<compile_context>
chip_gen: v6e
topology: v6e:2x2x1
jax: 0.10.0
libtpu: 0.0.40
codegen_flags: <defaults>
</compile_context>

<pallas_src>
import functools
import math

import jax
import jax.numpy as jnp
from jax.experimental import pallas as pl

BLK = 128  # lane width of each packed parameter column block / bias row


# ---------------------------------- fused kernel ----------------------------------

def _vit_kernel(x_ref, wE_ref, wF_ref, bias_ref, o_ref, *, num_heads, E, F, S, B):
    hd = E // num_heads

    # --- static, 128-lane-aligned views into the packed parameter slabs -----------
    def vec(row, n):                      # (1, n) bias / LayerNorm vector
        return bias_ref[row:row + 1, 0:n]

    def mat_E(idx, n):                    # (E, n) matrix with E rows
        return wE_ref[:, idx * BLK:idx * BLK + n]

    def mat_F(idx, n):                    # (F, n) matrix with F rows
        return wF_ref[:, idx * BLK:idx * BLK + n]

    e_wq, e_wkv, e_wo, e_w1 = mat_E(0, E), mat_E(1, 2 * E), mat_E(2, E), mat_E(3, F)
    d_wq, d_wkv, d_wo = mat_E(4, E), mat_E(5, 2 * E), mat_E(6, E)
    c_wq, c_wkv, c_wo = mat_E(7, E), mat_E(8, 2 * E), mat_E(9, E)
    d_w1 = mat_E(10, F)
    e_w2, d_w2 = mat_F(0, E), mat_F(1, E)

    e_bq, e_bkv, e_bo, e_b1, e_b2 = vec(0, E), vec(1, 2 * E), vec(2, E), vec(3, F), vec(4, E)
    e_ln1g, e_ln1b, e_ln2g, e_ln2b = vec(5, E), vec(6, E), vec(7, E), vec(8, E)
    d_bq, d_bkv, d_bo = vec(9, E), vec(10, 2 * E), vec(11, E)
    c_bq, c_bkv, c_bo = vec(12, E), vec(13, 2 * E), vec(14, E)
    d_b1, d_b2 = vec(15, F), vec(16, E)
    d_ln1g, d_ln1b = vec(17, E), vec(18, E)
    d_ln2g, d_ln2b = vec(19, E), vec(20, E)
    d_ln3g, d_ln3b = vec(21, E), vec(22, E)

    # ------------------------------ building blocks --------------------------------
    def mha(x_q, x_kv, wq, bq, wkv, bkv, wo, bo):
        # 1/sqrt(hd) is already folded into wq / bq on the host.
        q = jnp.dot(x_q, wq, preferred_element_type=jnp.float32) + bq           # (Sq, E)
        kv = jnp.dot(x_kv, wkv, preferred_element_type=jnp.float32) + bkv       # (Skv, 2E)
        k = kv[:, :E]
        v = kv[:, E:]
        heads = []
        for h in range(num_heads):
            lo = h * hd
            qh = q[:, lo:lo + hd]
            kh = k[:, lo:lo + hd]
            vh = v[:, lo:lo + hd]
            s = jax.lax.dot_general(qh, kh, (((1,), (1,)), ((), ())),
                                    preferred_element_type=jnp.float32)         # (Sq, Skv)
            s = s - jnp.max(s, axis=-1, keepdims=True)
            p = jnp.exp(s)
            p = p * pl.reciprocal(jnp.sum(p, axis=-1, keepdims=True), approx=True)
            heads.append(jnp.dot(p, vh, preferred_element_type=jnp.float32))    # (Sq, hd)
        att = jnp.concatenate(heads, axis=-1)                                   # (Sq, E)
        return jnp.dot(att, wo, preferred_element_type=jnp.float32) + bo        # single Wo matmul

    def add_ln(x, r, g, b):
        h = x + r
        mean = jnp.mean(h, axis=-1, keepdims=True)
        var = jnp.mean(jnp.square(h - mean), axis=-1, keepdims=True)
        return (h - mean) * jax.lax.rsqrt(var + 1e-5) * g + b

    def ffn(x, w1, b1, w2, b2):
        h = jnp.dot(x, w1, preferred_element_type=jnp.float32) + b1
        h = jnp.maximum(h, 0.0)
        return jnp.dot(h, w2, preferred_element_type=jnp.float32) + b2

    # ------------------------------ per-batch body ----------------------------------
    for b in range(B):                      # tiny static batch; unrolled, no grid steps
        x = x_ref[:, b, :]                  # (S, E)

        # encoder layer (post-norm)
        sa = mha(x, x, e_wq, e_bq, e_wkv, e_bkv, e_wo, e_bo)
        x1 = add_ln(x, sa, e_ln1g, e_ln1b)
        enc = add_ln(x1, ffn(x1, e_w1, e_b1, e_w2, e_b2), e_ln2g, e_ln2b)

        # decoder layer (tgt = enc, memory = enc)
        sa = mha(enc, enc, d_wq, d_bq, d_wkv, d_bkv, d_wo, d_bo)
        y = add_ln(enc, sa, d_ln1g, d_ln1b)
        ca = mha(y, enc, c_wq, c_bq, c_wkv, c_bkv, c_wo, c_bo)
        y = add_ln(y, ca, d_ln2g, d_ln2b)
        y = add_ln(y, ffn(y, d_w1, d_b1, d_w2, d_b2), d_ln3g, d_ln3b)

        o_ref[:, b, :] = y.astype(o_ref.dtype)


# ---------------------------------- host wrapper ----------------------------------

def vit_forward(x, wE, wF, bias, *, num_heads):
    """x: (S, B, E) -> (S, B, E).  Whole encoder+decoder in one grid=() pallas_call."""
    S, B, E = x.shape
    F = wF.shape[0]
    kernel = functools.partial(_vit_kernel, num_heads=num_heads, E=E, F=F, S=S, B=B)
    return pl.pallas_call(
        kernel,
        out_shape=jax.ShapeDtypeStruct((S, B, E), x.dtype),
        in_specs=[pl.BlockSpec(x.shape, lambda: (0, 0, 0)),
                  pl.BlockSpec(wE.shape, lambda: (0, 0)),
                  pl.BlockSpec(wF.shape, lambda: (0, 0)),
                  pl.BlockSpec(bias.shape, lambda: (0, 0))],
        out_specs=pl.BlockSpec((S, B, E), lambda: (0, 0, 0)),
    )(x, wE, wF, bias)


# --------------------------------- parameter packing ---------------------------------

def pack_params(params, E, F, num_heads):
    """Pack all weights into 3 slabs (one-time host constant folding):
       wE   (E, 11*128) : every matrix with E rows, each in its own 128-lane block
       wF   (F,  2*128) : the two (F, E) FFN down-projections
       bias (24, 128)   : every bias / LayerNorm vector, one per 128-lane row
       The attention scale 1/sqrt(head_dim) is folded into the Q weight/bias."""
    hd = E // num_heads
    scale = 1.0 / math.sqrt(hd)
    e, d = params["encoder"], params["decoder"]

    def split_qkv(wqkv, bqkv):
        return wqkv[:, :E] * scale, wqkv[:, E:], bqkv[:, :E] * scale, bqkv[:, E:]

    e_wq, e_wkv, e_bq, e_bkv = split_qkv(e["sa_wqkv"], e["sa_bqkv"])
    d_wq, d_wkv, d_bq, d_bkv = split_qkv(d["sa_wqkv"], d["sa_bqkv"])
    c_wq, c_wkv, c_bq, c_bkv = split_qkv(d["ca_wqkv"], d["ca_bqkv"])

    def pack_cols(mats):
        for m in mats:
            assert m.shape[1] <= BLK
        return jnp.concatenate(
            [jnp.pad(m, ((0, 0), (0, BLK - m.shape[1]))) for m in mats], axis=1)

    wE = pack_cols([e_wq, e_wkv, e["sa_wo"], e["w1"],
                    d_wq, d_wkv, d["sa_wo"],
                    c_wq, c_wkv, d["ca_wo"],
                    d["w1"]])
    wF = pack_cols([e["w2"], d["w2"]])

    vecs = [e_bq, e_bkv, e["sa_bo"], e["b1"], e["b2"],
            e["ln1_g"], e["ln1_b"], e["ln2_g"], e["ln2_b"],
            d_bq, d_bkv, d["sa_bo"],
            c_bq, c_bkv, d["ca_bo"],
            d["b1"], d["b2"],
            d["ln1_g"], d["ln1_b"], d["ln2_g"], d["ln2_b"], d["ln3_g"], d["ln3_b"]]
    rows = [jnp.pad(v, ((0, 0), (0, BLK - v.shape[1]))) for v in vecs]
    rows.append(jnp.zeros((1, BLK), jnp.float32))          # pad to 24 rows
    bias = jnp.concatenate(rows, axis=0)
    return wE, wF, bias


# --------------------------------- parameter init ---------------------------------

def make_params(key, E, hidden):
    keys = jax.random.split(key, 7)
    init = lambda k, shp: 0.02 * jax.random.normal(k, shp, jnp.float32)
    ones = lambda n=E: jnp.ones((1, n), jnp.float32)
    zeros = lambda n=E: jnp.zeros((1, n), jnp.float32)

    def mha_params(k):
        kq, ko = jax.random.split(k)
        return {"wqkv": init(kq, (E, 3 * E)), "bqkv": zeros(3 * E),
                "wo": init(ko, (E, E)), "bo": zeros(E)}

    enc_sa = mha_params(keys[0])
    encoder = {
        "sa_wqkv": enc_sa["wqkv"], "sa_bqkv": enc_sa["bqkv"],
        "sa_wo": enc_sa["wo"], "sa_bo": enc_sa["bo"],
        "w1": init(keys[1], (E, hidden)), "b1": zeros(hidden),
        "w2": init(keys[2], (hidden, E)), "b2": zeros(E),
        "ln1_g": ones(), "ln1_b": zeros(),
        "ln2_g": ones(), "ln2_b": zeros(),
    }
    dec_sa = mha_params(keys[3])
    dec_ca = mha_params(keys[4])
    decoder = {
        "sa_wqkv": dec_sa["wqkv"], "sa_bqkv": dec_sa["bqkv"],
        "sa_wo": dec_sa["wo"], "sa_bo": dec_sa["bo"],
        "ca_wqkv": dec_ca["wqkv"], "ca_bqkv": dec_ca["bqkv"],
        "ca_wo": dec_ca["wo"], "ca_bo": dec_ca["bo"],
        "w1": init(keys[5], (E, hidden)), "b1": zeros(hidden),
        "w2": init(keys[6], (hidden, E)), "b2": zeros(E),
        "ln1_g": ones(), "ln1_b": zeros(),
        "ln2_g": ones(), "ln2_b": zeros(),
        "ln3_g": ones(), "ln3_b": zeros(),
    }
    return {"encoder": encoder, "decoder": decoder}


# -------------------------------------- main --------------------------------------

if __name__ == "__main__":
    # ViT(in_channels=32, num_heads=4, hidden_dim=64); x: (S=8, B=2, E=32)
    S, B, E, H, HIDDEN = 8, 2, 32, 4, 64

    key = jax.random.PRNGKey(0)
    k_x, k_p = jax.random.split(key)
    x = jax.random.normal(k_x, (S, B, E), jnp.float32)
    params = make_params(k_p, E, HIDDEN)
    wE, wF, bias = pack_params(params, E, HIDDEN, H)    # one-time host constant fold

    fwd = jax.jit(functools.partial(vit_forward, num_heads=H))
    out = fwd(x, wE, wF, bias)
    jax.block_until_ready(out)

    assert out.shape == (S, B, E) and out.dtype == jnp.float32
    assert bool(jnp.all(jnp.isfinite(out)))
    print("KERNEL_OK")
</pallas_src>

<mosaic_0001>
module attributes {stable_mosaic.version = 11 : i64} {
  func.func @_vit_kernel(%arg0: memref<8x2x32xf32, #tpu.memory_space<vmem>>, %arg1: memref<32x1408xf32, #tpu.memory_space<vmem>>, %arg2: memref<64x256xf32, #tpu.memory_space<vmem>>, %arg3: memref<24x128xf32, #tpu.memory_space<vmem>>, %arg4: memref<8x2x32xf32, #tpu.memory_space<vmem>>) attributes {dimension_semantics = [], scalar_prefetch = 0 : i64, scratch_operands = 0 : i64, tpu.core_type = #tpu.core_type<tc>} {
    %c0 = arith.constant 0 : index
    %c0_0 = arith.constant 0 : index
    %0 = vector.load %arg1[%c0, %c0_0] : memref<32x1408xf32, #tpu.memory_space<vmem>>, vector<32x32xf32>
    %c0_1 = arith.constant 0 : index
    %c128 = arith.constant 128 : index
    %1 = vector.load %arg1[%c0_1, %c128] : memref<32x1408xf32, #tpu.memory_space<vmem>>, vector<32x64xf32>
    %c0_2 = arith.constant 0 : index
    %c256 = arith.constant 256 : index
    %2 = vector.load %arg1[%c0_2, %c256] : memref<32x1408xf32, #tpu.memory_space<vmem>>, vector<32x32xf32>
    %c0_3 = arith.constant 0 : index
    %c384 = arith.constant 384 : index
    %3 = vector.load %arg1[%c0_3, %c384] : memref<32x1408xf32, #tpu.memory_space<vmem>>, vector<32x64xf32>
    %c0_4 = arith.constant 0 : index
    %c512 = arith.constant 512 : index
    %4 = vector.load %arg1[%c0_4, %c512] : memref<32x1408xf32, #tpu.memory_space<vmem>>, vector<32x32xf32>
    %c0_5 = arith.constant 0 : index
    %c640 = arith.constant 640 : index
    %5 = vector.load %arg1[%c0_5, %c640] : memref<32x1408xf32, #tpu.memory_space<vmem>>, vector<32x64xf32>
    %c0_6 = arith.constant 0 : index
    %c768 = arith.constant 768 : index
    %6 = vector.load %arg1[%c0_6, %c768] : memref<32x1408xf32, #tpu.memory_space<vmem>>, vector<32x32xf32>
    %c0_7 = arith.constant 0 : index
    %c896 = arith.constant 896 : index
    %7 = vector.load %arg1[%c0_7, %c896] : memref<32x1408xf32, #tpu.memory_space<vmem>>, vector<32x32xf32>
    %c0_8 = arith.constant 0 : index
    %c1024 = arith.constant 1024 : index
    %8 = vector.load %arg1[%c0_8, %c1024] : memref<32x1408xf32, #tpu.memory_space<vmem>>, vector<32x64xf32>
    %c0_9 = arith.constant 0 : index
    %c1152 = arith.constant 1152 : index
    %9 = vector.load %arg1[%c0_9, %c1152] : memref<32x1408xf32, #tpu.memory_space<vmem>>, vector<32x32xf32>
    %c0_10 = arith.constant 0 : index
    %c1280 = arith.constant 1280 : index
    %10 = vector.load %arg1[%c0_10, %c1280] : memref<32x1408xf32, #tpu.memory_space<vmem>>, vector<32x64xf32>
    %c0_11 = arith.constant 0 : index
    %c0_12 = arith.constant 0 : index
    %11 = vector.load %arg2[%c0_11, %c0_12] : memref<64x256xf32, #tpu.memory_space<vmem>>, vector<64x32xf32>
    %c0_13 = arith.constant 0 : index
    %c128_14 = arith.constant 128 : index
    %12 = vector.load %arg2[%c0_13, %c128_14] : memref<64x256xf32, #tpu.memory_space<vmem>>, vector<64x32xf32>
    %c0_15 = arith.constant 0 : index
    %c0_16 = arith.constant 0 : index
    %13 = vector.load %arg3[%c0_15, %c0_16] : memref<24x128xf32, #tpu.memory_space<vmem>>, vector<1x32xf32>
    %c1 = arith.constant 1 : index
    %c0_17 = arith.constant 0 : index
    %14 = vector.load %arg3[%c1, %c0_17] : memref<24x128xf32, #tpu.memory_space<vmem>>, vector<1x64xf32>
    %c2 = arith.constant 2 : index
    %c0_18 = arith.constant 0 : index
    %15 = vector.load %arg3[%c2, %c0_18] : memref<24x128xf32, #tpu.memory_space<vmem>>, vector<1x32xf32>
    %c3 = arith.constant 3 : index
    %c0_19 = arith.constant 0 : index
    %16 = vector.load %arg3[%c3, %c0_19] : memref<24x128xf32, #tpu.memory_space<vmem>>, vector<1x64xf32>
    %c4 = arith.constant 4 : index
    %c0_20 = arith.constant 0 : index
    %17 = vector.load %arg3[%c4, %c0_20] : memref<24x128xf32, #tpu.memory_space<vmem>>, vector<1x32xf32>
    %c5 = arith.constant 5 : index
    %c0_21 = arith.constant 0 : index
    %18 = vector.load %arg3[%c5, %c0_21] : memref<24x128xf32, #tpu.memory_space<vmem>>, vector<1x32xf32>
    %c6 = arith.constant 6 : index
    %c0_22 = arith.constant 0 : index
    %19 = vector.load %arg3[%c6, %c0_22] : memref<24x128xf32, #tpu.memory_space<vmem>>, vector<1x32xf32>
    %c7 = arith.constant 7 : index
    %c0_23 = arith.constant 0 : index
    %20 = vector.load %arg3[%c7, %c0_23] : memref<24x128xf32, #tpu.memory_space<vmem>>, vector<1x32xf32>
    %c8 = arith.constant 8 : index
    %c0_24 = arith.constant 0 : index
    %21 = vector.load %arg3[%c8, %c0_24] : memref<24x128xf32, #tpu.memory_space<vmem>>, vector<1x32xf32>
    %c9 = arith.constant 9 : index
    %c0_25 = arith.constant 0 : index
    %22 = vector.load %arg3[%c9, %c0_25] : memref<24x128xf32, #tpu.memory_space<vmem>>, vector<1x32xf32>
    %c10 = arith.constant 10 : index
    %c0_26 = arith.constant 0 : index
    %23 = vector.load %arg3[%c10, %c0_26] : memref<24x128xf32, #tpu.memory_space<vmem>>, vector<1x64xf32>
    %c11 = arith.constant 11 : index
    %c0_27 = arith.constant 0 : index
    %24 = vector.load %arg3[%c11, %c0_27] : memref<24x128xf32, #tpu.memory_space<vmem>>, vector<1x32xf32>
    %c12 = arith.constant 12 : index
    %c0_28 = arith.constant 0 : index
    %25 = vector.load %arg3[%c12, %c0_28] : memref<24x128xf32, #tpu.memory_space<vmem>>, vector<1x32xf32>
    %c13 = arith.constant 13 : index
    %c0_29 = arith.constant 0 : index
    %26 = vector.load %arg3[%c13, %c0_29] : memref<24x128xf32, #tpu.memory_space<vmem>>, vector<1x64xf32>
    %c14 = arith.constant 14 : index
    %c0_30 = arith.constant 0 : index
    %27 = vector.load %arg3[%c14, %c0_30] : memref<24x128xf32, #tpu.memory_space<vmem>>, vector<1x32xf32>
    %c15 = arith.constant 15 : index
    %c0_31 = arith.constant 0 : index
    %28 = vector.load %arg3[%c15, %c0_31] : memref<24x128xf32, #tpu.memory_space<vmem>>, vector<1x64xf32>
    %c16 = arith.constant 16 : index
    %c0_32 = arith.constant 0 : index
    %29 = vector.load %arg3[%c16, %c0_32] : memref<24x128xf32, #tpu.memory_space<vmem>>, vector<1x32xf32>
    %c17 = arith.constant 17 : index
    %c0_33 = arith.constant 0 : index
    %30 = vector.load %arg3[%c17, %c0_33] : memref<24x128xf32, #tpu.memory_space<vmem>>, vector<1x32xf32>
    %c18 = arith.constant 18 : index
    %c0_34 = arith.constant 0 : index
    %31 = vector.load %arg3[%c18, %c0_34] : memref<24x128xf32, #tpu.memory_space<vmem>>, vector<1x32xf32>
    %c19 = arith.constant 19 : index
    %c0_35 = arith.constant 0 : index
    %32 = vector.load %arg3[%c19, %c0_35] : memref<24x128xf32, #tpu.memory_space<vmem>>, vector<1x32xf32>
    %c20 = arith.constant 20 : index
    %c0_36 = arith.constant 0 : index
    %33 = vector.load %arg3[%c20, %c0_36] : memref<24x128xf32, #tpu.memory_space<vmem>>, vector<1x32xf32>
    %c21 = arith.constant 21 : index
    %c0_37 = arith.constant 0 : index
    %34 = vector.load %arg3[%c21, %c0_37] : memref<24x128xf32, #tpu.memory_space<vmem>>, vector<1x32xf32>
    %c22 = arith.constant 22 : index
    %c0_38 = arith.constant 0 : index
    %35 = vector.load %arg3[%c22, %c0_38] : memref<24x128xf32, #tpu.memory_space<vmem>>, vector<1x32xf32>
    %c0_39 = arith.constant 0 : index
    %c0_40 = arith.constant 0 : index
    %c0_41 = arith.constant 0 : index
    %36 = vector.load %arg0[%c0_39, %c0_40, %c0_41] : memref<8x2x32xf32, #tpu.memory_space<vmem>>, vector<8x1x32xf32>
    %37 = vector.shape_cast %36 : vector<8x1x32xf32> to vector<8x32xf32>
    %cst = arith.constant dense<0.000000e+00> : vector<8x32xf32>
    %38 = tpu.matmul %37, %0, %cst {dimension_numbers = #tpu.dot_dimension_numbers<[1], [0], [0], [1], [0, 0, 1, 1], [], []>} : vector<8x32xf32>, vector<32x32xf32>, vector<8x32xf32> -> vector<8x32xf32>
    %39 = vector.broadcast %13 : vector<1x32xf32> to vector<8x32xf32>
    %40 = arith.addf %38, %39 : vector<8x32xf32>
    %cst_42 = arith.constant dense<0.000000e+00> : vector<8x64xf32>
    %41 = tpu.matmul %37, %1, %cst_42 {dimension_numbers = #tpu.dot_dimension_numbers<[1], [0], [0], [1], [0, 0, 1, 1], [], []>} : vector<8x32xf32>, vector<32x64xf32>, vector<8x64xf32> -> vector<8x64xf32>
    %42 = vector.broadcast %14 : vector<1x64xf32> to vector<8x64xf32>
    %43 = arith.addf %41, %42 : vector<8x64xf32>
    %44 = vector.extract_strided_slice %43 {offsets = [0, 0], sizes = [8, 32], strides = [1, 1]} : vector<8x64xf32> to vector<8x32xf32>
    %45 = vector.extract_strided_slice %43 {offsets = [0, 32], sizes = [8, 32], strides = [1, 1]} : vector<8x64xf32> to vector<8x32xf32>
    %46 = vector.extract_strided_slice %40 {offsets = [0, 0], sizes = [8, 8], strides = [1, 1]} : vector<8x32xf32> to vector<8x8xf32>
    %47 = vector.extract_strided_slice %44 {offsets = [0, 0], sizes = [8, 8], strides = [1, 1]} : vector<8x32xf32> to vector<8x8xf32>
    %48 = vector.extract_strided_slice %45 {offsets = [0, 0], sizes = [8, 8], strides = [1, 1]} : vector<8x32xf32> to vector<8x8xf32>
    %cst_43 = arith.constant dense<0.000000e+00> : vector<8x8xf32>
    %49 = tpu.matmul %46, %47, %cst_43 {dimension_numbers = #tpu.dot_dimension_numbers<[1], [1], [0], [0], [0, 0, 1, 0], [], []>} : vector<8x8xf32>, vector<8x8xf32>, vector<8x8xf32> -> vector<8x8xf32>
    %cst_44 = arith.constant dense<0xFF800000> : vector<8xf32>
    %50 = vector.multi_reduction <maximumf>, %49, %cst_44 [1] : vector<8x8xf32> to vector<8xf32>
    %51 = vector.shape_cast %50 : vector<8xf32> to vector<8x1xf32>
    %52 = vector.broadcast %51 : vector<8x1xf32> to vector<8x8xf32>
    %53 = arith.subf %49, %52 : vector<8x8xf32>
    %54 = math.exp %53 : vector<8x8xf32>
    %cst_45 = arith.constant dense<0.000000e+00> : vector<8xf32>
    %55 = vector.multi_reduction <add>, %54, %cst_45 [1] : vector<8x8xf32> to vector<8xf32>
    %56 = vector.shape_cast %55 : vector<8xf32> to vector<8x1xf32>
    %57 = tpu.reciprocal %56 {approx = true} : vector<8x1xf32> -> vector<8x1xf32>
    %58 = vector.broadcast %57 : vector<8x1xf32> to vector<8x8xf32>
    %59 = arith.mulf %54, %58 : vector<8x8xf32>
    %cst_46 = arith.constant dense<0.000000e+00> : vector<8x8xf32>
    %60 = tpu.matmul %59, %48, %cst_46 {dimension_numbers = #tpu.dot_dimension_numbers<[1], [0], [0], [1], [0, 0, 1, 1], [], []>} : vector<8x8xf32>, vector<8x8xf32>, vector<8x8xf32> -> vector<8x8xf32>
    %61 = vector.extract_strided_slice %40 {offsets = [0, 8], sizes = [8, 8], strides = [1, 1]} : vector<8x32xf32> to vector<8x8xf32>
    %62 = vector.extract_strided_slice %44 {offsets = [0, 8], sizes = [8, 8], strides = [1, 1]} : vector<8x32xf32> to vector<8x8xf32>
    %63 = vector.extract_strided_slice %45 {offsets = [0, 8], sizes = [8, 8], strides = [1, 1]} : vector<8x32xf32> to vector<8x8xf32>
    %cst_47 = arith.constant dense<0.000000e+00> : vector<8x8xf32>
    %64 = tpu.matmul %61, %62, %cst_47 {dimension_numbers = #tpu.dot_dimension_numbers<[1], [1], [0], [0], [0, 0, 1, 0], [], []>} : vector<8x8xf32>, vector<8x8xf32>, vector<8x8xf32> -> vector<8x8xf32>
    %cst_48 = arith.constant dense<0xFF800000> : vector<8xf32>
    %65 = vector.multi_reduction <maximumf>, %64, %cst_48 [1] : vector<8x8xf32> to vector<8xf32>
    %66 = vector.shape_cast %65 : vector<8xf32> to vector<8x1xf32>
    %67 = vector.broadcast %66 : vector<8x1xf32> to vector<8x8xf32>
    %68 = arith.subf %64, %67 : vector<8x8xf32>
    %69 = math.exp %68 : vector<8x8xf32>
    %cst_49 = arith.constant dense<0.000000e+00> : vector<8xf32>
    %70 = vector.multi_reduction <add>, %69, %cst_49 [1] : vector<8x8xf32> to vector<8xf32>
    %71 = vector.shape_cast %70 : vector<8xf32> to vector<8x1xf32>
    %72 = tpu.reciprocal %71 {approx = true} : vector<8x1xf32> -> vector<8x1xf32>
    %73 = vector.broadcast %72 : vector<8x1xf32> to vector<8x8xf32>
    %74 = arith.mulf %69, %73 : vector<8x8xf32>
    %cst_50 = arith.constant dense<0.000000e+00> : vector<8x8xf32>
    %75 = tpu.matmul %74, %63, %cst_50 {dimension_numbers = #tpu.dot_dimension_numbers<[1], [0], [0], [1], [0, 0, 1, 1], [], []>} : vector<8x8xf32>, vector<8x8xf32>, vector<8x8xf32> -> vector<8x8xf32>
    %76 = vector.extract_strided_slice %40 {offsets = [0, 16], sizes = [8, 8], strides = [1, 1]} : vector<8x32xf32> to vector<8x8xf32>
    %77 = vector.extract_strided_slice %44 {offsets = [0, 16], sizes = [8, 8], strides = [1, 1]} : vector<8x32xf32> to vector<8x8xf32>
    %78 = vector.extract_strided_slice %45 {offsets = [0, 16], sizes = [8, 8], strides = [1, 1]} : vector<8x32xf32> to vector<8x8xf32>
    %cst_51 = arith.constant dense<0.000000e+00> : vector<8x8xf32>
    %79 = tpu.matmul %76, %77, %cst_51 {dimension_numbers = #tpu.dot_dimension_numbers<[1], [1], [0], [0], [0, 0, 1, 0], [], []>} : vector<8x8xf32>, vector<8x8xf32>, vector<8x8xf32> -> vector<8x8xf32>
    %cst_52 = arith.constant dense<0xFF800000> : vector<8xf32>
    %80 = vector.multi_reduction <maximumf>, %79, %cst_52 [1] : vector<8x8xf32> to vector<8xf32>
    %81 = vector.shape_cast %80 : vector<8xf32> to vector<8x1xf32>
    %82 = vector.broadcast %81 : vector<8x1xf32> to vector<8x8xf32>
    %83 = arith.subf %79, %82 : vector<8x8xf32>
    %84 = math.exp %83 : vector<8x8xf32>
    %cst_53 = arith.constant dense<0.000000e+00> : vector<8xf32>
    %85 = vector.multi_reduction <add>, %84, %cst_53 [1] : vector<8x8xf32> to vector<8xf32>
    %86 = vector.shape_cast %85 : vector<8xf32> to vector<8x1xf32>
    %87 = tpu.reciprocal %86 {approx = true} : vector<8x1xf32> -> vector<8x1xf32>
    %88 = vector.broadcast %87 : vector<8x1xf32> to vector<8x8xf32>
    %89 = arith.mulf %84, %88 : vector<8x8xf32>
    %cst_54 = arith.constant dense<0.000000e+00> : vector<8x8xf32>
    %90 = tpu.matmul %89, %78, %cst_54 {dimension_numbers = #tpu.dot_dimension_numbers<[1], [0], [0], [1], [0, 0, 1, 1], [], []>} : vector<8x8xf32>, vector<8x8xf32>, vector<8x8xf32> -> vector<8x8xf32>
    %91 = vector.extract_strided_slice %40 {offsets = [0, 24], sizes = [8, 8], strides = [1, 1]} : vector<8x32xf32> to vector<8x8xf32>
    %92 = vector.extract_strided_slice %44 {offsets = [0, 24], sizes = [8, 8], strides = [1, 1]} : vector<8x32xf32> to vector<8x8xf32>
    %93 = vector.extract_strided_slice %45 {offsets = [0, 24], sizes = [8, 8], strides = [1, 1]} : vector<8x32xf32> to vector<8x8xf32>
    %cst_55 = arith.constant dense<0.000000e+00> : vector<8x8xf32>
    %94 = tpu.matmul %91, %92, %cst_55 {dimension_numbers = #tpu.dot_dimension_numbers<[1], [1], [0], [0], [0, 0, 1, 0], [], []>} : vector<8x8xf32>, vector<8x8xf32>, vector<8x8xf32> -> vector<8x8xf32>
    %cst_56 = arith.constant dense<0xFF800000> : vector<8xf32>
    %95 = vector.multi_reduction <maximumf>, %94, %cst_56 [1] : vector<8x8xf32> to vector<8xf32>
    %96 = vector.shape_cast %95 : vector<8xf32> to vector<8x1xf32>
    %97 = vector.broadcast %96 : vector<8x1xf32> to vector<8x8xf32>
    %98 = arith.subf %94, %97 : vector<8x8xf32>
    %99 = math.exp %98 : vector<8x8xf32>
    %cst_57 = arith.constant dense<0.000000e+00> : vector<8xf32>
    %100 = vector.multi_reduction <add>, %99, %cst_57 [1] : vector<8x8xf32> to vector<8xf32>
    %101 = vector.shape_cast %100 : vector<8xf32> to vector<8x1xf32>
    %102 = tpu.reciprocal %101 {approx = true} : vector<8x1xf32> -> vector<8x1xf32>
    %103 = vector.broadcast %102 : vector<8x1xf32> to vector<8x8xf32>
    %104 = arith.mulf %99, %103 : vector<8x8xf32>
    %cst_58 = arith.constant dense<0.000000e+00> : vector<8x8xf32>
    %105 = tpu.matmul %104, %93, %cst_58 {dimension_numbers = #tpu.dot_dimension_numbers<[1], [0], [0], [1], [0, 0, 1, 1], [], []>} : vector<8x8xf32>, vector<8x8xf32>, vector<8x8xf32> -> vector<8x8xf32>
    %106 = tpu.concatenate %60, %75, %90, %105 in 1 : vector<8x8xf32>, vector<8x8xf32>, vector<8x8xf32>, vector<8x8xf32> -> vector<8x32xf32>
    %cst_59 = arith.constant dense<0.000000e+00> : vector<8x32xf32>
    %107 = tpu.matmul %106, %2, %cst_59 {dimension_numbers = #tpu.dot_dimension_numbers<[1], [0], [0], [1], [0, 0, 1, 1], [], []>} : vector<8x32xf32>, vector<32x32xf32>, vector<8x32xf32> -> vector<8x32xf32>
    %108 = vector.broadcast %15 : vector<1x32xf32> to vector<8x32xf32>
    %109 = arith.addf %107, %108 : vector<8x32xf32>
    %110 = arith.addf %37, %109 : vector<8x32xf32>
    %cst_60 = arith.constant dense<0.000000e+00> : vector<8xf32>
    %111 = vector.multi_reduction <add>, %110, %cst_60 [1] : vector<8x32xf32> to vector<8xf32>
    %112 = vector.shape_cast %111 : vector<8xf32> to vector<8x1xf32>
    %cst_61 = arith.constant 3.200000e+01 : f32
    %113 = vector.broadcast %cst_61 : f32 to vector<8x1xf32>
    %114 = arith.divf %112, %113 : vector<8x1xf32>
    %115 = vector.broadcast %114 : vector<8x1xf32> to vector<8x32xf32>
    %116 = arith.subf %110, %115 : vector<8x32xf32>
    %117 = arith.mulf %116, %116 : vector<8x32xf32>
    %cst_62 = arith.constant dense<0.000000e+00> : vector<8xf32>
    %118 = vector.multi_reduction <add>, %117, %cst_62 [1] : vector<8x32xf32> to vector<8xf32>
    %119 = vector.shape_cast %118 : vector<8xf32> to vector<8x1xf32>
    %cst_63 = arith.constant 3.200000e+01 : f32
    %120 = vector.broadcast %cst_63 : f32 to vector<8x1xf32>
    %121 = arith.divf %119, %120 : vector<8x1xf32>
    %122 = vector.broadcast %114 : vector<8x1xf32> to vector<8x32xf32>
    %123 = arith.subf %110, %122 : vector<8x32xf32>
    %cst_64 = arith.constant 9.99999974E-6 : f32
    %124 = vector.broadcast %cst_64 : f32 to vector<8x1xf32>
    %125 = arith.addf %121, %124 : vector<8x1xf32>
    %126 = math.rsqrt %125 : vector<8x1xf32>
    %127 = vector.broadcast %126 : vector<8x1xf32> to vector<8x32xf32>
    %128 = arith.mulf %123, %127 : vector<8x32xf32>
    %129 = vector.broadcast %18 : vector<1x32xf32> to vector<8x32xf32>
    %130 = arith.mulf %128, %129 : vector<8x32xf32>
    %131 = vector.broadcast %19 : vector<1x32xf32> to vector<8x32xf32>
    %132 = arith.addf %130, %131 : vector<8x32xf32>
    %cst_65 = arith.constant dense<0.000000e+00> : vector<8x64xf32>
    %133 = tpu.matmul %132, %3, %cst_65 {dimension_numbers = #tpu.dot_dimension_numbers<[1], [0], [0], [1], [0, 0, 1, 1], [], []>} : vector<8x32xf32>, vector<32x64xf32>, vector<8x64xf32> -> vector<8x64xf32>
    %134 = vector.broadcast %16 : vector<1x64xf32> to vector<8x64xf32>
    %135 = arith.addf %133, %134 : vector<8x64xf32>
    %cst_66 = arith.constant 0.000000e+00 : f32
    %136 = vector.broadcast %cst_66 : f32 to vector<8x64xf32>
    %137 = arith.maximumf %135, %136 : vector<8x64xf32>
    %cst_67 = arith.constant dense<0.000000e+00> : vector<8x32xf32>
    %138 = tpu.matmul %137, %11, %cst_67 {dimension_numbers = #tpu.dot_dimension_numbers<[1], [0], [0], [1], [0, 0, 1, 1], [], []>} : vector<8x64xf32>, vector<64x32xf32>, vector<8x32xf32> -> vector<8x32xf32>
    %139 = vector.broadcast %17 : vector<1x32xf32> to vector<8x32xf32>
    %140 = arith.addf %138, %139 : vector<8x32xf32>
    %141 = arith.addf %132, %140 : vector<8x32xf32>
    %cst_68 = arith.constant dense<0.000000e+00> : vector<8xf32>
    %142 = vector.multi_reduction <add>, %141, %cst_68 [1] : vector<8x32xf32> to vector<8xf32>
    %143 = vector.shape_cast %142 : vector<8xf32> to vector<8x1xf32>
    %cst_69 = arith.constant 3.200000e+01 : f32
    %144 = vector.broadcast %cst_69 : f32 to vector<8x1xf32>
    %145 = arith.divf %143, %144 : vector<8x1xf32>
    %146 = vector.broadcast %145 : vector<8x1xf32> to vector<8x32xf32>
    %147 = arith.subf %141, %146 : vector<8x32xf32>
    %148 = arith.mulf %147, %147 : vector<8x32xf32>
    %cst_70 = arith.constant dense<0.000000e+00> : vector<8xf32>
    %149 = vector.multi_reduction <add>, %148, %cst_70 [1] : vector<8x32xf32> to vector<8xf32>
    %150 = vector.shape_cast %149 : vector<8xf32> to vector<8x1xf32>
    %cst_71 = arith.constant 3.200000e+01 : f32
    %151 = vector.broadcast %cst_71 : f32 to vector<8x1xf32>
    %152 = arith.divf %150, %151 : vector<8x1xf32>
    %153 = vector.broadcast %145 : vector<8x1xf32> to vector<8x32xf32>
    %154 = arith.subf %141, %153 : vector<8x32xf32>
    %cst_72 = arith.constant 9.99999974E-6 : f32
    %155 = vector.broadcast %cst_72 : f32 to vector<8x1xf32>
    %156 = arith.addf %152, %155 : vector<8x1xf32>
    %157 = math.rsqrt %156 : vector<8x1xf32>
    %158 = vector.broadcast %157 : vector<8x1xf32> to vector<8x32xf32>
    %159 = arith.mulf %154, %158 : vector<8x32xf32>
    %160 = vector.broadcast %20 : vector<1x32xf32> to vector<8x32xf32>
    %161 = arith.mulf %159, %160 : vector<8x32xf32>
    %162 = vector.broadcast %21 : vector<1x32xf32> to vector<8x32xf32>
    %163 = arith.addf %161, %162 : vector<8x32xf32>
    %cst_73 = arith.constant dense<0.000000e+00> : vector<8x32xf32>
    %164 = tpu.matmul %163, %4, %cst_73 {dimension_numbers = #tpu.dot_dimension_numbers<[1], [0], [0], [1], [0, 0, 1, 1], [], []>} : vector<8x32xf32>, vector<32x32xf32>, vector<8x32xf32> -> vector<8x32xf32>
    %165 = vector.broadcast %22 : vector<1x32xf32> to vector<8x32xf32>
    %166 = arith.addf %164, %165 : vector<8x32xf32>
    %cst_74 = arith.constant dense<0.000000e+00> : vector<8x64xf32>
    %167 = tpu.matmul %163, %5, %cst_74 {dimension_numbers = #tpu.dot_dimension_numbers<[1], [0], [0], [1], [0, 0, 1, 1], [], []>} : vector<8x32xf32>, vector<32x64xf32>, vector<8x64xf32> -> vector<8x64xf32>
    %168 = vector.broadcast %23 : vector<1x64xf32> to vector<8x64xf32>
    %169 = arith.addf %167, %168 : vector<8x64xf32>
    %170 = vector.extract_strided_slice %169 {offsets = [0, 0], sizes = [8, 32], strides = [1, 1]} : vector<8x64xf32> to vector<8x32xf32>
    %171 = vector.extract_strided_slice %169 {offsets = [0, 32], sizes = [8, 32], strides = [1, 1]} : vector<8x64xf32> to vector<8x32xf32>
    %172 = vector.extract_strided_slice %166 {offsets = [0, 0], sizes = [8, 8], strides = [1, 1]} : vector<8x32xf32> to vector<8x8xf32>
    %173 = vector.extract_strided_slice %170 {offsets = [0, 0], sizes = [8, 8], strides = [1, 1]} : vector<8x32xf32> to vector<8x8xf32>
    %174 = vector.extract_strided_slice %171 {offsets = [0, 0], sizes = [8, 8], strides = [1, 1]} : vector<8x32xf32> to vector<8x8xf32>
    %cst_75 = arith.constant dense<0.000000e+00> : vector<8x8xf32>
    %175 = tpu.matmul %172, %173, %cst_75 {dimension_numbers = #tpu.dot_dimension_numbers<[1], [1], [0], [0], [0, 0, 1, 0], [], []>} : vector<8x8xf32>, vector<8x8xf32>, vector<8x8xf32> -> vector<8x8xf32>
    %cst_76 = arith.constant dense<0xFF800000> : vector<8xf32>
    %176 = vector.multi_reduction <maximumf>, %175, %cst_76 [1] : vector<8x8xf32> to vector<8xf32>
    %177 = vector.shape_cast %176 : vector<8xf32> to vector<8x1xf32>
    %178 = vector.broadcast %177 : vector<8x1xf32> to vector<8x8xf32>
    %179 = arith.subf %175, %178 : vector<8x8xf32>
    %180 = math.exp %179 : vector<8x8xf32>
    %cst_77 = arith.constant dense<0.000000e+00> : vector<8xf32>
    %181 = vector.multi_reduction <add>, %180, %cst_77 [1] : vector<8x8xf32> to vector<8xf32>
    %182 = vector.shape_cast %181 : vector<8xf32> to vector<8x1xf32>
    %183 = tpu.reciprocal %182 {approx = true} : vector<8x1xf32> -> vector<8x1xf32>
    %184 = vector.broadcast %183 : vector<8x1xf32> to vector<8x8xf32>
    %185 = arith.mulf %180, %184 : vector<8x8xf32>
    %cst_78 = arith.constant dense<0.000000e+00> : vector<8x8xf32>
    %186 = tpu.matmul %185, %174, %cst_78 {dimension_numbers = #tpu.dot_dimension_numbers<[1], [0], [0], [1], [0, 0, 1, 1], [], []>} : vector<8x8xf32>, vector<8x8xf32>, vector<8x8xf32> -> vector<8x8xf32>
    %187 = vector.extract_strided_slice %166 {offsets = [0, 8], sizes = [8, 8], strides = [1, 1]} : vector<8x32xf32> to vector<8x8xf32>
    %188 = vector.extract_strided_slice %170 {offsets = [0, 8], sizes = [8, 8], strides = [1, 1]} : vector<8x32xf32> to vector<8x8xf32>
    %189 = vector.extract_strided_slice %171 {offsets = [0, 8], sizes = [8, 8], strides = [1, 1]} : vector<8x32xf32> to vector<8x8xf32>
    %cst_79 = arith.constant dense<0.000000e+00> : vector<8x8xf32>
    %190 = tpu.matmul %187, %188, %cst_79 {dimension_numbers = #tpu.dot_dimension_numbers<[1], [1], [0], [0], [0, 0, 1, 0], [], []>} : vector<8x8xf32>, vector<8x8xf32>, vector<8x8xf32> -> vector<8x8xf32>
    %cst_80 = arith.constant dense<0xFF800000> : vector<8xf32>
    %191 = vector.multi_reduction <maximumf>, %190, %cst_80 [1] : vector<8x8xf32> to vector<8xf32>
    %192 = vector.shape_cast %191 : vector<8xf32> to vector<8x1xf32>
    %193 = vector.broadcast %192 : vector<8x1xf32> to vector<8x8xf32>
    %194 = arith.subf %190, %193 : vector<8x8xf32>
    %195 = math.exp %194 : vector<8x8xf32>
    %cst_81 = arith.constant dense<0.000000e+00> : vector<8xf32>
    %196 = vector.multi_reduction <add>, %195, %cst_81 [1] : vector<8x8xf32> to vector<8xf32>
    %197 = vector.shape_cast %196 : vector<8xf32> to vector<8x1xf32>
    %198 = tpu.reciprocal %197 {approx = true} : vector<8x1xf32> -> vector<8x1xf32>
    %199 = vector.broadcast %198 : vector<8x1xf32> to vector<8x8xf32>
    %200 = arith.mulf %195, %199 : vector<8x8xf32>
    %cst_82 = arith.constant dense<0.000000e+00> : vector<8x8xf32>
    %201 = tpu.matmul %200, %189, %cst_82 {dimension_numbers = #tpu.dot_dimension_numbers<[1], [0], [0], [1], [0, 0, 1, 1], [], []>} : vector<8x8xf32>, vector<8x8xf32>, vector<8x8xf32> -> vector<8x8xf32>
    %202 = vector.extract_strided_slice %166 {offsets = [0, 16], sizes = [8, 8], strides = [1, 1]} : vector<8x32xf32> to vector<8x8xf32>
    %203 = vector.extract_strided_slice %170 {offsets = [0, 16], sizes = [8, 8], strides = [1, 1]} : vector<8x32xf32> to vector<8x8xf32>
    %204 = vector.extract_strided_slice %171 {offsets = [0, 16], sizes = [8, 8], strides = [1, 1]} : vector<8x32xf32> to vector<8x8xf32>
    %cst_83 = arith.constant dense<0.000000e+00> : vector<8x8xf32>
    %205 = tpu.matmul %202, %203, %cst_83 {dimension_numbers = #tpu.dot_dimension_numbers<[1], [1], [0], [0], [0, 0, 1, 0], [], []>} : vector<8x8xf32>, vector<8x8xf32>, vector<8x8xf32> -> vector<8x8xf32>
    %cst_84 = arith.constant dense<0xFF800000> : vector<8xf32>
    %206 = vector.multi_reduction <maximumf>, %205, %cst_84 [1] : vector<8x8xf32> to vector<8xf32>
    %207 = vector.shape_cast %206 : vector<8xf32> to vector<8x1xf32>
    %208 = vector.broadcast %207 : vector<8x1xf32> to vector<8x8xf32>
    %209 = arith.subf %205, %208 : vector<8x8xf32>
    %210 = math.exp %209 : vector<8x8xf32>
    %cst_85 = arith.constant dense<0.000000e+00> : vector<8xf32>
    %211 = vector.multi_reduction <add>, %210, %cst_85 [1] : vector<8x8xf32> to vector<8xf32>
    %212 = vector.shape_cast %211 : vector<8xf32> to vector<8x1xf32>
    %213 = tpu.reciprocal %212 {approx = true} : vector<8x1xf32> -> vector<8x1xf32>
    %214 = vector.broadcast %213 : vector<8x1xf32> to vector<8x8xf32>
    %215 = arith.mulf %210, %214 : vector<8x8xf32>
    %cst_86 = arith.constant dense<0.000000e+00> : vector<8x8xf32>
    %216 = tpu.matmul %215, %204, %cst_86 {dimension_numbers = #tpu.dot_dimension_numbers<[1], [0], [0], [1], [0, 0, 1, 1], [], []>} : vector<8x8xf32>, vector<8x8xf32>, vector<8x8xf32> -> vector<8x8xf32>
    %217 = vector.extract_strided_slice %166 {offsets = [0, 24], sizes = [8, 8], strides = [1, 1]} : vector<8x32xf32> to vector<8x8xf32>
    %218 = vector.extract_strided_slice %170 {offsets = [0, 24], sizes = [8, 8], strides = [1, 1]} : vector<8x32xf32> to vector<8x8xf32>
    %219 = vector.extract_strided_slice %171 {offsets = [0, 24], sizes = [8, 8], strides = [1, 1]} : vector<8x32xf32> to vector<8x8xf32>
    %cst_87 = arith.constant dense<0.000000e+00> : vector<8x8xf32>
    %220 = tpu.matmul %217, %218, %cst_87 {dimension_numbers = #tpu.dot_dimension_numbers<[1], [1], [0], [0], [0, 0, 1, 0], [], []>} : vector<8x8xf32>, vector<8x8xf32>, vector<8x8xf32> -> vector<8x8xf32>
    %cst_88 = arith.constant dense<0xFF800000> : vector<8xf32>
    %221 = vector.multi_reduction <maximumf>, %220, %cst_88 [1] : vector<8x8xf32> to vector<8xf32>
    %222 = vector.shape_cast %221 : vector<8xf32> to vector<8x1xf32>
    %223 = vector.broadcast %222 : vector<8x1xf32> to vector<8x8xf32>
    %224 = arith.subf %220, %223 : vector<8x8xf32>
    %225 = math.exp %224 : vector<8x8xf32>
    %cst_89 = arith.constant dense<0.000000e+00> : vector<8xf32>
    %226 = vector.multi_reduction <add>, %225, %cst_89 [1] : vector<8x8xf32> to vector<8xf32>
    %227 = vector.shape_cast %226 : vector<8xf32> to vector<8x1xf32>
    %228 = tpu.reciprocal %227 {approx = true} : vector<8x1xf32> -> vector<8x1xf32>
    %229 = vector.broadcast %228 : vector<8x1xf32> to vector<8x8xf32>
    %230 = arith.mulf %225, %229 : vector<8x8xf32>
    %cst_90 = arith.constant dense<0.000000e+00> : vector<8x8xf32>
    %231 = tpu.matmul %230, %219, %cst_90 {dimension_numbers = #tpu.dot_dimension_numbers<[1], [0], [0], [1], [0, 0, 1, 1], [], []>} : vector<8x8xf32>, vector<8x8xf32>, vector<8x8xf32> -> vector<8x8xf32>
    %232 = tpu.concatenate %186, %201, %216, %231 in 1 : vector<8x8xf32>, vector<8x8xf32>, vector<8x8xf32>, vector<8x8xf32> -> vector<8x32xf32>
    %cst_91 = arith.constant dense<0.000000e+00> : vector<8x32xf32>
    %233 = tpu.matmul %232, %6, %cst_91 {dimension_numbers = #tpu.dot_dimension_numbers<[1], [0], [0], [1], [0, 0, 1, 1], [], []>} : vector<8x32xf32>, vector<32x32xf32>, vector<8x32xf32> -> vector<8x32xf32>
    %234 = vector.broadcast %24 : vector<1x32xf32> to vector<8x32xf32>
    %235 = arith.addf %233, %234 : vector<8x32xf32>
    %236 = arith.addf %163, %235 : vector<8x32xf32>
    %cst_92 = arith.constant dense<0.000000e+00> : vector<8xf32>
    %237 = vector.multi_reduction <add>, %236, %cst_92 [1] : vector<8x32xf32> to vector<8xf32>
    %238 = vector.shape_cast %237 : vector<8xf32> to vector<8x1xf32>
    %cst_93 = arith.constant 3.200000e+01 : f32
    %239 = vector.broadcast %cst_93 : f32 to vector<8x1xf32>
    %240 = arith.divf %238, %239 : vector<8x1xf32>
    %241 = vector.broadcast %240 : vector<8x1xf32> to vector<8x32xf32>
    %242 = arith.subf %236, %241 : vector<8x32xf32>
    %243 = arith.mulf %242, %242 : vector<8x32xf32>
    %cst_94 = arith.constant dense<0.000000e+00> : vector<8xf32>
    %244 = vector.multi_reduction <add>, %243, %cst_94 [1] : vector<8x32xf32> to vector<8xf32>
    %245 = vector.shape_cast %244 : vector<8xf32> to vector<8x1xf32>
    %cst_95 = arith.constant 3.200000e+01 : f32
    %246 = vector.broadcast %cst_95 : f32 to vector<8x1xf32>
    %247 = arith.divf %245, %246 : vector<8x1xf32>
    %248 = vector.broadcast %240 : vector<8x1xf32> to vector<8x32xf32>
    %249 = arith.subf %236, %248 : vector<8x32xf32>
    %cst_96 = arith.constant 9.99999974E-6 : f32
    %250 = vector.broadcast %cst_96 : f32 to vector<8x1xf32>
    %251 = arith.addf %247, %250 : vector<8x1xf32>
    %252 = math.rsqrt %251 : vector<8x1xf32>
    %253 = vector.broadcast %252 : vector<8x1xf32> to vector<8x32xf32>
    %254 = arith.mulf %249, %253 : vector<8x32xf32>
    %255 = vector.broadcast %30 : vector<1x32xf32> to vector<8x32xf32>
    %256 = arith.mulf %254, %255 : vector<8x32xf32>
    %257 = vector.broadcast %31 : vector<1x32xf32> to vector<8x32xf32>
    %258 = arith.addf %256, %257 : vector<8x32xf32>
    %cst_97 = arith.constant dense<0.000000e+00> : vector<8x32xf32>
    %259 = tpu.matmul %258, %7, %cst_97 {dimension_numbers = #tpu.dot_dimension_numbers<[1], [0], [0], [1], [0, 0, 1, 1], [], []>} : vector<8x32xf32>, vector<32x32xf32>, vector<8x32xf32> -> vector<8x32xf32>
    %260 = vector.broadcast %25 : vector<1x32xf32> to vector<8x32xf32>
    %261 = arith.addf %259, %260 : vector<8x32xf32>
    %cst_98 = arith.constant dense<0.000000e+00> : vector<8x64xf32>
    %262 = tpu.matmul %163, %8, %cst_98 {dimension_numbers = #tpu.dot_dimension_numbers<[1], [0], [0], [1], [0, 0, 1, 1], [], []>} : vector<8x32xf32>, vector<32x64xf32>, vector<8x64xf32> -> vector<8x64xf32>
    %263 = vector.broadcast %26 : vector<1x64xf32> to vector<8x64xf32>
    %264 = arith.addf %262, %263 : vector<8x64xf32>
    %265 = vector.extract_strided_slice %264 {offsets = [0, 0], sizes = [8, 32], strides = [1, 1]} : vector<8x64xf32> to vector<8x32xf32>
    %266 = vector.extract_strided_slice %264 {offsets = [0, 32], sizes = [8, 32], strides = [1, 1]} : vector<8x64xf32> to vector<8x32xf32>
    %267 = vector.extract_strided_slice %261 {offsets = [0, 0], sizes = [8, 8], strides = [1, 1]} : vector<8x32xf32> to vector<8x8xf32>
    %268 = vector.extract_strided_slice %265 {offsets = [0, 0], sizes = [8, 8], strides = [1, 1]} : vector<8x32xf32> to vector<8x8xf32>
    %269 = vector.extract_strided_slice %266 {offsets = [0, 0], sizes = [8, 8], strides = [1, 1]} : vector<8x32xf32> to vector<8x8xf32>
    %cst_99 = arith.constant dense<0.000000e+00> : vector<8x8xf32>
    %270 = tpu.matmul %267, %268, %cst_99 {dimension_numbers = #tpu.dot_dimension_numbers<[1], [1], [0], [0], [0, 0, 1, 0], [], []>} : vector<8x8xf32>, vector<8x8xf32>, vector<8x8xf32> -> vector<8x8xf32>
    %cst_100 = arith.constant dense<0xFF800000> : vector<8xf32>
    %271 = vector.multi_reduction <maximumf>, %270, %cst_100 [1] : vector<8x8xf32> to vector<8xf32>
    %272 = vector.shape_cast %271 : vector<8xf32> to vector<8x1xf32>
    %273 = vector.broadcast %272 : vector<8x1xf32> to vector<8x8xf32>
    %274 = arith.subf %270, %273 : vector<8x8xf32>
    %275 = math.exp %274 : vector<8x8xf32>
    %cst_101 = arith.constant dense<0.000000e+00> : vector<8xf32>
    %276 = vector.multi_reduction <add>, %275, %cst_101 [1] : vector<8x8xf32> to vector<8xf32>
    %277 = vector.shape_cast %276 : vector<8xf32> to vector<8x1xf32>
    %278 = tpu.reciprocal %277 {approx = true} : vector<8x1xf32> -> vector<8x1xf32>
    %279 = vector.broadcast %278 : vector<8x1xf32> to vector<8x8xf32>
    %280 = arith.mulf %275, %279 : vector<8x8xf32>
    %cst_102 = arith.constant dense<0.000000e+00> : vector<8x8xf32>
    %281 = tpu.matmul %280, %269, %cst_102 {dimension_numbers = #tpu.dot_dimension_numbers<[1], [0], [0], [1], [0, 0, 1, 1], [], []>} : vector<8x8xf32>, vector<8x8xf32>, vector<8x8xf32> -> vector<8x8xf32>
    %282 = vector.extract_strided_slice %261 {offsets = [0, 8], sizes = [8, 8], strides = [1, 1]} : vector<8x32xf32> to vector<8x8xf32>
    %283 = vector.extract_strided_slice %265 {offsets = [0, 8], sizes = [8, 8], strides = [1, 1]} : vector<8x32xf32> to vector<8x8xf32>
    %284 = vector.extract_strided_slice %266 {offsets = [0, 8], sizes = [8, 8], strides = [1, 1]} : vector<8x32xf32> to vector<8x8xf32>
    %cst_103 = arith.constant dense<0.000000e+00> : vector<8x8xf32>
    %285 = tpu.matmul %282, %283, %cst_103 {dimension_numbers = #tpu.dot_dimension_numbers<[1], [1], [0], [0], [0, 0, 1, 0], [], []>} : vector<8x8xf32>, vector<8x8xf32>, vector<8x8xf32> -> vector<8x8xf32>
    %cst_104 = arith.constant dense<0xFF800000> : vector<8xf32>
    %286 = vector.multi_reduction <maximumf>, %285, %cst_104 [1] : vector<8x8xf32> to vector<8xf32>
    %287 = vector.shape_cast %286 : vector<8xf32> to vector<8x1xf32>
    %288 = vector.broadcast %287 : vector<8x1xf32> to vector<8x8xf32>
    %289 = arith.subf %285, %288 : vector<8x8xf32>
    %290 = math.exp %289 : vector<8x8xf32>
    %cst_105 = arith.constant dense<0.000000e+00> : vector<8xf32>
    %291 = vector.multi_reduction <add>, %290, %cst_105 [1] : vector<8x8xf32> to vector<8xf32>
    %292 = vector.shape_cast %291 : vector<8xf32> to vector<8x1xf32>
    %293 = tpu.reciprocal %292 {approx = true} : vector<8x1xf32> -> vector<8x1xf32>
    %294 = vector.broadcast %293 : vector<8x1xf32> to vector<8x8xf32>
    %295 = arith.mulf %290, %294 : vector<8x8xf32>
    %cst_106 = arith.constant dense<0.000000e+00> : vector<8x8xf32>
    %296 = tpu.matmul %295, %284, %cst_106 {dimension_numbers = #tpu.dot_dimension_numbers<[1], [0], [0], [1], [0, 0, 1, 1], [], []>} : vector<8x8xf32>, vector<8x8xf32>, vector<8x8xf32> -> vector<8x8xf32>
    %297 = vector.extract_strided_slice %261 {offsets = [0, 16], sizes = [8, 8], strides = [1, 1]} : vector<8x32xf32> to vector<8x8xf32>
    %298 = vector.extract_strided_slice %265 {offsets = [0, 16], sizes = [8, 8], strides = [1, 1]} : vector<8x32xf32> to vector<8x8xf32>
    %299 = vector.extract_strided_slice %266 {offsets = [0, 16], sizes = [8, 8], strides = [1, 1]} : vector<8x32xf32> to vector<8x8xf32>
    %cst_107 = arith.constant dense<0.000000e+00> : vector<8x8xf32>
    %300 = tpu.matmul %297, %298, %cst_107 {dimension_numbers = #tpu.dot_dimension_numbers<[1], [1], [0], [0], [0, 0, 1, 0], [], []>} : vector<8x8xf32>, vector<8x8xf32>, vector<8x8xf32> -> vector<8x8xf32>
    %cst_108 = arith.constant dense<0xFF800000> : vector<8xf32>
    %301 = vector.multi_reduction <maximumf>, %300, %cst_108 [1] : vector<8x8xf32> to vector<8xf32>
    %302 = vector.shape_cast %301 : vector<8xf32> to vector<8x1xf32>
    %303 = vector.broadcast %302 : vector<8x1xf32> to vector<8x8xf32>
    %304 = arith.subf %300, %303 : vector<8x8xf32>
    %305 = math.exp %304 : vector<8x8xf32>
    %cst_109 = arith.constant dense<0.000000e+00> : vector<8xf32>
    %306 = vector.multi_reduction <add>, %305, %cst_109 [1] : vector<8x8xf32> to vector<8xf32>
    %307 = vector.shape_cast %306 : vector<8xf32> to vector<8x1xf32>
    %308 = tpu.reciprocal %307 {approx = true} : vector<8x1xf32> -> vector<8x1xf32>
    %309 = vector.broadcast %308 : vector<8x1xf32> to vector<8x8xf32>
    %310 = arith.mulf %305, %309 : vector<8x8xf32>
    %cst_110 = arith.constant dense<0.000000e+00> : vector<8x8xf32>
    %311 = tpu.matmul %310, %299, %cst_110 {dimension_numbers = #tpu.dot_dimension_numbers<[1], [0], [0], [1], [0, 0, 1, 1], [], []>} : vector<8x8xf32>, vector<8x8xf32>, vector<8x8xf32> -> vector<8x8xf32>
    %312 = vector.extract_strided_slice %261 {offsets = [0, 24], sizes = [8, 8], strides = [1, 1]} : vector<8x32xf32> to vector<8x8xf32>
    %313 = vector.extract_strided_slice %265 {offsets = [0, 24], sizes = [8, 8], strides = [1, 1]} : vector<8x32xf32> to vector<8x8xf32>
    %314 = vector.extract_strided_slice %266 {offsets = [0, 24], sizes = [8, 8], strides = [1, 1]} : vector<8x32xf32> to vector<8x8xf32>
    %cst_111 = arith.constant dense<0.000000e+00> : vector<8x8xf32>
    %315 = tpu.matmul %312, %313, %cst_111 {dimension_numbers = #tpu.dot_dimension_numbers<[1], [1], [0], [0], [0, 0, 1, 0], [], []>} : vector<8x8xf32>, vector<8x8xf32>, vector<8x8xf32> -> vector<8x8xf32>
    %cst_112 = arith.constant dense<0xFF800000> : vector<8xf32>
    %316 = vector.multi_reduction <maximumf>, %315, %cst_112 [1] : vector<8x8xf32> to vector<8xf32>
    %317 = vector.shape_cast %316 : vector<8xf32> to vector<8x1xf32>
    %318 = vector.broadcast %317 : vector<8x1xf32> to vector<8x8xf32>
    %319 = arith.subf %315, %318 : vector<8x8xf32>
    %320 = math.exp %319 : vector<8x8xf32>
    %cst_113 = arith.constant dense<0.000000e+00> : vector<8xf32>
    %321 = vector.multi_reduction <add>, %320, %cst_113 [1] : vector<8x8xf32> to vector<8xf32>
    %322 = vector.shape_cast %321 : vector<8xf32> to vector<8x1xf32>
    %323 = tpu.reciprocal %322 {approx = true} : vector<8x1xf32> -> vector<8x1xf32>
    %324 = vector.broadcast %323 : vector<8x1xf32> to vector<8x8xf32>
    %325 = arith.mulf %320, %324 : vector<8x8xf32>
    %cst_114 = arith.constant dense<0.000000e+00> : vector<8x8xf32>
    %326 = tpu.matmul %325, %314, %cst_114 {dimension_numbers = #tpu.dot_dimension_numbers<[1], [0], [0], [1], [0, 0, 1, 1], [], []>} : vector<8x8xf32>, vector<8x8xf32>, vector<8x8xf32> -> vector<8x8xf32>
    %327 = tpu.concatenate %281, %296, %311, %326 in 1 : vector<8x8xf32>, vector<8x8xf32>, vector<8x8xf32>, vector<8x8xf32> -> vector<8x32xf32>
    %cst_115 = arith.constant dense<0.000000e+00> : vector<8x32xf32>
    %328 = tpu.matmul %327, %9, %cst_115 {dimension_numbers = #tpu.dot_dimension_numbers<[1], [0], [0], [1], [0, 0, 1, 1], [], []>} : vector<8x32xf32>, vector<32x32xf32>, vector<8x32xf32> -> vector<8x32xf32>
    %329 = vector.broadcast %27 : vector<1x32xf32> to vector<8x32xf32>
    %330 = arith.addf %328, %329 : vector<8x32xf32>
    %331 = arith.addf %258, %330 : vector<8x32xf32>
    %cst_116 = arith.constant dense<0.000000e+00> : vector<8xf32>
    %332 = vector.multi_reduction <add>, %331, %cst_116 [1] : vector<8x32xf32> to vector<8xf32>
    %333 = vector.shape_cast %332 : vector<8xf32> to vector<8x1xf32>
    %cst_117 = arith.constant 3.200000e+01 : f32
    %334 = vector.broadcast %cst_117 : f32 to vector<8x1xf32>
    %335 = arith.divf %333, %334 : vector<8x1xf32>
    %336 = vector.broadcast %335 : vector<8x1xf32> to vector<8x32xf32>
    %337 = arith.subf %331, %336 : vector<8x32xf32>
    %338 = arith.mulf %337, %337 : vector<8x32xf32>
    %cst_118 = arith.constant dense<0.000000e+00> : vector<8xf32>
    %339 = vector.multi_reduction <add>, %338, %cst_118 [1] : vector<8x32xf32> to vector<8xf32>
    %340 = vector.shape_cast %339 : vector<8xf32> to vector<8x1xf32>
    %cst_119 = arith.constant 3.200000e+01 : f32
    %341 = vector.broadcast %cst_119 : f32 to vector<8x1xf32>
    %342 = arith.divf %340, %341 : vector<8x1xf32>
    %343 = vector.broadcast %335 : vector<8x1xf32> to vector<8x32xf32>
    %344 = arith.subf %331, %343 : vector<8x32xf32>
    %cst_120 = arith.constant 9.99999974E-6 : f32
    %345 = vector.broadcast %cst_120 : f32 to vector<8x1xf32>
    %346 = arith.addf %342, %345 : vector<8x1xf32>
    %347 = math.rsqrt %346 : vector<8x1xf32>
    %348 = vector.broadcast %347 : vector<8x1xf32> to vector<8x32xf32>
    %349 = arith.mulf %344, %348 : vector<8x32xf32>
    %350 = vector.broadcast %32 : vector<1x32xf32> to vector<8x32xf32>
    %351 = arith.mulf %349, %350 : vector<8x32xf32>
    %352 = vector.broadcast %33 : vector<1x32xf32> to vector<8x32xf32>
    %353 = arith.addf %351, %352 : vector<8x32xf32>
    %cst_121 = arith.constant dense<0.000000e+00> : vector<8x64xf32>
    %354 = tpu.matmul %353, %10, %cst_121 {dimension_numbers = #tpu.dot_dimension_numbers<[1], [0], [0], [1], [0, 0, 1, 1], [], []>} : vector<8x32xf32>, vector<32x64xf32>, vector<8x64xf32> -> vector<8x64xf32>
    %355 = vector.broadcast %28 : vector<1x64xf32> to vector<8x64xf32>
    %356 = arith.addf %354, %355 : vector<8x64xf32>
    %cst_122 = arith.constant 0.000000e+00 : f32
    %357 = vector.broadcast %cst_122 : f32 to vector<8x64xf32>
    %358 = arith.maximumf %356, %357 : vector<8x64xf32>
    %cst_123 = arith.constant dense<0.000000e+00> : vector<8x32xf32>
    %359 = tpu.matmul %358, %12, %cst_123 {dimension_numbers = #tpu.dot_dimension_numbers<[1], [0], [0], [1], [0, 0, 1, 1], [], []>} : vector<8x64xf32>, vector<64x32xf32>, vector<8x32xf32> -> vector<8x32xf32>
    %360 = vector.broadcast %29 : vector<1x32xf32> to vector<8x32xf32>
    %361 = arith.addf %359, %360 : vector<8x32xf32>
    %362 = arith.addf %353, %361 : vector<8x32xf32>
    %cst_124 = arith.constant dense<0.000000e+00> : vector<8xf32>
    %363 = vector.multi_reduction <add>, %362, %cst_124 [1] : vector<8x32xf32> to vector<8xf32>
    %364 = vector.shape_cast %363 : vector<8xf32> to vector<8x1xf32>
    %cst_125 = arith.constant 3.200000e+01 : f32
    %365 = vector.broadcast %cst_125 : f32 to vector<8x1xf32>
    %366 = arith.divf %364, %365 : vector<8x1xf32>
    %367 = vector.broadcast %366 : vector<8x1xf32> to vector<8x32xf32>
    %368 = arith.subf %362, %367 : vector<8x32xf32>
    %369 = arith.mulf %368, %368 : vector<8x32xf32>
    %cst_126 = arith.constant dense<0.000000e+00> : vector<8xf32>
    %370 = vector.multi_reduction <add>, %369, %cst_126 [1] : vector<8x32xf32> to vector<8xf32>
    %371 = vector.shape_cast %370 : vector<8xf32> to vector<8x1xf32>
    %cst_127 = arith.constant 3.200000e+01 : f32
    %372 = vector.broadcast %cst_127 : f32 to vector<8x1xf32>
    %373 = arith.divf %371, %372 : vector<8x1xf32>
    %374 = vector.broadcast %366 : vector<8x1xf32> to vector<8x32xf32>
    %375 = arith.subf %362, %374 : vector<8x32xf32>
    %cst_128 = arith.constant 9.99999974E-6 : f32
    %376 = vector.broadcast %cst_128 : f32 to vector<8x1xf32>
    %377 = arith.addf %373, %376 : vector<8x1xf32>
    %378 = math.rsqrt %377 : vector<8x1xf32>
    %379 = vector.broadcast %378 : vector<8x1xf32> to vector<8x32xf32>
    %380 = arith.mulf %375, %379 : vector<8x32xf32>
    %381 = vector.broadcast %34 : vector<1x32xf32> to vector<8x32xf32>
    %382 = arith.mulf %380, %381 : vector<8x32xf32>
    %383 = vector.broadcast %35 : vector<1x32xf32> to vector<8x32xf32>
    %384 = arith.addf %382, %383 : vector<8x32xf32>
    %c0_129 = arith.constant 0 : index
    %c0_130 = arith.constant 0 : index
    %c0_131 = arith.constant 0 : index
    %385 = vector.load %arg4[%c0_129, %c0_130, %c0_131] : memref<8x2x32xf32, #tpu.memory_space<vmem>>, vector<8x1x32xf32>
    %386 = vector.shape_cast %385 : vector<8x1x32xf32> to vector<8x32xf32>
    %387 = vector.shape_cast %384 : vector<8x32xf32> to vector<8x1x32xf32>
    tpu.vector_store %arg4[%c0_129, %c0_130, %c0_131], %387 {strides = array<i32>} : memref<8x2x32xf32, #tpu.memory_space<vmem>>, vector<8x1x32xf32>,
    %c0_132 = arith.constant 0 : index
    %c1_133 = arith.constant 1 : index
    %c0_134 = arith.constant 0 : index
    %388 = vector.load %arg0[%c0_132, %c1_133, %c0_134] : memref<8x2x32xf32, #tpu.memory_space<vmem>>, vector<8x1x32xf32>
    %389 = vector.shape_cast %388 : vector<8x1x32xf32> to vector<8x32xf32>
    %cst_135 = arith.constant dense<0.000000e+00> : vector<8x32xf32>
    %390 = tpu.matmul %389, %0, %cst_135 {dimension_numbers = #tpu.dot_dimension_numbers<[1], [0], [0], [1], [0, 0, 1, 1], [], []>} : vector<8x32xf32>, vector<32x32xf32>, vector<8x32xf32> -> vector<8x32xf32>
    %391 = vector.broadcast %13 : vector<1x32xf32> to vector<8x32xf32>
    %392 = arith.addf %390, %391 : vector<8x32xf32>
    %cst_136 = arith.constant dense<0.000000e+00> : vector<8x64xf32>
    %393 = tpu.matmul %389, %1, %cst_136 {dimension_numbers = #tpu.dot_dimension_numbers<[1], [0], [0], [1], [0, 0, 1, 1], [], []>} : vector<8x32xf32>, vector<32x64xf32>, vector<8x64xf32> -> vector<8x64xf32>
    %394 = vector.broadcast %14 : vector<1x64xf32> to vector<8x64xf32>
    %395 = arith.addf %393, %394 : vector<8x64xf32>
    %396 = vector.extract_strided_slice %395 {offsets = [0, 0], sizes = [8, 32], strides = [1, 1]} : vector<8x64xf32> to vector<8x32xf32>
    %397 = vector.extract_strided_slice %395 {offsets = [0, 32], sizes = [8, 32], strides = [1, 1]} : vector<8x64xf32> to vector<8x32xf32>
    %398 = vector.extract_strided_slice %392 {offsets = [0, 0], sizes = [8, 8], strides = [1, 1]} : vector<8x32xf32> to vector<8x8xf32>
    %399 = vector.extract_strided_slice %396 {offsets = [0, 0], sizes = [8, 8], strides = [1, 1]} : vector<8x32xf32> to vector<8x8xf32>
    %400 = vector.extract_strided_slice %397 {offsets = [0, 0], sizes = [8, 8], strides = [1, 1]} : vector<8x32xf32> to vector<8x8xf32>
    %cst_137 = arith.constant dense<0.000000e+00> : vector<8x8xf32>
    %401 = tpu.matmul %398, %399, %cst_137 {dimension_numbers = #tpu.dot_dimension_numbers<[1], [1], [0], [0], [0, 0, 1, 0], [], []>} : vector<8x8xf32>, vector<8x8xf32>, vector<8x8xf32> -> vector<8x8xf32>
    %cst_138 = arith.constant dense<0xFF800000> : vector<8xf32>
    %402 = vector.multi_reduction <maximumf>, %401, %cst_138 [1] : vector<8x8xf32> to vector<8xf32>
    %403 = vector.shape_cast %402 : vector<8xf32> to vector<8x1xf32>
    %404 = vector.broadcast %403 : vector<8x1xf32> to vector<8x8xf32>
    %405 = arith.subf %401, %404 : vector<8x8xf32>
    %406 = math.exp %405 : vector<8x8xf32>
    %cst_139 = arith.constant dense<0.000000e+00> : vector<8xf32>
    %407 = vector.multi_reduction <add>, %406, %cst_139 [1] : vector<8x8xf32> to vector<8xf32>
    %408 = vector.shape_cast %407 : vector<8xf32> to vector<8x1xf32>
    %409 = tpu.reciprocal %408 {approx = true} : vector<8x1xf32> -> vector<8x1xf32>
    %410 = vector.broadcast %409 : vector<8x1xf32> to vector<8x8xf32>
    %411 = arith.mulf %406, %410 : vector<8x8xf32>
    %cst_140 = arith.constant dense<0.000000e+00> : vector<8x8xf32>
    %412 = tpu.matmul %411, %400, %cst_140 {dimension_numbers = #tpu.dot_dimension_numbers<[1], [0], [0], [1], [0, 0, 1, 1], [], []>} : vector<8x8xf32>, vector<8x8xf32>, vector<8x8xf32> -> vector<8x8xf32>
    %413 = vector.extract_strided_slice %392 {offsets = [0, 8], sizes = [8, 8], strides = [1, 1]} : vector<8x32xf32> to vector<8x8xf32>
    %414 = vector.extract_strided_slice %396 {offsets = [0, 8], sizes = [8, 8], strides = [1, 1]} : vector<8x32xf32> to vector<8x8xf32>
    %415 = vector.extract_strided_slice %397 {offsets = [0, 8], sizes = [8, 8], strides = [1, 1]} : vector<8x32xf32> to vector<8x8xf32>
    %cst_141 = arith.constant dense<0.000000e+00> : vector<8x8xf32>
    %416 = tpu.matmul %413, %414, %cst_141 {dimension_numbers = #tpu.dot_dimension_numbers<[1], [1], [0], [0], [0, 0, 1, 0], [], []>} : vector<8x8xf32>, vector<8x8xf32>, vector<8x8xf32> -> vector<8x8xf32>
    %cst_142 = arith.constant dense<0xFF800000> : vector<8xf32>
    %417 = vector.multi_reduction <maximumf>, %416, %cst_142 [1] : vector<8x8xf32> to vector<8xf32>
    %418 = vector.shape_cast %417 : vector<8xf32> to vector<8x1xf32>
    %419 = vector.broadcast %418 : vector<8x1xf32> to vector<8x8xf32>
    %420 = arith.subf %416, %419 : vector<8x8xf32>
    %421 = math.exp %420 : vector<8x8xf32>
    %cst_143 = arith.constant dense<0.000000e+00> : vector<8xf32>
    %422 = vector.multi_reduction <add>, %421, %cst_143 [1] : vector<8x8xf32> to vector<8xf32>
    %423 = vector.shape_cast %422 : vector<8xf32> to vector<8x1xf32>
    %424 = tpu.reciprocal %423 {approx = true} : vector<8x1xf32> -> vector<8x1xf32>
    %425 = vector.broadcast %424 : vector<8x1xf32> to vector<8x8xf32>
    %426 = arith.mulf %421, %425 : vector<8x8xf32>
    %cst_144 = arith.constant dense<0.000000e+00> : vector<8x8xf32>
    %427 = tpu.matmul %426, %415, %cst_144 {dimension_numbers = #tpu.dot_dimension_numbers<[1], [0], [0], [1], [0, 0, 1, 1], [], []>} : vector<8x8xf32>, vector<8x8xf32>, vector<8x8xf32> -> vector<8x8xf32>
    %428 = vector.extract_strided_slice %392 {offsets = [0, 16], sizes = [8, 8], strides = [1, 1]} : vector<8x32xf32> to vector<8x8xf32>
    %429 = vector.extract_strided_slice %396 {offsets = [0, 16], sizes = [8, 8], strides = [1, 1]} : vector<8x32xf32> to vector<8x8xf32>
    %430 = vector.extract_strided_slice %397 {offsets = [0, 16], sizes = [8, 8], strides = [1, 1]} : vector<8x32xf32> to vector<8x8xf32>
    %cst_145 = arith.constant dense<0.000000e+00> : vector<8x8xf32>
    %431 = tpu.matmul %428, %429, %cst_145 {dimension_numbers = #tpu.dot_dimension_numbers<[1], [1], [0], [0], [0, 0, 1, 0], [], []>} : vector<8x8xf32>, vector<8x8xf32>, vector<8x8xf32> -> vector<8x8xf32>
    %cst_146 = arith.constant dense<0xFF800000> : vector<8xf32>
    %432 = vector.multi_reduction <maximumf>, %431, %cst_146 [1] : vector<8x8xf32> to vector<8xf32>
    %433 = vector.shape_cast %432 : vector<8xf32> to vector<8x1xf32>
    %434 = vector.broadcast %433 : vector<8x1xf32> to vector<8x8xf32>
    %435 = arith.subf %431, %434 : vector<8x8xf32>
    %436 = math.exp %435 : vector<8x8xf32>
    %cst_147 = arith.constant dense<0.000000e+00> : vector<8xf32>
    %437 = vector.multi_reduction <add>, %436, %cst_147 [1] : vector<8x8xf32> to vector<8xf32>
    %438 = vector.shape_cast %437 : vector<8xf32> to vector<8x1xf32>
    %439 = tpu.reciprocal %438 {approx = true} : vector<8x1xf32> -> vector<8x1xf32>
    %440 = vector.broadcast %439 : vector<8x1xf32> to vector<8x8xf32>
    %441 = arith.mulf %436, %440 : vector<8x8xf32>
    %cst_148 = arith.constant dense<0.000000e+00> : vector<8x8xf32>
    %442 = tpu.matmul %441, %430, %cst_148 {dimension_numbers = #tpu.dot_dimension_numbers<[1], [0], [0], [1], [0, 0, 1, 1], [], []>} : vector<8x8xf32>, vector<8x8xf32>, vector<8x8xf32> -> vector<8x8xf32>
    %443 = vector.extract_strided_slice %392 {offsets = [0, 24], sizes = [8, 8], strides = [1, 1]} : vector<8x32xf32> to vector<8x8xf32>
    %444 = vector.extract_strided_slice %396 {offsets = [0, 24], sizes = [8, 8], strides = [1, 1]} : vector<8x32xf32> to vector<8x8xf32>
    %445 = vector.extract_strided_slice %397 {offsets = [0, 24], sizes = [8, 8], strides = [1, 1]} : vector<8x32xf32> to vector<8x8xf32>
    %cst_149 = arith.constant dense<0.000000e+00> : vector<8x8xf32>
    %446 = tpu.matmul %443, %444, %cst_149 {dimension_numbers = #tpu.dot_dimension_numbers<[1], [1], [0], [0], [0, 0, 1, 0], [], []>} : vector<8x8xf32>, vector<8x8xf32>, vector<8x8xf32> -> vector<8x8xf32>
    %cst_150 = arith.constant dense<0xFF800000> : vector<8xf32>
    %447 = vector.multi_reduction <maximumf>, %446, %cst_150 [1] : vector<8x8xf32> to vector<8xf32>
    %448 = vector.shape_cast %447 : vector<8xf32> to vector<8x1xf32>
    %449 = vector.broadcast %448 : vector<8x1xf32> to vector<8x8xf32>
    %450 = arith.subf %446, %449 : vector<8x8xf32>
    %451 = math.exp %450 : vector<8x8xf32>
    %cst_151 = arith.constant dense<0.000000e+00> : vector<8xf32>
    %452 = vector.multi_reduction <add>, %451, %cst_151 [1] : vector<8x8xf32> to vector<8xf32>
    %453 = vector.shape_cast %452 : vector<8xf32> to vector<8x1xf32>
    %454 = tpu.reciprocal %453 {approx = true} : vector<8x1xf32> -> vector<8x1xf32>
    %455 = vector.broadcast %454 : vector<8x1xf32> to vector<8x8xf32>
    %456 = arith.mulf %451, %455 : vector<8x8xf32>
    %cst_152 = arith.constant dense<0.000000e+00> : vector<8x8xf32>
    %457 = tpu.matmul %456, %445, %cst_152 {dimension_numbers = #tpu.dot_dimension_numbers<[1], [0], [0], [1], [0, 0, 1, 1], [], []>} : vector<8x8xf32>, vector<8x8xf32>, vector<8x8xf32> -> vector<8x8xf32>
    %458 = tpu.concatenate %412, %427, %442, %457 in 1 : vector<8x8xf32>, vector<8x8xf32>, vector<8x8xf32>, vector<8x8xf32> -> vector<8x32xf32>
    %cst_153 = arith.constant dense<0.000000e+00> : vector<8x32xf32>
    %459 = tpu.matmul %458, %2, %cst_153 {dimension_numbers = #tpu.dot_dimension_numbers<[1], [0], [0], [1], [0, 0, 1, 1], [], []>} : vector<8x32xf32>, vector<32x32xf32>, vector<8x32xf32> -> vector<8x32xf32>
    %460 = vector.broadcast %15 : vector<1x32xf32> to vector<8x32xf32>
    %461 = arith.addf %459, %460 : vector<8x32xf32>
    %462 = arith.addf %389, %461 : vector<8x32xf32>
    %cst_154 = arith.constant dense<0.000000e+00> : vector<8xf32>
    %463 = vector.multi_reduction <add>, %462, %cst_154 [1] : vector<8x32xf32> to vector<8xf32>
    %464 = vector.shape_cast %463 : vector<8xf32> to vector<8x1xf32>
    %cst_155 = arith.constant 3.200000e+01 : f32
    %465 = vector.broadcast %cst_155 : f32 to vector<8x1xf32>
    %466 = arith.divf %464, %465 : vector<8x1xf32>
    %467 = vector.broadcast %466 : vector<8x1xf32> to vector<8x32xf32>
    %468 = arith.subf %462, %467 : vector<8x32xf32>
    %469 = arith.mulf %468, %468 : vector<8x32xf32>
    %cst_156 = arith.constant dense<0.000000e+00> : vector<8xf32>
    %470 = vector.multi_reduction <add>, %469, %cst_156 [1] : vector<8x32xf32> to vector<8xf32>
    %471 = vector.shape_cast %470 : vector<8xf32> to vector<8x1xf32>
    %cst_157 = arith.constant 3.200000e+01 : f32
    %472 = vector.broadcast %cst_157 : f32 to vector<8x1xf32>
    %473 = arith.divf %471, %472 : vector<8x1xf32>
    %474 = vector.broadcast %466 : vector<8x1xf32> to vector<8x32xf32>
    %475 = arith.subf %462, %474 : vector<8x32xf32>
    %cst_158 = arith.constant 9.99999974E-6 : f32
    %476 = vector.broadcast %cst_158 : f32 to vector<8x1xf32>
    %477 = arith.addf %473, %476 : vector<8x1xf32>
    %478 = math.rsqrt %477 : vector<8x1xf32>
    %479 = vector.broadcast %478 : vector<8x1xf32> to vector<8x32xf32>
    %480 = arith.mulf %475, %479 : vector<8x32xf32>
    %481 = vector.broadcast %18 : vector<1x32xf32> to vector<8x32xf32>
    %482 = arith.mulf %480, %481 : vector<8x32xf32>
    %483 = vector.broadcast %19 : vector<1x32xf32> to vector<8x32xf32>
    %484 = arith.addf %482, %483 : vector<8x32xf32>
    %cst_159 = arith.constant dense<0.000000e+00> : vector<8x64xf32>
    %485 = tpu.matmul %484, %3, %cst_159 {dimension_numbers = #tpu.dot_dimension_numbers<[1], [0], [0], [1], [0, 0, 1, 1], [], []>} : vector<8x32xf32>, vector<32x64xf32>, vector<8x64xf32> -> vector<8x64xf32>
    %486 = vector.broadcast %16 : vector<1x64xf32> to vector<8x64xf32>
    %487 = arith.addf %485, %486 : vector<8x64xf32>
    %cst_160 = arith.constant 0.000000e+00 : f32
    %488 = vector.broadcast %cst_160 : f32 to vector<8x64xf32>
    %489 = arith.maximumf %487, %488 : vector<8x64xf32>
    %cst_161 = arith.constant dense<0.000000e+00> : vector<8x32xf32>
    %490 = tpu.matmul %489, %11, %cst_161 {dimension_numbers = #tpu.dot_dimension_numbers<[1], [0], [0], [1], [0, 0, 1, 1], [], []>} : vector<8x64xf32>, vector<64x32xf32>, vector<8x32xf32> -> vector<8x32xf32>
    %491 = vector.broadcast %17 : vector<1x32xf32> to vector<8x32xf32>
    %492 = arith.addf %490, %491 : vector<8x32xf32>
    %493 = arith.addf %484, %492 : vector<8x32xf32>
    %cst_162 = arith.constant dense<0.000000e+00> : vector<8xf32>
    %494 = vector.multi_reduction <add>, %493, %cst_162 [1] : vector<8x32xf32> to vector<8xf32>
    %495 = vector.shape_cast %494 : vector<8xf32> to vector<8x1xf32>
    %cst_163 = arith.constant 3.200000e+01 : f32
    %496 = vector.broadcast %cst_163 : f32 to vector<8x1xf32>
    %497 = arith.divf %495, %496 : vector<8x1xf32>
    %498 = vector.broadcast %497 : vector<8x1xf32> to vector<8x32xf32>
    %499 = arith.subf %493, %498 : vector<8x32xf32>
    %500 = arith.mulf %499, %499 : vector<8x32xf32>
    %cst_164 = arith.constant dense<0.000000e+00> : vector<8xf32>
    %501 = vector.multi_reduction <add>, %500, %cst_164 [1] : vector<8x32xf32> to vector<8xf32>
    %502 = vector.shape_cast %501 : vector<8xf32> to vector<8x1xf32>
    %cst_165 = arith.constant 3.200000e+01 : f32
    %503 = vector.broadcast %cst_165 : f32 to vector<8x1xf32>
    %504 = arith.divf %502, %503 : vector<8x1xf32>
    %505 = vector.broadcast %497 : vector<8x1xf32> to vector<8x32xf32>
    %506 = arith.subf %493, %505 : vector<8x32xf32>
    %cst_166 = arith.constant 9.99999974E-6 : f32
    %507 = vector.broadcast %cst_166 : f32 to vector<8x1xf32>
    %508 = arith.addf %504, %507 : vector<8x1xf32>
    %509 = math.rsqrt %508 : vector<8x1xf32>
    %510 = vector.broadcast %509 : vector<8x1xf32> to vector<8x32xf32>
    %511 = arith.mulf %506, %510 : vector<8x32xf32>
    %512 = vector.broadcast %20 : vector<1x32xf32> to vector<8x32xf32>
    %513 = arith.mulf %511, %512 : vector<8x32xf32>
    %514 = vector.broadcast %21 : vector<1x32xf32> to vector<8x32xf32>
    %515 = arith.addf %513, %514 : vector<8x32xf32>
    %cst_167 = arith.constant dense<0.000000e+00> : vector<8x32xf32>
    %516 = tpu.matmul %515, %4, %cst_167 {dimension_numbers = #tpu.dot_dimension_numbers<[1], [0], [0], [1], [0, 0, 1, 1], [], []>} : vector<8x32xf32>, vector<32x32xf32>, vector<8x32xf32> -> vector<8x32xf32>
    %517 = vector.broadcast %22 : vector<1x32xf32> to vector<8x32xf32>
    %518 = arith.addf %516, %517 : vector<8x32xf32>
    %cst_168 = arith.constant dense<0.000000e+00> : vector<8x64xf32>
    %519 = tpu.matmul %515, %5, %cst_168 {dimension_numbers = #tpu.dot_dimension_numbers<[1], [0], [0], [1], [0, 0, 1, 1], [], []>} : vector<8x32xf32>, vector<32x64xf32>, vector<8x64xf32> -> vector<8x64xf32>
    %520 = vector.broadcast %23 : vector<1x64xf32> to vector<8x64xf32>
    %521 = arith.addf %519, %520 : vector<8x64xf32>
    %522 = vector.extract_strided_slice %521 {offsets = [0, 0], sizes = [8, 32], strides = [1, 1]} : vector<8x64xf32> to vector<8x32xf32>
    %523 = vector.extract_strided_slice %521 {offsets = [0, 32], sizes = [8, 32], strides = [1, 1]} : vector<8x64xf32> to vector<8x32xf32>
    %524 = vector.extract_strided_slice %518 {offsets = [0, 0], sizes = [8, 8], strides = [1, 1]} : vector<8x32xf32> to vector<8x8xf32>
    %525 = vector.extract_strided_slice %522 {offsets = [0, 0], sizes = [8, 8], strides = [1, 1]} : vector<8x32xf32> to vector<8x8xf32>
    %526 = vector.extract_strided_slice %523 {offsets = [0, 0], sizes = [8, 8], strides = [1, 1]} : vector<8x32xf32> to vector<8x8xf32>
    %cst_169 = arith.constant dense<0.000000e+00> : vector<8x8xf32>
    %527 = tpu.matmul %524, %525, %cst_169 {dimension_numbers = #tpu.dot_dimension_numbers<[1], [1], [0], [0], [0, 0, 1, 0], [], []>} : vector<8x8xf32>, vector<8x8xf32>, vector<8x8xf32> -> vector<8x8xf32>
    %cst_170 = arith.constant dense<0xFF800000> : vector<8xf32>
    %528 = vector.multi_reduction <maximumf>, %527, %cst_170 [1] : vector<8x8xf32> to vector<8xf32>
    %529 = vector.shape_cast %528 : vector<8xf32> to vector<8x1xf32>
    %530 = vector.broadcast %529 : vector<8x1xf32> to vector<8x8xf32>
    %531 = arith.subf %527, %530 : vector<8x8xf32>
    %532 = math.exp %531 : vector<8x8xf32>
    %cst_171 = arith.constant dense<0.000000e+00> : vector<8xf32>
    %533 = vector.multi_reduction <add>, %532, %cst_171 [1] : vector<8x8xf32> to vector<8xf32>
    %534 = vector.shape_cast %533 : vector<8xf32> to vector<8x1xf32>
    %535 = tpu.reciprocal %534 {approx = true} : vector<8x1xf32> -> vector<8x1xf32>
    %536 = vector.broadcast %535 : vector<8x1xf32> to vector<8x8xf32>
    %537 = arith.mulf %532, %536 : vector<8x8xf32>
    %cst_172 = arith.constant dense<0.000000e+00> : vector<8x8xf32>
    %538 = tpu.matmul %537, %526, %cst_172 {dimension_numbers = #tpu.dot_dimension_numbers<[1], [0], [0], [1], [0, 0, 1, 1], [], []>} : vector<8x8xf32>, vector<8x8xf32>, vector<8x8xf32> -> vector<8x8xf32>
    %539 = vector.extract_strided_slice %518 {offsets = [0, 8], sizes = [8, 8], strides = [1, 1]} : vector<8x32xf32> to vector<8x8xf32>
    %540 = vector.extract_strided_slice %522 {offsets = [0, 8], sizes = [8, 8], strides = [1, 1]} : vector<8x32xf32> to vector<8x8xf32>
    %541 = vector.extract_strided_slice %523 {offsets = [0, 8], sizes = [8, 8], strides = [1, 1]} : vector<8x32xf32> to vector<8x8xf32>
    %cst_173 = arith.constant dense<0.000000e+00> : vector<8x8xf32>
    %542 = tpu.matmul %539, %540, %cst_173 {dimension_numbers = #tpu.dot_dimension_numbers<[1], [1], [0], [0], [0, 0, 1, 0], [], []>} : vector<8x8xf32>, vector<8x8xf32>, vector<8x8xf32> -> vector<8x8xf32>
    %cst_174 = arith.constant dense<0xFF800000> : vector<8xf32>
    %543 = vector.multi_reduction <maximumf>, %542, %cst_174 [1] : vector<8x8xf32> to vector<8xf32>
    %544 = vector.shape_cast %543 : vector<8xf32> to vector<8x1xf32>
    %545 = vector.broadcast %544 : vector<8x1xf32> to vector<8x8xf32>
    %546 = arith.subf %542, %545 : vector<8x8xf32>
    %547 = math.exp %546 : vector<8x8xf32>
    %cst_175 = arith.constant dense<0.000000e+00> : vector<8xf32>
    %548 = vector.multi_reduction <add>, %547, %cst_175 [1] : vector<8x8xf32> to vector<8xf32>
    %549 = vector.shape_cast %548 : vector<8xf32> to vector<8x1xf32>
    %550 = tpu.reciprocal %549 {approx = true} : vector<8x1xf32> -> vector<8x1xf32>
    %551 = vector.broadcast %550 : vector<8x1xf32> to vector<8x8xf32>
    %552 = arith.mulf %547, %551 : vector<8x8xf32>
    %cst_176 = arith.constant dense<0.000000e+00> : vector<8x8xf32>
    %553 = tpu.matmul %552, %541, %cst_176 {dimension_numbers = #tpu.dot_dimension_numbers<[1], [0], [0], [1], [0, 0, 1, 1], [], []>} : vector<8x8xf32>, vector<8x8xf32>, vector<8x8xf32> -> vector<8x8xf32>
    %554 = vector.extract_strided_slice %518 {offsets = [0, 16], sizes = [8, 8], strides = [1, 1]} : vector<8x32xf32> to vector<8x8xf32>
    %555 = vector.extract_strided_slice %522 {offsets = [0, 16], sizes = [8, 8], strides = [1, 1]} : vector<8x32xf32> to vector<8x8xf32>
    %556 = vector.extract_strided_slice %523 {offsets = [0, 16], sizes = [8, 8], strides = [1, 1]} : vector<8x32xf32> to vector<8x8xf32>
    %cst_177 = arith.constant dense<0.000000e+00> : vector<8x8xf32>
    %557 = tpu.matmul %554, %555, %cst_177 {dimension_numbers = #tpu.dot_dimension_numbers<[1], [1], [0], [0], [0, 0, 1, 0], [], []>} : vector<8x8xf32>, vector<8x8xf32>, vector<8x8xf32> -> vector<8x8xf32>
    %cst_178 = arith.constant dense<0xFF800000> : vector<8xf32>
    %558 = vector.multi_reduction <maximumf>, %557, %cst_178 [1] : vector<8x8xf32> to vector<8xf32>
    %559 = vector.shape_cast %558 : vector<8xf32> to vector<8x1xf32>
    %560 = vector.broadcast %559 : vector<8x1xf32> to vector<8x8xf32>
    %561 = arith.subf %557, %560 : vector<8x8xf32>
    %562 = math.exp %561 : vector<8x8xf32>
    %cst_179 = arith.constant dense<0.000000e+00> : vector<8xf32>
    %563 = vector.multi_reduction <add>, %562, %cst_179 [1] : vector<8x8xf32> to vector<8xf32>
    %564 = vector.shape_cast %563 : vector<8xf32> to vector<8x1xf32>
    %565 = tpu.reciprocal %564 {approx = true} : vector<8x1xf32> -> vector<8x1xf32>
    %566 = vector.broadcast %565 : vector<8x1xf32> to vector<8x8xf32>
    %567 = arith.mulf %562, %566 : vector<8x8xf32>
    %cst_180 = arith.constant dense<0.000000e+00> : vector<8x8xf32>
    %568 = tpu.matmul %567, %556, %cst_180 {dimension_numbers = #tpu.dot_dimension_numbers<[1], [0], [0], [1], [0, 0, 1, 1], [], []>} : vector<8x8xf32>, vector<8x8xf32>, vector<8x8xf32> -> vector<8x8xf32>
    %569 = vector.extract_strided_slice %518 {offsets = [0, 24], sizes = [8, 8], strides = [1, 1]} : vector<8x32xf32> to vector<8x8xf32>
    %570 = vector.extract_strided_slice %522 {offsets = [0, 24], sizes = [8, 8], strides = [1, 1]} : vector<8x32xf32> to vector<8x8xf32>
    %571 = vector.extract_strided_slice %523 {offsets = [0, 24], sizes = [8, 8], strides = [1, 1]} : vector<8x32xf32> to vector<8x8xf32>
    %cst_181 = arith.constant dense<0.000000e+00> : vector<8x8xf32>
    %572 = tpu.matmul %569, %570, %cst_181 {dimension_numbers = #tpu.dot_dimension_numbers<[1], [1], [0], [0], [0, 0, 1, 0], [], []>} : vector<8x8xf32>, vector<8x8xf32>, vector<8x8xf32> -> vector<8x8xf32>
    %cst_182 = arith.constant dense<0xFF800000> : vector<8xf32>
    %573 = vector.multi_reduction <maximumf>, %572, %cst_182 [1] : vector<8x8xf32> to vector<8xf32>
    %574 = vector.shape_cast %573 : vector<8xf32> to vector<8x1xf32>
    %575 = vector.broadcast %574 : vector<8x1xf32> to vector<8x8xf32>
    %576 = arith.subf %572, %575 : vector<8x8xf32>
    %577 = math.exp %576 : vector<8x8xf32>
    %cst_183 = arith.constant dense<0.000000e+00> : vector<8xf32>
    %578 = vector.multi_reduction <add>, %577, %cst_183 [1] : vector<8x8xf32> to vector<8xf32>
    %579 = vector.shape_cast %578 : vector<8xf32> to vector<8x1xf32>
    %580 = tpu.reciprocal %579 {approx = true} : vector<8x1xf32> -> vector<8x1xf32>
    %581 = vector.broadcast %580 : vector<8x1xf32> to vector<8x8xf32>
    %582 = arith.mulf %577, %581 : vector<8x8xf32>
    %cst_184 = arith.constant dense<0.000000e+00> : vector<8x8xf32>
    %583 = tpu.matmul %582, %571, %cst_184 {dimension_numbers = #tpu.dot_dimension_numbers<[1], [0], [0], [1], [0, 0, 1, 1], [], []>} : vector<8x8xf32>, vector<8x8xf32>, vector<8x8xf32> -> vector<8x8xf32>
    %584 = tpu.concatenate %538, %553, %568, %583 in 1 : vector<8x8xf32>, vector<8x8xf32>, vector<8x8xf32>, vector<8x8xf32> -> vector<8x32xf32>
    %cst_185 = arith.constant dense<0.000000e+00> : vector<8x32xf32>
    %585 = tpu.matmul %584, %6, %cst_185 {dimension_numbers = #tpu.dot_dimension_numbers<[1], [0], [0], [1], [0, 0, 1, 1], [], []>} : vector<8x32xf32>, vector<32x32xf32>, vector<8x32xf32> -> vector<8x32xf32>
    %586 = vector.broadcast %24 : vector<1x32xf32> to vector<8x32xf32>
    %587 = arith.addf %585, %586 : vector<8x32xf32>
    %588 = arith.addf %515, %587 : vector<8x32xf32>
    %cst_186 = arith.constant dense<0.000000e+00> : vector<8xf32>
    %589 = vector.multi_reduction <add>, %588, %cst_186 [1] : vector<8x32xf32> to vector<8xf32>
    %590 = vector.shape_cast %589 : vector<8xf32> to vector<8x1xf32>
    %cst_187 = arith.constant 3.200000e+01 : f32
    %591 = vector.broadcast %cst_187 : f32 to vector<8x1xf32>
    %592 = arith.divf %590, %591 : vector<8x1xf32>
    %593 = vector.broadcast %592 : vector<8x1xf32> to vector<8x32xf32>
    %594 = arith.subf %588, %593 : vector<8x32xf32>
    %595 = arith.mulf %594, %594 : vector<8x32xf32>
    %cst_188 = arith.constant dense<0.000000e+00> : vector<8xf32>
    %596 = vector.multi_reduction <add>, %595, %cst_188 [1] : vector<8x32xf32> to vector<8xf32>
    %597 = vector.shape_cast %596 : vector<8xf32> to vector<8x1xf32>
    %cst_189 = arith.constant 3.200000e+01 : f32
    %598 = vector.broadcast %cst_189 : f32 to vector<8x1xf32>
    %599 = arith.divf %597, %598 : vector<8x1xf32>
    %600 = vector.broadcast %592 : vector<8x1xf32> to vector<8x32xf32>
    %601 = arith.subf %588, %600 : vector<8x32xf32>
    %cst_190 = arith.constant 9.99999974E-6 : f32
    %602 = vector.broadcast %cst_190 : f32 to vector<8x1xf32>
    %603 = arith.addf %599, %602 : vector<8x1xf32>
    %604 = math.rsqrt %603 : vector<8x1xf32>
    %605 = vector.broadcast %604 : vector<8x1xf32> to vector<8x32xf32>
    %606 = arith.mulf %601, %605 : vector<8x32xf32>
    %607 = vector.broadcast %30 : vector<1x32xf32> to vector<8x32xf32>
    %608 = arith.mulf %606, %607 : vector<8x32xf32>
    %609 = vector.broadcast %31 : vector<1x32xf32> to vector<8x32xf32>
    %610 = arith.addf %608, %609 : vector<8x32xf32>
    %cst_191 = arith.constant dense<0.000000e+00> : vector<8x32xf32>
    %611 = tpu.matmul %610, %7, %cst_191 {dimension_numbers = #tpu.dot_dimension_numbers<[1], [0], [0], [1], [0, 0, 1, 1], [], []>} : vector<8x32xf32>, vector<32x32xf32>, vector<8x32xf32> -> vector<8x32xf32>
    %612 = vector.broadcast %25 : vector<1x32xf32> to vector<8x32xf32>
    %613 = arith.addf %611, %612 : vector<8x32xf32>
    %cst_192 = arith.constant dense<0.000000e+00> : vector<8x64xf32>
    %614 = tpu.matmul %515, %8, %cst_192 {dimension_numbers = #tpu.dot_dimension_numbers<[1], [0], [0], [1], [0, 0, 1, 1], [], []>} : vector<8x32xf32>, vector<32x64xf32>, vector<8x64xf32> -> vector<8x64xf32>
    %615 = vector.broadcast %26 : vector<1x64xf32> to vector<8x64xf32>
    %616 = arith.addf %614, %615 : vector<8x64xf32>
    %617 = vector.extract_strided_slice %616 {offsets = [0, 0], sizes = [8, 32], strides = [1, 1]} : vector<8x64xf32> to vector<8x32xf32>
    %618 = vector.extract_strided_slice %616 {offsets = [0, 32], sizes = [8, 32], strides = [1, 1]} : vector<8x64xf32> to vector<8x32xf32>
    %619 = vector.extract_strided_slice %613 {offsets = [0, 0], sizes = [8, 8], strides = [1, 1]} : vector<8x32xf32> to vector<8x8xf32>
    %620 = vector.extract_strided_slice %617 {offsets = [0, 0], sizes = [8, 8], strides = [1, 1]} : vector<8x32xf32> to vector<8x8xf32>
    %621 = vector.extract_strided_slice %618 {offsets = [0, 0], sizes = [8, 8], strides = [1, 1]} : vector<8x32xf32> to vector<8x8xf32>
    %cst_193 = arith.constant dense<0.000000e+00> : vector<8x8xf32>
    %622 = tpu.matmul %619, %620, %cst_193 {dimension_numbers = #tpu.dot_dimension_numbers<[1], [1], [0], [0], [0, 0, 1, 0], [], []>} : vector<8x8xf32>, vector<8x8xf32>, vector<8x8xf32> -> vector<8x8xf32>
    %cst_194 = arith.constant dense<0xFF800000> : vector<8xf32>
    %623 = vector.multi_reduction <maximumf>, %622, %cst_194 [1] : vector<8x8xf32> to vector<8xf32>
    %624 = vector.shape_cast %623 : vector<8xf32> to vector<8x1xf32>
    %625 = vector.broadcast %624 : vector<8x1xf32> to vector<8x8xf32>
    %626 = arith.subf %622, %625 : vector<8x8xf32>
    %627 = math.exp %626 : vector<8x8xf32>
    %cst_195 = arith.constant dense<0.000000e+00> : vector<8xf32>
    %628 = vector.multi_reduction <add>, %627, %cst_195 [1] : vector<8x8xf32> to vector<8xf32>
    %629 = vector.shape_cast %628 : vector<8xf32> to vector<8x1xf32>
    %630 = tpu.reciprocal %629 {approx = true} : vector<8x1xf32> -> vector<8x1xf32>
    %631 = vector.broadcast %630 : vector<8x1xf32> to vector<8x8xf32>
    %632 = arith.mulf %627, %631 : vector<8x8xf32>
    %cst_196 = arith.constant dense<0.000000e+00> : vector<8x8xf32>
    %633 = tpu.matmul %632, %621, %cst_196 {dimension_numbers = #tpu.dot_dimension_numbers<[1], [0], [0], [1], [0, 0, 1, 1], [], []>} : vector<8x8xf32>, vector<8x8xf32>, vector<8x8xf32> -> vector<8x8xf32>
    %634 = vector.extract_strided_slice %613 {offsets = [0, 8], sizes = [8, 8], strides = [1, 1]} : vector<8x32xf32> to vector<8x8xf32>
    %635 = vector.extract_strided_slice %617 {offsets = [0, 8], sizes = [8, 8], strides = [1, 1]} : vector<8x32xf32> to vector<8x8xf32>
    %636 = vector.extract_strided_slice %618 {offsets = [0, 8], sizes = [8, 8], strides = [1, 1]} : vector<8x32xf32> to vector<8x8xf32>
    %cst_197 = arith.constant dense<0.000000e+00> : vector<8x8xf32>
    %637 = tpu.matmul %634, %635, %cst_197 {dimension_numbers = #tpu.dot_dimension_numbers<[1], [1], [0], [0], [0, 0, 1, 0], [], []>} : vector<8x8xf32>, vector<8x8xf32>, vector<8x8xf32> -> vector<8x8xf32>
    %cst_198 = arith.constant dense<0xFF800000> : vector<8xf32>
    %638 = vector.multi_reduction <maximumf>, %637, %cst_198 [1] : vector<8x8xf32> to vector<8xf32>
    %639 = vector.shape_cast %638 : vector<8xf32> to vector<8x1xf32>
    %640 = vector.broadcast %639 : vector<8x1xf32> to vector<8x8xf32>
    %641 = arith.subf %637, %640 : vector<8x8xf32>
    %642 = math.exp %641 : vector<8x8xf32>
    %cst_199 = arith.constant dense<0.000000e+00> : vector<8xf32>
    %643 = vector.multi_reduction <add>, %642, %cst_199 [1] : vector<8x8xf32> to vector<8xf32>
    %644 = vector.shape_cast %643 : vector<8xf32> to vector<8x1xf32>
    %645 = tpu.reciprocal %644 {approx = true} : vector<8x1xf32> -> vector<8x1xf32>
    %646 = vector.broadcast %645 : vector<8x1xf32> to vector<8x8xf32>
    %647 = arith.mulf %642, %646 : vector<8x8xf32>
    %cst_200 = arith.constant dense<0.000000e+00> : vector<8x8xf32>
    %648 = tpu.matmul %647, %636, %cst_200 {dimension_numbers = #tpu.dot_dimension_numbers<[1], [0], [0], [1], [0, 0, 1, 1], [], []>} : vector<8x8xf32>, vector<8x8xf32>, vector<8x8xf32> -> vector<8x8xf32>
    %649 = vector.extract_strided_slice %613 {offsets = [0, 16], sizes = [8, 8], strides = [1, 1]} : vector<8x32xf32> to vector<8x8xf32>
    %650 = vector.extract_strided_slice %617 {offsets = [0, 16], sizes = [8, 8], strides = [1, 1]} : vector<8x32xf32> to vector<8x8xf32>
    %651 = vector.extract_strided_slice %618 {offsets = [0, 16], sizes = [8, 8], strides = [1, 1]} : vector<8x32xf32> to vector<8x8xf32>
    %cst_201 = arith.constant dense<0.000000e+00> : vector<8x8xf32>
    %652 = tpu.matmul %649, %650, %cst_201 {dimension_numbers = #tpu.dot_dimension_numbers<[1], [1], [0], [0], [0, 0, 1, 0], [], []>} : vector<8x8xf32>, vector<8x8xf32>, vector<8x8xf32> -> vector<8x8xf32>
    %cst_202 = arith.constant dense<0xFF800000> : vector<8xf32>
    %653 = vector.multi_reduction <maximumf>, %652, %cst_202 [1] : vector<8x8xf32> to vector<8xf32>
    %654 = vector.shape_cast %653 : vector<8xf32> to vector<8x1xf32>
    %655 = vector.broadcast %654 : vector<8x1xf32> to vector<8x8xf32>
    %656 = arith.subf %652, %655 : vector<8x8xf32>
    %657 = math.exp %656 : vector<8x8xf32>
    %cst_203 = arith.constant dense<0.000000e+00> : vector<8xf32>
    %658 = vector.multi_reduction <add>, %657, %cst_203 [1] : vector<8x8xf32> to vector<8xf32>
    %659 = vector.shape_cast %658 : vector<8xf32> to vector<8x1xf32>
    %660 = tpu.reciprocal %659 {approx = true} : vector<8x1xf32> -> vector<8x1xf32>
    %661 = vector.broadcast %660 : vector<8x1xf32> to vector<8x8xf32>
    %662 = arith.mulf %657, %661 : vector<8x8xf32>
    %cst_204 = arith.constant dense<0.000000e+00> : vector<8x8xf32>
    %663 = tpu.matmul %662, %651, %cst_204 {dimension_numbers = #tpu.dot_dimension_numbers<[1], [0], [0], [1], [0, 0, 1, 1], [], []>} : vector<8x8xf32>, vector<8x8xf32>, vector<8x8xf32> -> vector<8x8xf32>
    %664 = vector.extract_strided_slice %613 {offsets = [0, 24], sizes = [8, 8], strides = [1, 1]} : vector<8x32xf32> to vector<8x8xf32>
    %665 = vector.extract_strided_slice %617 {offsets = [0, 24], sizes = [8, 8], strides = [1, 1]} : vector<8x32xf32> to vector<8x8xf32>
    %666 = vector.extract_strided_slice %618 {offsets = [0, 24], sizes = [8, 8], strides = [1, 1]} : vector<8x32xf32> to vector<8x8xf32>
    %cst_205 = arith.constant dense<0.000000e+00> : vector<8x8xf32>
    %667 = tpu.matmul %664, %665, %cst_205 {dimension_numbers = #tpu.dot_dimension_numbers<[1], [1], [0], [0], [0, 0, 1, 0], [], []>} : vector<8x8xf32>, vector<8x8xf32>, vector<8x8xf32> -> vector<8x8xf32>
    %cst_206 = arith.constant dense<0xFF800000> : vector<8xf32>
    %668 = vector.multi_reduction <maximumf>, %667, %cst_206 [1] : vector<8x8xf32> to vector<8xf32>
    %669 = vector.shape_cast %668 : vector<8xf32> to vector<8x1xf32>
    %670 = vector.broadcast %669 : vector<8x1xf32> to vector<8x8xf32>
    %671 = arith.subf %667, %670 : vector<8x8xf32>
    %672 = math.exp %671 : vector<8x8xf32>
    %cst_207 = arith.constant dense<0.000000e+00> : vector<8xf32>
    %673 = vector.multi_reduction <add>, %672, %cst_207 [1] : vector<8x8xf32> to vector<8xf32>
    %674 = vector.shape_cast %673 : vector<8xf32> to vector<8x1xf32>
    %675 = tpu.reciprocal %674 {approx = true} : vector<8x1xf32> -> vector<8x1xf32>
    %676 = vector.broadcast %675 : vector<8x1xf32> to vector<8x8xf32>
    %677 = arith.mulf %672, %676 : vector<8x8xf32>
    %cst_208 = arith.constant dense<0.000000e+00> : vector<8x8xf32>
    %678 = tpu.matmul %677, %666, %cst_208 {dimension_numbers = #tpu.dot_dimension_numbers<[1], [0], [0], [1], [0, 0, 1, 1], [], []>} : vector<8x8xf32>, vector<8x8xf32>, vector<8x8xf32> -> vector<8x8xf32>
    %679 = tpu.concatenate %633, %648, %663, %678 in 1 : vector<8x8xf32>, vector<8x8xf32>, vector<8x8xf32>, vector<8x8xf32> -> vector<8x32xf32>
    %cst_209 = arith.constant dense<0.000000e+00> : vector<8x32xf32>
    %680 = tpu.matmul %679, %9, %cst_209 {dimension_numbers = #tpu.dot_dimension_numbers<[1], [0], [0], [1], [0, 0, 1, 1], [], []>} : vector<8x32xf32>, vector<32x32xf32>, vector<8x32xf32> -> vector<8x32xf32>
    %681 = vector.broadcast %27 : vector<1x32xf32> to vector<8x32xf32>
    %682 = arith.addf %680, %681 : vector<8x32xf32>
    %683 = arith.addf %610, %682 : vector<8x32xf32>
    %cst_210 = arith.constant dense<0.000000e+00> : vector<8xf32>
    %684 = vector.multi_reduction <add>, %683, %cst_210 [1] : vector<8x32xf32> to vector<8xf32>
    %685 = vector.shape_cast %684 : vector<8xf32> to vector<8x1xf32>
    %cst_211 = arith.constant 3.200000e+01 : f32
    %686 = vector.broadcast %cst_211 : f32 to vector<8x1xf32>
    %687 = arith.divf %685, %686 : vector<8x1xf32>
    %688 = vector.broadcast %687 : vector<8x1xf32> to vector<8x32xf32>
    %689 = arith.subf %683, %688 : vector<8x32xf32>
    %690 = arith.mulf %689, %689 : vector<8x32xf32>
    %cst_212 = arith.constant dense<0.000000e+00> : vector<8xf32>
    %691 = vector.multi_reduction <add>, %690, %cst_212 [1] : vector<8x32xf32> to vector<8xf32>
    %692 = vector.shape_cast %691 : vector<8xf32> to vector<8x1xf32>
    %cst_213 = arith.constant 3.200000e+01 : f32
    %693 = vector.broadcast %cst_213 : f32 to vector<8x1xf32>
    %694 = arith.divf %692, %693 : vector<8x1xf32>
    %695 = vector.broadcast %687 : vector<8x1xf32> to vector<8x32xf32>
    %696 = arith.subf %683, %695 : vector<8x32xf32>
    %cst_214 = arith.constant 9.99999974E-6 : f32
    %697 = vector.broadcast %cst_214 : f32 to vector<8x1xf32>
    %698 = arith.addf %694, %697 : vector<8x1xf32>
    %699 = math.rsqrt %698 : vector<8x1xf32>
    %700 = vector.broadcast %699 : vector<8x1xf32> to vector<8x32xf32>
    %701 = arith.mulf %696, %700 : vector<8x32xf32>
    %702 = vector.broadcast %32 : vector<1x32xf32> to vector<8x32xf32>
    %703 = arith.mulf %701, %702 : vector<8x32xf32>
    %704 = vector.broadcast %33 : vector<1x32xf32> to vector<8x32xf32>
    %705 = arith.addf %703, %704 : vector<8x32xf32>
    %cst_215 = arith.constant dense<0.000000e+00> : vector<8x64xf32>
    %706 = tpu.matmul %705, %10, %cst_215 {dimension_numbers = #tpu.dot_dimension_numbers<[1], [0], [0], [1], [0, 0, 1, 1], [], []>} : vector<8x32xf32>, vector<32x64xf32>, vector<8x64xf32> -> vector<8x64xf32>
    %707 = vector.broadcast %28 : vector<1x64xf32> to vector<8x64xf32>
    %708 = arith.addf %706, %707 : vector<8x64xf32>
    %cst_216 = arith.constant 0.000000e+00 : f32
    %709 = vector.broadcast %cst_216 : f32 to vector<8x64xf32>
    %710 = arith.maximumf %708, %709 : vector<8x64xf32>
    %cst_217 = arith.constant dense<0.000000e+00> : vector<8x32xf32>
    %711 = tpu.matmul %710, %12, %cst_217 {dimension_numbers = #tpu.dot_dimension_numbers<[1], [0], [0], [1], [0, 0, 1, 1], [], []>} : vector<8x64xf32>, vector<64x32xf32>, vector<8x32xf32> -> vector<8x32xf32>
    %712 = vector.broadcast %29 : vector<1x32xf32> to vector<8x32xf32>
    %713 = arith.addf %711, %712 : vector<8x32xf32>
    %714 = arith.addf %705, %713 : vector<8x32xf32>
    %cst_218 = arith.constant dense<0.000000e+00> : vector<8xf32>
    %715 = vector.multi_reduction <add>, %714, %cst_218 [1] : vector<8x32xf32> to vector<8xf32>
    %716 = vector.shape_cast %715 : vector<8xf32> to vector<8x1xf32>
    %cst_219 = arith.constant 3.200000e+01 : f32
    %717 = vector.broadcast %cst_219 : f32 to vector<8x1xf32>
    %718 = arith.divf %716, %717 : vector<8x1xf32>
    %719 = vector.broadcast %718 : vector<8x1xf32> to vector<8x32xf32>
    %720 = arith.subf %714, %719 : vector<8x32xf32>
    %721 = arith.mulf %720, %720 : vector<8x32xf32>
    %cst_220 = arith.constant dense<0.000000e+00> : vector<8xf32>
    %722 = vector.multi_reduction <add>, %721, %cst_220 [1] : vector<8x32xf32> to vector<8xf32>
    %723 = vector.shape_cast %722 : vector<8xf32> to vector<8x1xf32>
    %cst_221 = arith.constant 3.200000e+01 : f32
    %724 = vector.broadcast %cst_221 : f32 to vector<8x1xf32>
    %725 = arith.divf %723, %724 : vector<8x1xf32>
    %726 = vector.broadcast %718 : vector<8x1xf32> to vector<8x32xf32>
    %727 = arith.subf %714, %726 : vector<8x32xf32>
    %cst_222 = arith.constant 9.99999974E-6 : f32
    %728 = vector.broadcast %cst_222 : f32 to vector<8x1xf32>
    %729 = arith.addf %725, %728 : vector<8x1xf32>
    %730 = math.rsqrt %729 : vector<8x1xf32>
    %731 = vector.broadcast %730 : vector<8x1xf32> to vector<8x32xf32>
    %732 = arith.mulf %727, %731 : vector<8x32xf32>
    %733 = vector.broadcast %34 : vector<1x32xf32> to vector<8x32xf32>
    %734 = arith.mulf %732, %733 : vector<8x32xf32>
    %735 = vector.broadcast %35 : vector<1x32xf32> to vector<8x32xf32>
    %736 = arith.addf %734, %735 : vector<8x32xf32>
    %c0_223 = arith.constant 0 : index
    %c1_224 = arith.constant 1 : index
    %c0_225 = arith.constant 0 : index
    %737 = vector.load %arg4[%c0_223, %c1_224, %c0_225] : memref<8x2x32xf32, #tpu.memory_space<vmem>>, vector<8x1x32xf32>
    %738 = vector.shape_cast %737 : vector<8x1x32xf32> to vector<8x32xf32>
    %739 = vector.shape_cast %736 : vector<8x32xf32> to vector<8x1x32xf32>
    tpu.vector_store %arg4[%c0_223, %c1_224, %c0_225], %739 {strides = array<i32>} : memref<8x2x32xf32, #tpu.memory_space<vmem>>, vector<8x1x32xf32>,
    return
  }
}

</mosaic_0001>

<llo_original>
// kernel: vit_forward.1
$region0: #{vit_forward.1}
  #allocation0 [shape = 'u32[]', space=smem, size = 0x4, offset = 0x4, fixed_abs, tag = 'smem constant byte address 0x4 - core index']
  #allocation1 [shape = 'u32[144,128]{1,0:T(1,128)}', space=vmem, size = 0x12000, scoped, tag = 'internal scratch']
  %s0 = inlined_call_operand.hbm [shape: f32[8,2,32], index: 0, kind: input, shape index: {}]
  %s1 = inlined_call_operand.hbm [shape: f32[32,1408], index: 1, kind: input, shape index: {}]
  %s2 = inlined_call_operand.hbm [shape: f32[64,256], index: 2, kind: input, shape index: {}]
  %s3 = inlined_call_operand.hbm [shape: f32[24,128], index: 3, kind: input, shape index: {}]
  %s4 = inlined_call_operand.hbm [shape: f32[8,2,32], index: 4, kind: output, shape index: {}]
  %s5 = sld [smem:[#allocation0]]
  $region42: #{vit_forward.1} parent=0
    _
  %s7 = ssub.s32 1, %s5
  %s8 = scalar_select 0, %s7, %s5
  $region1: #{vit_forward.1} parent=0
    #allocation2 [shape = 'u8[8192]{0}', space=vmem, size = 0x2000, scoped, tag = 'input window, operand 0, single buffered']
    #allocation3 [shape = 's32[1]{0}', space=sflag, size = 0x4, scoped, tag = 'scoped memory for vit_forward.1']
    #allocation4 [shape = 's32[1]{0}', space=sflag, size = 0x4, scoped, tag = 'scoped memory for vit_forward.1']
    #allocation5 [shape = 'u8[180224]{0}', space=vmem, size = 0x2c000, scoped, tag = 'input window, operand 1, single buffered']
    #allocation6 [shape = 's32[1]{0}', space=sflag, size = 0x4, scoped, tag = 'scoped memory for vit_forward.1']
    #allocation7 [shape = 'u8[65536]{0}', space=vmem, size = 0x10000, scoped, tag = 'input window, operand 2, single buffered']
    #allocation8 [shape = 'u8[12288]{0}', space=vmem, size = 0x3000, scoped, tag = 'input window, operand 3, single buffered']
    #allocation9 [shape = 's32[1]{0}', space=sflag, size = 0x4, scoped, tag = 'scoped memory for vit_forward.1']
    #allocation10 [shape = 'u8[8192]{0}', space=vmem, size = 0x2000, scoped, tag = 'output window, operand 0, single buffered']
    %9 = vsyncpa [#allocation3], 0
    %10 = vsyncpa [#allocation6], 0
    %11 = vsyncpa [#allocation9], 0
    %12 = vsyncpa [#allocation4], 0
    // Predicated region
    $region2: #{vit_forward.1} parent=1 // pred_check
      _
    $region3: #{vit_forward.1} parent=1 // pred_check_branch
      %14 = sbr.rel (0) target = $region5
    $region4: #{vit_forward.1} parent=1 // pred_region
      %s16 = ssub.s32 256, 256
      %17 = vsyncadd [#allocation3], %s16
      %s18 = sshll.u32 [#allocation2], 4
      %s19 = int_to_ptr.vmem [resolvable:$true] %s18
      %24 = dma.hbm_to_vmem [thread:$0]  %s0, 256, %s19, [#allocation3], 32, 32, 2
    $region5: #{vit_forward.1} parent=1 // pred_fallthru
      _
    // Predicated region
    $region6: #{vit_forward.1} parent=1 // pred_check
      _
    $region7: #{vit_forward.1} parent=1 // pred_check_branch
      %26 = sbr.rel (0) target = $region9
    $region8: #{vit_forward.1} parent=1 // pred_region
      %s28 = ssub.s32 5632, 5632
      %29 = vsyncadd [#allocation6], %s28
      %s30 = sshll.u32 [#allocation5], 4
      %s31 = int_to_ptr.vmem [resolvable:$true] %s30
      %36 = dma.hbm_to_vmem [thread:$0]  %s1, 5632, %s31, [#allocation6], 1408, 1408, 88
    $region9: #{vit_forward.1} parent=1 // pred_fallthru
      _
    // Predicated region
    $region10: #{vit_forward.1} parent=1 // pred_check
      _
    $region11: #{vit_forward.1} parent=1 // pred_check_branch
      %38 = sbr.rel (0) target = $region13
    $region12: #{vit_forward.1} parent=1 // pred_region
      %s40 = ssub.s32 2048, 2048
      %41 = vsyncadd [#allocation6], %s40
      %s42 = sshll.u32 [#allocation7], 4
      %s43 = int_to_ptr.vmem [resolvable:$true] %s42
      %48 = dma.hbm_to_vmem [thread:$0]  %s2, 2048, %s43, [#allocation6], 256, 256, 16
    $region13: #{vit_forward.1} parent=1 // pred_fallthru
      _
    // Predicated region
    $region14: #{vit_forward.1} parent=1 // pred_check
      _
    $region15: #{vit_forward.1} parent=1 // pred_check_branch
      %50 = sbr.rel (0) target = $region17
    $region16: #{vit_forward.1} parent=1 // pred_region
      %s52 = ssub.s32 384, 384
      %53 = vsyncadd [#allocation9], %s52
      %s54 = sshll.u32 [#allocation8], 4
      %s55 = int_to_ptr.vmem [resolvable:$true] %s54
      %60 = dma.hbm_to_vmem [thread:$0]  %s3, 384, %s55, [#allocation9], 128, 128, 8
    $region17: #{vit_forward.1} parent=1 // pred_fallthru
      _
    // Predicated region
    $region18: #{vit_forward.1} parent=1 // pred_check
      _
    $region19: #{vit_forward.1} parent=1 // pred_check_branch
      %62 = sbr.rel (0) target = $region21
    $region20: #{vit_forward.1} parent=1 // pred_region
      %63 = dma.done [#allocation3], 256
    $region21: #{vit_forward.1} parent=1 // pred_fallthru
      _
    // Predicated region
    $region22: #{vit_forward.1} parent=1 // pred_check
      _
    $region23: #{vit_forward.1} parent=1 // pred_check_branch
      %65 = sbr.rel (0) target = $region25
    $region24: #{vit_forward.1} parent=1 // pred_region
      %66 = dma.done [#allocation6], 5632
    $region25: #{vit_forward.1} parent=1 // pred_fallthru
      _
    // Predicated region
    $region26: #{vit_forward.1} parent=1 // pred_check
      _
    $region27: #{vit_forward.1} parent=1 // pred_check_branch
      %68 = sbr.rel (0) target = $region29
    $region28: #{vit_forward.1} parent=1 // pred_region
      %69 = dma.done [#allocation6], 2048
    $region29: #{vit_forward.1} parent=1 // pred_fallthru
      _
    // Predicated region
    $region30: #{vit_forward.1} parent=1 // pred_check
      _
    $region31: #{vit_forward.1} parent=1 // pred_check_branch
      %71 = sbr.rel (0) target = $region33
    $region32: #{vit_forward.1} parent=1 // pred_region
      %72 = dma.done [#allocation9], 384
    $region33: #{vit_forward.1} parent=1 // pred_fallthru
      _
    %v73 = vld [vmem:[#allocation5] sm:$0xff]
    %v74 = vld [vmem:[#allocation5 + $0x58] sm:$0xff]
    %v75 = vld [vmem:[#allocation5 + $0xb0] sm:$0xff]
    %v76 = vld [vmem:[#allocation5 + $0x108] sm:$0xff]
    %v77 = vld [vmem:[#allocation5 + $0x8] sm:$0xff]
    %v78 = vld [vmem:[#allocation5 + $0x60] sm:$0xff]
    %v79 = vld [vmem:[#allocation5 + $0xb8] sm:$0xff]
    %v80 = vld [vmem:[#allocation5 + $0x110] sm:$0xff]
    %v81 = vld [vmem:[#allocation5 + $0x10] sm:$0xff]
    %v82 = vld [vmem:[#allocation5 + $0x68] sm:$0xff]
    %v83 = vld [vmem:[#allocation5 + $0xc0] sm:$0xff]
    %v84 = vld [vmem:[#allocation5 + $0x118] sm:$0xff]
    %v85 = vld [vmem:[#allocation5 + $0x18] sm:$0xff]
    %v86 = vld [vmem:[#allocation5 + $0x70] sm:$0xff]
    %v87 = vld [vmem:[#allocation5 + $0xc8] sm:$0xff]
    %v88 = vld [vmem:[#allocation5 + $0x120] sm:$0xff]
    %v89 = vld [vmem:[#allocation5 + $0x20] sm:$0xff]
    %v90 = vld [vmem:[#allocation5 + $0x78] sm:$0xff]
    %v91 = vld [vmem:[#allocation5 + $0xd0] sm:$0xff]
    %v92 = vld [vmem:[#allocation5 + $0x128] sm:$0xff]
    %v93 = vld [vmem:[#allocation5 + $0x28] sm:$0xff]
    %v94 = vld [vmem:[#allocation5 + $0x80] sm:$0xff]
    %v95 = vld [vmem:[#allocation5 + $0xd8] sm:$0xff]
    %v96 = vld [vmem:[#allocation5 + $0x130] sm:$0xff]
    %v97 = vld [vmem:[#allocation5 + $0x30] sm:$0xff]
    %v98 = vld [vmem:[#allocation5 + $0x88] sm:$0xff]
    %v99 = vld [vmem:[#allocation5 + $0xe0] sm:$0xff]
    %v100 = vld [vmem:[#allocation5 + $0x138] sm:$0xff]
    %v101 = vld [vmem:[#allocation5 + $0x38] sm:$0xff]
    %v102 = vld [vmem:[#allocation5 + $0x90] sm:$0xff]
    %v103 = vld [vmem:[#allocation5 + $0xe8] sm:$0xff]
    %v104 = vld [vmem:[#allocation5 + $0x140] sm:$0xff]
    %v105 = vld [vmem:[#allocation5 + $0x40] sm:$0xff]
    %v106 = vld [vmem:[#allocation5 + $0x98] sm:$0xff]
    %v107 = vld [vmem:[#allocation5 + $0xf0] sm:$0xff]
    %v108 = vld [vmem:[#allocation5 + $0x148] sm:$0xff]
    %v109 = vld [vmem:[#allocation5 + $0x48] sm:$0xff]
    %v110 = vld [vmem:[#allocation5 + $0xa0] sm:$0xff]
    %v111 = vld [vmem:[#allocation5 + $0xf8] sm:$0xff]
    %v112 = vld [vmem:[#allocation5 + $0x150] sm:$0xff]
    %v113 = vld [vmem:[#allocation5 + $0x50] sm:$0xff]
    %v114 = vld [vmem:[#allocation5 + $0xa8] sm:$0xff]
    %v115 = vld [vmem:[#allocation5 + $0x100] sm:$0xff]
    %v116 = vld [vmem:[#allocation5 + $0x158] sm:$0xff]
    %v117 = vld [vmem:[#allocation7] sm:$0xff]
    %v118 = vld [vmem:[#allocation7 + $0x10] sm:$0xff]
    %v119 = vld [vmem:[#allocation7 + $0x20] sm:$0xff]
    %v120 = vld [vmem:[#allocation7 + $0x30] sm:$0xff]
    %v121 = vld [vmem:[#allocation7 + $0x40] sm:$0xff]
    %v122 = vld [vmem:[#allocation7 + $0x50] sm:$0xff]
    %v123 = vld [vmem:[#allocation7 + $0x60] sm:$0xff]
    %v124 = vld [vmem:[#allocation7 + $0x70] sm:$0xff]
    %v125 = vld [vmem:[#allocation7 + $0x8] sm:$0xff]
    %v126 = vld [vmem:[#allocation7 + $0x18] sm:$0xff]
    %v127 = vld [vmem:[#allocation7 + $0x28] sm:$0xff]
    %v128 = vld [vmem:[#allocation7 + $0x38] sm:$0xff]
    %v129 = vld [vmem:[#allocation7 + $0x48] sm:$0xff]
    %v130 = vld [vmem:[#allocation7 + $0x58] sm:$0xff]
    %v131 = vld [vmem:[#allocation7 + $0x68] sm:$0xff]
    %v132 = vld [vmem:[#allocation7 + $0x78] sm:$0xff]
    %v133 = vld [vmem:[#allocation8] sm:$0x1]
    %v134 = vld [vmem:[#allocation8 + $0x1] sm:$0x1]
    %v135 = vld [vmem:[#allocation8 + $0x2] sm:$0x1]
    %v136 = vld [vmem:[#allocation8 + $0x3] sm:$0x1]
    %v137 = vld [vmem:[#allocation8 + $0x4] sm:$0x1]
    %v138 = vld [vmem:[#allocation8 + $0x5] sm:$0x1]
    %v139 = vld [vmem:[#allocation8 + $0x6] sm:$0x1]
    %v140 = vld [vmem:[#allocation8 + $0x7] sm:$0x1]
    %v141 = vld [vmem:[#allocation8 + $0x8] sm:$0x1]
    %v142 = vld [vmem:[#allocation8 + $0x9] sm:$0x1]
    %v143 = vld [vmem:[#allocation8 + $0xa] sm:$0x1]
    %v144 = vld [vmem:[#allocation8 + $0xb] sm:$0x1]
    %v145 = vld [vmem:[#allocation8 + $0xc] sm:$0x1]
    %v146 = vld [vmem:[#allocation8 + $0xd] sm:$0x1]
    %v147 = vld [vmem:[#allocation8 + $0xe] sm:$0x1]
    %v148 = vld [vmem:[#allocation8 + $0xf] sm:$0x1]
    %v149 = vld [vmem:[#allocation8 + $0x10] sm:$0x1]
    %v150 = vld [vmem:[#allocation8 + $0x11] sm:$0x1]
    %v151 = vld [vmem:[#allocation8 + $0x12] sm:$0x1]
    %v152 = vld [vmem:[#allocation8 + $0x13] sm:$0x1]
    %v153 = vld [vmem:[#allocation8 + $0x14] sm:$0x1]
    %v154 = vld [vmem:[#allocation8 + $0x15] sm:$0x1]
    %v155 = vld [vmem:[#allocation8 + $0x16] sm:$0x1]
    %v156 = vld [vmem:[#allocation2] sm:$0x1]
    %v157 = vld [vmem:[#allocation2 + $0x2] sm:$0x1]
    %v158 = vld [vmem:[#allocation2 + $0x4] sm:$0x1]
    %v159 = vld [vmem:[#allocation2 + $0x6] sm:$0x1]
    %v160 = vld [vmem:[#allocation2 + $0x8] sm:$0x1]
    %v161 = vld [vmem:[#allocation2 + $0xa] sm:$0x1]
    %v162 = vld [vmem:[#allocation2 + $0xc] sm:$0x1]
    %v163 = vld [vmem:[#allocation2 + $0xe] sm:$0x1]
    %v164 = vlaneseq
    %v165 = vshrl.u32 %v164, 7
    %v166 = vsub.s32 0, %v165
    %v167 = vrot.slane %v133, %v166
    %v176 = vrot.slane %v157, 7
    %vm177 = vcmask 1041409
    %v178 = vsel %vm177, %v176, %v156
    %v179 = vrot.slane %v158, 6
    %vm180 = vcmask 1042434
    %v181 = vsel %vm180, %v179, %v178
    %v182 = vrot.slane %v159, 5
    %vm183 = vcmask 1043459
    %v184 = vsel %vm183, %v182, %v181
    %v185 = vrot.slane %v160, 4
    %vm186 = vcmask 1044484
    %v187 = vsel %vm186, %v185, %v184
    %v188 = vrot.slane %v161, 3
    %vm189 = vcmask 1045509
    %v190 = vsel %vm189, %v188, %v187
    %v191 = vrot.slane %v162, 2
    %vm192 = vcmask 1046534
    %v193 = vsel %vm192, %v191, %v190
    %v194 = vrot.slane %v163, 1
    %vm195 = vcmask 1047559
    %v196 = vsel %vm195, %v194, %v193
    %vm197 = vcmask 261120
    %v198 = vsel %vm197, %v196, 0
    %200 = vmatprep.subr.mxu0 0.0
    %201 = vmatpush1.msra.mxu0 0.0
    %202 = vmatprep.subr.mxu0 0.0
    %203 = vmatpush1.msra.mxu0 0.0
    %204 = vmatprep.subr.mxu0 0.0
    %205 = vmatpush1.msra.mxu0 0.0
    %206 = vmatprep.subr.mxu0 0.0
    %207 = vmatpush1.msra.mxu0 0.0
    %208 = vmatprep.subr.mxu0 0.0
    %209 = vmatpush1.msra.mxu0 0.0
    %210 = vmatprep.subr.mxu0 0.0
    %211 = vmatpush1.msra.mxu0 0.0
    %212 = vmatprep.subr.mxu0 0.0
    %213 = vmatpush1.msra.mxu0 0.0
    %214 = vmatprep.subr.mxu0 0.0
    %215 = vmatpush1.msra.mxu0 0.0
    %216 = vmatprep.subr.mxu0 0.0
    %217 = vmatpush1.msra.mxu0 0.0
    %218 = vmatprep.subr.mxu0 0.0
    %219 = vmatpush1.msra.mxu0 0.0
    %220 = vmatprep.subr.mxu0 0.0
    %221 = vmatpush1.msra.mxu0 0.0
    %222 = vmatprep.subr.mxu0 0.0
    %223 = vmatpush1.msra.mxu0 0.0
    %224 = vmatprep.subr.mxu0 0.0
    %225 = vmatpush1.msra.mxu0 %v76
    %226 = vmatprep.subr.mxu0 0.0
    %227 = vmatpush1.msra.mxu0 %v75
    %228 = vmatprep.subr.mxu0 0.0
    %229 = vmatpush1.msra.mxu0 %v74
    %230 = vmatprep.subr.mxu0 0.0
    %231 = vmatpush1.msra.mxu0 %v73
    %232 = vmatprep.subr.mxu0 0.0
    %233 = vmatpush2.msra.mxu0 0.0
    %234 = vmatprep.subr.mxu0 0.0
    %235 = vmatpush2.msra.mxu0 0.0
    %236 = vmatprep.subr.mxu0 0.0
    %237 = vmatpush2.msra.mxu0 0.0
    %238 = vmatprep.subr.mxu0 0.0
    %239 = vmatpush2.msra.mxu0 0.0
    %240 = vmatprep.subr.mxu0 0.0
    %241 = vmatpush2.msra.mxu0 0.0
    %242 = vmatprep.subr.mxu0 0.0
    %243 = vmatpush2.msra.mxu0 0.0
    %244 = vmatprep.subr.mxu0 0.0
    %245 = vmatpush2.msra.mxu0 0.0
    %246 = vmatprep.subr.mxu0 0.0
    %247 = vmatpush2.msra.mxu0 0.0
    %248 = vmatprep.subr.mxu0 0.0
    %249 = vmatpush2.msra.mxu0 0.0
    %250 = vmatprep.subr.mxu0 0.0
    %251 = vmatpush2.msra.mxu0 0.0
    %252 = vmatprep.subr.mxu0 0.0
    %253 = vmatpush2.msra.mxu0 0.0
    %254 = vmatprep.subr.mxu0 0.0
    %255 = vmatpush2.msra.mxu0 0.0
    %256 = vmatprep.subr.mxu0 0.0
    %257 = vmatpush2.msra.mxu0 0.0
    %258 = vmatprep.subr.mxu0 0.0
    %259 = vmatpush2.msra.mxu0 0.0
    %260 = vmatprep.subr.mxu0 0.0
    %261 = vmatpush2.msra.mxu0 0.0
    %262 = vmatprep.subr.mxu0 0.0
    %263 = vmatpush2.msra.mxu0 0.0
    %264 = vmatprep.mubr.f32.mxu0 0.0
    %265 = vmatmul.mubr.f32.gmra.mxu0 %v198
    %v266 = vpop.f32.mrf.mxu0
    %v267 = vadd.f32 %v167, %v266
    %v268 = vpop.f32.mrf.mxu0
    %269 = vdwg.mxu0
    %v270 = vlaneseq
    %v271 = vshrl.u32 %v270, 7
    %v272 = vsub.s32 0, %v271
    %v273 = vrot.slane %v134, %v272
    %274 = vmatprep.subr.mxu0 0.0
    %275 = vmatpush1.msra.mxu0 0.0
    %276 = vmatprep.subr.mxu0 0.0
    %277 = vmatpush1.msra.mxu0 0.0
    %278 = vmatprep.subr.mxu0 0.0
    %279 = vmatpush1.msra.mxu0 0.0
    %280 = vmatprep.subr.mxu0 0.0
    %281 = vmatpush1.msra.mxu0 0.0
    %282 = vmatprep.subr.mxu0 0.0
    %283 = vmatpush1.msra.mxu0 0.0
    %284 = vmatprep.subr.mxu0 0.0
    %285 = vmatpush1.msra.mxu0 0.0
    %286 = vmatprep.subr.mxu0 0.0
    %287 = vmatpush1.msra.mxu0 0.0
    %288 = vmatprep.subr.mxu0 0.0
    %289 = vmatpush1.msra.mxu0 0.0
    %290 = vmatprep.subr.mxu0 0.0
    %291 = vmatpush1.msra.mxu0 0.0
    %292 = vmatprep.subr.mxu0 0.0
    %293 = vmatpush1.msra.mxu0 0.0
    %294 = vmatprep.subr.mxu0 0.0
    %295 = vmatpush1.msra.mxu0 0.0
    %296 = vmatprep.subr.mxu0 0.0
    %297 = vmatpush1.msra.mxu0 0.0
    %298 = vmatprep.subr.mxu0 0.0
    %299 = vmatpush1.msra.mxu0 %v80
    %300 = vmatprep.subr.mxu0 0.0
    %301 = vmatpush1.msra.mxu0 %v79
    %302 = vmatprep.subr.mxu0 0.0
    %303 = vmatpush1.msra.mxu0 %v78
    %304 = vmatprep.subr.mxu0 0.0
    %305 = vmatpush1.msra.mxu0 %v77
    %306 = vmatprep.subr.mxu0 0.0
    %307 = vmatpush2.msra.mxu0 0.0
    %308 = vmatprep.subr.mxu0 0.0
    %309 = vmatpush2.msra.mxu0 0.0
    %310 = vmatprep.subr.mxu0 0.0
    %311 = vmatpush2.msra.mxu0 0.0
    %312 = vmatprep.subr.mxu0 0.0
    %313 = vmatpush2.msra.mxu0 0.0
    %314 = vmatprep.subr.mxu0 0.0
    %315 = vmatpush2.msra.mxu0 0.0
    %316 = vmatprep.subr.mxu0 0.0
    %317 = vmatpush2.msra.mxu0 0.0
    %318 = vmatprep.subr.mxu0 0.0
    %319 = vmatpush2.msra.mxu0 0.0
    %320 = vmatprep.subr.mxu0 0.0
    %321 = vmatpush2.msra.mxu0 0.0
    %322 = vmatprep.subr.mxu0 0.0
    %323 = vmatpush2.msra.mxu0 0.0
    %324 = vmatprep.subr.mxu0 0.0
    %325 = vmatpush2.msra.mxu0 0.0
    %326 = vmatprep.subr.mxu0 0.0
    %327 = vmatpush2.msra.mxu0 0.0
    %328 = vmatprep.subr.mxu0 0.0
    %329 = vmatpush2.msra.mxu0 0.0
    %330 = vmatprep.subr.mxu0 0.0
    %331 = vmatpush2.msra.mxu0 0.0
    %332 = vmatprep.subr.mxu0 0.0
    %333 = vmatpush2.msra.mxu0 0.0
    %334 = vmatprep.subr.mxu0 0.0
    %335 = vmatpush2.msra.mxu0 0.0
    %336 = vmatprep.subr.mxu0 0.0
    %337 = vmatpush2.msra.mxu0 0.0
    %338 = vmatprep.mubr.f32.mxu0 0.0
    %339 = vmatmul.mubr.f32.gmra.mxu0 %v198
    %v340 = vpop.f32.mrf.mxu0
    %v341 = vadd.f32 %v273, %v340
    %v342 = vpop.f32.mrf.mxu0
    %343 = vdwg.mxu0
    %vm344 = vcmask 64512
    %v346 = vsel %vm344, %v267, 0
    %v349 = vsel %vm344, %v341, 0
    %351 = vmatprep.subr.mxu0 0.0
    %352 = vmatpush1.xpose.msra.mxu0 0.0
    %353 = vmatprep.subr.mxu0 0.0
    %354 = vmatpush1.xpose.msra.mxu0 0.0
    %355 = vmatprep.subr.mxu0 0.0
    %356 = vmatpush1.xpose.msra.mxu0 0.0
    %357 = vmatprep.subr.mxu0 0.0
    %358 = vmatpush1.xpose.msra.mxu0 0.0
    %359 = vmatprep.subr.mxu0 0.0
    %360 = vmatpush1.xpose.msra.mxu0 0.0
    %361 = vmatprep.subr.mxu0 0.0
    %362 = vmatpush1.xpose.msra.mxu0 0.0
    %363 = vmatprep.subr.mxu0 0.0
    %364 = vmatpush1.xpose.msra.mxu0 0.0
    %365 = vmatprep.subr.mxu0 0.0
    %366 = vmatpush1.xpose.msra.mxu0 0.0
    %367 = vmatprep.subr.mxu0 0.0
    %368 = vmatpush1.xpose.msra.mxu0 0.0
    %369 = vmatprep.subr.mxu0 0.0
    %370 = vmatpush1.xpose.msra.mxu0 0.0
    %371 = vmatprep.subr.mxu0 0.0
    %372 = vmatpush1.xpose.msra.mxu0 0.0
    %373 = vmatprep.subr.mxu0 0.0
    %374 = vmatpush1.xpose.msra.mxu0 0.0
    %375 = vmatprep.subr.mxu0 0.0
    %376 = vmatpush1.xpose.msra.mxu0 0.0
    %377 = vmatprep.subr.mxu0 0.0
    %378 = vmatpush1.xpose.msra.mxu0 0.0
    %379 = vmatprep.subr.mxu0 0.0
    %380 = vmatpush1.xpose.msra.mxu0 0.0
    %381 = vmatprep.subr.mxu0 0.0
    %382 = vmatpush1.xpose.msra.mxu0 %v349
    %383 = vmatprep.subr.mxu0 0.0
    %384 = vmatpush2.xpose.msra.mxu0 0.0
    %385 = vmatprep.subr.mxu0 0.0
    %386 = vmatpush2.xpose.msra.mxu0 0.0
    %387 = vmatprep.subr.mxu0 0.0
    %388 = vmatpush2.xpose.msra.mxu0 0.0
    %389 = vmatprep.subr.mxu0 0.0
    %390 = vmatpush2.xpose.msra.mxu0 0.0
    %391 = vmatprep.subr.mxu0 0.0
    %392 = vmatpush2.xpose.msra.mxu0 0.0
    %393 = vmatprep.subr.mxu0 0.0
    %394 = vmatpush2.xpose.msra.mxu0 0.0
    %395 = vmatprep.subr.mxu0 0.0
    %396 = vmatpush2.xpose.msra.mxu0 0.0
    %397 = vmatprep.subr.mxu0 0.0
    %398 = vmatpush2.xpose.msra.mxu0 0.0
    %399 = vmatprep.subr.mxu0 0.0
    %400 = vmatpush2.xpose.msra.mxu0 0.0
    %401 = vmatprep.subr.mxu0 0.0
    %402 = vmatpush2.xpose.msra.mxu0 0.0
    %403 = vmatprep.subr.mxu0 0.0
    %404 = vmatpush2.xpose.msra.mxu0 0.0
    %405 = vmatprep.subr.mxu0 0.0
    %406 = vmatpush2.xpose.msra.mxu0 0.0
    %407 = vmatprep.subr.mxu0 0.0
    %408 = vmatpush2.xpose.msra.mxu0 0.0
    %409 = vmatprep.subr.mxu0 0.0
    %410 = vmatpush2.xpose.msra.mxu0 0.0
    %411 = vmatprep.subr.mxu0 0.0
    %412 = vmatpush2.xpose.msra.mxu0 0.0
    %413 = vmatprep.subr.mxu0 0.0
    %414 = vmatpush2.xpose.msra.mxu0 0.0
    %415 = vmatprep.mubr.f32.mxu0 0.0
    %416 = vmatmul.mubr.f32.gmra.mxu0 %v346
    %v417 = vpop.f32.mrf.mxu0
    %v418 = vadd.f32 0.0, %v417
    %v419 = vpop.f32.mrf.mxu0
    %420 = vdwg.mxu0
    %v421 = vsel %vm344, %v418, -inf
    %422 = vmax.xlane.f32.xlu0 %v421
    %v423 = vpop.xlane.xlu0 %422
    %v424 = vsub.f32 %v418, %v423
    %v425 = vmul.f32 %v424, 1.442695
    %v426 = vpow.pop %v425
    %v427 = vsel %vm344, %v426, 0.0
    %428 = vadd.xlane.f32.xlu0 %v427
    %v429 = vpop.xlane.xlu0 %428
    %v430 = vrcp.pop %v429
    %v431 = vmul.f32 %v426, %v430
    %432 = vrot.lane.b32.xlu0 %v341, 96
    %v433 = vpop.permute.xlu0 %432
    %v436 = vsel %vm344, %v431, 0
    %438 = vmatprep.subr.mxu0 0.0
    %439 = vmatpush1.msra.mxu0 0.0
    %440 = vmatprep.subr.mxu0 0.0
    %441 = vmatpush1.msra.mxu0 0.0
    %442 = vmatprep.subr.mxu0 0.0
    %443 = vmatpush1.msra.mxu0 0.0
    %444 = vmatprep.subr.mxu0 0.0
    %445 = vmatpush1.msra.mxu0 0.0
    %446 = vmatprep.subr.mxu0 0.0
    %447 = vmatpush1.msra.mxu0 0.0
    %448 = vmatprep.subr.mxu0 0.0
    %449 = vmatpush1.msra.mxu0 0.0
    %450 = vmatprep.subr.mxu0 0.0
    %451 = vmatpush1.msra.mxu0 0.0
    %452 = vmatprep.subr.mxu0 0.0
    %453 = vmatpush1.msra.mxu0 0.0
    %454 = vmatprep.subr.mxu0 0.0
    %455 = vmatpush1.msra.mxu0 0.0
    %456 = vmatprep.subr.mxu0 0.0
    %457 = vmatpush1.msra.mxu0 0.0
    %458 = vmatprep.subr.mxu0 0.0
    %459 = vmatpush1.msra.mxu0 0.0
    %460 = vmatprep.subr.mxu0 0.0
    %461 = vmatpush1.msra.mxu0 0.0
    %462 = vmatprep.subr.mxu0 0.0
    %463 = vmatpush1.msra.mxu0 0.0
    %464 = vmatprep.subr.mxu0 0.0
    %465 = vmatpush1.msra.mxu0 0.0
    %466 = vmatprep.subr.mxu0 0.0
    %467 = vmatpush1.msra.mxu0 0.0
    %468 = vmatprep.subr.mxu0 0.0
    %469 = vmatpush1.msra.mxu0 %v433
    %470 = vmatprep.subr.mxu0 0.0
    %471 = vmatpush2.msra.mxu0 0.0
    %472 = vmatprep.subr.mxu0 0.0
    %473 = vmatpush2.msra.mxu0 0.0
    %474 = vmatprep.subr.mxu0 0.0
    %475 = vmatpush2.msra.mxu0 0.0
    %476 = vmatprep.subr.mxu0 0.0
    %477 = vmatpush2.msra.mxu0 0.0
    %478 = vmatprep.subr.mxu0 0.0
    %479 = vmatpush2.msra.mxu0 0.0
    %480 = vmatprep.subr.mxu0 0.0
    %481 = vmatpush2.msra.mxu0 0.0
    %482 = vmatprep.subr.mxu0 0.0
    %483 = vmatpush2.msra.mxu0 0.0
    %484 = vmatprep.subr.mxu0 0.0
    %485 = vmatpush2.msra.mxu0 0.0
    %486 = vmatprep.subr.mxu0 0.0
    %487 = vmatpush2.msra.mxu0 0.0
    %488 = vmatprep.subr.mxu0 0.0
    %489 = vmatpush2.msra.mxu0 0.0
    %490 = vmatprep.subr.mxu0 0.0
    %491 = vmatpush2.msra.mxu0 0.0
    %492 = vmatprep.subr.mxu0 0.0
    %493 = vmatpush2.msra.mxu0 0.0
    %494 = vmatprep.subr.mxu0 0.0
    %495 = vmatpush2.msra.mxu0 0.0
    %496 = vmatprep.subr.mxu0 0.0
    %497 = vmatpush2.msra.mxu0 0.0
    %498 = vmatprep.subr.mxu0 0.0
    %499 = vmatpush2.msra.mxu0 0.0
    %500 = vmatprep.subr.mxu0 0.0
    %501 = vmatpush2.msra.mxu0 0.0
    %502 = vmatprep.mubr.f32.mxu0 0.0
    %503 = vmatmul.mubr.f32.gmra.mxu0 %v436
    %v504 = vpop.f32.mrf.mxu0
    %v505 = vadd.f32 0.0, %v504
    %v506 = vpop.f32.mrf.mxu0
    %507 = vdwg.mxu0
    %508 = vrot.lane.b32.xlu0 %v267, 120
    %v509 = vpop.permute.xlu0 %508
    %510 = vrot.lane.b32.xlu0 %v341, 120
    %v511 = vpop.permute.xlu0 %510
    %v512 = vsel %vm344, %v509, 0
    %v514 = vsel %vm344, %v511, 0
    %516 = vmatprep.subr.mxu0 0.0
    %517 = vmatpush1.xpose.msra.mxu0 0.0
    %518 = vmatprep.subr.mxu0 0.0
    %519 = vmatpush1.xpose.msra.mxu0 0.0
    %520 = vmatprep.subr.mxu0 0.0
    %521 = vmatpush1.xpose.msra.mxu0 0.0
    %522 = vmatprep.subr.mxu0 0.0
    %523 = vmatpush1.xpose.msra.mxu0 0.0
    %524 = vmatprep.subr.mxu0 0.0
    %525 = vmatpush1.xpose.msra.mxu0 0.0
    %526 = vmatprep.subr.mxu0 0.0
    %527 = vmatpush1.xpose.msra.mxu0 0.0
    %528 = vmatprep.subr.mxu0 0.0
    %529 = vmatpush1.xpose.msra.mxu0 0.0
    %530 = vmatprep.subr.mxu0 0.0
    %531 = vmatpush1.xpose.msra.mxu0 0.0
    %532 = vmatprep.subr.mxu0 0.0
    %533 = vmatpush1.xpose.msra.mxu0 0.0
    %534 = vmatprep.subr.mxu0 0.0
    %535 = vmatpush1.xpose.msra.mxu0 0.0
    %536 = vmatprep.subr.mxu0 0.0
    %537 = vmatpush1.xpose.msra.mxu0 0.0
    %538 = vmatprep.subr.mxu0 0.0
    %539 = vmatpush1.xpose.msra.mxu0 0.0
    %540 = vmatprep.subr.mxu0 0.0
    %541 = vmatpush1.xpose.msra.mxu0 0.0
    %542 = vmatprep.subr.mxu0 0.0
    %543 = vmatpush1.xpose.msra.mxu0 0.0
    %544 = vmatprep.subr.mxu0 0.0
    %545 = vmatpush1.xpose.msra.mxu0 0.0
    %546 = vmatprep.subr.mxu0 0.0
    %547 = vmatpush1.xpose.msra.mxu0 %v514
    %548 = vmatprep.subr.mxu0 0.0
    %549 = vmatpush2.xpose.msra.mxu0 0.0
    %550 = vmatprep.subr.mxu0 0.0
    %551 = vmatpush2.xpose.msra.mxu0 0.0
    %552 = vmatprep.subr.mxu0 0.0
    %553 = vmatpush2.xpose.msra.mxu0 0.0
    %554 = vmatprep.subr.mxu0 0.0
    %555 = vmatpush2.xpose.msra.mxu0 0.0
    %556 = vmatprep.subr.mxu0 0.0
    %557 = vmatpush2.xpose.msra.mxu0 0.0
    %558 = vmatprep.subr.mxu0 0.0
    %559 = vmatpush2.xpose.msra.mxu0 0.0
    %560 = vmatprep.subr.mxu0 0.0
    %561 = vmatpush2.xpose.msra.mxu0 0.0
    %562 = vmatprep.subr.mxu0 0.0
    %563 = vmatpush2.xpose.msra.mxu0 0.0
    %564 = vmatprep.subr.mxu0 0.0
    %565 = vmatpush2.xpose.msra.mxu0 0.0
    %566 = vmatprep.subr.mxu0 0.0
    %567 = vmatpush2.xpose.msra.mxu0 0.0
    %568 = vmatprep.subr.mxu0 0.0
    %569 = vmatpush2.xpose.msra.mxu0 0.0
    %570 = vmatprep.subr.mxu0 0.0
    %571 = vmatpush2.xpose.msra.mxu0 0.0
    %572 = vmatprep.subr.mxu0 0.0
    %573 = vmatpush2.xpose.msra.mxu0 0.0
    %574 = vmatprep.subr.mxu0 0.0
    %575 = vmatpush2.xpose.msra.mxu0 0.0
    %576 = vmatprep.subr.mxu0 0.0
    %577 = vmatpush2.xpose.msra.mxu0 0.0
    %578 = vmatprep.subr.mxu0 0.0
    %579 = vmatpush2.xpose.msra.mxu0 0.0
    %580 = vmatprep.mubr.f32.mxu0 0.0
    %581 = vmatmul.mubr.f32.gmra.mxu0 %v512
    %v582 = vpop.f32.mrf.mxu0
    %v583 = vadd.f32 0.0, %v582
    %v584 = vpop.f32.mrf.mxu0
    %585 = vdwg.mxu0
    %v586 = vsel %vm344, %v583, -inf
    %587 = vmax.xlane.f32.xlu0 %v586
    %v588 = vpop.xlane.xlu0 %587
    %v589 = vsub.f32 %v583, %v588
    %v590 = vmul.f32 %v589, 1.442695
    %v591 = vpow.pop %v590
    %v592 = vsel %vm344, %v591, 0.0
    %593 = vadd.xlane.f32.xlu0 %v592
    %v594 = vpop.xlane.xlu0 %593
    %v595 = vrcp.pop %v594
    %v596 = vmul.f32 %v591, %v595
    %597 = vrot.lane.b32.xlu0 %v341, 88
    %v598 = vpop.permute.xlu0 %597
    %v601 = vsel %vm344, %v596, 0
    %603 = vmatprep.subr.mxu0 0.0
    %604 = vmatpush1.msra.mxu0 0.0
    %605 = vmatprep.subr.mxu0 0.0
    %606 = vmatpush1.msra.mxu0 0.0
    %607 = vmatprep.subr.mxu0 0.0
    %608 = vmatpush1.msra.mxu0 0.0
    %609 = vmatprep.subr.mxu0 0.0
    %610 = vmatpush1.msra.mxu0 0.0
    %611 = vmatprep.subr.mxu0 0.0
    %612 = vmatpush1.msra.mxu0 0.0
    %613 = vmatprep.subr.mxu0 0.0
    %614 = vmatpush1.msra.mxu0 0.0
    %615 = vmatprep.subr.mxu0 0.0
    %616 = vmatpush1.msra.mxu0 0.0
    %617 = vmatprep.subr.mxu0 0.0
    %618 = vmatpush1.msra.mxu0 0.0
    %619 = vmatprep.subr.mxu0 0.0
    %620 = vmatpush1.msra.mxu0 0.0
    %621 = vmatprep.subr.mxu0 0.0
    %622 = vmatpush1.msra.mxu0 0.0
    %623 = vmatprep.subr.mxu0 0.0
    %624 = vmatpush1.msra.mxu0 0.0
    %625 = vmatprep.subr.mxu0 0.0
    %626 = vmatpush1.msra.mxu0 0.0
    %627 = vmatprep.subr.mxu0 0.0
    %628 = vmatpush1.msra.mxu0 0.0
    %629 = vmatprep.subr.mxu0 0.0
    %630 = vmatpush1.msra.mxu0 0.0
    %631 = vmatprep.subr.mxu0 0.0
    %632 = vmatpush1.msra.mxu0 0.0
    %633 = vmatprep.subr.mxu0 0.0
    %634 = vmatpush1.msra.mxu0 %v598
    %635 = vmatprep.subr.mxu0 0.0
    %636 = vmatpush2.msra.mxu0 0.0
    %637 = vmatprep.subr.mxu0 0.0
    %638 = vmatpush2.msra.mxu0 0.0
    %639 = vmatprep.subr.mxu0 0.0
    %640 = vmatpush2.msra.mxu0 0.0
    %641 = vmatprep.subr.mxu0 0.0
    %642 = vmatpush2.msra.mxu0 0.0
    %643 = vmatprep.subr.mxu0 0.0
    %644 = vmatpush2.msra.mxu0 0.0
    %645 = vmatprep.subr.mxu0 0.0
    %646 = vmatpush2.msra.mxu0 0.0
    %647 = vmatprep.subr.mxu0 0.0
    %648 = vmatpush2.msra.mxu0 0.0
    %649 = vmatprep.subr.mxu0 0.0
    %650 = vmatpush2.msra.mxu0 0.0
    %651 = vmatprep.subr.mxu0 0.0
    %652 = vmatpush2.msra.mxu0 0.0
    %653 = vmatprep.subr.mxu0 0.0
    %654 = vmatpush2.msra.mxu0 0.0
    %655 = vmatprep.subr.mxu0 0.0
    %656 = vmatpush2.msra.mxu0 0.0
    %657 = vmatprep.subr.mxu0 0.0
    %658 = vmatpush2.msra.mxu0 0.0
    %659 = vmatprep.subr.mxu0 0.0
    %660 = vmatpush2.msra.mxu0 0.0
    %661 = vmatprep.subr.mxu0 0.0
    %662 = vmatpush2.msra.mxu0 0.0
    %663 = vmatprep.subr.mxu0 0.0
    %664 = vmatpush2.msra.mxu0 0.0
    %665 = vmatprep.subr.mxu0 0.0
    %666 = vmatpush2.msra.mxu0 0.0
    %667 = vmatprep.mubr.f32.mxu0 0.0
    %668 = vmatmul.mubr.f32.gmra.mxu0 %v601
    %v669 = vpop.f32.mrf.mxu0
    %v670 = vadd.f32 0.0, %v669
    %v671 = vpop.f32.mrf.mxu0
    %672 = vdwg.mxu0
    %673 = vrot.lane.b32.xlu0 %v267, 112
    %v674 = vpop.permute.xlu0 %673
    %675 = vrot.lane.b32.xlu0 %v341, 112
    %v676 = vpop.permute.xlu0 %675
    %v677 = vsel %vm344, %v674, 0
    %v679 = vsel %vm344, %v676, 0
    %681 = vmatprep.subr.mxu0 0.0
    %682 = vmatpush1.xpose.msra.mxu0 0.0
    %683 = vmatprep.subr.mxu0 0.0
    %684 = vmatpush1.xpose.msra.mxu0 0.0
    %685 = vmatprep.subr.mxu0 0.0
    %686 = vmatpush1.xpose.msra.mxu0 0.0
    %687 = vmatprep.subr.mxu0 0.0
    %688 = vmatpush1.xpose.msra.mxu0 0.0
    %689 = vmatprep.subr.mxu0 0.0
    %690 = vmatpush1.xpose.msra.mxu0 0.0
    %691 = vmatprep.subr.mxu0 0.0
    %692 = vmatpush1.xpose.msra.mxu0 0.0
    %693 = vmatprep.subr.mxu0 0.0
    %694 = vmatpush1.xpose.msra.mxu0 0.0
    %695 = vmatprep.subr.mxu0 0.0
    %696 = vmatpush1.xpose.msra.mxu0 0.0
    %697 = vmatprep.subr.mxu0 0.0
    %698 = vmatpush1.xpose.msra.mxu0 0.0
    %699 = vmatprep.subr.mxu0 0.0
    %700 = vmatpush1.xpose.msra.mxu0 0.0
    %701 = vmatprep.subr.mxu0 0.0
    %702 = vmatpush1.xpose.msra.mxu0 0.0
    %703 = vmatprep.subr.mxu0 0.0
    %704 = vmatpush1.xpose.msra.mxu0 0.0
    %705 = vmatprep.subr.mxu0 0.0
    %706 = vmatpush1.xpose.msra.mxu0 0.0
    %707 = vmatprep.subr.mxu0 0.0
    %708 = vmatpush1.xpose.msra.mxu0 0.0
    %709 = vmatprep.subr.mxu0 0.0
    %710 = vmatpush1.xpose.msra.mxu0 0.0
    %711 = vmatprep.subr.mxu0 0.0
    %712 = vmatpush1.xpose.msra.mxu0 %v679
    %713 = vmatprep.subr.mxu0 0.0
    %714 = vmatpush2.xpose.msra.mxu0 0.0
    %715 = vmatprep.subr.mxu0 0.0
    %716 = vmatpush2.xpose.msra.mxu0 0.0
    %717 = vmatprep.subr.mxu0 0.0
    %718 = vmatpush2.xpose.msra.mxu0 0.0
    %719 = vmatprep.subr.mxu0 0.0
    %720 = vmatpush2.xpose.msra.mxu0 0.0
    %721 = vmatprep.subr.mxu0 0.0
    %722 = vmatpush2.xpose.msra.mxu0 0.0
    %723 = vmatprep.subr.mxu0 0.0
    %724 = vmatpush2.xpose.msra.mxu0 0.0
    %725 = vmatprep.subr.mxu0 0.0
    %726 = vmatpush2.xpose.msra.mxu0 0.0
    %727 = vmatprep.subr.mxu0 0.0
    %728 = vmatpush2.xpose.msra.mxu0 0.0
    %729 = vmatprep.subr.mxu0 0.0
    %730 = vmatpush2.xpose.msra.mxu0 0.0
    %731 = vmatprep.subr.mxu0 0.0
    %732 = vmatpush2.xpose.msra.mxu0 0.0
    %733 = vmatprep.subr.mxu0 0.0
    %734 = vmatpush2.xpose.msra.mxu0 0.0
    %735 = vmatprep.subr.mxu0 0.0
    %736 = vmatpush2.xpose.msra.mxu0 0.0
    %737 = vmatprep.subr.mxu0 0.0
    %738 = vmatpush2.xpose.msra.mxu0 0.0
    %739 = vmatprep.subr.mxu0 0.0
    %740 = vmatpush2.xpose.msra.mxu0 0.0
    %741 = vmatprep.subr.mxu0 0.0
    %742 = vmatpush2.xpose.msra.mxu0 0.0
    %743 = vmatprep.subr.mxu0 0.0
    %744 = vmatpush2.xpose.msra.mxu0 0.0
    %745 = vmatprep.mubr.f32.mxu0 0.0
    %746 = vmatmul.mubr.f32.gmra.mxu0 %v677
    %v747 = vpop.f32.mrf.mxu0
    %v748 = vadd.f32 0.0, %v747
    %v749 = vpop.f32.mrf.mxu0
    %750 = vdwg.mxu0
    %v751 = vsel %vm344, %v748, -inf
    %752 = vmax.xlane.f32.xlu0 %v751
    %v753 = vpop.xlane.xlu0 %752
    %v754 = vsub.f32 %v748, %v753
    %v755 = vmul.f32 %v754, 1.442695
    %v756 = vpow.pop %v755
    %v757 = vsel %vm344, %v756, 0.0
    %758 = vadd.xlane.f32.xlu0 %v757
    %v759 = vpop.xlane.xlu0 %758
    %v760 = vrcp.pop %v759
    %v761 = vmul.f32 %v756, %v760
    %762 = vrot.lane.b32.xlu0 %v341, 80
    %v763 = vpop.permute.xlu0 %762
    %v766 = vsel %vm344, %v761, 0
    %768 = vmatprep.subr.mxu0 0.0
    %769 = vmatpush1.msra.mxu0 0.0
    %770 = vmatprep.subr.mxu0 0.0
    %771 = vmatpush1.msra.mxu0 0.0
    %772 = vmatprep.subr.mxu0 0.0
    %773 = vmatpush1.msra.mxu0 0.0
    %774 = vmatprep.subr.mxu0 0.0
    %775 = vmatpush1.msra.mxu0 0.0
    %776 = vmatprep.subr.mxu0 0.0
    %777 = vmatpush1.msra.mxu0 0.0
    %778 = vmatprep.subr.mxu0 0.0
    %779 = vmatpush1.msra.mxu0 0.0
    %780 = vmatprep.subr.mxu0 0.0
    %781 = vmatpush1.msra.mxu0 0.0
    %782 = vmatprep.subr.mxu0 0.0
    %783 = vmatpush1.msra.mxu0 0.0
    %784 = vmatprep.subr.mxu0 0.0
    %785 = vmatpush1.msra.mxu0 0.0
    %786 = vmatprep.subr.mxu0 0.0
    %787 = vmatpush1.msra.mxu0 0.0
    %788 = vmatprep.subr.mxu0 0.0
    %789 = vmatpush1.msra.mxu0 0.0
    %790 = vmatprep.subr.mxu0 0.0
    %791 = vmatpush1.msra.mxu0 0.0
    %792 = vmatprep.subr.mxu0 0.0
    %793 = vmatpush1.msra.mxu0 0.0
    %794 = vmatprep.subr.mxu0 0.0
    %795 = vmatpush1.msra.mxu0 0.0
    %796 = vmatprep.subr.mxu0 0.0
    %797 = vmatpush1.msra.mxu0 0.0
    %798 = vmatprep.subr.mxu0 0.0
    %799 = vmatpush1.msra.mxu0 %v763
    %800 = vmatprep.subr.mxu0 0.0
    %801 = vmatpush2.msra.mxu0 0.0
    %802 = vmatprep.subr.mxu0 0.0
    %803 = vmatpush2.msra.mxu0 0.0
    %804 = vmatprep.subr.mxu0 0.0
    %805 = vmatpush2.msra.mxu0 0.0
    %806 = vmatprep.subr.mxu0 0.0
    %807 = vmatpush2.msra.mxu0 0.0
    %808 = vmatprep.subr.mxu0 0.0
    %809 = vmatpush2.msra.mxu0 0.0
    %810 = vmatprep.subr.mxu0 0.0
    %811 = vmatpush2.msra.mxu0 0.0
    %812 = vmatprep.subr.mxu0 0.0
    %813 = vmatpush2.msra.mxu0 0.0
    %814 = vmatprep.subr.mxu0 0.0
    %815 = vmatpush2.msra.mxu0 0.0
    %816 = vmatprep.subr.mxu0 0.0
    %817 = vmatpush2.msra.mxu0 0.0
    %818 = vmatprep.subr.mxu0 0.0
    %819 = vmatpush2.msra.mxu0 0.0
    %820 = vmatprep.subr.mxu0 0.0
    %821 = vmatpush2.msra.mxu0 0.0
    %822 = vmatprep.subr.mxu0 0.0
    %823 = vmatpush2.msra.mxu0 0.0
    %824 = vmatprep.subr.mxu0 0.0
    %825 = vmatpush2.msra.mxu0 0.0
    %826 = vmatprep.subr.mxu0 0.0
    %827 = vmatpush2.msra.mxu0 0.0
    %828 = vmatprep.subr.mxu0 0.0
    %829 = vmatpush2.msra.mxu0 0.0
    %830 = vmatprep.subr.mxu0 0.0
    %831 = vmatpush2.msra.mxu0 0.0
    %832 = vmatprep.mubr.f32.mxu0 0.0
    %833 = vmatmul.mubr.f32.gmra.mxu0 %v766
    %v834 = vpop.f32.mrf.mxu0
    %v835 = vadd.f32 0.0, %v834
    %v836 = vpop.f32.mrf.mxu0
    %837 = vdwg.mxu0
    %838 = vrot.lane.b32.xlu0 %v267, 104
    %v839 = vpop.permute.xlu0 %838
    %840 = vrot.lane.b32.xlu0 %v341, 104
    %v841 = vpop.permute.xlu0 %840
    %v842 = vsel %vm344, %v839, 0
    %v844 = vsel %vm344, %v841, 0
    %846 = vmatprep.subr.mxu0 0.0
    %847 = vmatpush1.xpose.msra.mxu0 0.0
    %848 = vmatprep.subr.mxu0 0.0
    %849 = vmatpush1.xpose.msra.mxu0 0.0
    %850 = vmatprep.subr.mxu0 0.0
    %851 = vmatpush1.xpose.msra.mxu0 0.0
    %852 = vmatprep.subr.mxu0 0.0
    %853 = vmatpush1.xpose.msra.mxu0 0.0
    %854 = vmatprep.subr.mxu0 0.0
    %855 = vmatpush1.xpose.msra.mxu0 0.0
    %856 = vmatprep.subr.mxu0 0.0
    %857 = vmatpush1.xpose.msra.mxu0 0.0
    %858 = vmatprep.subr.mxu0 0.0
    %859 = vmatpush1.xpose.msra.mxu0 0.0
    %860 = vmatprep.subr.mxu0 0.0
    %861 = vmatpush1.xpose.msra.mxu0 0.0
    %862 = vmatprep.subr.mxu0 0.0
    %863 = vmatpush1.xpose.msra.mxu0 0.0
    %864 = vmatprep.subr.mxu0 0.0
    %865 = vmatpush1.xpose.msra.mxu0 0.0
    %866 = vmatprep.subr.mxu0 0.0
    %867 = vmatpush1.xpose.msra.mxu0 0.0
    %868 = vmatprep.subr.mxu0 0.0
    %869 = vmatpush1.xpose.msra.mxu0 0.0
    %870 = vmatprep.subr.mxu0 0.0
    %871 = vmatpush1.xpose.msra.mxu0 0.0
    %872 = vmatprep.subr.mxu0 0.0
    %873 = vmatpush1.xpose.msra.mxu0 0.0
    %874 = vmatprep.subr.mxu0 0.0
    %875 = vmatpush1.xpose.msra.mxu0 0.0
    %876 = vmatprep.subr.mxu0 0.0
    %877 = vmatpush1.xpose.msra.mxu0 %v844
    %878 = vmatprep.subr.mxu0 0.0
    %879 = vmatpush2.xpose.msra.mxu0 0.0
    %880 = vmatprep.subr.mxu0 0.0
    %881 = vmatpush2.xpose.msra.mxu0 0.0
    %882 = vmatprep.subr.mxu0 0.0
    %883 = vmatpush2.xpose.msra.mxu0 0.0
    %884 = vmatprep.subr.mxu0 0.0
    %885 = vmatpush2.xpose.msra.mxu0 0.0
    %886 = vmatprep.subr.mxu0 0.0
    %887 = vmatpush2.xpose.msra.mxu0 0.0
    %888 = vmatprep.subr.mxu0 0.0
    %889 = vmatpush2.xpose.msra.mxu0 0.0
    %890 = vmatprep.subr.mxu0 0.0
    %891 = vmatpush2.xpose.msra.mxu0 0.0
    %892 = vmatprep.subr.mxu0 0.0
    %893 = vmatpush2.xpose.msra.mxu0 0.0
    %894 = vmatprep.subr.mxu0 0.0
    %895 = vmatpush2.xpose.msra.mxu0 0.0
    %896 = vmatprep.subr.mxu0 0.0
    %897 = vmatpush2.xpose.msra.mxu0 0.0
    %898 = vmatprep.subr.mxu0 0.0
    %899 = vmatpush2.xpose.msra.mxu0 0.0
    %900 = vmatprep.subr.mxu0 0.0
    %901 = vmatpush2.xpose.msra.mxu0 0.0
    %902 = vmatprep.subr.mxu0 0.0
    %903 = vmatpush2.xpose.msra.mxu0 0.0
    %904 = vmatprep.subr.mxu0 0.0
    %905 = vmatpush2.xpose.msra.mxu0 0.0
    %906 = vmatprep.subr.mxu0 0.0
    %907 = vmatpush2.xpose.msra.mxu0 0.0
    %908 = vmatprep.subr.mxu0 0.0
    %909 = vmatpush2.xpose.msra.mxu0 0.0
    %910 = vmatprep.mubr.f32.mxu0 0.0
    %911 = vmatmul.mubr.f32.gmra.mxu0 %v842
    %v912 = vpop.f32.mrf.mxu0
    %v913 = vadd.f32 0.0, %v912
    %v914 = vpop.f32.mrf.mxu0
    %915 = vdwg.mxu0
    %v916 = vsel %vm344, %v913, -inf
    %917 = vmax.xlane.f32.xlu0 %v916
    %v918 = vpop.xlane.xlu0 %917
    %v919 = vsub.f32 %v913, %v918
    %v920 = vmul.f32 %v919, 1.442695
    %v921 = vpow.pop %v920
    %v922 = vsel %vm344, %v921, 0.0
    %923 = vadd.xlane.f32.xlu0 %v922
    %v924 = vpop.xlane.xlu0 %923
    %v925 = vrcp.pop %v924
    %v926 = vmul.f32 %v921, %v925
    %927 = vrot.lane.b32.xlu0 %v341, 72
    %v928 = vpop.permute.xlu0 %927
    %v931 = vsel %vm344, %v926, 0
    %933 = vmatprep.subr.mxu0 0.0
    %934 = vmatpush1.msra.mxu0 0.0
    %935 = vmatprep.subr.mxu0 0.0
    %936 = vmatpush1.msra.mxu0 0.0
    %937 = vmatprep.subr.mxu0 0.0
    %938 = vmatpush1.msra.mxu0 0.0
    %939 = vmatprep.subr.mxu0 0.0
    %940 = vmatpush1.msra.mxu0 0.0
    %941 = vmatprep.subr.mxu0 0.0
    %942 = vmatpush1.msra.mxu0 0.0
    %943 = vmatprep.subr.mxu0 0.0
    %944 = vmatpush1.msra.mxu0 0.0
    %945 = vmatprep.subr.mxu0 0.0
    %946 = vmatpush1.msra.mxu0 0.0
    %947 = vmatprep.subr.mxu0 0.0
    %948 = vmatpush1.msra.mxu0 0.0
    %949 = vmatprep.subr.mxu0 0.0
    %950 = vmatpush1.msra.mxu0 0.0
    %951 = vmatprep.subr.mxu0 0.0
    %952 = vmatpush1.msra.mxu0 0.0
    %953 = vmatprep.subr.mxu0 0.0
    %954 = vmatpush1.msra.mxu0 0.0
    %955 = vmatprep.subr.mxu0 0.0
    %956 = vmatpush1.msra.mxu0 0.0
    %957 = vmatprep.subr.mxu0 0.0
    %958 = vmatpush1.msra.mxu0 0.0
    %959 = vmatprep.subr.mxu0 0.0
    %960 = vmatpush1.msra.mxu0 0.0
    %961 = vmatprep.subr.mxu0 0.0
    %962 = vmatpush1.msra.mxu0 0.0
    %963 = vmatprep.subr.mxu0 0.0
    %964 = vmatpush1.msra.mxu0 %v928
    %965 = vmatprep.subr.mxu0 0.0
    %966 = vmatpush2.msra.mxu0 0.0
    %967 = vmatprep.subr.mxu0 0.0
    %968 = vmatpush2.msra.mxu0 0.0
    %969 = vmatprep.subr.mxu0 0.0
    %970 = vmatpush2.msra.mxu0 0.0
    %971 = vmatprep.subr.mxu0 0.0
    %972 = vmatpush2.msra.mxu0 0.0
    %973 = vmatprep.subr.mxu0 0.0
    %974 = vmatpush2.msra.mxu0 0.0
    %975 = vmatprep.subr.mxu0 0.0
    %976 = vmatpush2.msra.mxu0 0.0
    %977 = vmatprep.subr.mxu0 0.0
    %978 = vmatpush2.msra.mxu0 0.0
    %979 = vmatprep.subr.mxu0 0.0
    %980 = vmatpush2.msra.mxu0 0.0
    %981 = vmatprep.subr.mxu0 0.0
    %982 = vmatpush2.msra.mxu0 0.0
    %983 = vmatprep.subr.mxu0 0.0
    %984 = vmatpush2.msra.mxu0 0.0
    %985 = vmatprep.subr.mxu0 0.0
    %986 = vmatpush2.msra.mxu0 0.0
    %987 = vmatprep.subr.mxu0 0.0
    %988 = vmatpush2.msra.mxu0 0.0
    %989 = vmatprep.subr.mxu0 0.0
    %990 = vmatpush2.msra.mxu0 0.0
    %991 = vmatprep.subr.mxu0 0.0
    %992 = vmatpush2.msra.mxu0 0.0
    %993 = vmatprep.subr.mxu0 0.0
    %994 = vmatpush2.msra.mxu0 0.0
    %995 = vmatprep.subr.mxu0 0.0
    %996 = vmatpush2.msra.mxu0 0.0
    %997 = vmatprep.mubr.f32.mxu0 0.0
    %998 = vmatmul.mubr.f32.gmra.mxu0 %v931
    %v999 = vpop.f32.mrf.mxu0
    %v1000 = vadd.f32 0.0, %v999
    %v1001 = vpop.f32.mrf.mxu0
    %1002 = vdwg.mxu0
    %1004 = vrot.lane.b32.xlu0 %v670, 8
    %v1005 = vpop.permute.xlu0 %1004
    %1008 = vrot.lane.b32.xlu0 %v835, 16
    %v1009 = vpop.permute.xlu0 %1008
    %1012 = vrot.lane.b32.xlu0 %v1000, 24
    %v1013 = vpop.permute.xlu0 %1012
    %v1015 = vsel %vm344, %v505, %v1005
    %vm1016 = vcmask 130048
    %v1017 = vsel %vm1016, %v1015, %v1009
    %vm1018 = vcmask 195584
    %v1019 = vsel %vm1018, %v1017, %v1013
    %v1020 = vlaneseq
    %v1021 = vshrl.u32 %v1020, 7
    %v1022 = vsub.s32 0, %v1021
    %v1023 = vrot.slane %v135, %v1022
    %v1025 = vsel %vm197, %v1019, 0
    %1027 = vmatprep.subr.mxu0 0.0
    %1028 = vmatpush1.msra.mxu0 0.0
    %1029 = vmatprep.subr.mxu0 0.0
    %1030 = vmatpush1.msra.mxu0 0.0
    %1031 = vmatprep.subr.mxu0 0.0
    %1032 = vmatpush1.msra.mxu0 0.0
    %1033 = vmatprep.subr.mxu0 0.0
    %1034 = vmatpush1.msra.mxu0 0.0
    %1035 = vmatprep.subr.mxu0 0.0
    %1036 = vmatpush1.msra.mxu0 0.0
    %1037 = vmatprep.subr.mxu0 0.0
    %1038 = vmatpush1.msra.mxu0 0.0
    %1039 = vmatprep.subr.mxu0 0.0
    %1040 = vmatpush1.msra.mxu0 0.0
    %1041 = vmatprep.subr.mxu0 0.0
    %1042 = vmatpush1.msra.mxu0 0.0
    %1043 = vmatprep.subr.mxu0 0.0
    %1044 = vmatpush1.msra.mxu0 0.0
    %1045 = vmatprep.subr.mxu0 0.0
    %1046 = vmatpush1.msra.mxu0 0.0
    %1047 = vmatprep.subr.mxu0 0.0
    %1048 = vmatpush1.msra.mxu0 0.0
    %1049 = vmatprep.subr.mxu0 0.0
    %1050 = vmatpush1.msra.mxu0 0.0
    %1051 = vmatprep.subr.mxu0 0.0
    %1052 = vmatpush1.msra.mxu0 %v84
    %1053 = vmatprep.subr.mxu0 0.0
    %1054 = vmatpush1.msra.mxu0 %v83
    %1055 = vmatprep.subr.mxu0 0.0
    %1056 = vmatpush1.msra.mxu0 %v82
    %1057 = vmatprep.subr.mxu0 0.0
    %1058 = vmatpush1.msra.mxu0 %v81
    %1059 = vmatprep.subr.mxu0 0.0
    %1060 = vmatpush2.msra.mxu0 0.0
    %1061 = vmatprep.subr.mxu0 0.0
    %1062 = vmatpush2.msra.mxu0 0.0
    %1063 = vmatprep.subr.mxu0 0.0
    %1064 = vmatpush2.msra.mxu0 0.0
    %1065 = vmatprep.subr.mxu0 0.0
    %1066 = vmatpush2.msra.mxu0 0.0
    %1067 = vmatprep.subr.mxu0 0.0
    %1068 = vmatpush2.msra.mxu0 0.0
    %1069 = vmatprep.subr.mxu0 0.0
    %1070 = vmatpush2.msra.mxu0 0.0
    %1071 = vmatprep.subr.mxu0 0.0
    %1072 = vmatpush2.msra.mxu0 0.0
    %1073 = vmatprep.subr.mxu0 0.0
    %1074 = vmatpush2.msra.mxu0 0.0
    %1075 = vmatprep.subr.mxu0 0.0
    %1076 = vmatpush2.msra.mxu0 0.0
    %1077 = vmatprep.subr.mxu0 0.0
    %1078 = vmatpush2.msra.mxu0 0.0
    %1079 = vmatprep.subr.mxu0 0.0
    %1080 = vmatpush2.msra.mxu0 0.0
    %1081 = vmatprep.subr.mxu0 0.0
    %1082 = vmatpush2.msra.mxu0 0.0
    %1083 = vmatprep.subr.mxu0 0.0
    %1084 = vmatpush2.msra.mxu0 0.0
    %1085 = vmatprep.subr.mxu0 0.0
    %1086 = vmatpush2.msra.mxu0 0.0
    %1087 = vmatprep.subr.mxu0 0.0
    %1088 = vmatpush2.msra.mxu0 0.0
    %1089 = vmatprep.subr.mxu0 0.0
    %1090 = vmatpush2.msra.mxu0 0.0
    %1091 = vmatprep.mubr.f32.mxu0 0.0
    %1092 = vmatmul.mubr.f32.gmra.mxu0 %v1025
    %v1093 = vpop.f32.mrf.mxu0
    %v1094 = vadd.f32 %v1023, %v1093
    %v1095 = vpop.f32.mrf.mxu0
    %1096 = vdwg.mxu0
    %v1098 = vrot.slane %v1094, 1
    %v1099 = vrot.slane %v1094, 2
    %v1100 = vrot.slane %v1094, 3
    %v1101 = vrot.slane %v1094, 4
    %v1102 = vrot.slane %v1094, 5
    %v1103 = vrot.slane %v1094, 6
    %v1104 = vrot.slane %v1094, 7
    %v1113 = vadd.f32 %v156, %v1094
    %v1114 = vadd.f32 %v157, %v1098
    %v1115 = vadd.f32 %v158, %v1099
    %v1116 = vadd.f32 %v159, %v1100
    %v1117 = vadd.f32 %v160, %v1101
    %v1118 = vadd.f32 %v161, %v1102
    %v1119 = vadd.f32 %v162, %v1103
    %v1120 = vadd.f32 %v163, %v1104
    %v1129 = vrot.slane %v1114, 7
    %v1130 = vsel %vm177, %v1129, %v1113
    %v1131 = vrot.slane %v1115, 6
    %v1132 = vsel %vm180, %v1131, %v1130
    %v1133 = vrot.slane %v1116, 5
    %v1134 = vsel %vm183, %v1133, %v1132
    %v1135 = vrot.slane %v1117, 4
    %v1136 = vsel %vm186, %v1135, %v1134
    %v1137 = vrot.slane %v1118, 3
    %v1138 = vsel %vm189, %v1137, %v1136
    %v1139 = vrot.slane %v1119, 2
    %v1140 = vsel %vm192, %v1139, %v1138
    %v1141 = vrot.slane %v1120, 1
    %v1142 = vsel %vm195, %v1141, %v1140
    %v1144 = vsel %vm197, %v1142, 0.0
    %1145 = vadd.xlane.f32.xlu0 %v1144
    %v1146 = vpop.xlane.xlu0 %1145
    %v1147 = vrcp.pop 32.0
    %v1148 = vmul.f32 %v1146, %v1147
    %v1150 = vrot.slane %v1148, 1
    %v1151 = vrot.slane %v1148, 2
    %v1152 = vrot.slane %v1148, 3
    %v1153 = vrot.slane %v1148, 4
    %v1154 = vrot.slane %v1148, 5
    %v1155 = vrot.slane %v1148, 6
    %v1156 = vrot.slane %v1148, 7
    %v1165 = vsub.f32 %v1113, %v1148
    %v1166 = vsub.f32 %v1114, %v1150
    %v1167 = vsub.f32 %v1115, %v1151
    %v1168 = vsub.f32 %v1116, %v1152
    %v1169 = vsub.f32 %v1117, %v1153
    %v1170 = vsub.f32 %v1118, %v1154
    %v1171 = vsub.f32 %v1119, %v1155
    %v1172 = vsub.f32 %v1120, %v1156
    %v1173 = vmul.f32 %v1165, %v1165
    %v1174 = vmul.f32 %v1166, %v1166
    %v1175 = vmul.f32 %v1167, %v1167
    %v1176 = vmul.f32 %v1168, %v1168
    %v1177 = vmul.f32 %v1169, %v1169
    %v1178 = vmul.f32 %v1170, %v1170
    %v1179 = vmul.f32 %v1171, %v1171
    %v1180 = vmul.f32 %v1172, %v1172
    %v1189 = vrot.slane %v1174, 7
    %v1190 = vsel %vm177, %v1189, %v1173
    %v1191 = vrot.slane %v1175, 6
    %v1192 = vsel %vm180, %v1191, %v1190
    %v1193 = vrot.slane %v1176, 5
    %v1194 = vsel %vm183, %v1193, %v1192
    %v1195 = vrot.slane %v1177, 4
    %v1196 = vsel %vm186, %v1195, %v1194
    %v1197 = vrot.slane %v1178, 3
    %v1198 = vsel %vm189, %v1197, %v1196
    %v1199 = vrot.slane %v1179, 2
    %v1200 = vsel %vm192, %v1199, %v1198
    %v1201 = vrot.slane %v1180, 1
    %v1202 = vsel %vm195, %v1201, %v1200
    %v1204 = vsel %vm197, %v1202, 0.0
    %1205 = vadd.xlane.f32.xlu0 %v1204
    %v1206 = vpop.xlane.xlu0 %1205
    %v1207 = vmul.f32 %v1206, %v1147
    %v1208 = vadd.f32 %v1207, 1e-05
    %v1209 = vrsqrt.pop %v1208
    %v1211 = vrot.slane %v1209, 1
    %v1212 = vrot.slane %v1209, 2
    %v1213 = vrot.slane %v1209, 3
    %v1214 = vrot.slane %v1209, 4
    %v1215 = vrot.slane %v1209, 5
    %v1216 = vrot.slane %v1209, 6
    %v1217 = vrot.slane %v1209, 7
    %v1226 = vmul.f32 %v1165, %v1209
    %v1227 = vmul.f32 %v1166, %v1211
    %v1228 = vmul.f32 %v1167, %v1212
    %v1229 = vmul.f32 %v1168, %v1213
    %v1230 = vmul.f32 %v1169, %v1214
    %v1231 = vmul.f32 %v1170, %v1215
    %v1232 = vmul.f32 %v1171, %v1216
    %v1233 = vmul.f32 %v1172, %v1217
    %v1234 = vlaneseq
    %v1235 = vshrl.u32 %v1234, 7
    %v1236 = vsub.s32 0, %v1235
    %v1237 = vrot.slane %v138, %v1236
    %v1238 = vmul.f32 %v1226, %v1237
    %v1239 = vmul.f32 %v1227, %v1237
    %v1240 = vmul.f32 %v1228, %v1237
    %v1241 = vmul.f32 %v1229, %v1237
    %v1242 = vmul.f32 %v1230, %v1237
    %v1243 = vmul.f32 %v1231, %v1237
    %v1244 = vmul.f32 %v1232, %v1237
    %v1245 = vmul.f32 %v1233, %v1237
    %v1246 = vlaneseq
    %v1247 = vshrl.u32 %v1246, 7
    %v1248 = vsub.s32 0, %v1247
    %v1249 = vrot.slane %v139, %v1248
    %v1250 = vadd.f32 %v1238, %v1249
    %v1251 = vadd.f32 %v1239, %v1249
    %v1252 = vadd.f32 %v1240, %v1249
    %v1253 = vadd.f32 %v1241, %v1249
    %v1254 = vadd.f32 %v1242, %v1249
    %v1255 = vadd.f32 %v1243, %v1249
    %v1256 = vadd.f32 %v1244, %v1249
    %v1257 = vadd.f32 %v1245, %v1249
    %v1258 = vlaneseq
    %v1259 = vshrl.u32 %v1258, 7
    %v1260 = vsub.s32 0, %v1259
    %v1261 = vrot.slane %v136, %v1260
    %v1270 = vrot.slane %v1251, 7
    %v1271 = vsel %vm177, %v1270, %v1250
    %v1272 = vrot.slane %v1252, 6
    %v1273 = vsel %vm180, %v1272, %v1271
    %v1274 = vrot.slane %v1253, 5
    %v1275 = vsel %vm183, %v1274, %v1273
    %v1276 = vrot.slane %v1254, 4
    %v1277 = vsel %vm186, %v1276, %v1275
    %v1278 = vrot.slane %v1255, 3
    %v1279 = vsel %vm189, %v1278, %v1277
    %v1280 = vrot.slane %v1256, 2
    %v1281 = vsel %vm192, %v1280, %v1279
    %v1282 = vrot.slane %v1257, 1
    %v1283 = vsel %vm195, %v1282, %v1281
    %v1284 = vsel %vm197, %v1283, 0
    %1286 = vmatprep.subr.mxu0 0.0
    %1287 = vmatpush1.msra.mxu0 0.0
    %1288 = vmatprep.subr.mxu0 0.0
    %1289 = vmatpush1.msra.mxu0 0.0
    %1290 = vmatprep.subr.mxu0 0.0
    %1291 = vmatpush1.msra.mxu0 0.0
    %1292 = vmatprep.subr.mxu0 0.0
    %1293 = vmatpush1.msra.mxu0 0.0
    %1294 = vmatprep.subr.mxu0 0.0
    %1295 = vmatpush1.msra.mxu0 0.0
    %1296 = vmatprep.subr.mxu0 0.0
    %1297 = vmatpush1.msra.mxu0 0.0
    %1298 = vmatprep.subr.mxu0 0.0
    %1299 = vmatpush1.msra.mxu0 0.0
    %1300 = vmatprep.subr.mxu0 0.0
    %1301 = vmatpush1.msra.mxu0 0.0
    %1302 = vmatprep.subr.mxu0 0.0
    %1303 = vmatpush1.msra.mxu0 0.0
    %1304 = vmatprep.subr.mxu0 0.0
    %1305 = vmatpush1.msra.mxu0 0.0
    %1306 = vmatprep.subr.mxu0 0.0
    %1307 = vmatpush1.msra.mxu0 0.0
    %1308 = vmatprep.subr.mxu0 0.0
    %1309 = vmatpush1.msra.mxu0 0.0
    %1310 = vmatprep.subr.mxu0 0.0
    %1311 = vmatpush1.msra.mxu0 %v88
    %1312 = vmatprep.subr.mxu0 0.0
    %1313 = vmatpush1.msra.mxu0 %v87
    %1314 = vmatprep.subr.mxu0 0.0
    %1315 = vmatpush1.msra.mxu0 %v86
    %1316 = vmatprep.subr.mxu0 0.0
    %1317 = vmatpush1.msra.mxu0 %v85
    %1318 = vmatprep.subr.mxu0 0.0
    %1319 = vmatpush2.msra.mxu0 0.0
    %1320 = vmatprep.subr.mxu0 0.0
    %1321 = vmatpush2.msra.mxu0 0.0
    %1322 = vmatprep.subr.mxu0 0.0
    %1323 = vmatpush2.msra.mxu0 0.0
    %1324 = vmatprep.subr.mxu0 0.0
    %1325 = vmatpush2.msra.mxu0 0.0
    %1326 = vmatprep.subr.mxu0 0.0
    %1327 = vmatpush2.msra.mxu0 0.0
    %1328 = vmatprep.subr.mxu0 0.0
    %1329 = vmatpush2.msra.mxu0 0.0
    %1330 = vmatprep.subr.mxu0 0.0
    %1331 = vmatpush2.msra.mxu0 0.0
    %1332 = vmatprep.subr.mxu0 0.0
    %1333 = vmatpush2.msra.mxu0 0.0
    %1334 = vmatprep.subr.mxu0 0.0
    %1335 = vmatpush2.msra.mxu0 0.0
    %1336 = vmatprep.subr.mxu0 0.0
    %1337 = vmatpush2.msra.mxu0 0.0
    %1338 = vmatprep.subr.mxu0 0.0
    %1339 = vmatpush2.msra.mxu0 0.0
    %1340 = vmatprep.subr.mxu0 0.0
    %1341 = vmatpush2.msra.mxu0 0.0
    %1342 = vmatprep.subr.mxu0 0.0
    %1343 = vmatpush2.msra.mxu0 0.0
    %1344 = vmatprep.subr.mxu0 0.0
    %1345 = vmatpush2.msra.mxu0 0.0
    %1346 = vmatprep.subr.mxu0 0.0
    %1347 = vmatpush2.msra.mxu0 0.0
    %1348 = vmatprep.subr.mxu0 0.0
    %1349 = vmatpush2.msra.mxu0 0.0
    %1350 = vmatprep.mubr.f32.mxu0 0.0
    %1351 = vmatmul.mubr.f32.gmra.mxu0 %v1284
    %v1352 = vpop.f32.mrf.mxu0
    %v1353 = vadd.f32 %v1261, %v1352
    %v1354 = vpop.f32.mrf.mxu0
    %1355 = vdwg.mxu0
    %v1356 = vmax.f32 %v1353, 0.0
    %v1357 = vlaneseq
    %v1358 = vshrl.u32 %v1357, 7
    %v1359 = vsub.s32 0, %v1358
    %v1360 = vrot.slane %v137, %v1359
    %vm1361 = vcmask 523264
    %v1363 = vsel %vm1361, %v1356, 0
    %1365 = vmatprep.subr.mxu0 0.0
    %1366 = vmatpush1.msra.mxu0 0.0
    %1367 = vmatprep.subr.mxu0 0.0
    %1368 = vmatpush1.msra.mxu0 0.0
    %1369 = vmatprep.subr.mxu0 0.0
    %1370 = vmatpush1.msra.mxu0 0.0
    %1371 = vmatprep.subr.mxu0 0.0
    %1372 = vmatpush1.msra.mxu0 0.0
    %1373 = vmatprep.subr.mxu0 0.0
    %1374 = vmatpush1.msra.mxu0 0.0
    %1375 = vmatprep.subr.mxu0 0.0
    %1376 = vmatpush1.msra.mxu0 0.0
    %1377 = vmatprep.subr.mxu0 0.0
    %1378 = vmatpush1.msra.mxu0 0.0
    %1379 = vmatprep.subr.mxu0 0.0
    %1380 = vmatpush1.msra.mxu0 0.0
    %1381 = vmatprep.subr.mxu0 0.0
    %1382 = vmatpush1.msra.mxu0 %v124
    %1383 = vmatprep.subr.mxu0 0.0
    %1384 = vmatpush1.msra.mxu0 %v123
    %1385 = vmatprep.subr.mxu0 0.0
    %1386 = vmatpush1.msra.mxu0 %v122
    %1387 = vmatprep.subr.mxu0 0.0
    %1388 = vmatpush1.msra.mxu0 %v121
    %1389 = vmatprep.subr.mxu0 0.0
    %1390 = vmatpush1.msra.mxu0 %v120
    %1391 = vmatprep.subr.mxu0 0.0
    %1392 = vmatpush1.msra.mxu0 %v119
    %1393 = vmatprep.subr.mxu0 0.0
    %1394 = vmatpush1.msra.mxu0 %v118
    %1395 = vmatprep.subr.mxu0 0.0
    %1396 = vmatpush1.msra.mxu0 %v117
    %1397 = vmatprep.subr.mxu0 0.0
    %1398 = vmatpush2.msra.mxu0 0.0
    %1399 = vmatprep.subr.mxu0 0.0
    %1400 = vmatpush2.msra.mxu0 0.0
    %1401 = vmatprep.subr.mxu0 0.0
    %1402 = vmatpush2.msra.mxu0 0.0
    %1403 = vmatprep.subr.mxu0 0.0
    %1404 = vmatpush2.msra.mxu0 0.0
    %1405 = vmatprep.subr.mxu0 0.0
    %1406 = vmatpush2.msra.mxu0 0.0
    %1407 = vmatprep.subr.mxu0 0.0
    %1408 = vmatpush2.msra.mxu0 0.0
    %1409 = vmatprep.subr.mxu0 0.0
    %1410 = vmatpush2.msra.mxu0 0.0
    %1411 = vmatprep.subr.mxu0 0.0
    %1412 = vmatpush2.msra.mxu0 0.0
    %1413 = vmatprep.subr.mxu0 0.0
    %1414 = vmatpush2.msra.mxu0 0.0
    %1415 = vmatprep.subr.mxu0 0.0
    %1416 = vmatpush2.msra.mxu0 0.0
    %1417 = vmatprep.subr.mxu0 0.0
    %1418 = vmatpush2.msra.mxu0 0.0
    %1419 = vmatprep.subr.mxu0 0.0
    %1420 = vmatpush2.msra.mxu0 0.0
    %1421 = vmatprep.subr.mxu0 0.0
    %1422 = vmatpush2.msra.mxu0 0.0
    %1423 = vmatprep.subr.mxu0 0.0
    %1424 = vmatpush2.msra.mxu0 0.0
    %1425 = vmatprep.subr.mxu0 0.0
    %1426 = vmatpush2.msra.mxu0 0.0
    %1427 = vmatprep.subr.mxu0 0.0
    %1428 = vmatpush2.msra.mxu0 0.0
    %1429 = vmatprep.mubr.f32.mxu0 0.0
    %1430 = vmatmul.mubr.f32.gmra.mxu0 %v1363
    %v1431 = vpop.f32.mrf.mxu0
    %v1432 = vadd.f32 %v1360, %v1431
    %v1433 = vpop.f32.mrf.mxu0
    %1434 = vdwg.mxu0
    %v1436 = vrot.slane %v1432, 1
    %v1437 = vrot.slane %v1432, 2
    %v1438 = vrot.slane %v1432, 3
    %v1439 = vrot.slane %v1432, 4
    %v1440 = vrot.slane %v1432, 5
    %v1441 = vrot.slane %v1432, 6
    %v1442 = vrot.slane %v1432, 7
    %v1451 = vadd.f32 %v1250, %v1432
    %v1452 = vadd.f32 %v1251, %v1436
    %v1453 = vadd.f32 %v1252, %v1437
    %v1454 = vadd.f32 %v1253, %v1438
    %v1455 = vadd.f32 %v1254, %v1439
    %v1456 = vadd.f32 %v1255, %v1440
    %v1457 = vadd.f32 %v1256, %v1441
    %v1458 = vadd.f32 %v1257, %v1442
    %v1467 = vrot.slane %v1452, 7
    %v1468 = vsel %vm177, %v1467, %v1451
    %v1469 = vrot.slane %v1453, 6
    %v1470 = vsel %vm180, %v1469, %v1468
    %v1471 = vrot.slane %v1454, 5
    %v1472 = vsel %vm183, %v1471, %v1470
    %v1473 = vrot.slane %v1455, 4
    %v1474 = vsel %vm186, %v1473, %v1472
    %v1475 = vrot.slane %v1456, 3
    %v1476 = vsel %vm189, %v1475, %v1474
    %v1477 = vrot.slane %v1457, 2
    %v1478 = vsel %vm192, %v1477, %v1476
    %v1479 = vrot.slane %v1458, 1
    %v1480 = vsel %vm195, %v1479, %v1478
    %v1482 = vsel %vm197, %v1480, 0.0
    %1483 = vadd.xlane.f32.xlu0 %v1482
    %v1484 = vpop.xlane.xlu0 %1483
    %v1485 = vmul.f32 %v1484, %v1147
    %v1487 = vrot.slane %v1485, 1
    %v1488 = vrot.slane %v1485, 2
    %v1489 = vrot.slane %v1485, 3
    %v1490 = vrot.slane %v1485, 4
    %v1491 = vrot.slane %v1485, 5
    %v1492 = vrot.slane %v1485, 6
    %v1493 = vrot.slane %v1485, 7
    %v1502 = vsub.f32 %v1451, %v1485
    %v1503 = vsub.f32 %v1452, %v1487
    %v1504 = vsub.f32 %v1453, %v1488
    %v1505 = vsub.f32 %v1454, %v1489
    %v1506 = vsub.f32 %v1455, %v1490
    %v1507 = vsub.f32 %v1456, %v1491
    %v1508 = vsub.f32 %v1457, %v1492
    %v1509 = vsub.f32 %v1458, %v1493
    %v1510 = vmul.f32 %v1502, %v1502
    %v1511 = vmul.f32 %v1503, %v1503
    %v1512 = vmul.f32 %v1504, %v1504
    %v1513 = vmul.f32 %v1505, %v1505
    %v1514 = vmul.f32 %v1506, %v1506
    %v1515 = vmul.f32 %v1507, %v1507
    %v1516 = vmul.f32 %v1508, %v1508
    %v1517 = vmul.f32 %v1509, %v1509
    %v1526 = vrot.slane %v1511, 7
    %v1527 = vsel %vm177, %v1526, %v1510
    %v1528 = vrot.slane %v1512, 6
    %v1529 = vsel %vm180, %v1528, %v1527
    %v1530 = vrot.slane %v1513, 5
    %v1531 = vsel %vm183, %v1530, %v1529
    %v1532 = vrot.slane %v1514, 4
    %v1533 = vsel %vm186, %v1532, %v1531
    %v1534 = vrot.slane %v1515, 3
    %v1535 = vsel %vm189, %v1534, %v1533
    %v1536 = vrot.slane %v1516, 2
    %v1537 = vsel %vm192, %v1536, %v1535
    %v1538 = vrot.slane %v1517, 1
    %v1539 = vsel %vm195, %v1538, %v1537
    %v1541 = vsel %vm197, %v1539, 0.0
    %1542 = vadd.xlane.f32.xlu0 %v1541
    %v1543 = vpop.xlane.xlu0 %1542
    %v1544 = vmul.f32 %v1543, %v1147
    %v1545 = vadd.f32 %v1544, 1e-05
    %v1546 = vrsqrt.pop %v1545
    %v1548 = vrot.slane %v1546, 1
    %v1549 = vrot.slane %v1546, 2
    %v1550 = vrot.slane %v1546, 3
    %v1551 = vrot.slane %v1546, 4
    %v1552 = vrot.slane %v1546, 5
    %v1553 = vrot.slane %v1546, 6
    %v1554 = vrot.slane %v1546, 7
    %v1563 = vmul.f32 %v1502, %v1546
    %v1564 = vmul.f32 %v1503, %v1548
    %v1565 = vmul.f32 %v1504, %v1549
    %v1566 = vmul.f32 %v1505, %v1550
    %v1567 = vmul.f32 %v1506, %v1551
    %v1568 = vmul.f32 %v1507, %v1552
    %v1569 = vmul.f32 %v1508, %v1553
    %v1570 = vmul.f32 %v1509, %v1554
    %v1571 = vlaneseq
    %v1572 = vshrl.u32 %v1571, 7
    %v1573 = vsub.s32 0, %v1572
    %v1574 = vrot.slane %v140, %v1573
    %v1575 = vmul.f32 %v1563, %v1574
    %v1576 = vmul.f32 %v1564, %v1574
    %v1577 = vmul.f32 %v1565, %v1574
    %v1578 = vmul.f32 %v1566, %v1574
    %v1579 = vmul.f32 %v1567, %v1574
    %v1580 = vmul.f32 %v1568, %v1574
    %v1581 = vmul.f32 %v1569, %v1574
    %v1582 = vmul.f32 %v1570, %v1574
    %v1583 = vlaneseq
    %v1584 = vshrl.u32 %v1583, 7
    %v1585 = vsub.s32 0, %v1584
    %v1586 = vrot.slane %v141, %v1585
    %v1587 = vadd.f32 %v1575, %v1586
    %v1588 = vadd.f32 %v1576, %v1586
    %v1589 = vadd.f32 %v1577, %v1586
    %v1590 = vadd.f32 %v1578, %v1586
    %v1591 = vadd.f32 %v1579, %v1586
    %v1592 = vadd.f32 %v1580, %v1586
    %v1593 = vadd.f32 %v1581, %v1586
    %v1594 = vadd.f32 %v1582, %v1586
    %v1595 = vlaneseq
    %v1596 = vshrl.u32 %v1595, 7
    %v1597 = vsub.s32 0, %v1596
    %v1598 = vrot.slane %v142, %v1597
    %v1607 = vrot.slane %v1588, 7
    %v1608 = vsel %vm177, %v1607, %v1587
    %v1609 = vrot.slane %v1589, 6
    %v1610 = vsel %vm180, %v1609, %v1608
    %v1611 = vrot.slane %v1590, 5
    %v1612 = vsel %vm183, %v1611, %v1610
    %v1613 = vrot.slane %v1591, 4
    %v1614 = vsel %vm186, %v1613, %v1612
    %v1615 = vrot.slane %v1592, 3
    %v1616 = vsel %vm189, %v1615, %v1614
    %v1617 = vrot.slane %v1593, 2
    %v1618 = vsel %vm192, %v1617, %v1616
    %v1619 = vrot.slane %v1594, 1
    %v1620 = vsel %vm195, %v1619, %v1618
    %v1621 = vsel %vm197, %v1620, 0
    %1623 = vmatprep.subr.mxu0 0.0
    %1624 = vmatpush1.msra.mxu0 0.0
    %1625 = vmatprep.subr.mxu0 0.0
    %1626 = vmatpush1.msra.mxu0 0.0
    %1627 = vmatprep.subr.mxu0 0.0
    %1628 = vmatpush1.msra.mxu0 0.0
    %1629 = vmatprep.subr.mxu0 0.0
    %1630 = vmatpush1.msra.mxu0 0.0
    %1631 = vmatprep.subr.mxu0 0.0
    %1632 = vmatpush1.msra.mxu0 0.0
    %1633 = vmatprep.subr.mxu0 0.0
    %1634 = vmatpush1.msra.mxu0 0.0
    %1635 = vmatprep.subr.mxu0 0.0
    %1636 = vmatpush1.msra.mxu0 0.0
    %1637 = vmatprep.subr.mxu0 0.0
    %1638 = vmatpush1.msra.mxu0 0.0
    %1639 = vmatprep.subr.mxu0 0.0
    %1640 = vmatpush1.msra.mxu0 0.0
    %1641 = vmatprep.subr.mxu0 0.0
    %1642 = vmatpush1.msra.mxu0 0.0
    %1643 = vmatprep.subr.mxu0 0.0
    %1644 = vmatpush1.msra.mxu0 0.0
    %1645 = vmatprep.subr.mxu0 0.0
    %1646 = vmatpush1.msra.mxu0 0.0
    %1647 = vmatprep.subr.mxu0 0.0
    %1648 = vmatpush1.msra.mxu0 %v92
    %1649 = vmatprep.subr.mxu0 0.0
    %1650 = vmatpush1.msra.mxu0 %v91
    %1651 = vmatprep.subr.mxu0 0.0
    %1652 = vmatpush1.msra.mxu0 %v90
    %1653 = vmatprep.subr.mxu0 0.0
    %1654 = vmatpush1.msra.mxu0 %v89
    %1655 = vmatprep.subr.mxu0 0.0
    %1656 = vmatpush2.msra.mxu0 0.0
    %1657 = vmatprep.subr.mxu0 0.0
    %1658 = vmatpush2.msra.mxu0 0.0
    %1659 = vmatprep.subr.mxu0 0.0
    %1660 = vmatpush2.msra.mxu0 0.0
    %1661 = vmatprep.subr.mxu0 0.0
    %1662 = vmatpush2.msra.mxu0 0.0
    %1663 = vmatprep.subr.mxu0 0.0
    %1664 = vmatpush2.msra.mxu0 0.0
    %1665 = vmatprep.subr.mxu0 0.0
    %1666 = vmatpush2.msra.mxu0 0.0
    %1667 = vmatprep.subr.mxu0 0.0
    %1668 = vmatpush2.msra.mxu0 0.0
    %1669 = vmatprep.subr.mxu0 0.0
    %1670 = vmatpush2.msra.mxu0 0.0
    %1671 = vmatprep.subr.mxu0 0.0
    %1672 = vmatpush2.msra.mxu0 0.0
    %1673 = vmatprep.subr.mxu0 0.0
    %1674 = vmatpush2.msra.mxu0 0.0
    %1675 = vmatprep.subr.mxu0 0.0
    %1676 = vmatpush2.msra.mxu0 0.0
    %1677 = vmatprep.subr.mxu0 0.0
    %1678 = vmatpush2.msra.mxu0 0.0
    %1679 = vmatprep.subr.mxu0 0.0
    %1680 = vmatpush2.msra.mxu0 0.0
    %1681 = vmatprep.subr.mxu0 0.0
    %1682 = vmatpush2.msra.mxu0 0.0
    %1683 = vmatprep.subr.mxu0 0.0
    %1684 = vmatpush2.msra.mxu0 0.0
    %1685 = vmatprep.subr.mxu0 0.0
    %1686 = vmatpush2.msra.mxu0 0.0
    %1687 = vmatprep.mubr.f32.mxu0 0.0
    %1688 = vmatmul.mubr.f32.gmra.mxu0 %v1621
    %v1689 = vpop.f32.mrf.mxu0
    %v1690 = vadd.f32 %v1598, %v1689
    %v1691 = vpop.f32.mrf.mxu0
    %1692 = vdwg.mxu0
    %v1693 = vlaneseq
    %v1694 = vshrl.u32 %v1693, 7
    %v1695 = vsub.s32 0, %v1694
    %v1696 = vrot.slane %v143, %v1695
    %1697 = vmatprep.subr.mxu0 0.0
    %1698 = vmatpush1.msra.mxu0 0.0
    %1699 = vmatprep.subr.mxu0 0.0
    %1700 = vmatpush1.msra.mxu0 0.0
    %1701 = vmatprep.subr.mxu0 0.0
    %1702 = vmatpush1.msra.mxu0 0.0
    %1703 = vmatprep.subr.mxu0 0.0
    %1704 = vmatpush1.msra.mxu0 0.0
    %1705 = vmatprep.subr.mxu0 0.0
    %1706 = vmatpush1.msra.mxu0 0.0
    %1707 = vmatprep.subr.mxu0 0.0
    %1708 = vmatpush1.msra.mxu0 0.0
    %1709 = vmatprep.subr.mxu0 0.0
    %1710 = vmatpush1.msra.mxu0 0.0
    %1711 = vmatprep.subr.mxu0 0.0
    %1712 = vmatpush1.msra.mxu0 0.0
    %1713 = vmatprep.subr.mxu0 0.0
    %1714 = vmatpush1.msra.mxu0 0.0
    %1715 = vmatprep.subr.mxu0 0.0
    %1716 = vmatpush1.msra.mxu0 0.0
    %1717 = vmatprep.subr.mxu0 0.0
    %1718 = vmatpush1.msra.mxu0 0.0
    %1719 = vmatprep.subr.mxu0 0.0
    %1720 = vmatpush1.msra.mxu0 0.0
    %1721 = vmatprep.subr.mxu0 0.0
    %1722 = vmatpush1.msra.mxu0 %v96
    %1723 = vmatprep.subr.mxu0 0.0
    %1724 = vmatpush1.msra.mxu0 %v95
    %1725 = vmatprep.subr.mxu0 0.0
    %1726 = vmatpush1.msra.mxu0 %v94
    %1727 = vmatprep.subr.mxu0 0.0
    %1728 = vmatpush1.msra.mxu0 %v93
    %1729 = vmatprep.subr.mxu0 0.0
    %1730 = vmatpush2.msra.mxu0 0.0
    %1731 = vmatprep.subr.mxu0 0.0
    %1732 = vmatpush2.msra.mxu0 0.0
    %1733 = vmatprep.subr.mxu0 0.0
    %1734 = vmatpush2.msra.mxu0 0.0
    %1735 = vmatprep.subr.mxu0 0.0
    %1736 = vmatpush2.msra.mxu0 0.0
    %1737 = vmatprep.subr.mxu0 0.0
    %1738 = vmatpush2.msra.mxu0 0.0
    %1739 = vmatprep.subr.mxu0 0.0
    %1740 = vmatpush2.msra.mxu0 0.0
    %1741 = vmatprep.subr.mxu0 0.0
    %1742 = vmatpush2.msra.mxu0 0.0
    %1743 = vmatprep.subr.mxu0 0.0
    %1744 = vmatpush2.msra.mxu0 0.0
    %1745 = vmatprep.subr.mxu0 0.0
    %1746 = vmatpush2.msra.mxu0 0.0
    %1747 = vmatprep.subr.mxu0 0.0
    %1748 = vmatpush2.msra.mxu0 0.0
    %1749 = vmatprep.subr.mxu0 0.0
    %1750 = vmatpush2.msra.mxu0 0.0
    %1751 = vmatprep.subr.mxu0 0.0
    %1752 = vmatpush2.msra.mxu0 0.0
    %1753 = vmatprep.subr.mxu0 0.0
    %1754 = vmatpush2.msra.mxu0 0.0
    %1755 = vmatprep.subr.mxu0 0.0
    %1756 = vmatpush2.msra.mxu0 0.0
    %1757 = vmatprep.subr.mxu0 0.0
    %1758 = vmatpush2.msra.mxu0 0.0
    %1759 = vmatprep.subr.mxu0 0.0
    %1760 = vmatpush2.msra.mxu0 0.0
    %1761 = vmatprep.mubr.f32.mxu0 0.0
    %1762 = vmatmul.mubr.f32.gmra.mxu0 %v1621
    %v1763 = vpop.f32.mrf.mxu0
    %v1764 = vadd.f32 %v1696, %v1763
    %v1765 = vpop.f32.mrf.mxu0
    %1766 = vdwg.mxu0
    %v1768 = vsel %vm344, %v1690, 0
    %v1771 = vsel %vm344, %v1764, 0
    %1773 = vmatprep.subr.mxu0 0.0
    %1774 = vmatpush1.xpose.msra.mxu0 0.0
    %1775 = vmatprep.subr.mxu0 0.0
    %1776 = vmatpush1.xpose.msra.mxu0 0.0
    %1777 = vmatprep.subr.mxu0 0.0
    %1778 = vmatpush1.xpose.msra.mxu0 0.0
    %1779 = vmatprep.subr.mxu0 0.0
    %1780 = vmatpush1.xpose.msra.mxu0 0.0
    %1781 = vmatprep.subr.mxu0 0.0
    %1782 = vmatpush1.xpose.msra.mxu0 0.0
    %1783 = vmatprep.subr.mxu0 0.0
    %1784 = vmatpush1.xpose.msra.mxu0 0.0
    %1785 = vmatprep.subr.mxu0 0.0
    %1786 = vmatpush1.xpose.msra.mxu0 0.0
    %1787 = vmatprep.subr.mxu0 0.0
    %1788 = vmatpush1.xpose.msra.mxu0 0.0
    %1789 = vmatprep.subr.mxu0 0.0
    %1790 = vmatpush1.xpose.msra.mxu0 0.0
    %1791 = vmatprep.subr.mxu0 0.0
    %1792 = vmatpush1.xpose.msra.mxu0 0.0
    %1793 = vmatprep.subr.mxu0 0.0
    %1794 = vmatpush1.xpose.msra.mxu0 0.0
    %1795 = vmatprep.subr.mxu0 0.0
    %1796 = vmatpush1.xpose.msra.mxu0 0.0
    %1797 = vmatprep.subr.mxu0 0.0
    %1798 = vmatpush1.xpose.msra.mxu0 0.0
    %1799 = vmatprep.subr.mxu0 0.0
    %1800 = vmatpush1.xpose.msra.mxu0 0.0
    %1801 = vmatprep.subr.mxu0 0.0
    %1802 = vmatpush1.xpose.msra.mxu0 0.0
    %1803 = vmatprep.subr.mxu0 0.0
    %1804 = vmatpush1.xpose.msra.mxu0 %v1771
    %1805 = vmatprep.subr.mxu0 0.0
    %1806 = vmatpush2.xpose.msra.mxu0 0.0
    %1807 = vmatprep.subr.mxu0 0.0
    %1808 = vmatpush2.xpose.msra.mxu0 0.0
    %1809 = vmatprep.subr.mxu0 0.0
    %1810 = vmatpush2.xpose.msra.mxu0 0.0
    %1811 = vmatprep.subr.mxu0 0.0
    %1812 = vmatpush2.xpose.msra.mxu0 0.0
    %1813 = vmatprep.subr.mxu0 0.0
    %1814 = vmatpush2.xpose.msra.mxu0 0.0
    %1815 = vmatprep.subr.mxu0 0.0
    %1816 = vmatpush2.xpose.msra.mxu0 0.0
    %1817 = vmatprep.subr.mxu0 0.0
    %1818 = vmatpush2.xpose.msra.mxu0 0.0
    %1819 = vmatprep.subr.mxu0 0.0
    %1820 = vmatpush2.xpose.msra.mxu0 0.0
    %1821 = vmatprep.subr.mxu0 0.0
    %1822 = vmatpush2.xpose.msra.mxu0 0.0
    %1823 = vmatprep.subr.mxu0 0.0
    %1824 = vmatpush2.xpose.msra.mxu0 0.0
    %1825 = vmatprep.subr.mxu0 0.0
    %1826 = vmatpush2.xpose.msra.mxu0 0.0
    %1827 = vmatprep.subr.mxu0 0.0
    %1828 = vmatpush2.xpose.msra.mxu0 0.0
    %1829 = vmatprep.subr.mxu0 0.0
    %1830 = vmatpush2.xpose.msra.mxu0 0.0
    %1831 = vmatprep.subr.mxu0 0.0
    %1832 = vmatpush2.xpose.msra.mxu0 0.0
    %1833 = vmatprep.subr.mxu0 0.0
    %1834 = vmatpush2.xpose.msra.mxu0 0.0
    %1835 = vmatprep.subr.mxu0 0.0
    %1836 = vmatpush2.xpose.msra.mxu0 0.0
    %1837 = vmatprep.mubr.f32.mxu0 0.0
    %1838 = vmatmul.mubr.f32.gmra.mxu0 %v1768
    %v1839 = vpop.f32.mrf.mxu0
    %v1840 = vadd.f32 0.0, %v1839
    %v1841 = vpop.f32.mrf.mxu0
    %1842 = vdwg.mxu0
    %v1843 = vsel %vm344, %v1840, -inf
    %1844 = vmax.xlane.f32.xlu0 %v1843
    %v1845 = vpop.xlane.xlu0 %1844
    %v1846 = vsub.f32 %v1840, %v1845
    %v1847 = vmul.f32 %v1846, 1.442695
    %v1848 = vpow.pop %v1847
    %v1849 = vsel %vm344, %v1848, 0.0
    %1850 = vadd.xlane.f32.xlu0 %v1849
    %v1851 = vpop.xlane.xlu0 %1850
    %v1852 = vrcp.pop %v1851
    %v1853 = vmul.f32 %v1848, %v1852
    %1854 = vrot.lane.b32.xlu0 %v1764, 96
    %v1855 = vpop.permute.xlu0 %1854
    %v1858 = vsel %vm344, %v1853, 0
    %1860 = vmatprep.subr.mxu0 0.0
    %1861 = vmatpush1.msra.mxu0 0.0
    %1862 = vmatprep.subr.mxu0 0.0
    %1863 = vmatpush1.msra.mxu0 0.0
    %1864 = vmatprep.subr.mxu0 0.0
    %1865 = vmatpush1.msra.mxu0 0.0
    %1866 = vmatprep.subr.mxu0 0.0
    %1867 = vmatpush1.msra.mxu0 0.0
    %1868 = vmatprep.subr.mxu0 0.0
    %1869 = vmatpush1.msra.mxu0 0.0
    %1870 = vmatprep.subr.mxu0 0.0
    %1871 = vmatpush1.msra.mxu0 0.0
    %1872 = vmatprep.subr.mxu0 0.0
    %1873 = vmatpush1.msra.mxu0 0.0
    %1874 = vmatprep.subr.mxu0 0.0
    %1875 = vmatpush1.msra.mxu0 0.0
    %1876 = vmatprep.subr.mxu0 0.0
    %1877 = vmatpush1.msra.mxu0 0.0
    %1878 = vmatprep.subr.mxu0 0.0
    %1879 = vmatpush1.msra.mxu0 0.0
    %1880 = vmatprep.subr.mxu0 0.0
    %1881 = vmatpush1.msra.mxu0 0.0
    %1882 = vmatprep.subr.mxu0 0.0
    %1883 = vmatpush1.msra.mxu0 0.0
    %1884 = vmatprep.subr.mxu0 0.0
    %1885 = vmatpush1.msra.mxu0 0.0
    %1886 = vmatprep.subr.mxu0 0.0
    %1887 = vmatpush1.msra.mxu0 0.0
    %1888 = vmatprep.subr.mxu0 0.0
    %1889 = vmatpush1.msra.mxu0 0.0
    %1890 = vmatprep.subr.mxu0 0.0
    %1891 = vmatpush1.msra.mxu0 %v1855
    %1892 = vmatprep.subr.mxu0 0.0
    %1893 = vmatpush2.msra.mxu0 0.0
    %1894 = vmatprep.subr.mxu0 0.0
    %1895 = vmatpush2.msra.mxu0 0.0
    %1896 = vmatprep.subr.mxu0 0.0
    %1897 = vmatpush2.msra.mxu0 0.0
    %1898 = vmatprep.subr.mxu0 0.0
    %1899 = vmatpush2.msra.mxu0 0.0
    %1900 = vmatprep.subr.mxu0 0.0
    %1901 = vmatpush2.msra.mxu0 0.0
    %1902 = vmatprep.subr.mxu0 0.0
    %1903 = vmatpush2.msra.mxu0 0.0
    %1904 = vmatprep.subr.mxu0 0.0
    %1905 = vmatpush2.msra.mxu0 0.0
    %1906 = vmatprep.subr.mxu0 0.0
    %1907 = vmatpush2.msra.mxu0 0.0
    %1908 = vmatprep.subr.mxu0 0.0
    %1909 = vmatpush2.msra.mxu0 0.0
    %1910 = vmatprep.subr.mxu0 0.0
    %1911 = vmatpush2.msra.mxu0 0.0
    %1912 = vmatprep.subr.mxu0 0.0
    %1913 = vmatpush2.msra.mxu0 0.0
    %1914 = vmatprep.subr.mxu0 0.0
    %1915 = vmatpush2.msra.mxu0 0.0
    %1916 = vmatprep.subr.mxu0 0.0
    %1917 = vmatpush2.msra.mxu0 0.0
    %1918 = vmatprep.subr.mxu0 0.0
    %1919 = vmatpush2.msra.mxu0 0.0
    %1920 = vmatprep.subr.mxu0 0.0
    %1921 = vmatpush2.msra.mxu0 0.0
    %1922 = vmatprep.subr.mxu0 0.0
    %1923 = vmatpush2.msra.mxu0 0.0
    %1924 = vmatprep.mubr.f32.mxu0 0.0
    %1925 = vmatmul.mubr.f32.gmra.mxu0 %v1858
    %v1926 = vpop.f32.mrf.mxu0
    %v1927 = vadd.f32 0.0, %v1926
    %v1928 = vpop.f32.mrf.mxu0
    %1929 = vdwg.mxu0
    %1930 = vrot.lane.b32.xlu0 %v1690, 120
    %v1931 = vpop.permute.xlu0 %1930
    %1932 = vrot.lane.b32.xlu0 %v1764, 120
    %v1933 = vpop.permute.xlu0 %1932
    %v1934 = vsel %vm344, %v1931, 0
    %v1936 = vsel %vm344, %v1933, 0
    %1938 = vmatprep.subr.mxu0 0.0
    %1939 = vmatpush1.xpose.msra.mxu0 0.0
    %1940 = vmatprep.subr.mxu0 0.0
    %1941 = vmatpush1.xpose.msra.mxu0 0.0
    %1942 = vmatprep.subr.mxu0 0.0
    %1943 = vmatpush1.xpose.msra.mxu0 0.0
    %1944 = vmatprep.subr.mxu0 0.0
    %1945 = vmatpush1.xpose.msra.mxu0 0.0
    %1946 = vmatprep.subr.mxu0 0.0
    %1947 = vmatpush1.xpose.msra.mxu0 0.0
    %1948 = vmatprep.subr.mxu0 0.0
    %1949 = vmatpush1.xpose.msra.mxu0 0.0
    %1950 = vmatprep.subr.mxu0 0.0
    %1951 = vmatpush1.xpose.msra.mxu0 0.0
    %1952 = vmatprep.subr.mxu0 0.0
    %1953 = vmatpush1.xpose.msra.mxu0 0.0
    %1954 = vmatprep.subr.mxu0 0.0
    %1955 = vmatpush1.xpose.msra.mxu0 0.0
    %1956 = vmatprep.subr.mxu0 0.0
    %1957 = vmatpush1.xpose.msra.mxu0 0.0
    %1958 = vmatprep.subr.mxu0 0.0
    %1959 = vmatpush1.xpose.msra.mxu0 0.0
    %1960 = vmatprep.subr.mxu0 0.0
    %1961 = vmatpush1.xpose.msra.mxu0 0.0
    %1962 = vmatprep.subr.mxu0 0.0
    %1963 = vmatpush1.xpose.msra.mxu0 0.0
    %1964 = vmatprep.subr.mxu0 0.0
    %1965 = vmatpush1.xpose.msra.mxu0 0.0
    %1966 = vmatprep.subr.mxu0 0.0
    %1967 = vmatpush1.xpose.msra.mxu0 0.0
    %1968 = vmatprep.subr.mxu0 0.0
    %1969 = vmatpush1.xpose.msra.mxu0 %v1936
    %1970 = vmatprep.subr.mxu0 0.0
    %1971 = vmatpush2.xpose.msra.mxu0 0.0
    %1972 = vmatprep.subr.mxu0 0.0
    %1973 = vmatpush2.xpose.msra.mxu0 0.0
    %1974 = vmatprep.subr.mxu0 0.0
    %1975 = vmatpush2.xpose.msra.mxu0 0.0
    %1976 = vmatprep.subr.mxu0 0.0
    %1977 = vmatpush2.xpose.msra.mxu0 0.0
    %1978 = vmatprep.subr.mxu0 0.0
    %1979 = vmatpush2.xpose.msra.mxu0 0.0
    %1980 = vmatprep.subr.mxu0 0.0
    %1981 = vmatpush2.xpose.msra.mxu0 0.0
    %1982 = vmatprep.subr.mxu0 0.0
    %1983 = vmatpush2.xpose.msra.mxu0 0.0
    %1984 = vmatprep.subr.mxu0 0.0
    %1985 = vmatpush2.xpose.msra.mxu0 0.0
    %1986 = vmatprep.subr.mxu0 0.0
    %1987 = vmatpush2.xpose.msra.mxu0 0.0
    %1988 = vmatprep.subr.mxu0 0.0
    %1989 = vmatpush2.xpose.msra.mxu0 0.0
    %1990 = vmatprep.subr.mxu0 0.0
    %1991 = vmatpush2.xpose.msra.mxu0 0.0
    %1992 = vmatprep.subr.mxu0 0.0
    %1993 = vmatpush2.xpose.msra.mxu0 0.0
    %1994 = vmatprep.subr.mxu0 0.0
    %1995 = vmatpush2.xpose.msra.mxu0 0.0
    %1996 = vmatprep.subr.mxu0 0.0
    %1997 = vmatpush2.xpose.msra.mxu0 0.0
    %1998 = vmatprep.subr.mxu0 0.0
    %1999 = vmatpush2.xpose.msra.mxu0 0.0
    %2000 = vmatprep.subr.mxu0 0.0
    %2001 = vmatpush2.xpose.msra.mxu0 0.0
    %2002 = vmatprep.mubr.f32.mxu0 0.0
    %2003 = vmatmul.mubr.f32.gmra.mxu0 %v1934
    %v2004 = vpop.f32.mrf.mxu0
    %v2005 = vadd.f32 0.0, %v2004
    %v2006 = vpop.f32.mrf.mxu0
    %2007 = vdwg.mxu0
    %v2008 = vsel %vm344, %v2005, -inf
    %2009 = vmax.xlane.f32.xlu0 %v2008
    %v2010 = vpop.xlane.xlu0 %2009
    %v2011 = vsub.f32 %v2005, %v2010
    %v2012 = vmul.f32 %v2011, 1.442695
    %v2013 = vpow.pop %v2012
    %v2014 = vsel %vm344, %v2013, 0.0
    %2015 = vadd.xlane.f32.xlu0 %v2014
    %v2016 = vpop.xlane.xlu0 %2015
    %v2017 = vrcp.pop %v2016
    %v2018 = vmul.f32 %v2013, %v2017
    %2019 = vrot.lane.b32.xlu0 %v1764, 88
    %v2020 = vpop.permute.xlu0 %2019
    %v2023 = vsel %vm344, %v2018, 0
    %2025 = vmatprep.subr.mxu0 0.0
    %2026 = vmatpush1.msra.mxu0 0.0
    %2027 = vmatprep.subr.mxu0 0.0
    %2028 = vmatpush1.msra.mxu0 0.0
    %2029 = vmatprep.subr.mxu0 0.0
    %2030 = vmatpush1.msra.mxu0 0.0
    %2031 = vmatprep.subr.mxu0 0.0
    %2032 = vmatpush1.msra.mxu0 0.0
    %2033 = vmatprep.subr.mxu0 0.0
    %2034 = vmatpush1.msra.mxu0 0.0
    %2035 = vmatprep.subr.mxu0 0.0
    %2036 = vmatpush1.msra.mxu0 0.0
    %2037 = vmatprep.subr.mxu0 0.0
    %2038 = vmatpush1.msra.mxu0 0.0
    %2039 = vmatprep.subr.mxu0 0.0
    %2040 = vmatpush1.msra.mxu0 0.0
    %2041 = vmatprep.subr.mxu0 0.0
    %2042 = vmatpush1.msra.mxu0 0.0
    %2043 = vmatprep.subr.mxu0 0.0
    %2044 = vmatpush1.msra.mxu0 0.0
    %2045 = vmatprep.subr.mxu0 0.0
    %2046 = vmatpush1.msra.mxu0 0.0
    %2047 = vmatprep.subr.mxu0 0.0
    %2048 = vmatpush1.msra.mxu0 0.0
    %2049 = vmatprep.subr.mxu0 0.0
    %2050 = vmatpush1.msra.mxu0 0.0
    %2051 = vmatprep.subr.mxu0 0.0
    %2052 = vmatpush1.msra.mxu0 0.0
    %2053 = vmatprep.subr.mxu0 0.0
    %2054 = vmatpush1.msra.mxu0 0.0
    %2055 = vmatprep.subr.mxu0 0.0
    %2056 = vmatpush1.msra.mxu0 %v2020
    %2057 = vmatprep.subr.mxu0 0.0
    %2058 = vmatpush2.msra.mxu0 0.0
    %2059 = vmatprep.subr.mxu0 0.0
    %2060 = vmatpush2.msra.mxu0 0.0
    %2061 = vmatprep.subr.mxu0 0.0
    %2062 = vmatpush2.msra.mxu0 0.0
    %2063 = vmatprep.subr.mxu0 0.0
    %2064 = vmatpush2.msra.mxu0 0.0
    %2065 = vmatprep.subr.mxu0 0.0
    %2066 = vmatpush2.msra.mxu0 0.0
    %2067 = vmatprep.subr.mxu0 0.0
    %2068 = vmatpush2.msra.mxu0 0.0
    %2069 = vmatprep.subr.mxu0 0.0
    %2070 = vmatpush2.msra.mxu0 0.0
    %2071 = vmatprep.subr.mxu0 0.0
    %2072 = vmatpush2.msra.mxu0 0.0
    %2073 = vmatprep.subr.mxu0 0.0
    %2074 = vmatpush2.msra.mxu0 0.0
    %2075 = vmatprep.subr.mxu0 0.0
    %2076 = vmatpush2.msra.mxu0 0.0
    %2077 = vmatprep.subr.mxu0 0.0
    %2078 = vmatpush2.msra.mxu0 0.0
    %2079 = vmatprep.subr.mxu0 0.0
    %2080 = vmatpush2.msra.mxu0 0.0
    %2081 = vmatprep.subr.mxu0 0.0
    %2082 = vmatpush2.msra.mxu0 0.0
    %2083 = vmatprep.subr.mxu0 0.0
    %2084 = vmatpush2.msra.mxu0 0.0
    %2085 = vmatprep.subr.mxu0 0.0
    %2086 = vmatpush2.msra.mxu0 0.0
    %2087 = vmatprep.subr.mxu0 0.0
    %2088 = vmatpush2.msra.mxu0 0.0
    %2089 = vmatprep.mubr.f32.mxu0 0.0
    %2090 = vmatmul.mubr.f32.gmra.mxu0 %v2023
    %v2091 = vpop.f32.mrf.mxu0
    %v2092 = vadd.f32 0.0, %v2091
    %v2093 = vpop.f32.mrf.mxu0
    %2094 = vdwg.mxu0
    %2095 = vrot.lane.b32.xlu0 %v1690, 112
    %v2096 = vpop.permute.xlu0 %2095
    %2097 = vrot.lane.b32.xlu0 %v1764, 112
    %v2098 = vpop.permute.xlu0 %2097
    %v2099 = vsel %vm344, %v2096, 0
    %v2101 = vsel %vm344, %v2098, 0
    %2103 = vmatprep.subr.mxu0 0.0
    %2104 = vmatpush1.xpose.msra.mxu0 0.0
    %2105 = vmatprep.subr.mxu0 0.0
    %2106 = vmatpush1.xpose.msra.mxu0 0.0
    %2107 = vmatprep.subr.mxu0 0.0
    %2108 = vmatpush1.xpose.msra.mxu0 0.0
    %2109 = vmatprep.subr.mxu0 0.0
    %2110 = vmatpush1.xpose.msra.mxu0 0.0
    %2111 = vmatprep.subr.mxu0 0.0
    %2112 = vmatpush1.xpose.msra.mxu0 0.0
    %2113 = vmatprep.subr.mxu0 0.0
    %2114 = vmatpush1.xpose.msra.mxu0 0.0
    %2115 = vmatprep.subr.mxu0 0.0
    %2116 = vmatpush1.xpose.msra.mxu0 0.0
    %2117 = vmatprep.subr.mxu0 0.0
    %2118 = vmatpush1.xpose.msra.mxu0 0.0
    %2119 = vmatprep.subr.mxu0 0.0
    %2120 = vmatpush1.xpose.msra.mxu0 0.0
    %2121 = vmatprep.subr.mxu0 0.0
    %2122 = vmatpush1.xpose.msra.mxu0 0.0
    %2123 = vmatprep.subr.mxu0 0.0
    %2124 = vmatpush1.xpose.msra.mxu0 0.0
    %2125 = vmatprep.subr.mxu0 0.0
    %2126 = vmatpush1.xpose.msra.mxu0 0.0
    %2127 = vmatprep.subr.mxu0 0.0
    %2128 = vmatpush1.xpose.msra.mxu0 0.0
    %2129 = vmatprep.subr.mxu0 0.0
    %2130 = vmatpush1.xpose.msra.mxu0 0.0
    %2131 = vmatprep.subr.mxu0 0.0
    %2132 = vmatpush1.xpose.msra.mxu0 0.0
    %2133 = vmatprep.subr.mxu0 0.0
    %2134 = vmatpush1.xpose.msra.mxu0 %v2101
    %2135 = vmatprep.subr.mxu0 0.0
    %2136 = vmatpush2.xpose.msra.mxu0 0.0
    %2137 = vmatprep.subr.mxu0 0.0
    %2138 = vmatpush2.xpose.msra.mxu0 0.0
    %2139 = vmatprep.subr.mxu0 0.0
    %2140 = vmatpush2.xpose.msra.mxu0 0.0
    %2141 = vmatprep.subr.mxu0 0.0
    %2142 = vmatpush2.xpose.msra.mxu0 0.0
    %2143 = vmatprep.subr.mxu0 0.0
    %2144 = vmatpush2.xpose.msra.mxu0 0.0
    %2145 = vmatprep.subr.mxu0 0.0
    %2146 = vmatpush2.xpose.msra.mxu0 0.0
    %2147 = vmatprep.subr.mxu0 0.0
    %2148 = vmatpush2.xpose.msra.mxu0 0.0
    %2149 = vmatprep.subr.mxu0 0.0
    %2150 = vmatpush2.xpose.msra.mxu0 0.0
    %2151 = vmatprep.subr.mxu0 0.0
    %2152 = vmatpush2.xpose.msra.mxu0 0.0
    %2153 = vmatprep.subr.mxu0 0.0
    %2154 = vmatpush2.xpose.msra.mxu0 0.0
    %2155 = vmatprep.subr.mxu0 0.0
    %2156 = vmatpush2.xpose.msra.mxu0 0.0
    %2157 = vmatprep.subr.mxu0 0.0
    %2158 = vmatpush2.xpose.msra.mxu0 0.0
    %2159 = vmatprep.subr.mxu0 0.0
    %2160 = vmatpush2.xpose.msra.mxu0 0.0
    %2161 = vmatprep.subr.mxu0 0.0
    %2162 = vmatpush2.xpose.msra.mxu0 0.0
    %2163 = vmatprep.subr.mxu0 0.0
    %2164 = vmatpush2.xpose.msra.mxu0 0.0
    %2165 = vmatprep.subr.mxu0 0.0
    %2166 = vmatpush2.xpose.msra.mxu0 0.0
    %2167 = vmatprep.mubr.f32.mxu0 0.0
    %2168 = vmatmul.mubr.f32.gmra.mxu0 %v2099
    %v2169 = vpop.f32.mrf.mxu0
    %v2170 = vadd.f32 0.0, %v2169
    %v2171 = vpop.f32.mrf.mxu0
    %2172 = vdwg.mxu0
    %v2173 = vsel %vm344, %v2170, -inf
    %2174 = vmax.xlane.f32.xlu0 %v2173
    %v2175 = vpop.xlane.xlu0 %2174
    %v2176 = vsub.f32 %v2170, %v2175
    %v2177 = vmul.f32 %v2176, 1.442695
    %v2178 = vpow.pop %v2177
    %v2179 = vsel %vm344, %v2178, 0.0
    %2180 = vadd.xlane.f32.xlu0 %v2179
    %v2181 = vpop.xlane.xlu0 %2180
    %v2182 = vrcp.pop %v2181
    %v2183 = vmul.f32 %v2178, %v2182
    %2184 = vrot.lane.b32.xlu0 %v1764, 80
    %v2185 = vpop.permute.xlu0 %2184
    %v2188 = vsel %vm344, %v2183, 0
    %2190 = vmatprep.subr.mxu0 0.0
    %2191 = vmatpush1.msra.mxu0 0.0
    %2192 = vmatprep.subr.mxu0 0.0
    %2193 = vmatpush1.msra.mxu0 0.0
    %2194 = vmatprep.subr.mxu0 0.0
    %2195 = vmatpush1.msra.mxu0 0.0
    %2196 = vmatprep.subr.mxu0 0.0
    %2197 = vmatpush1.msra.mxu0 0.0
    %2198 = vmatprep.subr.mxu0 0.0
    %2199 = vmatpush1.msra.mxu0 0.0
    %2200 = vmatprep.subr.mxu0 0.0
    %2201 = vmatpush1.msra.mxu0 0.0
    %2202 = vmatprep.subr.mxu0 0.0
    %2203 = vmatpush1.msra.mxu0 0.0
    %2204 = vmatprep.subr.mxu0 0.0
    %2205 = vmatpush1.msra.mxu0 0.0
    %2206 = vmatprep.subr.mxu0 0.0
    %2207 = vmatpush1.msra.mxu0 0.0
    %2208 = vmatprep.subr.mxu0 0.0
    %2209 = vmatpush1.msra.mxu0 0.0
    %2210 = vmatprep.subr.mxu0 0.0
    %2211 = vmatpush1.msra.mxu0 0.0
    %2212 = vmatprep.subr.mxu0 0.0
    %2213 = vmatpush1.msra.mxu0 0.0
    %2214 = vmatprep.subr.mxu0 0.0
    %2215 = vmatpush1.msra.mxu0 0.0
    %2216 = vmatprep.subr.mxu0 0.0
    %2217 = vmatpush1.msra.mxu0 0.0
    %2218 = vmatprep.subr.mxu0 0.0
    %2219 = vmatpush1.msra.mxu0 0.0
    %2220 = vmatprep.subr.mxu0 0.0
    %2221 = vmatpush1.msra.mxu0 %v2185
    %2222 = vmatprep.subr.mxu0 0.0
    %2223 = vmatpush2.msra.mxu0 0.0
    %2224 = vmatprep.subr.mxu0 0.0
    %2225 = vmatpush2.msra.mxu0 0.0
    %2226 = vmatprep.subr.mxu0 0.0
    %2227 = vmatpush2.msra.mxu0 0.0
    %2228 = vmatprep.subr.mxu0 0.0
    %2229 = vmatpush2.msra.mxu0 0.0
    %2230 = vmatprep.subr.mxu0 0.0
    %2231 = vmatpush2.msra.mxu0 0.0
    %2232 = vmatprep.subr.mxu0 0.0
    %2233 = vmatpush2.msra.mxu0 0.0
    %2234 = vmatprep.subr.mxu0 0.0
    %2235 = vmatpush2.msra.mxu0 0.0
    %2236 = vmatprep.subr.mxu0 0.0
    %2237 = vmatpush2.msra.mxu0 0.0
    %2238 = vmatprep.subr.mxu0 0.0
    %2239 = vmatpush2.msra.mxu0 0.0
    %2240 = vmatprep.subr.mxu0 0.0
    %2241 = vmatpush2.msra.mxu0 0.0
    %2242 = vmatprep.subr.mxu0 0.0
    %2243 = vmatpush2.msra.mxu0 0.0
    %2244 = vmatprep.subr.mxu0 0.0
    %2245 = vmatpush2.msra.mxu0 0.0
    %2246 = vmatprep.subr.mxu0 0.0
    %2247 = vmatpush2.msra.mxu0 0.0
    %2248 = vmatprep.subr.mxu0 0.0
    %2249 = vmatpush2.msra.mxu0 0.0
    %2250 = vmatprep.subr.mxu0 0.0
    %2251 = vmatpush2.msra.mxu0 0.0
    %2252 = vmatprep.subr.mxu0 0.0
    %2253 = vmatpush2.msra.mxu0 0.0
    %2254 = vmatprep.mubr.f32.mxu0 0.0
    %2255 = vmatmul.mubr.f32.gmra.mxu0 %v2188
    %v2256 = vpop.f32.mrf.mxu0
    %v2257 = vadd.f32 0.0, %v2256
    %v2258 = vpop.f32.mrf.mxu0
    %2259 = vdwg.mxu0
    %2260 = vrot.lane.b32.xlu0 %v1690, 104
    %v2261 = vpop.permute.xlu0 %2260
    %2262 = vrot.lane.b32.xlu0 %v1764, 104
    %v2263 = vpop.permute.xlu0 %2262
    %v2264 = vsel %vm344, %v2261, 0
    %v2266 = vsel %vm344, %v2263, 0
    %2268 = vmatprep.subr.mxu0 0.0
    %2269 = vmatpush1.xpose.msra.mxu0 0.0
    %2270 = vmatprep.subr.mxu0 0.0
    %2271 = vmatpush1.xpose.msra.mxu0 0.0
    %2272 = vmatprep.subr.mxu0 0.0
    %2273 = vmatpush1.xpose.msra.mxu0 0.0
    %2274 = vmatprep.subr.mxu0 0.0
    %2275 = vmatpush1.xpose.msra.mxu0 0.0
    %2276 = vmatprep.subr.mxu0 0.0
    %2277 = vmatpush1.xpose.msra.mxu0 0.0
    %2278 = vmatprep.subr.mxu0 0.0
    %2279 = vmatpush1.xpose.msra.mxu0 0.0
    %2280 = vmatprep.subr.mxu0 0.0
    %2281 = vmatpush1.xpose.msra.mxu0 0.0
    %2282 = vmatprep.subr.mxu0 0.0
    %2283 = vmatpush1.xpose.msra.mxu0 0.0
    %2284 = vmatprep.subr.mxu0 0.0
    %2285 = vmatpush1.xpose.msra.mxu0 0.0
    %2286 = vmatprep.subr.mxu0 0.0
    %2287 = vmatpush1.xpose.msra.mxu0 0.0
    %2288 = vmatprep.subr.mxu0 0.0
    %2289 = vmatpush1.xpose.msra.mxu0 0.0
    %2290 = vmatprep.subr.mxu0 0.0
    %2291 = vmatpush1.xpose.msra.mxu0 0.0
    %2292 = vmatprep.subr.mxu0 0.0
    %2293 = vmatpush1.xpose.msra.mxu0 0.0
    %2294 = vmatprep.subr.mxu0 0.0
    %2295 = vmatpush1.xpose.msra.mxu0 0.0
    %2296 = vmatprep.subr.mxu0 0.0
    %2297 = vmatpush1.xpose.msra.mxu0 0.0
    %2298 = vmatprep.subr.mxu0 0.0
    %2299 = vmatpush1.xpose.msra.mxu0 %v2266
    %2300 = vmatprep.subr.mxu0 0.0
    %2301 = vmatpush2.xpose.msra.mxu0 0.0
    %2302 = vmatprep.subr.mxu0 0.0
    %2303 = vmatpush2.xpose.msra.mxu0 0.0
    %2304 = vmatprep.subr.mxu0 0.0
    %2305 = vmatpush2.xpose.msra.mxu0 0.0
    %2306 = vmatprep.subr.mxu0 0.0
    %2307 = vmatpush2.xpose.msra.mxu0 0.0
    %2308 = vmatprep.subr.mxu0 0.0
    %2309 = vmatpush2.xpose.msra.mxu0 0.0
    %2310 = vmatprep.subr.mxu0 0.0
    %2311 = vmatpush2.xpose.msra.mxu0 0.0
    %2312 = vmatprep.subr.mxu0 0.0
    %2313 = vmatpush2.xpose.msra.mxu0 0.0
    %2314 = vmatprep.subr.mxu0 0.0
    %2315 = vmatpush2.xpose.msra.mxu0 0.0
    %2316 = vmatprep.subr.mxu0 0.0
    %2317 = vmatpush2.xpose.msra.mxu0 0.0
    %2318 = vmatprep.subr.mxu0 0.0
    %2319 = vmatpush2.xpose.msra.mxu0 0.0
    %2320 = vmatprep.subr.mxu0 0.0
    %2321 = vmatpush2.xpose.msra.mxu0 0.0
    %2322 = vmatprep.subr.mxu0 0.0
    %2323 = vmatpush2.xpose.msra.mxu0 0.0
    %2324 = vmatprep.subr.mxu0 0.0
    %2325 = vmatpush2.xpose.msra.mxu0 0.0
    %2326 = vmatprep.subr.mxu0 0.0
    %2327 = vmatpush2.xpose.msra.mxu0 0.0
    %2328 = vmatprep.subr.mxu0 0.0
    %2329 = vmatpush2.xpose.msra.mxu0 0.0
    %2330 = vmatprep.subr.mxu0 0.0
    %2331 = vmatpush2.xpose.msra.mxu0 0.0
    %2332 = vmatprep.mubr.f32.mxu0 0.0
    %2333 = vmatmul.mubr.f32.gmra.mxu0 %v2264
    %v2334 = vpop.f32.mrf.mxu0
    %v2335 = vadd.f32 0.0, %v2334
    %v2336 = vpop.f32.mrf.mxu0
    %2337 = vdwg.mxu0
    %v2338 = vsel %vm344, %v2335, -inf
    %2339 = vmax.xlane.f32.xlu0 %v2338
    %v2340 = vpop.xlane.xlu0 %2339
    %v2341 = vsub.f32 %v2335, %v2340
    %v2342 = vmul.f32 %v2341, 1.442695
    %v2343 = vpow.pop %v2342
    %v2344 = vsel %vm344, %v2343, 0.0
    %2345 = vadd.xlane.f32.xlu0 %v2344
    %v2346 = vpop.xlane.xlu0 %2345
    %v2347 = vrcp.pop %v2346
    %v2348 = vmul.f32 %v2343, %v2347
    %2349 = vrot.lane.b32.xlu0 %v1764, 72
    %v2350 = vpop.permute.xlu0 %2349
    %v2353 = vsel %vm344, %v2348, 0
    %2355 = vmatprep.subr.mxu0 0.0
    %2356 = vmatpush1.msra.mxu0 0.0
    %2357 = vmatprep.subr.mxu0 0.0
    %2358 = vmatpush1.msra.mxu0 0.0
    %2359 = vmatprep.subr.mxu0 0.0
    %2360 = vmatpush1.msra.mxu0 0.0
    %2361 = vmatprep.subr.mxu0 0.0
    %2362 = vmatpush1.msra.mxu0 0.0
    %2363 = vmatprep.subr.mxu0 0.0
    %2364 = vmatpush1.msra.mxu0 0.0
    %2365 = vmatprep.subr.mxu0 0.0
    %2366 = vmatpush1.msra.mxu0 0.0
    %2367 = vmatprep.subr.mxu0 0.0
    %2368 = vmatpush1.msra.mxu0 0.0
    %2369 = vmatprep.subr.mxu0 0.0
    %2370 = vmatpush1.msra.mxu0 0.0
    %2371 = vmatprep.subr.mxu0 0.0
    %2372 = vmatpush1.msra.mxu0 0.0
    %2373 = vmatprep.subr.mxu0 0.0
    %2374 = vmatpush1.msra.mxu0 0.0
    %2375 = vmatprep.subr.mxu0 0.0
    %2376 = vmatpush1.msra.mxu0 0.0
    %2377 = vmatprep.subr.mxu0 0.0
    %2378 = vmatpush1.msra.mxu0 0.0
    %2379 = vmatprep.subr.mxu0 0.0
    %2380 = vmatpush1.msra.mxu0 0.0
    %2381 = vmatprep.subr.mxu0 0.0
    %2382 = vmatpush1.msra.mxu0 0.0
    %2383 = vmatprep.subr.mxu0 0.0
    %2384 = vmatpush1.msra.mxu0 0.0
    %2385 = vmatprep.subr.mxu0 0.0
    %2386 = vmatpush1.msra.mxu0 %v2350
    %2387 = vmatprep.subr.mxu0 0.0
    %2388 = vmatpush2.msra.mxu0 0.0
    %2389 = vmatprep.subr.mxu0 0.0
    %2390 = vmatpush2.msra.mxu0 0.0
    %2391 = vmatprep.subr.mxu0 0.0
    %2392 = vmatpush2.msra.mxu0 0.0
    %2393 = vmatprep.subr.mxu0 0.0
    %2394 = vmatpush2.msra.mxu0 0.0
    %2395 = vmatprep.subr.mxu0 0.0
    %2396 = vmatpush2.msra.mxu0 0.0
    %2397 = vmatprep.subr.mxu0 0.0
    %2398 = vmatpush2.msra.mxu0 0.0
    %2399 = vmatprep.subr.mxu0 0.0
    %2400 = vmatpush2.msra.mxu0 0.0
    %2401 = vmatprep.subr.mxu0 0.0
    %2402 = vmatpush2.msra.mxu0 0.0
    %2403 = vmatprep.subr.mxu0 0.0
    %2404 = vmatpush2.msra.mxu0 0.0
    %2405 = vmatprep.subr.mxu0 0.0
    %2406 = vmatpush2.msra.mxu0 0.0
    %2407 = vmatprep.subr.mxu0 0.0
    %2408 = vmatpush2.msra.mxu0 0.0
    %2409 = vmatprep.subr.mxu0 0.0
    %2410 = vmatpush2.msra.mxu0 0.0
    %2411 = vmatprep.subr.mxu0 0.0
    %2412 = vmatpush2.msra.mxu0 0.0
    %2413 = vmatprep.subr.mxu0 0.0
    %2414 = vmatpush2.msra.mxu0 0.0
    %2415 = vmatprep.subr.mxu0 0.0
    %2416 = vmatpush2.msra.mxu0 0.0
    %2417 = vmatprep.subr.mxu0 0.0
    %2418 = vmatpush2.msra.mxu0 0.0
    %2419 = vmatprep.mubr.f32.mxu0 0.0
    %2420 = vmatmul.mubr.f32.gmra.mxu0 %v2353
    %v2421 = vpop.f32.mrf.mxu0
    %v2422 = vadd.f32 0.0, %v2421
    %v2423 = vpop.f32.mrf.mxu0
    %2424 = vdwg.mxu0
    %2426 = vrot.lane.b32.xlu0 %v2092, 8
    %v2427 = vpop.permute.xlu0 %2426
    %2430 = vrot.lane.b32.xlu0 %v2257, 16
    %v2431 = vpop.permute.xlu0 %2430
    %2434 = vrot.lane.b32.xlu0 %v2422, 24
    %v2435 = vpop.permute.xlu0 %2434
    %v2437 = vsel %vm344, %v1927, %v2427
    %v2438 = vsel %vm1016, %v2437, %v2431
    %v2439 = vsel %vm1018, %v2438, %v2435
    %v2440 = vlaneseq
    %v2441 = vshrl.u32 %v2440, 7
    %v2442 = vsub.s32 0, %v2441
    %v2443 = vrot.slane %v144, %v2442
    %v2445 = vsel %vm197, %v2439, 0
    %2447 = vmatprep.subr.mxu0 0.0
    %2448 = vmatpush1.msra.mxu0 0.0
    %2449 = vmatprep.subr.mxu0 0.0
    %2450 = vmatpush1.msra.mxu0 0.0
    %2451 = vmatprep.subr.mxu0 0.0
    %2452 = vmatpush1.msra.mxu0 0.0
    %2453 = vmatprep.subr.mxu0 0.0
    %2454 = vmatpush1.msra.mxu0 0.0
    %2455 = vmatprep.subr.mxu0 0.0
    %2456 = vmatpush1.msra.mxu0 0.0
    %2457 = vmatprep.subr.mxu0 0.0
    %2458 = vmatpush1.msra.mxu0 0.0
    %2459 = vmatprep.subr.mxu0 0.0
    %2460 = vmatpush1.msra.mxu0 0.0
    %2461 = vmatprep.subr.mxu0 0.0
    %2462 = vmatpush1.msra.mxu0 0.0
    %2463 = vmatprep.subr.mxu0 0.0
    %2464 = vmatpush1.msra.mxu0 0.0
    %2465 = vmatprep.subr.mxu0 0.0
    %2466 = vmatpush1.msra.mxu0 0.0
    %2467 = vmatprep.subr.mxu0 0.0
    %2468 = vmatpush1.msra.mxu0 0.0
    %2469 = vmatprep.subr.mxu0 0.0
    %2470 = vmatpush1.msra.mxu0 0.0
    %2471 = vmatprep.subr.mxu0 0.0
    %2472 = vmatpush1.msra.mxu0 %v100
    %2473 = vmatprep.subr.mxu0 0.0
    %2474 = vmatpush1.msra.mxu0 %v99
    %2475 = vmatprep.subr.mxu0 0.0
    %2476 = vmatpush1.msra.mxu0 %v98
    %2477 = vmatprep.subr.mxu0 0.0
    %2478 = vmatpush1.msra.mxu0 %v97
    %2479 = vmatprep.subr.mxu0 0.0
    %2480 = vmatpush2.msra.mxu0 0.0
    %2481 = vmatprep.subr.mxu0 0.0
    %2482 = vmatpush2.msra.mxu0 0.0
    %2483 = vmatprep.subr.mxu0 0.0
    %2484 = vmatpush2.msra.mxu0 0.0
    %2485 = vmatprep.subr.mxu0 0.0
    %2486 = vmatpush2.msra.mxu0 0.0
    %2487 = vmatprep.subr.mxu0 0.0
    %2488 = vmatpush2.msra.mxu0 0.0
    %2489 = vmatprep.subr.mxu0 0.0
    %2490 = vmatpush2.msra.mxu0 0.0
    %2491 = vmatprep.subr.mxu0 0.0
    %2492 = vmatpush2.msra.mxu0 0.0
    %2493 = vmatprep.subr.mxu0 0.0
    %2494 = vmatpush2.msra.mxu0 0.0
    %2495 = vmatprep.subr.mxu0 0.0
    %2496 = vmatpush2.msra.mxu0 0.0
    %2497 = vmatprep.subr.mxu0 0.0
    %2498 = vmatpush2.msra.mxu0 0.0
    %2499 = vmatprep.subr.mxu0 0.0
    %2500 = vmatpush2.msra.mxu0 0.0
    %2501 = vmatprep.subr.mxu0 0.0
    %2502 = vmatpush2.msra.mxu0 0.0
    %2503 = vmatprep.subr.mxu0 0.0
    %2504 = vmatpush2.msra.mxu0 0.0
    %2505 = vmatprep.subr.mxu0 0.0
    %2506 = vmatpush2.msra.mxu0 0.0
    %2507 = vmatprep.subr.mxu0 0.0
    %2508 = vmatpush2.msra.mxu0 0.0
    %2509 = vmatprep.subr.mxu0 0.0
    %2510 = vmatpush2.msra.mxu0 0.0
    %2511 = vmatprep.mubr.f32.mxu0 0.0
    %2512 = vmatmul.mubr.f32.gmra.mxu0 %v2445
    %v2513 = vpop.f32.mrf.mxu0
    %v2514 = vadd.f32 %v2443, %v2513
    %v2515 = vpop.f32.mrf.mxu0
    %2516 = vdwg.mxu0
    %v2518 = vrot.slane %v2514, 1
    %v2519 = vrot.slane %v2514, 2
    %v2520 = vrot.slane %v2514, 3
    %v2521 = vrot.slane %v2514, 4
    %v2522 = vrot.slane %v2514, 5
    %v2523 = vrot.slane %v2514, 6
    %v2524 = vrot.slane %v2514, 7
    %v2533 = vadd.f32 %v1587, %v2514
    %v2534 = vadd.f32 %v1588, %v2518
    %v2535 = vadd.f32 %v1589, %v2519
    %v2536 = vadd.f32 %v1590, %v2520
    %v2537 = vadd.f32 %v1591, %v2521
    %v2538 = vadd.f32 %v1592, %v2522
    %v2539 = vadd.f32 %v1593, %v2523
    %v2540 = vadd.f32 %v1594, %v2524
    %v2549 = vrot.slane %v2534, 7
    %v2550 = vsel %vm177, %v2549, %v2533
    %v2551 = vrot.slane %v2535, 6
    %v2552 = vsel %vm180, %v2551, %v2550
    %v2553 = vrot.slane %v2536, 5
    %v2554 = vsel %vm183, %v2553, %v2552
    %v2555 = vrot.slane %v2537, 4
    %v2556 = vsel %vm186, %v2555, %v2554
    %v2557 = vrot.slane %v2538, 3
    %v2558 = vsel %vm189, %v2557, %v2556
    %v2559 = vrot.slane %v2539, 2
    %v2560 = vsel %vm192, %v2559, %v2558
    %v2561 = vrot.slane %v2540, 1
    %v2562 = vsel %vm195, %v2561, %v2560
    %v2564 = vsel %vm197, %v2562, 0.0
    %2565 = vadd.xlane.f32.xlu0 %v2564
    %v2566 = vpop.xlane.xlu0 %2565
    %v2567 = vmul.f32 %v2566, %v1147
    %v2569 = vrot.slane %v2567, 1
    %v2570 = vrot.slane %v2567, 2
    %v2571 = vrot.slane %v2567, 3
    %v2572 = vrot.slane %v2567, 4
    %v2573 = vrot.slane %v2567, 5
    %v2574 = vrot.slane %v2567, 6
    %v2575 = vrot.slane %v2567, 7
    %v2584 = vsub.f32 %v2533, %v2567
    %v2585 = vsub.f32 %v2534, %v2569
    %v2586 = vsub.f32 %v2535, %v2570
    %v2587 = vsub.f32 %v2536, %v2571
    %v2588 = vsub.f32 %v2537, %v2572
    %v2589 = vsub.f32 %v2538, %v2573
    %v2590 = vsub.f32 %v2539, %v2574
    %v2591 = vsub.f32 %v2540, %v2575
    %v2592 = vmul.f32 %v2584, %v2584
    %v2593 = vmul.f32 %v2585, %v2585
    %v2594 = vmul.f32 %v2586, %v2586
    %v2595 = vmul.f32 %v2587, %v2587
    %v2596 = vmul.f32 %v2588, %v2588
    %v2597 = vmul.f32 %v2589, %v2589
    %v2598 = vmul.f32 %v2590, %v2590
    %v2599 = vmul.f32 %v2591, %v2591
    %v2608 = vrot.slane %v2593, 7
    %v2609 = vsel %vm177, %v2608, %v2592
    %v2610 = vrot.slane %v2594, 6
    %v2611 = vsel %vm180, %v2610, %v2609
    %v2612 = vrot.slane %v2595, 5
    %v2613 = vsel %vm183, %v2612, %v2611
    %v2614 = vrot.slane %v2596, 4
    %v2615 = vsel %vm186, %v2614, %v2613
    %v2616 = vrot.slane %v2597, 3
    %v2617 = vsel %vm189, %v2616, %v2615
    %v2618 = vrot.slane %v2598, 2
    %v2619 = vsel %vm192, %v2618, %v2617
    %v2620 = vrot.slane %v2599, 1
    %v2621 = vsel %vm195, %v2620, %v2619
    %v2623 = vsel %vm197, %v2621, 0.0
    %2624 = vadd.xlane.f32.xlu0 %v2623
    %v2625 = vpop.xlane.xlu0 %2624
    %v2626 = vmul.f32 %v2625, %v1147
    %v2627 = vadd.f32 %v2626, 1e-05
    %v2628 = vrsqrt.pop %v2627
    %v2630 = vrot.slane %v2628, 1
    %v2631 = vrot.slane %v2628, 2
    %v2632 = vrot.slane %v2628, 3
    %v2633 = vrot.slane %v2628, 4
    %v2634 = vrot.slane %v2628, 5
    %v2635 = vrot.slane %v2628, 6
    %v2636 = vrot.slane %v2628, 7
    %v2645 = vmul.f32 %v2584, %v2628
    %v2646 = vmul.f32 %v2585, %v2630
    %v2647 = vmul.f32 %v2586, %v2631
    %v2648 = vmul.f32 %v2587, %v2632
    %v2649 = vmul.f32 %v2588, %v2633
    %v2650 = vmul.f32 %v2589, %v2634
    %v2651 = vmul.f32 %v2590, %v2635
    %v2652 = vmul.f32 %v2591, %v2636
    %v2653 = vlaneseq
    %v2654 = vshrl.u32 %v2653, 7
    %v2655 = vsub.s32 0, %v2654
    %v2656 = vrot.slane %v150, %v2655
    %v2657 = vmul.f32 %v2645, %v2656
    %v2658 = vmul.f32 %v2646, %v2656
    %v2659 = vmul.f32 %v2647, %v2656
    %v2660 = vmul.f32 %v2648, %v2656
    %v2661 = vmul.f32 %v2649, %v2656
    %v2662 = vmul.f32 %v2650, %v2656
    %v2663 = vmul.f32 %v2651, %v2656
    %v2664 = vmul.f32 %v2652, %v2656
    %v2665 = vlaneseq
    %v2666 = vshrl.u32 %v2665, 7
    %v2667 = vsub.s32 0, %v2666
    %v2668 = vrot.slane %v151, %v2667
    %v2669 = vadd.f32 %v2657, %v2668
    %v2670 = vadd.f32 %v2658, %v2668
    %v2671 = vadd.f32 %v2659, %v2668
    %v2672 = vadd.f32 %v2660, %v2668
    %v2673 = vadd.f32 %v2661, %v2668
    %v2674 = vadd.f32 %v2662, %v2668
    %v2675 = vadd.f32 %v2663, %v2668
    %v2676 = vadd.f32 %v2664, %v2668
    %v2677 = vlaneseq
    %v2678 = vshrl.u32 %v2677, 7
    %v2679 = vsub.s32 0, %v2678
    %v2680 = vrot.slane %v145, %v2679
    %v2689 = vrot.slane %v2670, 7
    %v2690 = vsel %vm177, %v2689, %v2669
    %v2691 = vrot.slane %v2671, 6
    %v2692 = vsel %vm180, %v2691, %v2690
    %v2693 = vrot.slane %v2672, 5
    %v2694 = vsel %vm183, %v2693, %v2692
    %v2695 = vrot.slane %v2673, 4
    %v2696 = vsel %vm186, %v2695, %v2694
    %v2697 = vrot.slane %v2674, 3
    %v2698 = vsel %vm189, %v2697, %v2696
    %v2699 = vrot.slane %v2675, 2
    %v2700 = vsel %vm192, %v2699, %v2698
    %v2701 = vrot.slane %v2676, 1
    %v2702 = vsel %vm195, %v2701, %v2700
    %v2703 = vsel %vm197, %v2702, 0
    %2705 = vmatprep.subr.mxu0 0.0
    %2706 = vmatpush1.msra.mxu0 0.0
    %2707 = vmatprep.subr.mxu0 0.0
    %2708 = vmatpush1.msra.mxu0 0.0
    %2709 = vmatprep.subr.mxu0 0.0
    %2710 = vmatpush1.msra.mxu0 0.0
    %2711 = vmatprep.subr.mxu0 0.0
    %2712 = vmatpush1.msra.mxu0 0.0
    %2713 = vmatprep.subr.mxu0 0.0
    %2714 = vmatpush1.msra.mxu0 0.0
    %2715 = vmatprep.subr.mxu0 0.0
    %2716 = vmatpush1.msra.mxu0 0.0
    %2717 = vmatprep.subr.mxu0 0.0
    %2718 = vmatpush1.msra.mxu0 0.0
    %2719 = vmatprep.subr.mxu0 0.0
    %2720 = vmatpush1.msra.mxu0 0.0
    %2721 = vmatprep.subr.mxu0 0.0
    %2722 = vmatpush1.msra.mxu0 0.0
    %2723 = vmatprep.subr.mxu0 0.0
    %2724 = vmatpush1.msra.mxu0 0.0
    %2725 = vmatprep.subr.mxu0 0.0
    %2726 = vmatpush1.msra.mxu0 0.0
    %2727 = vmatprep.subr.mxu0 0.0
    %2728 = vmatpush1.msra.mxu0 0.0
    %2729 = vmatprep.subr.mxu0 0.0
    %2730 = vmatpush1.msra.mxu0 %v104
    %2731 = vmatprep.subr.mxu0 0.0
    %2732 = vmatpush1.msra.mxu0 %v103
    %2733 = vmatprep.subr.mxu0 0.0
    %2734 = vmatpush1.msra.mxu0 %v102
    %2735 = vmatprep.subr.mxu0 0.0
    %2736 = vmatpush1.msra.mxu0 %v101
    %2737 = vmatprep.subr.mxu0 0.0
    %2738 = vmatpush2.msra.mxu0 0.0
    %2739 = vmatprep.subr.mxu0 0.0
    %2740 = vmatpush2.msra.mxu0 0.0
    %2741 = vmatprep.subr.mxu0 0.0
    %2742 = vmatpush2.msra.mxu0 0.0
    %2743 = vmatprep.subr.mxu0 0.0
    %2744 = vmatpush2.msra.mxu0 0.0
    %2745 = vmatprep.subr.mxu0 0.0
    %2746 = vmatpush2.msra.mxu0 0.0
    %2747 = vmatprep.subr.mxu0 0.0
    %2748 = vmatpush2.msra.mxu0 0.0
    %2749 = vmatprep.subr.mxu0 0.0
    %2750 = vmatpush2.msra.mxu0 0.0
    %2751 = vmatprep.subr.mxu0 0.0
    %2752 = vmatpush2.msra.mxu0 0.0
    %2753 = vmatprep.subr.mxu0 0.0
    %2754 = vmatpush2.msra.mxu0 0.0
    %2755 = vmatprep.subr.mxu0 0.0
    %2756 = vmatpush2.msra.mxu0 0.0
    %2757 = vmatprep.subr.mxu0 0.0
    %2758 = vmatpush2.msra.mxu0 0.0
    %2759 = vmatprep.subr.mxu0 0.0
    %2760 = vmatpush2.msra.mxu0 0.0
    %2761 = vmatprep.subr.mxu0 0.0
    %2762 = vmatpush2.msra.mxu0 0.0
    %2763 = vmatprep.subr.mxu0 0.0
    %2764 = vmatpush2.msra.mxu0 0.0
    %2765 = vmatprep.subr.mxu0 0.0
    %2766 = vmatpush2.msra.mxu0 0.0
    %2767 = vmatprep.subr.mxu0 0.0
    %2768 = vmatpush2.msra.mxu0 0.0
    %2769 = vmatprep.mubr.f32.mxu0 0.0
    %2770 = vmatmul.mubr.f32.gmra.mxu0 %v2703
    %v2771 = vpop.f32.mrf.mxu0
    %v2772 = vadd.f32 %v2680, %v2771
    %v2773 = vpop.f32.mrf.mxu0
    %2774 = vdwg.mxu0
    %v2775 = vlaneseq
    %v2776 = vshrl.u32 %v2775, 7
    %v2777 = vsub.s32 0, %v2776
    %v2778 = vrot.slane %v146, %v2777
    %2779 = vmatprep.subr.mxu0 0.0
    %2780 = vmatpush1.msra.mxu0 0.0
    %2781 = vmatprep.subr.mxu0 0.0
    %2782 = vmatpush1.msra.mxu0 0.0
    %2783 = vmatprep.subr.mxu0 0.0
    %2784 = vmatpush1.msra.mxu0 0.0
    %2785 = vmatprep.subr.mxu0 0.0
    %2786 = vmatpush1.msra.mxu0 0.0
    %2787 = vmatprep.subr.mxu0 0.0
    %2788 = vmatpush1.msra.mxu0 0.0
    %2789 = vmatprep.subr.mxu0 0.0
    %2790 = vmatpush1.msra.mxu0 0.0
    %2791 = vmatprep.subr.mxu0 0.0
    %2792 = vmatpush1.msra.mxu0 0.0
    %2793 = vmatprep.subr.mxu0 0.0
    %2794 = vmatpush1.msra.mxu0 0.0
    %2795 = vmatprep.subr.mxu0 0.0
    %2796 = vmatpush1.msra.mxu0 0.0
    %2797 = vmatprep.subr.mxu0 0.0
    %2798 = vmatpush1.msra.mxu0 0.0
    %2799 = vmatprep.subr.mxu0 0.0
    %2800 = vmatpush1.msra.mxu0 0.0
    %2801 = vmatprep.subr.mxu0 0.0
    %2802 = vmatpush1.msra.mxu0 0.0
    %2803 = vmatprep.subr.mxu0 0.0
    %2804 = vmatpush1.msra.mxu0 %v108
    %2805 = vmatprep.subr.mxu0 0.0
    %2806 = vmatpush1.msra.mxu0 %v107
    %2807 = vmatprep.subr.mxu0 0.0
    %2808 = vmatpush1.msra.mxu0 %v106
    %2809 = vmatprep.subr.mxu0 0.0
    %2810 = vmatpush1.msra.mxu0 %v105
    %2811 = vmatprep.subr.mxu0 0.0
    %2812 = vmatpush2.msra.mxu0 0.0
    %2813 = vmatprep.subr.mxu0 0.0
    %2814 = vmatpush2.msra.mxu0 0.0
    %2815 = vmatprep.subr.mxu0 0.0
    %2816 = vmatpush2.msra.mxu0 0.0
    %2817 = vmatprep.subr.mxu0 0.0
    %2818 = vmatpush2.msra.mxu0 0.0
    %2819 = vmatprep.subr.mxu0 0.0
    %2820 = vmatpush2.msra.mxu0 0.0
    %2821 = vmatprep.subr.mxu0 0.0
    %2822 = vmatpush2.msra.mxu0 0.0
    %2823 = vmatprep.subr.mxu0 0.0
    %2824 = vmatpush2.msra.mxu0 0.0
    %2825 = vmatprep.subr.mxu0 0.0
    %2826 = vmatpush2.msra.mxu0 0.0
    %2827 = vmatprep.subr.mxu0 0.0
    %2828 = vmatpush2.msra.mxu0 0.0
    %2829 = vmatprep.subr.mxu0 0.0
    %2830 = vmatpush2.msra.mxu0 0.0
    %2831 = vmatprep.subr.mxu0 0.0
    %2832 = vmatpush2.msra.mxu0 0.0
    %2833 = vmatprep.subr.mxu0 0.0
    %2834 = vmatpush2.msra.mxu0 0.0
    %2835 = vmatprep.subr.mxu0 0.0
    %2836 = vmatpush2.msra.mxu0 0.0
    %2837 = vmatprep.subr.mxu0 0.0
    %2838 = vmatpush2.msra.mxu0 0.0
    %2839 = vmatprep.subr.mxu0 0.0
    %2840 = vmatpush2.msra.mxu0 0.0
    %2841 = vmatprep.subr.mxu0 0.0
    %2842 = vmatpush2.msra.mxu0 0.0
    %2843 = vmatprep.mubr.f32.mxu0 0.0
    %2844 = vmatmul.mubr.f32.gmra.mxu0 %v1621
    %v2845 = vpop.f32.mrf.mxu0
    %v2846 = vadd.f32 %v2778, %v2845
    %v2847 = vpop.f32.mrf.mxu0
    %2848 = vdwg.mxu0
    %v2850 = vsel %vm344, %v2772, 0
    %v2853 = vsel %vm344, %v2846, 0
    %2855 = vmatprep.subr.mxu0 0.0
    %2856 = vmatpush1.xpose.msra.mxu0 0.0
    %2857 = vmatprep.subr.mxu0 0.0
    %2858 = vmatpush1.xpose.msra.mxu0 0.0
    %2859 = vmatprep.subr.mxu0 0.0
    %2860 = vmatpush1.xpose.msra.mxu0 0.0
    %2861 = vmatprep.subr.mxu0 0.0
    %2862 = vmatpush1.xpose.msra.mxu0 0.0
    %2863 = vmatprep.subr.mxu0 0.0
    %2864 = vmatpush1.xpose.msra.mxu0 0.0
    %2865 = vmatprep.subr.mxu0 0.0
    %2866 = vmatpush1.xpose.msra.mxu0 0.0
    %2867 = vmatprep.subr.mxu0 0.0
    %2868 = vmatpush1.xpose.msra.mxu0 0.0
    %2869 = vmatprep.subr.mxu0 0.0
    %2870 = vmatpush1.xpose.msra.mxu0 0.0
    %2871 = vmatprep.subr.mxu0 0.0
    %2872 = vmatpush1.xpose.msra.mxu0 0.0
    %2873 = vmatprep.subr.mxu0 0.0
    %2874 = vmatpush1.xpose.msra.mxu0 0.0
    %2875 = vmatprep.subr.mxu0 0.0
    %2876 = vmatpush1.xpose.msra.mxu0 0.0
    %2877 = vmatprep.subr.mxu0 0.0
    %2878 = vmatpush1.xpose.msra.mxu0 0.0
    %2879 = vmatprep.subr.mxu0 0.0
    %2880 = vmatpush1.xpose.msra.mxu0 0.0
    %2881 = vmatprep.subr.mxu0 0.0
    %2882 = vmatpush1.xpose.msra.mxu0 0.0
    %2883 = vmatprep.subr.mxu0 0.0
    %2884 = vmatpush1.xpose.msra.mxu0 0.0
    %2885 = vmatprep.subr.mxu0 0.0
    %2886 = vmatpush1.xpose.msra.mxu0 %v2853
    %2887 = vmatprep.subr.mxu0 0.0
    %2888 = vmatpush2.xpose.msra.mxu0 0.0
    %2889 = vmatprep.subr.mxu0 0.0
    %2890 = vmatpush2.xpose.msra.mxu0 0.0
    %2891 = vmatprep.subr.mxu0 0.0
    %2892 = vmatpush2.xpose.msra.mxu0 0.0
    %2893 = vmatprep.subr.mxu0 0.0
    %2894 = vmatpush2.xpose.msra.mxu0 0.0
    %2895 = vmatprep.subr.mxu0 0.0
    %2896 = vmatpush2.xpose.msra.mxu0 0.0
    %2897 = vmatprep.subr.mxu0 0.0
    %2898 = vmatpush2.xpose.msra.mxu0 0.0
    %2899 = vmatprep.subr.mxu0 0.0
    %2900 = vmatpush2.xpose.msra.mxu0 0.0
    %2901 = vmatprep.subr.mxu0 0.0
    %2902 = vmatpush2.xpose.msra.mxu0 0.0
    %2903 = vmatprep.subr.mxu0 0.0
    %2904 = vmatpush2.xpose.msra.mxu0 0.0
    %2905 = vmatprep.subr.mxu0 0.0
    %2906 = vmatpush2.xpose.msra.mxu0 0.0
    %2907 = vmatprep.subr.mxu0 0.0
    %2908 = vmatpush2.xpose.msra.mxu0 0.0
    %2909 = vmatprep.subr.mxu0 0.0
    %2910 = vmatpush2.xpose.msra.mxu0 0.0
    %2911 = vmatprep.subr.mxu0 0.0
    %2912 = vmatpush2.xpose.msra.mxu0 0.0
    %2913 = vmatprep.subr.mxu0 0.0
    %2914 = vmatpush2.xpose.msra.mxu0 0.0
    %2915 = vmatprep.subr.mxu0 0.0
    %2916 = vmatpush2.xpose.msra.mxu0 0.0
    %2917 = vmatprep.subr.mxu0 0.0
    %2918 = vmatpush2.xpose.msra.mxu0 0.0
    %2919 = vmatprep.mubr.f32.mxu0 0.0
    %2920 = vmatmul.mubr.f32.gmra.mxu0 %v2850
    %v2921 = vpop.f32.mrf.mxu0
    %v2922 = vadd.f32 0.0, %v2921
    %v2923 = vpop.f32.mrf.mxu0
    %2924 = vdwg.mxu0
    %v2925 = vsel %vm344, %v2922, -inf
    %2926 = vmax.xlane.f32.xlu0 %v2925
    %v2927 = vpop.xlane.xlu0 %2926
    %v2928 = vsub.f32 %v2922, %v2927
    %v2929 = vmul.f32 %v2928, 1.442695
    %v2930 = vpow.pop %v2929
    %v2931 = vsel %vm344, %v2930, 0.0
    %2932 = vadd.xlane.f32.xlu0 %v2931
    %v2933 = vpop.xlane.xlu0 %2932
    %v2934 = vrcp.pop %v2933
    %v2935 = vmul.f32 %v2930, %v2934
    %2936 = vrot.lane.b32.xlu0 %v2846, 96
    %v2937 = vpop.permute.xlu0 %2936
    %v2940 = vsel %vm344, %v2935, 0
    %2942 = vmatprep.subr.mxu0 0.0
    %2943 = vmatpush1.msra.mxu0 0.0
    %2944 = vmatprep.subr.mxu0 0.0
    %2945 = vmatpush1.msra.mxu0 0.0
    %2946 = vmatprep.subr.mxu0 0.0
    %2947 = vmatpush1.msra.mxu0 0.0
    %2948 = vmatprep.subr.mxu0 0.0
    %2949 = vmatpush1.msra.mxu0 0.0
    %2950 = vmatprep.subr.mxu0 0.0
    %2951 = vmatpush1.msra.mxu0 0.0
    %2952 = vmatprep.subr.mxu0 0.0
    %2953 = vmatpush1.msra.mxu0 0.0
    %2954 = vmatprep.subr.mxu0 0.0
    %2955 = vmatpush1.msra.mxu0 0.0
    %2956 = vmatprep.subr.mxu0 0.0
    %2957 = vmatpush1.msra.mxu0 0.0
    %2958 = vmatprep.subr.mxu0 0.0
    %2959 = vmatpush1.msra.mxu0 0.0
    %2960 = vmatprep.subr.mxu0 0.0
    %2961 = vmatpush1.msra.mxu0 0.0
    %2962 = vmatprep.subr.mxu0 0.0
    %2963 = vmatpush1.msra.mxu0 0.0
    %2964 = vmatprep.subr.mxu0 0.0
    %2965 = vmatpush1.msra.mxu0 0.0
    %2966 = vmatprep.subr.mxu0 0.0
    %2967 = vmatpush1.msra.mxu0 0.0
    %2968 = vmatprep.subr.mxu0 0.0
    %2969 = vmatpush1.msra.mxu0 0.0
    %2970 = vmatprep.subr.mxu0 0.0
    %2971 = vmatpush1.msra.mxu0 0.0
    %2972 = vmatprep.subr.mxu0 0.0
    %2973 = vmatpush1.msra.mxu0 %v2937
    %2974 = vmatprep.subr.mxu0 0.0
    %2975 = vmatpush2.msra.mxu0 0.0
    %2976 = vmatprep.subr.mxu0 0.0
    %2977 = vmatpush2.msra.mxu0 0.0
    %2978 = vmatprep.subr.mxu0 0.0
    %2979 = vmatpush2.msra.mxu0 0.0
    %2980 = vmatprep.subr.mxu0 0.0
    %2981 = vmatpush2.msra.mxu0 0.0
    %2982 = vmatprep.subr.mxu0 0.0
    %2983 = vmatpush2.msra.mxu0 0.0
    %2984 = vmatprep.subr.mxu0 0.0
    %2985 = vmatpush2.msra.mxu0 0.0
    %2986 = vmatprep.subr.mxu0 0.0
    %2987 = vmatpush2.msra.mxu0 0.0
    %2988 = vmatprep.subr.mxu0 0.0
    %2989 = vmatpush2.msra.mxu0 0.0
    %2990 = vmatprep.subr.mxu0 0.0
    %2991 = vmatpush2.msra.mxu0 0.0
    %2992 = vmatprep.subr.mxu0 0.0
    %2993 = vmatpush2.msra.mxu0 0.0
    %2994 = vmatprep.subr.mxu0 0.0
    %2995 = vmatpush2.msra.mxu0 0.0
    %2996 = vmatprep.subr.mxu0 0.0
    %2997 = vmatpush2.msra.mxu0 0.0
    %2998 = vmatprep.subr.mxu0 0.0
    %2999 = vmatpush2.msra.mxu0 0.0
    %3000 = vmatprep.subr.mxu0 0.0
    %3001 = vmatpush2.msra.mxu0 0.0
    %3002 = vmatprep.subr.mxu0 0.0
    %3003 = vmatpush2.msra.mxu0 0.0
    %3004 = vmatprep.subr.mxu0 0.0
    %3005 = vmatpush2.msra.mxu0 0.0
    %3006 = vmatprep.mubr.f32.mxu0 0.0
    %3007 = vmatmul.mubr.f32.gmra.mxu0 %v2940
    %v3008 = vpop.f32.mrf.mxu0
    %v3009 = vadd.f32 0.0, %v3008
    %v3010 = vpop.f32.mrf.mxu0
    %3011 = vdwg.mxu0
    %3012 = vrot.lane.b32.xlu0 %v2772, 120
    %v3013 = vpop.permute.xlu0 %3012
    %3014 = vrot.lane.b32.xlu0 %v2846, 120
    %v3015 = vpop.permute.xlu0 %3014
    %v3016 = vsel %vm344, %v3013, 0
    %v3018 = vsel %vm344, %v3015, 0
    %3020 = vmatprep.subr.mxu0 0.0
    %3021 = vmatpush1.xpose.msra.mxu0 0.0
    %3022 = vmatprep.subr.mxu0 0.0
    %3023 = vmatpush1.xpose.msra.mxu0 0.0
    %3024 = vmatprep.subr.mxu0 0.0
    %3025 = vmatpush1.xpose.msra.mxu0 0.0
    %3026 = vmatprep.subr.mxu0 0.0
    %3027 = vmatpush1.xpose.msra.mxu0 0.0
    %3028 = vmatprep.subr.mxu0 0.0
    %3029 = vmatpush1.xpose.msra.mxu0 0.0
    %3030 = vmatprep.subr.mxu0 0.0
    %3031 = vmatpush1.xpose.msra.mxu0 0.0
    %3032 = vmatprep.subr.mxu0 0.0
    %3033 = vmatpush1.xpose.msra.mxu0 0.0
    %3034 = vmatprep.subr.mxu0 0.0
    %3035 = vmatpush1.xpose.msra.mxu0 0.0
    %3036 = vmatprep.subr.mxu0 0.0
    %3037 = vmatpush1.xpose.msra.mxu0 0.0
    %3038 = vmatprep.subr.mxu0 0.0
    %3039 = vmatpush1.xpose.msra.mxu0 0.0
    %3040 = vmatprep.subr.mxu0 0.0
    %3041 = vmatpush1.xpose.msra.mxu0 0.0
    %3042 = vmatprep.subr.mxu0 0.0
    %3043 = vmatpush1.xpose.msra.mxu0 0.0
    %3044 = vmatprep.subr.mxu0 0.0
    %3045 = vmatpush1.xpose.msra.mxu0 0.0
    %3046 = vmatprep.subr.mxu0 0.0
    %3047 = vmatpush1.xpose.msra.mxu0 0.0
    %3048 = vmatprep.subr.mxu0 0.0
    %3049 = vmatpush1.xpose.msra.mxu0 0.0
    %3050 = vmatprep.subr.mxu0 0.0
    %3051 = vmatpush1.xpose.msra.mxu0 %v3018
    %3052 = vmatprep.subr.mxu0 0.0
    %3053 = vmatpush2.xpose.msra.mxu0 0.0
    %3054 = vmatprep.subr.mxu0 0.0
    %3055 = vmatpush2.xpose.msra.mxu0 0.0
    %3056 = vmatprep.subr.mxu0 0.0
    %3057 = vmatpush2.xpose.msra.mxu0 0.0
    %3058 = vmatprep.subr.mxu0 0.0
    %3059 = vmatpush2.xpose.msra.mxu0 0.0
    %3060 = vmatprep.subr.mxu0 0.0
    %3061 = vmatpush2.xpose.msra.mxu0 0.0
    %3062 = vmatprep.subr.mxu0 0.0
    %3063 = vmatpush2.xpose.msra.mxu0 0.0
    %3064 = vmatprep.subr.mxu0 0.0
    %3065 = vmatpush2.xpose.msra.mxu0 0.0
    %3066 = vmatprep.subr.mxu0 0.0
    %3067 = vmatpush2.xpose.msra.mxu0 0.0
    %3068 = vmatprep.subr.mxu0 0.0
    %3069 = vmatpush2.xpose.msra.mxu0 0.0
    %3070 = vmatprep.subr.mxu0 0.0
    %3071 = vmatpush2.xpose.msra.mxu0 0.0
    %3072 = vmatprep.subr.mxu0 0.0
    %3073 = vmatpush2.xpose.msra.mxu0 0.0
    %3074 = vmatprep.subr.mxu0 0.0
    %3075 = vmatpush2.xpose.msra.mxu0 0.0
    %3076 = vmatprep.subr.mxu0 0.0
    %3077 = vmatpush2.xpose.msra.mxu0 0.0
    %3078 = vmatprep.subr.mxu0 0.0
    %3079 = vmatpush2.xpose.msra.mxu0 0.0
    %3080 = vmatprep.subr.mxu0 0.0
    %3081 = vmatpush2.xpose.msra.mxu0 0.0
    %3082 = vmatprep.subr.mxu0 0.0
    %3083 = vmatpush2.xpose.msra.mxu0 0.0
    %3084 = vmatprep.mubr.f32.mxu0 0.0
    %3085 = vmatmul.mubr.f32.gmra.mxu0 %v3016
    %v3086 = vpop.f32.mrf.mxu0
    %v3087 = vadd.f32 0.0, %v3086
    %v3088 = vpop.f32.mrf.mxu0
    %3089 = vdwg.mxu0
    %v3090 = vsel %vm344, %v3087, -inf
    %3091 = vmax.xlane.f32.xlu0 %v3090
    %v3092 = vpop.xlane.xlu0 %3091
    %v3093 = vsub.f32 %v3087, %v3092
    %v3094 = vmul.f32 %v3093, 1.442695
    %v3095 = vpow.pop %v3094
    %v3096 = vsel %vm344, %v3095, 0.0
    %3097 = vadd.xlane.f32.xlu0 %v3096
    %v3098 = vpop.xlane.xlu0 %3097
    %v3099 = vrcp.pop %v3098
    %v3100 = vmul.f32 %v3095, %v3099
    %3101 = vrot.lane.b32.xlu0 %v2846, 88
    %v3102 = vpop.permute.xlu0 %3101
    %v3105 = vsel %vm344, %v3100, 0
    %3107 = vmatprep.subr.mxu0 0.0
    %3108 = vmatpush1.msra.mxu0 0.0
    %3109 = vmatprep.subr.mxu0 0.0
    %3110 = vmatpush1.msra.mxu0 0.0
    %3111 = vmatprep.subr.mxu0 0.0
    %3112 = vmatpush1.msra.mxu0 0.0
    %3113 = vmatprep.subr.mxu0 0.0
    %3114 = vmatpush1.msra.mxu0 0.0
    %3115 = vmatprep.subr.mxu0 0.0
    %3116 = vmatpush1.msra.mxu0 0.0
    %3117 = vmatprep.subr.mxu0 0.0
    %3118 = vmatpush1.msra.mxu0 0.0
    %3119 = vmatprep.subr.mxu0 0.0
    %3120 = vmatpush1.msra.mxu0 0.0
    %3121 = vmatprep.subr.mxu0 0.0
    %3122 = vmatpush1.msra.mxu0 0.0
    %3123 = vmatprep.subr.mxu0 0.0
    %3124 = vmatpush1.msra.mxu0 0.0
    %3125 = vmatprep.subr.mxu0 0.0
    %3126 = vmatpush1.msra.mxu0 0.0
    %3127 = vmatprep.subr.mxu0 0.0
    %3128 = vmatpush1.msra.mxu0 0.0
    %3129 = vmatprep.subr.mxu0 0.0
    %3130 = vmatpush1.msra.mxu0 0.0
    %3131 = vmatprep.subr.mxu0 0.0
    %3132 = vmatpush1.msra.mxu0 0.0
    %3133 = vmatprep.subr.mxu0 0.0
    %3134 = vmatpush1.msra.mxu0 0.0
    %3135 = vmatprep.subr.mxu0 0.0
    %3136 = vmatpush1.msra.mxu0 0.0
    %3137 = vmatprep.subr.mxu0 0.0
    %3138 = vmatpush1.msra.mxu0 %v3102
    %3139 = vmatprep.subr.mxu0 0.0
    %3140 = vmatpush2.msra.mxu0 0.0
    %3141 = vmatprep.subr.mxu0 0.0
    %3142 = vmatpush2.msra.mxu0 0.0
    %3143 = vmatprep.subr.mxu0 0.0
    %3144 = vmatpush2.msra.mxu0 0.0
    %3145 = vmatprep.subr.mxu0 0.0
    %3146 = vmatpush2.msra.mxu0 0.0
    %3147 = vmatprep.subr.mxu0 0.0
    %3148 = vmatpush2.msra.mxu0 0.0
    %3149 = vmatprep.subr.mxu0 0.0
    %3150 = vmatpush2.msra.mxu0 0.0
    %3151 = vmatprep.subr.mxu0 0.0
    %3152 = vmatpush2.msra.mxu0 0.0
    %3153 = vmatprep.subr.mxu0 0.0
    %3154 = vmatpush2.msra.mxu0 0.0
    %3155 = vmatprep.subr.mxu0 0.0
    %3156 = vmatpush2.msra.mxu0 0.0
    %3157 = vmatprep.subr.mxu0 0.0
    %3158 = vmatpush2.msra.mxu0 0.0
    %3159 = vmatprep.subr.mxu0 0.0
    %3160 = vmatpush2.msra.mxu0 0.0
    %3161 = vmatprep.subr.mxu0 0.0
    %3162 = vmatpush2.msra.mxu0 0.0
    %3163 = vmatprep.subr.mxu0 0.0
    %3164 = vmatpush2.msra.mxu0 0.0
    %3165 = vmatprep.subr.mxu0 0.0
    %3166 = vmatpush2.msra.mxu0 0.0
    %3167 = vmatprep.subr.mxu0 0.0
    %3168 = vmatpush2.msra.mxu0 0.0
    %3169 = vmatprep.subr.mxu0 0.0
    %3170 = vmatpush2.msra.mxu0 0.0
    %3171 = vmatprep.mubr.f32.mxu0 0.0
    %3172 = vmatmul.mubr.f32.gmra.mxu0 %v3105
    %v3173 = vpop.f32.mrf.mxu0
    %v3174 = vadd.f32 0.0, %v3173
    %v3175 = vpop.f32.mrf.mxu0
    %3176 = vdwg.mxu0
    %3177 = vrot.lane.b32.xlu0 %v2772, 112
    %v3178 = vpop.permute.xlu0 %3177
    %3179 = vrot.lane.b32.xlu0 %v2846, 112
    %v3180 = vpop.permute.xlu0 %3179
    %v3181 = vsel %vm344, %v3178, 0
    %v3183 = vsel %vm344, %v3180, 0
    %3185 = vmatprep.subr.mxu0 0.0
    %3186 = vmatpush1.xpose.msra.mxu0 0.0
    %3187 = vmatprep.subr.mxu0 0.0
    %3188 = vmatpush1.xpose.msra.mxu0 0.0
    %3189 = vmatprep.subr.mxu0 0.0
    %3190 = vmatpush1.xpose.msra.mxu0 0.0
    %3191 = vmatprep.subr.mxu0 0.0
    %3192 = vmatpush1.xpose.msra.mxu0 0.0
    %3193 = vmatprep.subr.mxu0 0.0
    %3194 = vmatpush1.xpose.msra.mxu0 0.0
    %3195 = vmatprep.subr.mxu0 0.0
    %3196 = vmatpush1.xpose.msra.mxu0 0.0
    %3197 = vmatprep.subr.mxu0 0.0
    %3198 = vmatpush1.xpose.msra.mxu0 0.0
    %3199 = vmatprep.subr.mxu0 0.0
    %3200 = vmatpush1.xpose.msra.mxu0 0.0
    %3201 = vmatprep.subr.mxu0 0.0
    %3202 = vmatpush1.xpose.msra.mxu0 0.0
    %3203 = vmatprep.subr.mxu0 0.0
    %3204 = vmatpush1.xpose.msra.mxu0 0.0
    %3205 = vmatprep.subr.mxu0 0.0
    %3206 = vmatpush1.xpose.msra.mxu0 0.0
    %3207 = vmatprep.subr.mxu0 0.0
    %3208 = vmatpush1.xpose.msra.mxu0 0.0
    %3209 = vmatprep.subr.mxu0 0.0
    %3210 = vmatpush1.xpose.msra.mxu0 0.0
    %3211 = vmatprep.subr.mxu0 0.0
    %3212 = vmatpush1.xpose.msra.mxu0 0.0
    %3213 = vmatprep.subr.mxu0 0.0
    %3214 = vmatpush1.xpose.msra.mxu0 0.0
    %3215 = vmatprep.subr.mxu0 0.0
    %3216 = vmatpush1.xpose.msra.mxu0 %v3183
    %3217 = vmatprep.subr.mxu0 0.0
    %3218 = vmatpush2.xpose.msra.mxu0 0.0
    %3219 = vmatprep.subr.mxu0 0.0
    %3220 = vmatpush2.xpose.msra.mxu0 0.0
    %3221 = vmatprep.subr.mxu0 0.0
    %3222 = vmatpush2.xpose.msra.mxu0 0.0
    %3223 = vmatprep.subr.mxu0 0.0
    %3224 = vmatpush2.xpose.msra.mxu0 0.0
    %3225 = vmatprep.subr.mxu0 0.0
    %3226 = vmatpush2.xpose.msra.mxu0 0.0
    %3227 = vmatprep.subr.mxu0 0.0
    %3228 = vmatpush2.xpose.msra.mxu0 0.0
    %3229 = vmatprep.subr.mxu0 0.0
    %3230 = vmatpush2.xpose.msra.mxu0 0.0
    %3231 = vmatprep.subr.mxu0 0.0
    %3232 = vmatpush2.xpose.msra.mxu0 0.0
    %3233 = vmatprep.subr.mxu0 0.0
    %3234 = vmatpush2.xpose.msra.mxu0 0.0
    %3235 = vmatprep.subr.mxu0 0.0
    %3236 = vmatpush2.xpose.msra.mxu0 0.0
    %3237 = vmatprep.subr.mxu0 0.0
    %3238 = vmatpush2.xpose.msra.mxu0 0.0
    %3239 = vmatprep.subr.mxu0 0.0
    %3240 = vmatpush2.xpose.msra.mxu0 0.0
    %3241 = vmatprep.subr.mxu0 0.0
    %3242 = vmatpush2.xpose.msra.mxu0 0.0
    %3243 = vmatprep.subr.mxu0 0.0
    %3244 = vmatpush2.xpose.msra.mxu0 0.0
    %3245 = vmatprep.subr.mxu0 0.0
    %3246 = vmatpush2.xpose.msra.mxu0 0.0
    %3247 = vmatprep.subr.mxu0 0.0
    %3248 = vmatpush2.xpose.msra.mxu0 0.0
    %3249 = vmatprep.mubr.f32.mxu0 0.0
    %3250 = vmatmul.mubr.f32.gmra.mxu0 %v3181
    %v3251 = vpop.f32.mrf.mxu0
    %v3252 = vadd.f32 0.0, %v3251
    %v3253 = vpop.f32.mrf.mxu0
    %3254 = vdwg.mxu0
    %v3255 = vsel %vm344, %v3252, -inf
    %3256 = vmax.xlane.f32.xlu0 %v3255
    %v3257 = vpop.xlane.xlu0 %3256
    %v3258 = vsub.f32 %v3252, %v3257
    %v3259 = vmul.f32 %v3258, 1.442695
    %v3260 = vpow.pop %v3259
    %v3261 = vsel %vm344, %v3260, 0.0
    %3262 = vadd.xlane.f32.xlu0 %v3261
    %v3263 = vpop.xlane.xlu0 %3262
    %v3264 = vrcp.pop %v3263
    %v3265 = vmul.f32 %v3260, %v3264
    %3266 = vrot.lane.b32.xlu0 %v2846, 80
    %v3267 = vpop.permute.xlu0 %3266
    %v3270 = vsel %vm344, %v3265, 0
    %3272 = vmatprep.subr.mxu0 0.0
    %3273 = vmatpush1.msra.mxu0 0.0
    %3274 = vmatprep.subr.mxu0 0.0
    %3275 = vmatpush1.msra.mxu0 0.0
    %3276 = vmatprep.subr.mxu0 0.0
    %3277 = vmatpush1.msra.mxu0 0.0
    %3278 = vmatprep.subr.mxu0 0.0
    %3279 = vmatpush1.msra.mxu0 0.0
    %3280 = vmatprep.subr.mxu0 0.0
    %3281 = vmatpush1.msra.mxu0 0.0
    %3282 = vmatprep.subr.mxu0 0.0
    %3283 = vmatpush1.msra.mxu0 0.0
    %3284 = vmatprep.subr.mxu0 0.0
    %3285 = vmatpush1.msra.mxu0 0.0
    %3286 = vmatprep.subr.mxu0 0.0
    %3287 = vmatpush1.msra.mxu0 0.0
    %3288 = vmatprep.subr.mxu0 0.0
    %3289 = vmatpush1.msra.mxu0 0.0
    %3290 = vmatprep.subr.mxu0 0.0
    %3291 = vmatpush1.msra.mxu0 0.0
    %3292 = vmatprep.subr.mxu0 0.0
    %3293 = vmatpush1.msra.mxu0 0.0
    %3294 = vmatprep.subr.mxu0 0.0
    %3295 = vmatpush1.msra.mxu0 0.0
    %3296 = vmatprep.subr.mxu0 0.0
    %3297 = vmatpush1.msra.mxu0 0.0
    %3298 = vmatprep.subr.mxu0 0.0
    %3299 = vmatpush1.msra.mxu0 0.0
    %3300 = vmatprep.subr.mxu0 0.0
    %3301 = vmatpush1.msra.mxu0 0.0
    %3302 = vmatprep.subr.mxu0 0.0
    %3303 = vmatpush1.msra.mxu0 %v3267
    %3304 = vmatprep.subr.mxu0 0.0
    %3305 = vmatpush2.msra.mxu0 0.0
    %3306 = vmatprep.subr.mxu0 0.0
    %3307 = vmatpush2.msra.mxu0 0.0
    %3308 = vmatprep.subr.mxu0 0.0
    %3309 = vmatpush2.msra.mxu0 0.0
    %3310 = vmatprep.subr.mxu0 0.0
    %3311 = vmatpush2.msra.mxu0 0.0
    %3312 = vmatprep.subr.mxu0 0.0
    %3313 = vmatpush2.msra.mxu0 0.0
    %3314 = vmatprep.subr.mxu0 0.0
    %3315 = vmatpush2.msra.mxu0 0.0
    %3316 = vmatprep.subr.mxu0 0.0
    %3317 = vmatpush2.msra.mxu0 0.0
    %3318 = vmatprep.subr.mxu0 0.0
    %3319 = vmatpush2.msra.mxu0 0.0
    %3320 = vmatprep.subr.mxu0 0.0
    %3321 = vmatpush2.msra.mxu0 0.0
    %3322 = vmatprep.subr.mxu0 0.0
    %3323 = vmatpush2.msra.mxu0 0.0
    %3324 = vmatprep.subr.mxu0 0.0
    %3325 = vmatpush2.msra.mxu0 0.0
    %3326 = vmatprep.subr.mxu0 0.0
    %3327 = vmatpush2.msra.mxu0 0.0
    %3328 = vmatprep.subr.mxu0 0.0
    %3329 = vmatpush2.msra.mxu0 0.0
    %3330 = vmatprep.subr.mxu0 0.0
    %3331 = vmatpush2.msra.mxu0 0.0
    %3332 = vmatprep.subr.mxu0 0.0
    %3333 = vmatpush2.msra.mxu0 0.0
    %3334 = vmatprep.subr.mxu0 0.0
    %3335 = vmatpush2.msra.mxu0 0.0
    %3336 = vmatprep.mubr.f32.mxu0 0.0
    %3337 = vmatmul.mubr.f32.gmra.mxu0 %v3270
    %v3338 = vpop.f32.mrf.mxu0
    %v3339 = vadd.f32 0.0, %v3338
    %v3340 = vpop.f32.mrf.mxu0
    %3341 = vdwg.mxu0
    %3342 = vrot.lane.b32.xlu0 %v2772, 104
    %v3343 = vpop.permute.xlu0 %3342
    %3344 = vrot.lane.b32.xlu0 %v2846, 104
    %v3345 = vpop.permute.xlu0 %3344
    %v3346 = vsel %vm344, %v3343, 0
    %v3348 = vsel %vm344, %v3345, 0
    %3350 = vmatprep.subr.mxu0 0.0
    %3351 = vmatpush1.xpose.msra.mxu0 0.0
    %3352 = vmatprep.subr.mxu0 0.0
    %3353 = vmatpush1.xpose.msra.mxu0 0.0
    %3354 = vmatprep.subr.mxu0 0.0
    %3355 = vmatpush1.xpose.msra.mxu0 0.0
    %3356 = vmatprep.subr.mxu0 0.0
    %3357 = vmatpush1.xpose.msra.mxu0 0.0
    %3358 = vmatprep.subr.mxu0 0.0
    %3359 = vmatpush1.xpose.msra.mxu0 0.0
    %3360 = vmatprep.subr.mxu0 0.0
    %3361 = vmatpush1.xpose.msra.mxu0 0.0
    %3362 = vmatprep.subr.mxu0 0.0
    %3363 = vmatpush1.xpose.msra.mxu0 0.0
    %3364 = vmatprep.subr.mxu0 0.0
    %3365 = vmatpush1.xpose.msra.mxu0 0.0
    %3366 = vmatprep.subr.mxu0 0.0
    %3367 = vmatpush1.xpose.msra.mxu0 0.0
    %3368 = vmatprep.subr.mxu0 0.0
    %3369 = vmatpush1.xpose.msra.mxu0 0.0
    %3370 = vmatprep.subr.mxu0 0.0
    %3371 = vmatpush1.xpose.msra.mxu0 0.0
    %3372 = vmatprep.subr.mxu0 0.0
    %3373 = vmatpush1.xpose.msra.mxu0 0.0
    %3374 = vmatprep.subr.mxu0 0.0
    %3375 = vmatpush1.xpose.msra.mxu0 0.0
    %3376 = vmatprep.subr.mxu0 0.0
    %3377 = vmatpush1.xpose.msra.mxu0 0.0
    %3378 = vmatprep.subr.mxu0 0.0
    %3379 = vmatpush1.xpose.msra.mxu0 0.0
    %3380 = vmatprep.subr.mxu0 0.0
    %3381 = vmatpush1.xpose.msra.mxu0 %v3348
    %3382 = vmatprep.subr.mxu0 0.0
    %3383 = vmatpush2.xpose.msra.mxu0 0.0
    %3384 = vmatprep.subr.mxu0 0.0
    %3385 = vmatpush2.xpose.msra.mxu0 0.0
    %3386 = vmatprep.subr.mxu0 0.0
    %3387 = vmatpush2.xpose.msra.mxu0 0.0
    %3388 = vmatprep.subr.mxu0 0.0
    %3389 = vmatpush2.xpose.msra.mxu0 0.0
    %3390 = vmatprep.subr.mxu0 0.0
    %3391 = vmatpush2.xpose.msra.mxu0 0.0
    %3392 = vmatprep.subr.mxu0 0.0
    %3393 = vmatpush2.xpose.msra.mxu0 0.0
    %3394 = vmatprep.subr.mxu0 0.0
    %3395 = vmatpush2.xpose.msra.mxu0 0.0
    %3396 = vmatprep.subr.mxu0 0.0
    %3397 = vmatpush2.xpose.msra.mxu0 0.0
    %3398 = vmatprep.subr.mxu0 0.0
    %3399 = vmatpush2.xpose.msra.mxu0 0.0
    %3400 = vmatprep.subr.mxu0 0.0
    %3401 = vmatpush2.xpose.msra.mxu0 0.0
    %3402 = vmatprep.subr.mxu0 0.0
    %3403 = vmatpush2.xpose.msra.mxu0 0.0
    %3404 = vmatprep.subr.mxu0 0.0
    %3405 = vmatpush2.xpose.msra.mxu0 0.0
    %3406 = vmatprep.subr.mxu0 0.0
    %3407 = vmatpush2.xpose.msra.mxu0 0.0
    %3408 = vmatprep.subr.mxu0 0.0
    %3409 = vmatpush2.xpose.msra.mxu0 0.0
    %3410 = vmatprep.subr.mxu0 0.0
    %3411 = vmatpush2.xpose.msra.mxu0 0.0
    %3412 = vmatprep.subr.mxu0 0.0
    %3413 = vmatpush2.xpose.msra.mxu0 0.0
    %3414 = vmatprep.mubr.f32.mxu0 0.0
    %3415 = vmatmul.mubr.f32.gmra.mxu0 %v3346
    %v3416 = vpop.f32.mrf.mxu0
    %v3417 = vadd.f32 0.0, %v3416
    %v3418 = vpop.f32.mrf.mxu0
    %3419 = vdwg.mxu0
    %v3420 = vsel %vm344, %v3417, -inf
    %3421 = vmax.xlane.f32.xlu0 %v3420
    %v3422 = vpop.xlane.xlu0 %3421
    %v3423 = vsub.f32 %v3417, %v3422
    %v3424 = vmul.f32 %v3423, 1.442695
    %v3425 = vpow.pop %v3424
    %v3426 = vsel %vm344, %v3425, 0.0
    %3427 = vadd.xlane.f32.xlu0 %v3426
    %v3428 = vpop.xlane.xlu0 %3427
    %v3429 = vrcp.pop %v3428
    %v3430 = vmul.f32 %v3425, %v3429
    %3431 = vrot.lane.b32.xlu0 %v2846, 72
    %v3432 = vpop.permute.xlu0 %3431
    %v3435 = vsel %vm344, %v3430, 0
    %3437 = vmatprep.subr.mxu0 0.0
    %3438 = vmatpush1.msra.mxu0 0.0
    %3439 = vmatprep.subr.mxu0 0.0
    %3440 = vmatpush1.msra.mxu0 0.0
    %3441 = vmatprep.subr.mxu0 0.0
    %3442 = vmatpush1.msra.mxu0 0.0
    %3443 = vmatprep.subr.mxu0 0.0
    %3444 = vmatpush1.msra.mxu0 0.0
    %3445 = vmatprep.subr.mxu0 0.0
    %3446 = vmatpush1.msra.mxu0 0.0
    %3447 = vmatprep.subr.mxu0 0.0
    %3448 = vmatpush1.msra.mxu0 0.0
    %3449 = vmatprep.subr.mxu0 0.0
    %3450 = vmatpush1.msra.mxu0 0.0
    %3451 = vmatprep.subr.mxu0 0.0
    %3452 = vmatpush1.msra.mxu0 0.0
    %3453 = vmatprep.subr.mxu0 0.0
    %3454 = vmatpush1.msra.mxu0 0.0
    %3455 = vmatprep.subr.mxu0 0.0
    %3456 = vmatpush1.msra.mxu0 0.0
    %3457 = vmatprep.subr.mxu0 0.0
    %3458 = vmatpush1.msra.mxu0 0.0
    %3459 = vmatprep.subr.mxu0 0.0
    %3460 = vmatpush1.msra.mxu0 0.0
    %3461 = vmatprep.subr.mxu0 0.0
    %3462 = vmatpush1.msra.mxu0 0.0
    %3463 = vmatprep.subr.mxu0 0.0
    %3464 = vmatpush1.msra.mxu0 0.0
    %3465 = vmatprep.subr.mxu0 0.0
    %3466 = vmatpush1.msra.mxu0 0.0
    %3467 = vmatprep.subr.mxu0 0.0
    %3468 = vmatpush1.msra.mxu0 %v3432
    %3469 = vmatprep.subr.mxu0 0.0
    %3470 = vmatpush2.msra.mxu0 0.0
    %3471 = vmatprep.subr.mxu0 0.0
    %3472 = vmatpush2.msra.mxu0 0.0
    %3473 = vmatprep.subr.mxu0 0.0
    %3474 = vmatpush2.msra.mxu0 0.0
    %3475 = vmatprep.subr.mxu0 0.0
    %3476 = vmatpush2.msra.mxu0 0.0
    %3477 = vmatprep.subr.mxu0 0.0
    %3478 = vmatpush2.msra.mxu0 0.0
    %3479 = vmatprep.subr.mxu0 0.0
    %3480 = vmatpush2.msra.mxu0 0.0
    %3481 = vmatprep.subr.mxu0 0.0
    %3482 = vmatpush2.msra.mxu0 0.0
    %3483 = vmatprep.subr.mxu0 0.0
    %3484 = vmatpush2.msra.mxu0 0.0
    %3485 = vmatprep.subr.mxu0 0.0
    %3486 = vmatpush2.msra.mxu0 0.0
    %3487 = vmatprep.subr.mxu0 0.0
    %3488 = vmatpush2.msra.mxu0 0.0
    %3489 = vmatprep.subr.mxu0 0.0
    %3490 = vmatpush2.msra.mxu0 0.0
    %3491 = vmatprep.subr.mxu0 0.0
    %3492 = vmatpush2.msra.mxu0 0.0
    %3493 = vmatprep.subr.mxu0 0.0
    %3494 = vmatpush2.msra.mxu0 0.0
    %3495 = vmatprep.subr.mxu0 0.0
    %3496 = vmatpush2.msra.mxu0 0.0
    %3497 = vmatprep.subr.mxu0 0.0
    %3498 = vmatpush2.msra.mxu0 0.0
    %3499 = vmatprep.subr.mxu0 0.0
    %3500 = vmatpush2.msra.mxu0 0.0
    %3501 = vmatprep.mubr.f32.mxu0 0.0
    %3502 = vmatmul.mubr.f32.gmra.mxu0 %v3435
    %v3503 = vpop.f32.mrf.mxu0
    %v3504 = vadd.f32 0.0, %v3503
    %v3505 = vpop.f32.mrf.mxu0
    %3506 = vdwg.mxu0
    %3508 = vrot.lane.b32.xlu0 %v3174, 8
    %v3509 = vpop.permute.xlu0 %3508
    %3512 = vrot.lane.b32.xlu0 %v3339, 16
    %v3513 = vpop.permute.xlu0 %3512
    %3516 = vrot.lane.b32.xlu0 %v3504, 24
    %v3517 = vpop.permute.xlu0 %3516
    %v3519 = vsel %vm344, %v3009, %v3509
    %v3520 = vsel %vm1016, %v3519, %v3513
    %v3521 = vsel %vm1018, %v3520, %v3517
    %v3522 = vlaneseq
    %v3523 = vshrl.u32 %v3522, 7
    %v3524 = vsub.s32 0, %v3523
    %v3525 = vrot.slane %v147, %v3524
    %v3527 = vsel %vm197, %v3521, 0
    %3529 = vmatprep.subr.mxu0 0.0
    %3530 = vmatpush1.msra.mxu0 0.0
    %3531 = vmatprep.subr.mxu0 0.0
    %3532 = vmatpush1.msra.mxu0 0.0
    %3533 = vmatprep.subr.mxu0 0.0
    %3534 = vmatpush1.msra.mxu0 0.0
    %3535 = vmatprep.subr.mxu0 0.0
    %3536 = vmatpush1.msra.mxu0 0.0
    %3537 = vmatprep.subr.mxu0 0.0
    %3538 = vmatpush1.msra.mxu0 0.0
    %3539 = vmatprep.subr.mxu0 0.0
    %3540 = vmatpush1.msra.mxu0 0.0
    %3541 = vmatprep.subr.mxu0 0.0
    %3542 = vmatpush1.msra.mxu0 0.0
    %3543 = vmatprep.subr.mxu0 0.0
    %3544 = vmatpush1.msra.mxu0 0.0
    %3545 = vmatprep.subr.mxu0 0.0
    %3546 = vmatpush1.msra.mxu0 0.0
    %3547 = vmatprep.subr.mxu0 0.0
    %3548 = vmatpush1.msra.mxu0 0.0
    %3549 = vmatprep.subr.mxu0 0.0
    %3550 = vmatpush1.msra.mxu0 0.0
    %3551 = vmatprep.subr.mxu0 0.0
    %3552 = vmatpush1.msra.mxu0 0.0
    %3553 = vmatprep.subr.mxu0 0.0
    %3554 = vmatpush1.msra.mxu0 %v112
    %3555 = vmatprep.subr.mxu0 0.0
    %3556 = vmatpush1.msra.mxu0 %v111
    %3557 = vmatprep.subr.mxu0 0.0
    %3558 = vmatpush1.msra.mxu0 %v110
    %3559 = vmatprep.subr.mxu0 0.0
    %3560 = vmatpush1.msra.mxu0 %v109
    %3561 = vmatprep.subr.mxu0 0.0
    %3562 = vmatpush2.msra.mxu0 0.0
    %3563 = vmatprep.subr.mxu0 0.0
    %3564 = vmatpush2.msra.mxu0 0.0
    %3565 = vmatprep.subr.mxu0 0.0
    %3566 = vmatpush2.msra.mxu0 0.0
    %3567 = vmatprep.subr.mxu0 0.0
    %3568 = vmatpush2.msra.mxu0 0.0
    %3569 = vmatprep.subr.mxu0 0.0
    %3570 = vmatpush2.msra.mxu0 0.0
    %3571 = vmatprep.subr.mxu0 0.0
    %3572 = vmatpush2.msra.mxu0 0.0
    %3573 = vmatprep.subr.mxu0 0.0
    %3574 = vmatpush2.msra.mxu0 0.0
    %3575 = vmatprep.subr.mxu0 0.0
    %3576 = vmatpush2.msra.mxu0 0.0
    %3577 = vmatprep.subr.mxu0 0.0
    %3578 = vmatpush2.msra.mxu0 0.0
    %3579 = vmatprep.subr.mxu0 0.0
    %3580 = vmatpush2.msra.mxu0 0.0
    %3581 = vmatprep.subr.mxu0 0.0
    %3582 = vmatpush2.msra.mxu0 0.0
    %3583 = vmatprep.subr.mxu0 0.0
    %3584 = vmatpush2.msra.mxu0 0.0
    %3585 = vmatprep.subr.mxu0 0.0
    %3586 = vmatpush2.msra.mxu0 0.0
    %3587 = vmatprep.subr.mxu0 0.0
    %3588 = vmatpush2.msra.mxu0 0.0
    %3589 = vmatprep.subr.mxu0 0.0
    %3590 = vmatpush2.msra.mxu0 0.0
    %3591 = vmatprep.subr.mxu0 0.0
    %3592 = vmatpush2.msra.mxu0 0.0
    %3593 = vmatprep.mubr.f32.mxu0 0.0
    %3594 = vmatmul.mubr.f32.gmra.mxu0 %v3527
    %v3595 = vpop.f32.mrf.mxu0
    %v3596 = vadd.f32 %v3525, %v3595
    %v3597 = vpop.f32.mrf.mxu0
    %3598 = vdwg.mxu0
    %v3600 = vrot.slane %v3596, 1
    %v3601 = vrot.slane %v3596, 2
    %v3602 = vrot.slane %v3596, 3
    %v3603 = vrot.slane %v3596, 4
    %v3604 = vrot.slane %v3596, 5
    %v3605 = vrot.slane %v3596, 6
    %v3606 = vrot.slane %v3596, 7
    %v3615 = vadd.f32 %v2669, %v3596
    %v3616 = vadd.f32 %v2670, %v3600
    %v3617 = vadd.f32 %v2671, %v3601
    %v3618 = vadd.f32 %v2672, %v3602
    %v3619 = vadd.f32 %v2673, %v3603
    %v3620 = vadd.f32 %v2674, %v3604
    %v3621 = vadd.f32 %v2675, %v3605
    %v3622 = vadd.f32 %v2676, %v3606
    %v3631 = vrot.slane %v3616, 7
    %v3632 = vsel %vm177, %v3631, %v3615
    %v3633 = vrot.slane %v3617, 6
    %v3634 = vsel %vm180, %v3633, %v3632
    %v3635 = vrot.slane %v3618, 5
    %v3636 = vsel %vm183, %v3635, %v3634
    %v3637 = vrot.slane %v3619, 4
    %v3638 = vsel %vm186, %v3637, %v3636
    %v3639 = vrot.slane %v3620, 3
    %v3640 = vsel %vm189, %v3639, %v3638
    %v3641 = vrot.slane %v3621, 2
    %v3642 = vsel %vm192, %v3641, %v3640
    %v3643 = vrot.slane %v3622, 1
    %v3644 = vsel %vm195, %v3643, %v3642
    %v3646 = vsel %vm197, %v3644, 0.0
    %3647 = vadd.xlane.f32.xlu0 %v3646
    %v3648 = vpop.xlane.xlu0 %3647
    %v3649 = vmul.f32 %v3648, %v1147
    %v3651 = vrot.slane %v3649, 1
    %v3652 = vrot.slane %v3649, 2
    %v3653 = vrot.slane %v3649, 3
    %v3654 = vrot.slane %v3649, 4
    %v3655 = vrot.slane %v3649, 5
    %v3656 = vrot.slane %v3649, 6
    %v3657 = vrot.slane %v3649, 7
    %v3666 = vsub.f32 %v3615, %v3649
    %v3667 = vsub.f32 %v3616, %v3651
    %v3668 = vsub.f32 %v3617, %v3652
    %v3669 = vsub.f32 %v3618, %v3653
    %v3670 = vsub.f32 %v3619, %v3654
    %v3671 = vsub.f32 %v3620, %v3655
    %v3672 = vsub.f32 %v3621, %v3656
    %v3673 = vsub.f32 %v3622, %v3657
    %v3674 = vmul.f32 %v3666, %v3666
    %v3675 = vmul.f32 %v3667, %v3667
    %v3676 = vmul.f32 %v3668, %v3668
    %v3677 = vmul.f32 %v3669, %v3669
    %v3678 = vmul.f32 %v3670, %v3670
    %v3679 = vmul.f32 %v3671, %v3671
    %v3680 = vmul.f32 %v3672, %v3672
    %v3681 = vmul.f32 %v3673, %v3673
    %v3690 = vrot.slane %v3675, 7
    %v3691 = vsel %vm177, %v3690, %v3674
    %v3692 = vrot.slane %v3676, 6
    %v3693 = vsel %vm180, %v3692, %v3691
    %v3694 = vrot.slane %v3677, 5
    %v3695 = vsel %vm183, %v3694, %v3693
    %v3696 = vrot.slane %v3678, 4
    %v3697 = vsel %vm186, %v3696, %v3695
    %v3698 = vrot.slane %v3679, 3
    %v3699 = vsel %vm189, %v3698, %v3697
    %v3700 = vrot.slane %v3680, 2
    %v3701 = vsel %vm192, %v3700, %v3699
    %v3702 = vrot.slane %v3681, 1
    %v3703 = vsel %vm195, %v3702, %v3701
    %v3705 = vsel %vm197, %v3703, 0.0
    %3706 = vadd.xlane.f32.xlu0 %v3705
    %v3707 = vpop.xlane.xlu0 %3706
    %v3708 = vmul.f32 %v3707, %v1147
    %v3709 = vadd.f32 %v3708, 1e-05
    %v3710 = vrsqrt.pop %v3709
    %v3712 = vrot.slane %v3710, 1
    %v3713 = vrot.slane %v3710, 2
    %v3714 = vrot.slane %v3710, 3
    %v3715 = vrot.slane %v3710, 4
    %v3716 = vrot.slane %v3710, 5
    %v3717 = vrot.slane %v3710, 6
    %v3718 = vrot.slane %v3710, 7
    %v3727 = vmul.f32 %v3666, %v3710
    %v3728 = vmul.f32 %v3667, %v3712
    %v3729 = vmul.f32 %v3668, %v3713
    %v3730 = vmul.f32 %v3669, %v3714
    %v3731 = vmul.f32 %v3670, %v3715
    %v3732 = vmul.f32 %v3671, %v3716
    %v3733 = vmul.f32 %v3672, %v3717
    %v3734 = vmul.f32 %v3673, %v3718
    %v3735 = vlaneseq
    %v3736 = vshrl.u32 %v3735, 7
    %v3737 = vsub.s32 0, %v3736
    %v3738 = vrot.slane %v152, %v3737
    %v3739 = vmul.f32 %v3727, %v3738
    %v3740 = vmul.f32 %v3728, %v3738
    %v3741 = vmul.f32 %v3729, %v3738
    %v3742 = vmul.f32 %v3730, %v3738
    %v3743 = vmul.f32 %v3731, %v3738
    %v3744 = vmul.f32 %v3732, %v3738
    %v3745 = vmul.f32 %v3733, %v3738
    %v3746 = vmul.f32 %v3734, %v3738
    %v3747 = vlaneseq
    %v3748 = vshrl.u32 %v3747, 7
    %v3749 = vsub.s32 0, %v3748
    %v3750 = vrot.slane %v153, %v3749
    %v3751 = vadd.f32 %v3739, %v3750
    %v3752 = vadd.f32 %v3740, %v3750
    %v3753 = vadd.f32 %v3741, %v3750
    %v3754 = vadd.f32 %v3742, %v3750
    %v3755 = vadd.f32 %v3743, %v3750
    %v3756 = vadd.f32 %v3744, %v3750
    %v3757 = vadd.f32 %v3745, %v3750
    %v3758 = vadd.f32 %v3746, %v3750
    %v3759 = vlaneseq
    %v3760 = vshrl.u32 %v3759, 7
    %v3761 = vsub.s32 0, %v3760
    %v3762 = vrot.slane %v148, %v3761
    %v3771 = vrot.slane %v3752, 7
    %v3772 = vsel %vm177, %v3771, %v3751
    %v3773 = vrot.slane %v3753, 6
    %v3774 = vsel %vm180, %v3773, %v3772
    %v3775 = vrot.slane %v3754, 5
    %v3776 = vsel %vm183, %v3775, %v3774
    %v3777 = vrot.slane %v3755, 4
    %v3778 = vsel %vm186, %v3777, %v3776
    %v3779 = vrot.slane %v3756, 3
    %v3780 = vsel %vm189, %v3779, %v3778
    %v3781 = vrot.slane %v3757, 2
    %v3782 = vsel %vm192, %v3781, %v3780
    %v3783 = vrot.slane %v3758, 1
    %v3784 = vsel %vm195, %v3783, %v3782
    %v3785 = vsel %vm197, %v3784, 0
    %3787 = vmatprep.subr.mxu0 0.0
    %3788 = vmatpush1.msra.mxu0 0.0
    %3789 = vmatprep.subr.mxu0 0.0
    %3790 = vmatpush1.msra.mxu0 0.0
    %3791 = vmatprep.subr.mxu0 0.0
    %3792 = vmatpush1.msra.mxu0 0.0
    %3793 = vmatprep.subr.mxu0 0.0
    %3794 = vmatpush1.msra.mxu0 0.0
    %3795 = vmatprep.subr.mxu0 0.0
    %3796 = vmatpush1.msra.mxu0 0.0
    %3797 = vmatprep.subr.mxu0 0.0
    %3798 = vmatpush1.msra.mxu0 0.0
    %3799 = vmatprep.subr.mxu0 0.0
    %3800 = vmatpush1.msra.mxu0 0.0
    %3801 = vmatprep.subr.mxu0 0.0
    %3802 = vmatpush1.msra.mxu0 0.0
    %3803 = vmatprep.subr.mxu0 0.0
    %3804 = vmatpush1.msra.mxu0 0.0
    %3805 = vmatprep.subr.mxu0 0.0
    %3806 = vmatpush1.msra.mxu0 0.0
    %3807 = vmatprep.subr.mxu0 0.0
    %3808 = vmatpush1.msra.mxu0 0.0
    %3809 = vmatprep.subr.mxu0 0.0
    %3810 = vmatpush1.msra.mxu0 0.0
    %3811 = vmatprep.subr.mxu0 0.0
    %3812 = vmatpush1.msra.mxu0 %v116
    %3813 = vmatprep.subr.mxu0 0.0
    %3814 = vmatpush1.msra.mxu0 %v115
    %3815 = vmatprep.subr.mxu0 0.0
    %3816 = vmatpush1.msra.mxu0 %v114
    %3817 = vmatprep.subr.mxu0 0.0
    %3818 = vmatpush1.msra.mxu0 %v113
    %3819 = vmatprep.subr.mxu0 0.0
    %3820 = vmatpush2.msra.mxu0 0.0
    %3821 = vmatprep.subr.mxu0 0.0
    %3822 = vmatpush2.msra.mxu0 0.0
    %3823 = vmatprep.subr.mxu0 0.0
    %3824 = vmatpush2.msra.mxu0 0.0
    %3825 = vmatprep.subr.mxu0 0.0
    %3826 = vmatpush2.msra.mxu0 0.0
    %3827 = vmatprep.subr.mxu0 0.0
    %3828 = vmatpush2.msra.mxu0 0.0
    %3829 = vmatprep.subr.mxu0 0.0
    %3830 = vmatpush2.msra.mxu0 0.0
    %3831 = vmatprep.subr.mxu0 0.0
    %3832 = vmatpush2.msra.mxu0 0.0
    %3833 = vmatprep.subr.mxu0 0.0
    %3834 = vmatpush2.msra.mxu0 0.0
    %3835 = vmatprep.subr.mxu0 0.0
    %3836 = vmatpush2.msra.mxu0 0.0
    %3837 = vmatprep.subr.mxu0 0.0
    %3838 = vmatpush2.msra.mxu0 0.0
    %3839 = vmatprep.subr.mxu0 0.0
    %3840 = vmatpush2.msra.mxu0 0.0
    %3841 = vmatprep.subr.mxu0 0.0
    %3842 = vmatpush2.msra.mxu0 0.0
    %3843 = vmatprep.subr.mxu0 0.0
    %3844 = vmatpush2.msra.mxu0 0.0
    %3845 = vmatprep.subr.mxu0 0.0
    %3846 = vmatpush2.msra.mxu0 0.0
    %3847 = vmatprep.subr.mxu0 0.0
    %3848 = vmatpush2.msra.mxu0 0.0
    %3849 = vmatprep.subr.mxu0 0.0
    %3850 = vmatpush2.msra.mxu0 0.0
    %3851 = vmatprep.mubr.f32.mxu0 0.0
    %3852 = vmatmul.mubr.f32.gmra.mxu0 %v3785
    %v3853 = vpop.f32.mrf.mxu0
    %v3854 = vadd.f32 %v3762, %v3853
    %v3855 = vpop.f32.mrf.mxu0
    %3856 = vdwg.mxu0
    %v3857 = vmax.f32 %v3854, 0.0
    %v3858 = vlaneseq
    %v3859 = vshrl.u32 %v3858, 7
    %v3860 = vsub.s32 0, %v3859
    %v3861 = vrot.slane %v149, %v3860
    %v3863 = vsel %vm1361, %v3857, 0
    %3865 = vmatprep.subr.mxu0 0.0
    %3866 = vmatpush1.msra.mxu0 0.0
    %3867 = vmatprep.subr.mxu0 0.0
    %3868 = vmatpush1.msra.mxu0 0.0
    %3869 = vmatprep.subr.mxu0 0.0
    %3870 = vmatpush1.msra.mxu0 0.0
    %3871 = vmatprep.subr.mxu0 0.0
    %3872 = vmatpush1.msra.mxu0 0.0
    %3873 = vmatprep.subr.mxu0 0.0
    %3874 = vmatpush1.msra.mxu0 0.0
    %3875 = vmatprep.subr.mxu0 0.0
    %3876 = vmatpush1.msra.mxu0 0.0
    %3877 = vmatprep.subr.mxu0 0.0
    %3878 = vmatpush1.msra.mxu0 0.0
    %3879 = vmatprep.subr.mxu0 0.0
    %3880 = vmatpush1.msra.mxu0 0.0
    %3881 = vmatprep.subr.mxu0 0.0
    %3882 = vmatpush1.msra.mxu0 %v132
    %3883 = vmatprep.subr.mxu0 0.0
    %3884 = vmatpush1.msra.mxu0 %v131
    %3885 = vmatprep.subr.mxu0 0.0
    %3886 = vmatpush1.msra.mxu0 %v130
    %3887 = vmatprep.subr.mxu0 0.0
    %3888 = vmatpush1.msra.mxu0 %v129
    %3889 = vmatprep.subr.mxu0 0.0
    %3890 = vmatpush1.msra.mxu0 %v128
    %3891 = vmatprep.subr.mxu0 0.0
    %3892 = vmatpush1.msra.mxu0 %v127
    %3893 = vmatprep.subr.mxu0 0.0
    %3894 = vmatpush1.msra.mxu0 %v126
    %3895 = vmatprep.subr.mxu0 0.0
    %3896 = vmatpush1.msra.mxu0 %v125
    %3897 = vmatprep.subr.mxu0 0.0
    %3898 = vmatpush2.msra.mxu0 0.0
    %3899 = vmatprep.subr.mxu0 0.0
    %3900 = vmatpush2.msra.mxu0 0.0
    %3901 = vmatprep.subr.mxu0 0.0
    %3902 = vmatpush2.msra.mxu0 0.0
    %3903 = vmatprep.subr.mxu0 0.0
    %3904 = vmatpush2.msra.mxu0 0.0
    %3905 = vmatprep.subr.mxu0 0.0
    %3906 = vmatpush2.msra.mxu0 0.0
    %3907 = vmatprep.subr.mxu0 0.0
    %3908 = vmatpush2.msra.mxu0 0.0
    %3909 = vmatprep.subr.mxu0 0.0
    %3910 = vmatpush2.msra.mxu0 0.0
    %3911 = vmatprep.subr.mxu0 0.0
    %3912 = vmatpush2.msra.mxu0 0.0
    %3913 = vmatprep.subr.mxu0 0.0
    %3914 = vmatpush2.msra.mxu0 0.0
    %3915 = vmatprep.subr.mxu0 0.0
    %3916 = vmatpush2.msra.mxu0 0.0
    %3917 = vmatprep.subr.mxu0 0.0
    %3918 = vmatpush2.msra.mxu0 0.0
    %3919 = vmatprep.subr.mxu0 0.0
    %3920 = vmatpush2.msra.mxu0 0.0
    %3921 = vmatprep.subr.mxu0 0.0
    %3922 = vmatpush2.msra.mxu0 0.0
    %3923 = vmatprep.subr.mxu0 0.0
    %3924 = vmatpush2.msra.mxu0 0.0
    %3925 = vmatprep.subr.mxu0 0.0
    %3926 = vmatpush2.msra.mxu0 0.0
    %3927 = vmatprep.subr.mxu0 0.0
    %3928 = vmatpush2.msra.mxu0 0.0
    %3929 = vmatprep.mubr.f32.mxu0 0.0
    %3930 = vmatmul.mubr.f32.gmra.mxu0 %v3863
    %v3931 = vpop.f32.mrf.mxu0
    %v3932 = vadd.f32 %v3861, %v3931
    %v3933 = vpop.f32.mrf.mxu0
    %3934 = vdwg.mxu0
    %v3936 = vrot.slane %v3932, 1
    %v3937 = vrot.slane %v3932, 2
    %v3938 = vrot.slane %v3932, 3
    %v3939 = vrot.slane %v3932, 4
    %v3940 = vrot.slane %v3932, 5
    %v3941 = vrot.slane %v3932, 6
    %v3942 = vrot.slane %v3932, 7
    %v3951 = vadd.f32 %v3751, %v3932
    %v3952 = vadd.f32 %v3752, %v3936
    %v3953 = vadd.f32 %v3753, %v3937
    %v3954 = vadd.f32 %v3754, %v3938
    %v3955 = vadd.f32 %v3755, %v3939
    %v3956 = vadd.f32 %v3756, %v3940
    %v3957 = vadd.f32 %v3757, %v3941
    %v3958 = vadd.f32 %v3758, %v3942
    %v3967 = vrot.slane %v3952, 7
    %v3968 = vsel %vm177, %v3967, %v3951
    %v3969 = vrot.slane %v3953, 6
    %v3970 = vsel %vm180, %v3969, %v3968
    %v3971 = vrot.slane %v3954, 5
    %v3972 = vsel %vm183, %v3971, %v3970
    %v3973 = vrot.slane %v3955, 4
    %v3974 = vsel %vm186, %v3973, %v3972
    %v3975 = vrot.slane %v3956, 3
    %v3976 = vsel %vm189, %v3975, %v3974
    %v3977 = vrot.slane %v3957, 2
    %v3978 = vsel %vm192, %v3977, %v3976
    %v3979 = vrot.slane %v3958, 1
    %v3980 = vsel %vm195, %v3979, %v3978
    %v3982 = vsel %vm197, %v3980, 0.0
    %3983 = vadd.xlane.f32.xlu0 %v3982
    %v3984 = vpop.xlane.xlu0 %3983
    %v3985 = vmul.f32 %v3984, %v1147
    %v3987 = vrot.slane %v3985, 1
    %v3988 = vrot.slane %v3985, 2
    %v3989 = vrot.slane %v3985, 3
    %v3990 = vrot.slane %v3985, 4
    %v3991 = vrot.slane %v3985, 5
    %v3992 = vrot.slane %v3985, 6
    %v3993 = vrot.slane %v3985, 7
    %v4002 = vsub.f32 %v3951, %v3985
    %v4003 = vsub.f32 %v3952, %v3987
    %v4004 = vsub.f32 %v3953, %v3988
    %v4005 = vsub.f32 %v3954, %v3989
    %v4006 = vsub.f32 %v3955, %v3990
    %v4007 = vsub.f32 %v3956, %v3991
    %v4008 = vsub.f32 %v3957, %v3992
    %v4009 = vsub.f32 %v3958, %v3993
    %v4010 = vmul.f32 %v4002, %v4002
    %v4011 = vmul.f32 %v4003, %v4003
    %v4012 = vmul.f32 %v4004, %v4004
    %v4013 = vmul.f32 %v4005, %v4005
    %v4014 = vmul.f32 %v4006, %v4006
    %v4015 = vmul.f32 %v4007, %v4007
    %v4016 = vmul.f32 %v4008, %v4008
    %v4017 = vmul.f32 %v4009, %v4009
    %v4026 = vrot.slane %v4011, 7
    %v4027 = vsel %vm177, %v4026, %v4010
    %v4028 = vrot.slane %v4012, 6
    %v4029 = vsel %vm180, %v4028, %v4027
    %v4030 = vrot.slane %v4013, 5
    %v4031 = vsel %vm183, %v4030, %v4029
    %v4032 = vrot.slane %v4014, 4
    %v4033 = vsel %vm186, %v4032, %v4031
    %v4034 = vrot.slane %v4015, 3
    %v4035 = vsel %vm189, %v4034, %v4033
    %v4036 = vrot.slane %v4016, 2
    %v4037 = vsel %vm192, %v4036, %v4035
    %v4038 = vrot.slane %v4017, 1
    %v4039 = vsel %vm195, %v4038, %v4037
    %v4041 = vsel %vm197, %v4039, 0.0
    %4042 = vadd.xlane.f32.xlu0 %v4041
    %v4043 = vpop.xlane.xlu0 %4042
    %v4044 = vmul.f32 %v4043, %v1147
    %v4045 = vadd.f32 %v4044, 1e-05
    %v4046 = vrsqrt.pop %v4045
    %v4048 = vrot.slane %v4046, 1
    %v4049 = vrot.slane %v4046, 2
    %v4050 = vrot.slane %v4046, 3
    %v4051 = vrot.slane %v4046, 4
    %v4052 = vrot.slane %v4046, 5
    %v4053 = vrot.slane %v4046, 6
    %v4054 = vrot.slane %v4046, 7
    %v4063 = vmul.f32 %v4002, %v4046
    %v4064 = vmul.f32 %v4003, %v4048
    %v4065 = vmul.f32 %v4004, %v4049
    %v4066 = vmul.f32 %v4005, %v4050
    %v4067 = vmul.f32 %v4006, %v4051
    %v4068 = vmul.f32 %v4007, %v4052
    %v4069 = vmul.f32 %v4008, %v4053
    %v4070 = vmul.f32 %v4009, %v4054
    %v4071 = vlaneseq
    %v4072 = vshrl.u32 %v4071, 7
    %v4073 = vsub.s32 0, %v4072
    %v4074 = vrot.slane %v154, %v4073
    %v4075 = vmul.f32 %v4063, %v4074
    %v4076 = vmul.f32 %v4064, %v4074
    %v4077 = vmul.f32 %v4065, %v4074
    %v4078 = vmul.f32 %v4066, %v4074
    %v4079 = vmul.f32 %v4067, %v4074
    %v4080 = vmul.f32 %v4068, %v4074
    %v4081 = vmul.f32 %v4069, %v4074
    %v4082 = vmul.f32 %v4070, %v4074
    %v4083 = vlaneseq
    %v4084 = vshrl.u32 %v4083, 7
    %v4085 = vsub.s32 0, %v4084
    %v4086 = vrot.slane %v155, %v4085
    %v4087 = vadd.f32 %v4075, %v4086
    %v4088 = vadd.f32 %v4076, %v4086
    %v4089 = vadd.f32 %v4077, %v4086
    %v4090 = vadd.f32 %v4078, %v4086
    %v4091 = vadd.f32 %v4079, %v4086
    %v4092 = vadd.f32 %v4080, %v4086
    %v4093 = vadd.f32 %v4081, %v4086
    %v4094 = vadd.f32 %v4082, %v4086
    %vm4095 = vcmask 253952
    %4096 = vst.msk [vmem:[#allocation10] sm:$0x1] %vm4095, %v4087
    %4097 = vst.msk [vmem:[#allocation10 + $0x2] sm:$0x1] %vm4095, %v4088
    %4098 = vst.msk [vmem:[#allocation10 + $0x4] sm:$0x1] %vm4095, %v4089
    %4099 = vst.msk [vmem:[#allocation10 + $0x6] sm:$0x1] %vm4095, %v4090
    %4100 = vst.msk [vmem:[#allocation10 + $0x8] sm:$0x1] %vm4095, %v4091
    %4101 = vst.msk [vmem:[#allocation10 + $0xa] sm:$0x1] %vm4095, %v4092
    %4102 = vst.msk [vmem:[#allocation10 + $0xc] sm:$0x1] %vm4095, %v4093
    %4103 = vst.msk [vmem:[#allocation10 + $0xe] sm:$0x1] %vm4095, %v4094
    %v4104 = vld [vmem:[#allocation2 + $0x1] sm:$0x1]
    %v4105 = vld [vmem:[#allocation2 + $0x3] sm:$0x1]
    %v4106 = vld [vmem:[#allocation2 + $0x5] sm:$0x1]
    %v4107 = vld [vmem:[#allocation2 + $0x7] sm:$0x1]
    %v4108 = vld [vmem:[#allocation2 + $0x9] sm:$0x1]
    %v4109 = vld [vmem:[#allocation2 + $0xb] sm:$0x1]
    %v4110 = vld [vmem:[#allocation2 + $0xd] sm:$0x1]
    %v4111 = vld [vmem:[#allocation2 + $0xf] sm:$0x1]
    %v4120 = vrot.slane %v4105, 7
    %v4121 = vsel %vm177, %v4120, %v4104
    %v4122 = vrot.slane %v4106, 6
    %v4123 = vsel %vm180, %v4122, %v4121
    %v4124 = vrot.slane %v4107, 5
    %v4125 = vsel %vm183, %v4124, %v4123
    %v4126 = vrot.slane %v4108, 4
    %v4127 = vsel %vm186, %v4126, %v4125
    %v4128 = vrot.slane %v4109, 3
    %v4129 = vsel %vm189, %v4128, %v4127
    %v4130 = vrot.slane %v4110, 2
    %v4131 = vsel %vm192, %v4130, %v4129
    %v4132 = vrot.slane %v4111, 1
    %v4133 = vsel %vm195, %v4132, %v4131
    %v4134 = vsel %vm197, %v4133, 0
    %4136 = vmatprep.subr.mxu0 0.0
    %4137 = vmatpush1.msra.mxu0 0.0
    %4138 = vmatprep.subr.mxu0 0.0
    %4139 = vmatpush1.msra.mxu0 0.0
    %4140 = vmatprep.subr.mxu0 0.0
    %4141 = vmatpush1.msra.mxu0 0.0
    %4142 = vmatprep.subr.mxu0 0.0
    %4143 = vmatpush1.msra.mxu0 0.0
    %4144 = vmatprep.subr.mxu0 0.0
    %4145 = vmatpush1.msra.mxu0 0.0
    %4146 = vmatprep.subr.mxu0 0.0
    %4147 = vmatpush1.msra.mxu0 0.0
    %4148 = vmatprep.subr.mxu0 0.0
    %4149 = vmatpush1.msra.mxu0 0.0
    %4150 = vmatprep.subr.mxu0 0.0
    %4151 = vmatpush1.msra.mxu0 0.0
    %4152 = vmatprep.subr.mxu0 0.0
    %4153 = vmatpush1.msra.mxu0 0.0
    %4154 = vmatprep.subr.mxu0 0.0
    %4155 = vmatpush1.msra.mxu0 0.0
    %4156 = vmatprep.subr.mxu0 0.0
    %4157 = vmatpush1.msra.mxu0 0.0
    %4158 = vmatprep.subr.mxu0 0.0
    %4159 = vmatpush1.msra.mxu0 0.0
    %4160 = vmatprep.subr.mxu0 0.0
    %4161 = vmatpush1.msra.mxu0 %v76
    %4162 = vmatprep.subr.mxu0 0.0
    %4163 = vmatpush1.msra.mxu0 %v75
    %4164 = vmatprep.subr.mxu0 0.0
    %4165 = vmatpush1.msra.mxu0 %v74
    %4166 = vmatprep.subr.mxu0 0.0
    %4167 = vmatpush1.msra.mxu0 %v73
    %4168 = vmatprep.subr.mxu0 0.0
    %4169 = vmatpush2.msra.mxu0 0.0
    %4170 = vmatprep.subr.mxu0 0.0
    %4171 = vmatpush2.msra.mxu0 0.0
    %4172 = vmatprep.subr.mxu0 0.0
    %4173 = vmatpush2.msra.mxu0 0.0
    %4174 = vmatprep.subr.mxu0 0.0
    %4175 = vmatpush2.msra.mxu0 0.0
    %4176 = vmatprep.subr.mxu0 0.0
    %4177 = vmatpush2.msra.mxu0 0.0
    %4178 = vmatprep.subr.mxu0 0.0
    %4179 = vmatpush2.msra.mxu0 0.0
    %4180 = vmatprep.subr.mxu0 0.0
    %4181 = vmatpush2.msra.mxu0 0.0
    %4182 = vmatprep.subr.mxu0 0.0
    %4183 = vmatpush2.msra.mxu0 0.0
    %4184 = vmatprep.subr.mxu0 0.0
    %4185 = vmatpush2.msra.mxu0 0.0
    %4186 = vmatprep.subr.mxu0 0.0
    %4187 = vmatpush2.msra.mxu0 0.0
    %4188 = vmatprep.subr.mxu0 0.0
    %4189 = vmatpush2.msra.mxu0 0.0
    %4190 = vmatprep.subr.mxu0 0.0
    %4191 = vmatpush2.msra.mxu0 0.0
    %4192 = vmatprep.subr.mxu0 0.0
    %4193 = vmatpush2.msra.mxu0 0.0
    %4194 = vmatprep.subr.mxu0 0.0
    %4195 = vmatpush2.msra.mxu0 0.0
    %4196 = vmatprep.subr.mxu0 0.0
    %4197 = vmatpush2.msra.mxu0 0.0
    %4198 = vmatprep.subr.mxu0 0.0
    %4199 = vmatpush2.msra.mxu0 0.0
    %4200 = vmatprep.mubr.f32.mxu0 0.0
    %4201 = vmatmul.mubr.f32.gmra.mxu0 %v4134
    %v4202 = vpop.f32.mrf.mxu0
    %v4203 = vadd.f32 %v167, %v4202
    %v4204 = vpop.f32.mrf.mxu0
    %4205 = vdwg.mxu0
    %4206 = vmatprep.subr.mxu0 0.0
    %4207 = vmatpush1.msra.mxu0 0.0
    %4208 = vmatprep.subr.mxu0 0.0
    %4209 = vmatpush1.msra.mxu0 0.0
    %4210 = vmatprep.subr.mxu0 0.0
    %4211 = vmatpush1.msra.mxu0 0.0
    %4212 = vmatprep.subr.mxu0 0.0
    %4213 = vmatpush1.msra.mxu0 0.0
    %4214 = vmatprep.subr.mxu0 0.0
    %4215 = vmatpush1.msra.mxu0 0.0
    %4216 = vmatprep.subr.mxu0 0.0
    %4217 = vmatpush1.msra.mxu0 0.0
    %4218 = vmatprep.subr.mxu0 0.0
    %4219 = vmatpush1.msra.mxu0 0.0
    %4220 = vmatprep.subr.mxu0 0.0
    %4221 = vmatpush1.msra.mxu0 0.0
    %4222 = vmatprep.subr.mxu0 0.0
    %4223 = vmatpush1.msra.mxu0 0.0
    %4224 = vmatprep.subr.mxu0 0.0
    %4225 = vmatpush1.msra.mxu0 0.0
    %4226 = vmatprep.subr.mxu0 0.0
    %4227 = vmatpush1.msra.mxu0 0.0
    %4228 = vmatprep.subr.mxu0 0.0
    %4229 = vmatpush1.msra.mxu0 0.0
    %4230 = vmatprep.subr.mxu0 0.0
    %4231 = vmatpush1.msra.mxu0 %v80
    %4232 = vmatprep.subr.mxu0 0.0
    %4233 = vmatpush1.msra.mxu0 %v79
    %4234 = vmatprep.subr.mxu0 0.0
    %4235 = vmatpush1.msra.mxu0 %v78
    %4236 = vmatprep.subr.mxu0 0.0
    %4237 = vmatpush1.msra.mxu0 %v77
    %4238 = vmatprep.subr.mxu0 0.0
    %4239 = vmatpush2.msra.mxu0 0.0
    %4240 = vmatprep.subr.mxu0 0.0
    %4241 = vmatpush2.msra.mxu0 0.0
    %4242 = vmatprep.subr.mxu0 0.0
    %4243 = vmatpush2.msra.mxu0 0.0
    %4244 = vmatprep.subr.mxu0 0.0
    %4245 = vmatpush2.msra.mxu0 0.0
    %4246 = vmatprep.subr.mxu0 0.0
    %4247 = vmatpush2.msra.mxu0 0.0
    %4248 = vmatprep.subr.mxu0 0.0
    %4249 = vmatpush2.msra.mxu0 0.0
    %4250 = vmatprep.subr.mxu0 0.0
    %4251 = vmatpush2.msra.mxu0 0.0
    %4252 = vmatprep.subr.mxu0 0.0
    %4253 = vmatpush2.msra.mxu0 0.0
    %4254 = vmatprep.subr.mxu0 0.0
    %4255 = vmatpush2.msra.mxu0 0.0
    %4256 = vmatprep.subr.mxu0 0.0
    %4257 = vmatpush2.msra.mxu0 0.0
    %4258 = vmatprep.subr.mxu0 0.0
    %4259 = vmatpush2.msra.mxu0 0.0
    %4260 = vmatprep.subr.mxu0 0.0
    %4261 = vmatpush2.msra.mxu0 0.0
    %4262 = vmatprep.subr.mxu0 0.0
    %4263 = vmatpush2.msra.mxu0 0.0
    %4264 = vmatprep.subr.mxu0 0.0
    %4265 = vmatpush2.msra.mxu0 0.0
    %4266 = vmatprep.subr.mxu0 0.0
    %4267 = vmatpush2.msra.mxu0 0.0
    %4268 = vmatprep.subr.mxu0 0.0
    %4269 = vmatpush2.msra.mxu0 0.0
    %4270 = vmatprep.mubr.f32.mxu0 0.0
    %4271 = vmatmul.mubr.f32.gmra.mxu0 %v4134
    %v4272 = vpop.f32.mrf.mxu0
    %v4273 = vadd.f32 %v273, %v4272
    %v4274 = vpop.f32.mrf.mxu0
    %4275 = vdwg.mxu0
    %v4277 = vsel %vm344, %v4203, 0
    %v4280 = vsel %vm344, %v4273, 0
    %4282 = vmatprep.subr.mxu0 0.0
    %4283 = vmatpush1.xpose.msra.mxu0 0.0
    %4284 = vmatprep.subr.mxu0 0.0
    %4285 = vmatpush1.xpose.msra.mxu0 0.0
    %4286 = vmatprep.subr.mxu0 0.0
    %4287 = vmatpush1.xpose.msra.mxu0 0.0
    %4288 = vmatprep.subr.mxu0 0.0
    %4289 = vmatpush1.xpose.msra.mxu0 0.0
    %4290 = vmatprep.subr.mxu0 0.0
    %4291 = vmatpush1.xpose.msra.mxu0 0.0
    %4292 = vmatprep.subr.mxu0 0.0
    %4293 = vmatpush1.xpose.msra.mxu0 0.0
    %4294 = vmatprep.subr.mxu0 0.0
    %4295 = vmatpush1.xpose.msra.mxu0 0.0
    %4296 = vmatprep.subr.mxu0 0.0
    %4297 = vmatpush1.xpose.msra.mxu0 0.0
    %4298 = vmatprep.subr.mxu0 0.0
    %4299 = vmatpush1.xpose.msra.mxu0 0.0
    %4300 = vmatprep.subr.mxu0 0.0
    %4301 = vmatpush1.xpose.msra.mxu0 0.0
    %4302 = vmatprep.subr.mxu0 0.0
    %4303 = vmatpush1.xpose.msra.mxu0 0.0
    %4304 = vmatprep.subr.mxu0 0.0
    %4305 = vmatpush1.xpose.msra.mxu0 0.0
    %4306 = vmatprep.subr.mxu0 0.0
    %4307 = vmatpush1.xpose.msra.mxu0 0.0
    %4308 = vmatprep.subr.mxu0 0.0
    %4309 = vmatpush1.xpose.msra.mxu0 0.0
    %4310 = vmatprep.subr.mxu0 0.0
    %4311 = vmatpush1.xpose.msra.mxu0 0.0
    %4312 = vmatprep.subr.mxu0 0.0
    %4313 = vmatpush1.xpose.msra.mxu0 %v4280
    %4314 = vmatprep.subr.mxu0 0.0
    %4315 = vmatpush2.xpose.msra.mxu0 0.0
    %4316 = vmatprep.subr.mxu0 0.0
    %4317 = vmatpush2.xpose.msra.mxu0 0.0
    %4318 = vmatprep.subr.mxu0 0.0
    %4319 = vmatpush2.xpose.msra.mxu0 0.0
    %4320 = vmatprep.subr.mxu0 0.0
    %4321 = vmatpush2.xpose.msra.mxu0 0.0
    %4322 = vmatprep.subr.mxu0 0.0
    %4323 = vmatpush2.xpose.msra.mxu0 0.0
    %4324 = vmatprep.subr.mxu0 0.0
    %4325 = vmatpush2.xpose.msra.mxu0 0.0
    %4326 = vmatprep.subr.mxu0 0.0
    %4327 = vmatpush2.xpose.msra.mxu0 0.0
    %4328 = vmatprep.subr.mxu0 0.0
    %4329 = vmatpush2.xpose.msra.mxu0 0.0
    %4330 = vmatprep.subr.mxu0 0.0
    %4331 = vmatpush2.xpose.msra.mxu0 0.0
    %4332 = vmatprep.subr.mxu0 0.0
    %4333 = vmatpush2.xpose.msra.mxu0 0.0
    %4334 = vmatprep.subr.mxu0 0.0
    %4335 = vmatpush2.xpose.msra.mxu0 0.0
    %4336 = vmatprep.subr.mxu0 0.0
    %4337 = vmatpush2.xpose.msra.mxu0 0.0
    %4338 = vmatprep.subr.mxu0 0.0
    %4339 = vmatpush2.xpose.msra.mxu0 0.0
    %4340 = vmatprep.subr.mxu0 0.0
    %4341 = vmatpush2.xpose.msra.mxu0 0.0
    %4342 = vmatprep.subr.mxu0 0.0
    %4343 = vmatpush2.xpose.msra.mxu0 0.0
    %4344 = vmatprep.subr.mxu0 0.0
    %4345 = vmatpush2.xpose.msra.mxu0 0.0
    %4346 = vmatprep.mubr.f32.mxu0 0.0
    %4347 = vmatmul.mubr.f32.gmra.mxu0 %v4277
    %v4348 = vpop.f32.mrf.mxu0
    %v4349 = vadd.f32 0.0, %v4348
    %v4350 = vpop.f32.mrf.mxu0
    %4351 = vdwg.mxu0
    %v4352 = vsel %vm344, %v4349, -inf
    %4353 = vmax.xlane.f32.xlu0 %v4352
    %v4354 = vpop.xlane.xlu0 %4353
    %v4355 = vsub.f32 %v4349, %v4354
    %v4356 = vmul.f32 %v4355, 1.442695
    %v4357 = vpow.pop %v4356
    %v4358 = vsel %vm344, %v4357, 0.0
    %4359 = vadd.xlane.f32.xlu0 %v4358
    %v4360 = vpop.xlane.xlu0 %4359
    %v4361 = vrcp.pop %v4360
    %v4362 = vmul.f32 %v4357, %v4361
    %4363 = vrot.lane.b32.xlu0 %v4273, 96
    %v4364 = vpop.permute.xlu0 %4363
    %v4367 = vsel %vm344, %v4362, 0
    %4369 = vmatprep.subr.mxu0 0.0
    %4370 = vmatpush1.msra.mxu0 0.0
    %4371 = vmatprep.subr.mxu0 0.0
    %4372 = vmatpush1.msra.mxu0 0.0
    %4373 = vmatprep.subr.mxu0 0.0
    %4374 = vmatpush1.msra.mxu0 0.0
    %4375 = vmatprep.subr.mxu0 0.0
    %4376 = vmatpush1.msra.mxu0 0.0
    %4377 = vmatprep.subr.mxu0 0.0
    %4378 = vmatpush1.msra.mxu0 0.0
    %4379 = vmatprep.subr.mxu0 0.0
    %4380 = vmatpush1.msra.mxu0 0.0
    %4381 = vmatprep.subr.mxu0 0.0
    %4382 = vmatpush1.msra.mxu0 0.0
    %4383 = vmatprep.subr.mxu0 0.0
    %4384 = vmatpush1.msra.mxu0 0.0
    %4385 = vmatprep.subr.mxu0 0.0
    %4386 = vmatpush1.msra.mxu0 0.0
    %4387 = vmatprep.subr.mxu0 0.0
    %4388 = vmatpush1.msra.mxu0 0.0
    %4389 = vmatprep.subr.mxu0 0.0
    %4390 = vmatpush1.msra.mxu0 0.0
    %4391 = vmatprep.subr.mxu0 0.0
    %4392 = vmatpush1.msra.mxu0 0.0
    %4393 = vmatprep.subr.mxu0 0.0
    %4394 = vmatpush1.msra.mxu0 0.0
    %4395 = vmatprep.subr.mxu0 0.0
    %4396 = vmatpush1.msra.mxu0 0.0
    %4397 = vmatprep.subr.mxu0 0.0
    %4398 = vmatpush1.msra.mxu0 0.0
    %4399 = vmatprep.subr.mxu0 0.0
    %4400 = vmatpush1.msra.mxu0 %v4364
    %4401 = vmatprep.subr.mxu0 0.0
    %4402 = vmatpush2.msra.mxu0 0.0
    %4403 = vmatprep.subr.mxu0 0.0
    %4404 = vmatpush2.msra.mxu0 0.0
    %4405 = vmatprep.subr.mxu0 0.0
    %4406 = vmatpush2.msra.mxu0 0.0
    %4407 = vmatprep.subr.mxu0 0.0
    %4408 = vmatpush2.msra.mxu0 0.0
    %4409 = vmatprep.subr.mxu0 0.0
    %4410 = vmatpush2.msra.mxu0 0.0
    %4411 = vmatprep.subr.mxu0 0.0
    %4412 = vmatpush2.msra.mxu0 0.0
    %4413 = vmatprep.subr.mxu0 0.0
    %4414 = vmatpush2.msra.mxu0 0.0
    %4415 = vmatprep.subr.mxu0 0.0
    %4416 = vmatpush2.msra.mxu0 0.0
    %4417 = vmatprep.subr.mxu0 0.0
    %4418 = vmatpush2.msra.mxu0 0.0
    %4419 = vmatprep.subr.mxu0 0.0
    %4420 = vmatpush2.msra.mxu0 0.0
    %4421 = vmatprep.subr.mxu0 0.0
    %4422 = vmatpush2.msra.mxu0 0.0
    %4423 = vmatprep.subr.mxu0 0.0
    %4424 = vmatpush2.msra.mxu0 0.0
    %4425 = vmatprep.subr.mxu0 0.0
    %4426 = vmatpush2.msra.mxu0 0.0
    %4427 = vmatprep.subr.mxu0 0.0
    %4428 = vmatpush2.msra.mxu0 0.0
    %4429 = vmatprep.subr.mxu0 0.0
    %4430 = vmatpush2.msra.mxu0 0.0
    %4431 = vmatprep.subr.mxu0 0.0
    %4432 = vmatpush2.msra.mxu0 0.0
    %4433 = vmatprep.mubr.f32.mxu0 0.0
    %4434 = vmatmul.mubr.f32.gmra.mxu0 %v4367
    %v4435 = vpop.f32.mrf.mxu0
    %v4436 = vadd.f32 0.0, %v4435
    %v4437 = vpop.f32.mrf.mxu0
    %4438 = vdwg.mxu0
    %4439 = vrot.lane.b32.xlu0 %v4203, 120
    %v4440 = vpop.permute.xlu0 %4439
    %4441 = vrot.lane.b32.xlu0 %v4273, 120
    %v4442 = vpop.permute.xlu0 %4441
    %v4443 = vsel %vm344, %v4440, 0
    %v4445 = vsel %vm344, %v4442, 0
    %4447 = vmatprep.subr.mxu0 0.0
    %4448 = vmatpush1.xpose.msra.mxu0 0.0
    %4449 = vmatprep.subr.mxu0 0.0
    %4450 = vmatpush1.xpose.msra.mxu0 0.0
    %4451 = vmatprep.subr.mxu0 0.0
    %4452 = vmatpush1.xpose.msra.mxu0 0.0
    %4453 = vmatprep.subr.mxu0 0.0
    %4454 = vmatpush1.xpose.msra.mxu0 0.0
    %4455 = vmatprep.subr.mxu0 0.0
    %4456 = vmatpush1.xpose.msra.mxu0 0.0
    %4457 = vmatprep.subr.mxu0 0.0
    %4458 = vmatpush1.xpose.msra.mxu0 0.0
    %4459 = vmatprep.subr.mxu0 0.0
    %4460 = vmatpush1.xpose.msra.mxu0 0.0
    %4461 = vmatprep.subr.mxu0 0.0
    %4462 = vmatpush1.xpose.msra.mxu0 0.0
    %4463 = vmatprep.subr.mxu0 0.0
    %4464 = vmatpush1.xpose.msra.mxu0 0.0
    %4465 = vmatprep.subr.mxu0 0.0
    %4466 = vmatpush1.xpose.msra.mxu0 0.0
    %4467 = vmatprep.subr.mxu0 0.0
    %4468 = vmatpush1.xpose.msra.mxu0 0.0
    %4469 = vmatprep.subr.mxu0 0.0
    %4470 = vmatpush1.xpose.msra.mxu0 0.0
    %4471 = vmatprep.subr.mxu0 0.0
    %4472 = vmatpush1.xpose.msra.mxu0 0.0
    %4473 = vmatprep.subr.mxu0 0.0
    %4474 = vmatpush1.xpose.msra.mxu0 0.0
    %4475 = vmatprep.subr.mxu0 0.0
    %4476 = vmatpush1.xpose.msra.mxu0 0.0
    %4477 = vmatprep.subr.mxu0 0.0
    %4478 = vmatpush1.xpose.msra.mxu0 %v4445
    %4479 = vmatprep.subr.mxu0 0.0
    %4480 = vmatpush2.xpose.msra.mxu0 0.0
    %4481 = vmatprep.subr.mxu0 0.0
    %4482 = vmatpush2.xpose.msra.mxu0 0.0
    %4483 = vmatprep.subr.mxu0 0.0
    %4484 = vmatpush2.xpose.msra.mxu0 0.0
    %4485 = vmatprep.subr.mxu0 0.0
    %4486 = vmatpush2.xpose.msra.mxu0 0.0
    %4487 = vmatprep.subr.mxu0 0.0
    %4488 = vmatpush2.xpose.msra.mxu0 0.0
    %4489 = vmatprep.subr.mxu0 0.0
    %4490 = vmatpush2.xpose.msra.mxu0 0.0
    %4491 = vmatprep.subr.mxu0 0.0
    %4492 = vmatpush2.xpose.msra.mxu0 0.0
    %4493 = vmatprep.subr.mxu0 0.0
    %4494 = vmatpush2.xpose.msra.mxu0 0.0
    %4495 = vmatprep.subr.mxu0 0.0
    %4496 = vmatpush2.xpose.msra.mxu0 0.0
    %4497 = vmatprep.subr.mxu0 0.0
    %4498 = vmatpush2.xpose.msra.mxu0 0.0
    %4499 = vmatprep.subr.mxu0 0.0
    %4500 = vmatpush2.xpose.msra.mxu0 0.0
    %4501 = vmatprep.subr.mxu0 0.0
    %4502 = vmatpush2.xpose.msra.mxu0 0.0
    %4503 = vmatprep.subr.mxu0 0.0
    %4504 = vmatpush2.xpose.msra.mxu0 0.0
    %4505 = vmatprep.subr.mxu0 0.0
    %4506 = vmatpush2.xpose.msra.mxu0 0.0
    %4507 = vmatprep.subr.mxu0 0.0
    %4508 = vmatpush2.xpose.msra.mxu0 0.0
    %4509 = vmatprep.subr.mxu0 0.0
    %4510 = vmatpush2.xpose.msra.mxu0 0.0
    %4511 = vmatprep.mubr.f32.mxu0 0.0
    %4512 = vmatmul.mubr.f32.gmra.mxu0 %v4443
    %v4513 = vpop.f32.mrf.mxu0
    %v4514 = vadd.f32 0.0, %v4513
    %v4515 = vpop.f32.mrf.mxu0
    %4516 = vdwg.mxu0
    %v4517 = vsel %vm344, %v4514, -inf
    %4518 = vmax.xlane.f32.xlu0 %v4517
    %v4519 = vpop.xlane.xlu0 %4518
    %v4520 = vsub.f32 %v4514, %v4519
    %v4521 = vmul.f32 %v4520, 1.442695
    %v4522 = vpow.pop %v4521
    %v4523 = vsel %vm344, %v4522, 0.0
    %4524 = vadd.xlane.f32.xlu0 %v4523
    %v4525 = vpop.xlane.xlu0 %4524
    %v4526 = vrcp.pop %v4525
    %v4527 = vmul.f32 %v4522, %v4526
    %4528 = vrot.lane.b32.xlu0 %v4273, 88
    %v4529 = vpop.permute.xlu0 %4528
    %v4532 = vsel %vm344, %v4527, 0
    %4534 = vmatprep.subr.mxu0 0.0
    %4535 = vmatpush1.msra.mxu0 0.0
    %4536 = vmatprep.subr.mxu0 0.0
    %4537 = vmatpush1.msra.mxu0 0.0
    %4538 = vmatprep.subr.mxu0 0.0
    %4539 = vmatpush1.msra.mxu0 0.0
    %4540 = vmatprep.subr.mxu0 0.0
    %4541 = vmatpush1.msra.mxu0 0.0
    %4542 = vmatprep.subr.mxu0 0.0
    %4543 = vmatpush1.msra.mxu0 0.0
    %4544 = vmatprep.subr.mxu0 0.0
    %4545 = vmatpush1.msra.mxu0 0.0
    %4546 = vmatprep.subr.mxu0 0.0
    %4547 = vmatpush1.msra.mxu0 0.0
    %4548 = vmatprep.subr.mxu0 0.0
    %4549 = vmatpush1.msra.mxu0 0.0
    %4550 = vmatprep.subr.mxu0 0.0
    %4551 = vmatpush1.msra.mxu0 0.0
    %4552 = vmatprep.subr.mxu0 0.0
    %4553 = vmatpush1.msra.mxu0 0.0
    %4554 = vmatprep.subr.mxu0 0.0
    %4555 = vmatpush1.msra.mxu0 0.0
    %4556 = vmatprep.subr.mxu0 0.0
    %4557 = vmatpush1.msra.mxu0 0.0
    %4558 = vmatprep.subr.mxu0 0.0
    %4559 = vmatpush1.msra.mxu0 0.0
    %4560 = vmatprep.subr.mxu0 0.0
    %4561 = vmatpush1.msra.mxu0 0.0
    %4562 = vmatprep.subr.mxu0 0.0
    %4563 = vmatpush1.msra.mxu0 0.0
    %4564 = vmatprep.subr.mxu0 0.0
    %4565 = vmatpush1.msra.mxu0 %v4529
    %4566 = vmatprep.subr.mxu0 0.0
    %4567 = vmatpush2.msra.mxu0 0.0
    %4568 = vmatprep.subr.mxu0 0.0
    %4569 = vmatpush2.msra.mxu0 0.0
    %4570 = vmatprep.subr.mxu0 0.0
    %4571 = vmatpush2.msra.mxu0 0.0
    %4572 = vmatprep.subr.mxu0 0.0
    %4573 = vmatpush2.msra.mxu0 0.0
    %4574 = vmatprep.subr.mxu0 0.0
    %4575 = vmatpush2.msra.mxu0 0.0
    %4576 = vmatprep.subr.mxu0 0.0
    %4577 = vmatpush2.msra.mxu0 0.0
    %4578 = vmatprep.subr.mxu0 0.0
    %4579 = vmatpush2.msra.mxu0 0.0
    %4580 = vmatprep.subr.mxu0 0.0
    %4581 = vmatpush2.msra.mxu0 0.0
    %4582 = vmatprep.subr.mxu0 0.0
    %4583 = vmatpush2.msra.mxu0 0.0
    %4584 = vmatprep.subr.mxu0 0.0
    %4585 = vmatpush2.msra.mxu0 0.0
    %4586 = vmatprep.subr.mxu0 0.0
    %4587 = vmatpush2.msra.mxu0 0.0
    %4588 = vmatprep.subr.mxu0 0.0
    %4589 = vmatpush2.msra.mxu0 0.0
    %4590 = vmatprep.subr.mxu0 0.0
    %4591 = vmatpush2.msra.mxu0 0.0
    %4592 = vmatprep.subr.mxu0 0.0
    %4593 = vmatpush2.msra.mxu0 0.0
    %4594 = vmatprep.subr.mxu0 0.0
    %4595 = vmatpush2.msra.mxu0 0.0
    %4596 = vmatprep.subr.mxu0 0.0
    %4597 = vmatpush2.msra.mxu0 0.0
    %4598 = vmatprep.mubr.f32.mxu0 0.0
    %4599 = vmatmul.mubr.f32.gmra.mxu0 %v4532
    %v4600 = vpop.f32.mrf.mxu0
    %v4601 = vadd.f32 0.0, %v4600
    %v4602 = vpop.f32.mrf.mxu0
    %4603 = vdwg.mxu0
    %4604 = vrot.lane.b32.xlu0 %v4203, 112
    %v4605 = vpop.permute.xlu0 %4604
    %4606 = vrot.lane.b32.xlu0 %v4273, 112
    %v4607 = vpop.permute.xlu0 %4606
    %v4608 = vsel %vm344, %v4605, 0
    %v4610 = vsel %vm344, %v4607, 0
    %4612 = vmatprep.subr.mxu0 0.0
    %4613 = vmatpush1.xpose.msra.mxu0 0.0
    %4614 = vmatprep.subr.mxu0 0.0
    %4615 = vmatpush1.xpose.msra.mxu0 0.0
    %4616 = vmatprep.subr.mxu0 0.0
    %4617 = vmatpush1.xpose.msra.mxu0 0.0
    %4618 = vmatprep.subr.mxu0 0.0
    %4619 = vmatpush1.xpose.msra.mxu0 0.0
    %4620 = vmatprep.subr.mxu0 0.0
    %4621 = vmatpush1.xpose.msra.mxu0 0.0
    %4622 = vmatprep.subr.mxu0 0.0
    %4623 = vmatpush1.xpose.msra.mxu0 0.0
    %4624 = vmatprep.subr.mxu0 0.0
    %4625 = vmatpush1.xpose.msra.mxu0 0.0
    %4626 = vmatprep.subr.mxu0 0.0
    %4627 = vmatpush1.xpose.msra.mxu0 0.0
    %4628 = vmatprep.subr.mxu0 0.0
    %4629 = vmatpush1.xpose.msra.mxu0 0.0
    %4630 = vmatprep.subr.mxu0 0.0
    %4631 = vmatpush1.xpose.msra.mxu0 0.0
    %4632 = vmatprep.subr.mxu0 0.0
    %4633 = vmatpush1.xpose.msra.mxu0 0.0
    %4634 = vmatprep.subr.mxu0 0.0
    %4635 = vmatpush1.xpose.msra.mxu0 0.0
    %4636 = vmatprep.subr.mxu0 0.0
    %4637 = vmatpush1.xpose.msra.mxu0 0.0
    %4638 = vmatprep.subr.mxu0 0.0
    %4639 = vmatpush1.xpose.msra.mxu0 0.0
    %4640 = vmatprep.subr.mxu0 0.0
    %4641 = vmatpush1.xpose.msra.mxu0 0.0
    %4642 = vmatprep.subr.mxu0 0.0
    %4643 = vmatpush1.xpose.msra.mxu0 %v4610
    %4644 = vmatprep.subr.mxu0 0.0
    %4645 = vmatpush2.xpose.msra.mxu0 0.0
    %4646 = vmatprep.subr.mxu0 0.0
    %4647 = vmatpush2.xpose.msra.mxu0 0.0
    %4648 = vmatprep.subr.mxu0 0.0
    %4649 = vmatpush2.xpose.msra.mxu0 0.0
    %4650 = vmatprep.subr.mxu0 0.0
    %4651 = vmatpush2.xpose.msra.mxu0 0.0
    %4652 = vmatprep.subr.mxu0 0.0
    %4653 = vmatpush2.xpose.msra.mxu0 0.0
    %4654 = vmatprep.subr.mxu0 0.0
    %4655 = vmatpush2.xpose.msra.mxu0 0.0
    %4656 = vmatprep.subr.mxu0 0.0
    %4657 = vmatpush2.xpose.msra.mxu0 0.0
    %4658 = vmatprep.subr.mxu0 0.0
    %4659 = vmatpush2.xpose.msra.mxu0 0.0
    %4660 = vmatprep.subr.mxu0 0.0
    %4661 = vmatpush2.xpose.msra.mxu0 0.0
    %4662 = vmatprep.subr.mxu0 0.0
    %4663 = vmatpush2.xpose.msra.mxu0 0.0
    %4664 = vmatprep.subr.mxu0 0.0
    %4665 = vmatpush2.xpose.msra.mxu0 0.0
    %4666 = vmatprep.subr.mxu0 0.0
    %4667 = vmatpush2.xpose.msra.mxu0 0.0
    %4668 = vmatprep.subr.mxu0 0.0
    %4669 = vmatpush2.xpose.msra.mxu0 0.0
    %4670 = vmatprep.subr.mxu0 0.0
    %4671 = vmatpush2.xpose.msra.mxu0 0.0
    %4672 = vmatprep.subr.mxu0 0.0
    %4673 = vmatpush2.xpose.msra.mxu0 0.0
    %4674 = vmatprep.subr.mxu0 0.0
    %4675 = vmatpush2.xpose.msra.mxu0 0.0
    %4676 = vmatprep.mubr.f32.mxu0 0.0
    %4677 = vmatmul.mubr.f32.gmra.mxu0 %v4608
    %v4678 = vpop.f32.mrf.mxu0
    %v4679 = vadd.f32 0.0, %v4678
    %v4680 = vpop.f32.mrf.mxu0
    %4681 = vdwg.mxu0
    %v4682 = vsel %vm344, %v4679, -inf
    %4683 = vmax.xlane.f32.xlu0 %v4682
    %v4684 = vpop.xlane.xlu0 %4683
    %v4685 = vsub.f32 %v4679, %v4684
    %v4686 = vmul.f32 %v4685, 1.442695
    %v4687 = vpow.pop %v4686
    %v4688 = vsel %vm344, %v4687, 0.0
    %4689 = vadd.xlane.f32.xlu0 %v4688
    %v4690 = vpop.xlane.xlu0 %4689
    %v4691 = vrcp.pop %v4690
    %v4692 = vmul.f32 %v4687, %v4691
    %4693 = vrot.lane.b32.xlu0 %v4273, 80
    %v4694 = vpop.permute.xlu0 %4693
    %v4697 = vsel %vm344, %v4692, 0
    %4699 = vmatprep.subr.mxu0 0.0
    %4700 = vmatpush1.msra.mxu0 0.0
    %4701 = vmatprep.subr.mxu0 0.0
    %4702 = vmatpush1.msra.mxu0 0.0
    %4703 = vmatprep.subr.mxu0 0.0
    %4704 = vmatpush1.msra.mxu0 0.0
    %4705 = vmatprep.subr.mxu0 0.0
    %4706 = vmatpush1.msra.mxu0 0.0
    %4707 = vmatprep.subr.mxu0 0.0
    %4708 = vmatpush1.msra.mxu0 0.0
    %4709 = vmatprep.subr.mxu0 0.0
    %4710 = vmatpush1.msra.mxu0 0.0
    %4711 = vmatprep.subr.mxu0 0.0
    %4712 = vmatpush1.msra.mxu0 0.0
    %4713 = vmatprep.subr.mxu0 0.0
    %4714 = vmatpush1.msra.mxu0 0.0
    %4715 = vmatprep.subr.mxu0 0.0
    %4716 = vmatpush1.msra.mxu0 0.0
    %4717 = vmatprep.subr.mxu0 0.0
    %4718 = vmatpush1.msra.mxu0 0.0
    %4719 = vmatprep.subr.mxu0 0.0
    %4720 = vmatpush1.msra.mxu0 0.0
    %4721 = vmatprep.subr.mxu0 0.0
    %4722 = vmatpush1.msra.mxu0 0.0
    %4723 = vmatprep.subr.mxu0 0.0
    %4724 = vmatpush1.msra.mxu0 0.0
    %4725 = vmatprep.subr.mxu0 0.0
    %4726 = vmatpush1.msra.mxu0 0.0
    %4727 = vmatprep.subr.mxu0 0.0
    %4728 = vmatpush1.msra.mxu0 0.0
    %4729 = vmatprep.subr.mxu0 0.0
    %4730 = vmatpush1.msra.mxu0 %v4694
    %4731 = vmatprep.subr.mxu0 0.0
    %4732 = vmatpush2.msra.mxu0 0.0
    %4733 = vmatprep.subr.mxu0 0.0
    %4734 = vmatpush2.msra.mxu0 0.0
    %4735 = vmatprep.subr.mxu0 0.0
    %4736 = vmatpush2.msra.mxu0 0.0
    %4737 = vmatprep.subr.mxu0 0.0
    %4738 = vmatpush2.msra.mxu0 0.0
    %4739 = vmatprep.subr.mxu0 0.0
    %4740 = vmatpush2.msra.mxu0 0.0
    %4741 = vmatprep.subr.mxu0 0.0
    %4742 = vmatpush2.msra.mxu0 0.0
    %4743 = vmatprep.subr.mxu0 0.0
    %4744 = vmatpush2.msra.mxu0 0.0
    %4745 = vmatprep.subr.mxu0 0.0
    %4746 = vmatpush2.msra.mxu0 0.0
    %4747 = vmatprep.subr.mxu0 0.0
    %4748 = vmatpush2.msra.mxu0 0.0
    %4749 = vmatprep.subr.mxu0 0.0
    %4750 = vmatpush2.msra.mxu0 0.0
    %4751 = vmatprep.subr.mxu0 0.0
    %4752 = vmatpush2.msra.mxu0 0.0
    %4753 = vmatprep.subr.mxu0 0.0
    %4754 = vmatpush2.msra.mxu0 0.0
    %4755 = vmatprep.subr.mxu0 0.0
    %4756 = vmatpush2.msra.mxu0 0.0
    %4757 = vmatprep.subr.mxu0 0.0
    %4758 = vmatpush2.msra.mxu0 0.0
    %4759 = vmatprep.subr.mxu0 0.0
    %4760 = vmatpush2.msra.mxu0 0.0
    %4761 = vmatprep.subr.mxu0 0.0
    %4762 = vmatpush2.msra.mxu0 0.0
    %4763 = vmatprep.mubr.f32.mxu0 0.0
    %4764 = vmatmul.mubr.f32.gmra.mxu0 %v4697
    %v4765 = vpop.f32.mrf.mxu0
    %v4766 = vadd.f32 0.0, %v4765
    %v4767 = vpop.f32.mrf.mxu0
    %4768 = vdwg.mxu0
    %4769 = vrot.lane.b32.xlu0 %v4203, 104
    %v4770 = vpop.permute.xlu0 %4769
    %4771 = vrot.lane.b32.xlu0 %v4273, 104
    %v4772 = vpop.permute.xlu0 %4771
    %v4773 = vsel %vm344, %v4770, 0
    %v4775 = vsel %vm344, %v4772, 0
    %4777 = vmatprep.subr.mxu0 0.0
    %4778 = vmatpush1.xpose.msra.mxu0 0.0
    %4779 = vmatprep.subr.mxu0 0.0
    %4780 = vmatpush1.xpose.msra.mxu0 0.0
    %4781 = vmatprep.subr.mxu0 0.0
    %4782 = vmatpush1.xpose.msra.mxu0 0.0
    %4783 = vmatprep.subr.mxu0 0.0
    %4784 = vmatpush1.xpose.msra.mxu0 0.0
    %4785 = vmatprep.subr.mxu0 0.0
    %4786 = vmatpush1.xpose.msra.mxu0 0.0
    %4787 = vmatprep.subr.mxu0 0.0
    %4788 = vmatpush1.xpose.msra.mxu0 0.0
    %4789 = vmatprep.subr.mxu0 0.0
    %4790 = vmatpush1.xpose.msra.mxu0 0.0
    %4791 = vmatprep.subr.mxu0 0.0
    %4792 = vmatpush1.xpose.msra.mxu0 0.0
    %4793 = vmatprep.subr.mxu0 0.0
    %4794 = vmatpush1.xpose.msra.mxu0 0.0
    %4795 = vmatprep.subr.mxu0 0.0
    %4796 = vmatpush1.xpose.msra.mxu0 0.0
    %4797 = vmatprep.subr.mxu0 0.0
    %4798 = vmatpush1.xpose.msra.mxu0 0.0
    %4799 = vmatprep.subr.mxu0 0.0
    %4800 = vmatpush1.xpose.msra.mxu0 0.0
    %4801 = vmatprep.subr.mxu0 0.0
    %4802 = vmatpush1.xpose.msra.mxu0 0.0
    %4803 = vmatprep.subr.mxu0 0.0
    %4804 = vmatpush1.xpose.msra.mxu0 0.0
    %4805 = vmatprep.subr.mxu0 0.0
    %4806 = vmatpush1.xpose.msra.mxu0 0.0
    %4807 = vmatprep.subr.mxu0 0.0
    %4808 = vmatpush1.xpose.msra.mxu0 %v4775
    %4809 = vmatprep.subr.mxu0 0.0
    %4810 = vmatpush2.xpose.msra.mxu0 0.0
    %4811 = vmatprep.subr.mxu0 0.0
    %4812 = vmatpush2.xpose.msra.mxu0 0.0
    %4813 = vmatprep.subr.mxu0 0.0
    %4814 = vmatpush2.xpose.msra.mxu0 0.0
    %4815 = vmatprep.subr.mxu0 0.0
    %4816 = vmatpush2.xpose.msra.mxu0 0.0
    %4817 = vmatprep.subr.mxu0 0.0
    %4818 = vmatpush2.xpose.msra.mxu0 0.0
    %4819 = vmatprep.subr.mxu0 0.0
    %4820 = vmatpush2.xpose.msra.mxu0 0.0
    %4821 = vmatprep.subr.mxu0 0.0
    %4822 = vmatpush2.xpose.msra.mxu0 0.0
    %4823 = vmatprep.subr.mxu0 0.0
    %4824 = vmatpush2.xpose.msra.mxu0 0.0
    %4825 = vmatprep.subr.mxu0 0.0
    %4826 = vmatpush2.xpose.msra.mxu0 0.0
    %4827 = vmatprep.subr.mxu0 0.0
    %4828 = vmatpush2.xpose.msra.mxu0 0.0
    %4829 = vmatprep.subr.mxu0 0.0
    %4830 = vmatpush2.xpose.msra.mxu0 0.0
    %4831 = vmatprep.subr.mxu0 0.0
    %4832 = vmatpush2.xpose.msra.mxu0 0.0
    %4833 = vmatprep.subr.mxu0 0.0
    %4834 = vmatpush2.xpose.msra.mxu0 0.0
    %4835 = vmatprep.subr.mxu0 0.0
    %4836 = vmatpush2.xpose.msra.mxu0 0.0
    %4837 = vmatprep.subr.mxu0 0.0
    %4838 = vmatpush2.xpose.msra.mxu0 0.0
    %4839 = vmatprep.subr.mxu0 0.0
    %4840 = vmatpush2.xpose.msra.mxu0 0.0
    %4841 = vmatprep.mubr.f32.mxu0 0.0
    %4842 = vmatmul.mubr.f32.gmra.mxu0 %v4773
    %v4843 = vpop.f32.mrf.mxu0
    %v4844 = vadd.f32 0.0, %v4843
    %v4845 = vpop.f32.mrf.mxu0
    %4846 = vdwg.mxu0
    %v4847 = vsel %vm344, %v4844, -inf
    %4848 = vmax.xlane.f32.xlu0 %v4847
    %v4849 = vpop.xlane.xlu0 %4848
    %v4850 = vsub.f32 %v4844, %v4849
    %v4851 = vmul.f32 %v4850, 1.442695
    %v4852 = vpow.pop %v4851
    %v4853 = vsel %vm344, %v4852, 0.0
    %4854 = vadd.xlane.f32.xlu0 %v4853
    %v4855 = vpop.xlane.xlu0 %4854
    %v4856 = vrcp.pop %v4855
    %v4857 = vmul.f32 %v4852, %v4856
    %4858 = vrot.lane.b32.xlu0 %v4273, 72
    %v4859 = vpop.permute.xlu0 %4858
    %v4862 = vsel %vm344, %v4857, 0
    %4864 = vmatprep.subr.mxu0 0.0
    %4865 = vmatpush1.msra.mxu0 0.0
    %4866 = vmatprep.subr.mxu0 0.0
    %4867 = vmatpush1.msra.mxu0 0.0
    %4868 = vmatprep.subr.mxu0 0.0
    %4869 = vmatpush1.msra.mxu0 0.0
    %4870 = vmatprep.subr.mxu0 0.0
    %4871 = vmatpush1.msra.mxu0 0.0
    %4872 = vmatprep.subr.mxu0 0.0
    %4873 = vmatpush1.msra.mxu0 0.0
    %4874 = vmatprep.subr.mxu0 0.0
    %4875 = vmatpush1.msra.mxu0 0.0
    %4876 = vmatprep.subr.mxu0 0.0
    %4877 = vmatpush1.msra.mxu0 0.0
    %4878 = vmatprep.subr.mxu0 0.0
    %4879 = vmatpush1.msra.mxu0 0.0
    %4880 = vmatprep.subr.mxu0 0.0
    %4881 = vmatpush1.msra.mxu0 0.0
    %4882 = vmatprep.subr.mxu0 0.0
    %4883 = vmatpush1.msra.mxu0 0.0
    %4884 = vmatprep.subr.mxu0 0.0
    %4885 = vmatpush1.msra.mxu0 0.0
    %4886 = vmatprep.subr.mxu0 0.0
    %4887 = vmatpush1.msra.mxu0 0.0
    %4888 = vmatprep.subr.mxu0 0.0
    %4889 = vmatpush1.msra.mxu0 0.0
    %4890 = vmatprep.subr.mxu0 0.0
    %4891 = vmatpush1.msra.mxu0 0.0
    %4892 = vmatprep.subr.mxu0 0.0
    %4893 = vmatpush1.msra.mxu0 0.0
    %4894 = vmatprep.subr.mxu0 0.0
    %4895 = vmatpush1.msra.mxu0 %v4859
    %4896 = vmatprep.subr.mxu0 0.0
    %4897 = vmatpush2.msra.mxu0 0.0
    %4898 = vmatprep.subr.mxu0 0.0
    %4899 = vmatpush2.msra.mxu0 0.0
    %4900 = vmatprep.subr.mxu0 0.0
    %4901 = vmatpush2.msra.mxu0 0.0
    %4902 = vmatprep.subr.mxu0 0.0
    %4903 = vmatpush2.msra.mxu0 0.0
    %4904 = vmatprep.subr.mxu0 0.0
    %4905 = vmatpush2.msra.mxu0 0.0
    %4906 = vmatprep.subr.mxu0 0.0
    %4907 = vmatpush2.msra.mxu0 0.0
    %4908 = vmatprep.subr.mxu0 0.0
    %4909 = vmatpush2.msra.mxu0 0.0
    %4910 = vmatprep.subr.mxu0 0.0
    %4911 = vmatpush2.msra.mxu0 0.0
    %4912 = vmatprep.subr.mxu0 0.0
    %4913 = vmatpush2.msra.mxu0 0.0
    %4914 = vmatprep.subr.mxu0 0.0
    %4915 = vmatpush2.msra.mxu0 0.0
    %4916 = vmatprep.subr.mxu0 0.0
    %4917 = vmatpush2.msra.mxu0 0.0
    %4918 = vmatprep.subr.mxu0 0.0
    %4919 = vmatpush2.msra.mxu0 0.0
    %4920 = vmatprep.subr.mxu0 0.0
    %4921 = vmatpush2.msra.mxu0 0.0
    %4922 = vmatprep.subr.mxu0 0.0
    %4923 = vmatpush2.msra.mxu0 0.0
    %4924 = vmatprep.subr.mxu0 0.0
    %4925 = vmatpush2.msra.mxu0 0.0
    %4926 = vmatprep.subr.mxu0 0.0
    %4927 = vmatpush2.msra.mxu0 0.0
    %4928 = vmatprep.mubr.f32.mxu0 0.0
    %4929 = vmatmul.mubr.f32.gmra.mxu0 %v4862
    %v4930 = vpop.f32.mrf.mxu0
    %v4931 = vadd.f32 0.0, %v4930
    %v4932 = vpop.f32.mrf.mxu0
    %4933 = vdwg.mxu0
    %4935 = vrot.lane.b32.xlu0 %v4601, 8
    %v4936 = vpop.permute.xlu0 %4935
    %4939 = vrot.lane.b32.xlu0 %v4766, 16
    %v4940 = vpop.permute.xlu0 %4939
    %4943 = vrot.lane.b32.xlu0 %v4931, 24
    %v4944 = vpop.permute.xlu0 %4943
    %v4946 = vsel %vm344, %v4436, %v4936
    %v4947 = vsel %vm1016, %v4946, %v4940
    %v4948 = vsel %vm1018, %v4947, %v4944
    %v4950 = vsel %vm197, %v4948, 0
    %4952 = vmatprep.subr.mxu0 0.0
    %4953 = vmatpush1.msra.mxu0 0.0
    %4954 = vmatprep.subr.mxu0 0.0
    %4955 = vmatpush1.msra.mxu0 0.0
    %4956 = vmatprep.subr.mxu0 0.0
    %4957 = vmatpush1.msra.mxu0 0.0
    %4958 = vmatprep.subr.mxu0 0.0
    %4959 = vmatpush1.msra.mxu0 0.0
    %4960 = vmatprep.subr.mxu0 0.0
    %4961 = vmatpush1.msra.mxu0 0.0
    %4962 = vmatprep.subr.mxu0 0.0
    %4963 = vmatpush1.msra.mxu0 0.0
    %4964 = vmatprep.subr.mxu0 0.0
    %4965 = vmatpush1.msra.mxu0 0.0
    %4966 = vmatprep.subr.mxu0 0.0
    %4967 = vmatpush1.msra.mxu0 0.0
    %4968 = vmatprep.subr.mxu0 0.0
    %4969 = vmatpush1.msra.mxu0 0.0
    %4970 = vmatprep.subr.mxu0 0.0
    %4971 = vmatpush1.msra.mxu0 0.0
    %4972 = vmatprep.subr.mxu0 0.0
    %4973 = vmatpush1.msra.mxu0 0.0
    %4974 = vmatprep.subr.mxu0 0.0
    %4975 = vmatpush1.msra.mxu0 0.0
    %4976 = vmatprep.subr.mxu0 0.0
    %4977 = vmatpush1.msra.mxu0 %v84
    %4978 = vmatprep.subr.mxu0 0.0
    %4979 = vmatpush1.msra.mxu0 %v83
    %4980 = vmatprep.subr.mxu0 0.0
    %4981 = vmatpush1.msra.mxu0 %v82
    %4982 = vmatprep.subr.mxu0 0.0
    %4983 = vmatpush1.msra.mxu0 %v81
    %4984 = vmatprep.subr.mxu0 0.0
    %4985 = vmatpush2.msra.mxu0 0.0
    %4986 = vmatprep.subr.mxu0 0.0
    %4987 = vmatpush2.msra.mxu0 0.0
    %4988 = vmatprep.subr.mxu0 0.0
    %4989 = vmatpush2.msra.mxu0 0.0
    %4990 = vmatprep.subr.mxu0 0.0
    %4991 = vmatpush2.msra.mxu0 0.0
    %4992 = vmatprep.subr.mxu0 0.0
    %4993 = vmatpush2.msra.mxu0 0.0
    %4994 = vmatprep.subr.mxu0 0.0
    %4995 = vmatpush2.msra.mxu0 0.0
    %4996 = vmatprep.subr.mxu0 0.0
    %4997 = vmatpush2.msra.mxu0 0.0
    %4998 = vmatprep.subr.mxu0 0.0
    %4999 = vmatpush2.msra.mxu0 0.0
    %5000 = vmatprep.subr.mxu0 0.0
    %5001 = vmatpush2.msra.mxu0 0.0
    %5002 = vmatprep.subr.mxu0 0.0
    %5003 = vmatpush2.msra.mxu0 0.0
    %5004 = vmatprep.subr.mxu0 0.0
    %5005 = vmatpush2.msra.mxu0 0.0
    %5006 = vmatprep.subr.mxu0 0.0
    %5007 = vmatpush2.msra.mxu0 0.0
    %5008 = vmatprep.subr.mxu0 0.0
    %5009 = vmatpush2.msra.mxu0 0.0
    %5010 = vmatprep.subr.mxu0 0.0
    %5011 = vmatpush2.msra.mxu0 0.0
    %5012 = vmatprep.subr.mxu0 0.0
    %5013 = vmatpush2.msra.mxu0 0.0
    %5014 = vmatprep.subr.mxu0 0.0
    %5015 = vmatpush2.msra.mxu0 0.0
    %5016 = vmatprep.mubr.f32.mxu0 0.0
    %5017 = vmatmul.mubr.f32.gmra.mxu0 %v4950
    %v5018 = vpop.f32.mrf.mxu0
    %v5019 = vadd.f32 %v1023, %v5018
    %v5020 = vpop.f32.mrf.mxu0
    %5021 = vdwg.mxu0
    %v5023 = vrot.slane %v5019, 1
    %v5024 = vrot.slane %v5019, 2
    %v5025 = vrot.slane %v5019, 3
    %v5026 = vrot.slane %v5019, 4
    %v5027 = vrot.slane %v5019, 5
    %v5028 = vrot.slane %v5019, 6
    %v5029 = vrot.slane %v5019, 7
    %v5038 = vadd.f32 %v4104, %v5019
    %v5039 = vadd.f32 %v4105, %v5023
    %v5040 = vadd.f32 %v4106, %v5024
    %v5041 = vadd.f32 %v4107, %v5025
    %v5042 = vadd.f32 %v4108, %v5026
    %v5043 = vadd.f32 %v4109, %v5027
    %v5044 = vadd.f32 %v4110, %v5028
    %v5045 = vadd.f32 %v4111, %v5029
    %v5054 = vrot.slane %v5039, 7
    %v5055 = vsel %vm177, %v5054, %v5038
    %v5056 = vrot.slane %v5040, 6
    %v5057 = vsel %vm180, %v5056, %v5055
    %v5058 = vrot.slane %v5041, 5
    %v5059 = vsel %vm183, %v5058, %v5057
    %v5060 = vrot.slane %v5042, 4
    %v5061 = vsel %vm186, %v5060, %v5059
    %v5062 = vrot.slane %v5043, 3
    %v5063 = vsel %vm189, %v5062, %v5061
    %v5064 = vrot.slane %v5044, 2
    %v5065 = vsel %vm192, %v5064, %v5063
    %v5066 = vrot.slane %v5045, 1
    %v5067 = vsel %vm195, %v5066, %v5065
    %v5069 = vsel %vm197, %v5067, 0.0
    %5070 = vadd.xlane.f32.xlu0 %v5069
    %v5071 = vpop.xlane.xlu0 %5070
    %v5072 = vmul.f32 %v5071, %v1147
    %v5074 = vrot.slane %v5072, 1
    %v5075 = vrot.slane %v5072, 2
    %v5076 = vrot.slane %v5072, 3
    %v5077 = vrot.slane %v5072, 4
    %v5078 = vrot.slane %v5072, 5
    %v5079 = vrot.slane %v5072, 6
    %v5080 = vrot.slane %v5072, 7
    %v5089 = vsub.f32 %v5038, %v5072
    %v5090 = vsub.f32 %v5039, %v5074
    %v5091 = vsub.f32 %v5040, %v5075
    %v5092 = vsub.f32 %v5041, %v5076
    %v5093 = vsub.f32 %v5042, %v5077
    %v5094 = vsub.f32 %v5043, %v5078
    %v5095 = vsub.f32 %v5044, %v5079
    %v5096 = vsub.f32 %v5045, %v5080
    %v5097 = vmul.f32 %v5089, %v5089
    %v5098 = vmul.f32 %v5090, %v5090
    %v5099 = vmul.f32 %v5091, %v5091
    %v5100 = vmul.f32 %v5092, %v5092
    %v5101 = vmul.f32 %v5093, %v5093
    %v5102 = vmul.f32 %v5094, %v5094
    %v5103 = vmul.f32 %v5095, %v5095
    %v5104 = vmul.f32 %v5096, %v5096
    %v5113 = vrot.slane %v5098, 7
    %v5114 = vsel %vm177, %v5113, %v5097
    %v5115 = vrot.slane %v5099, 6
    %v5116 = vsel %vm180, %v5115, %v5114
    %v5117 = vrot.slane %v5100, 5
    %v5118 = vsel %vm183, %v5117, %v5116
    %v5119 = vrot.slane %v5101, 4
    %v5120 = vsel %vm186, %v5119, %v5118
    %v5121 = vrot.slane %v5102, 3
    %v5122 = vsel %vm189, %v5121, %v5120
    %v5123 = vrot.slane %v5103, 2
    %v5124 = vsel %vm192, %v5123, %v5122
    %v5125 = vrot.slane %v5104, 1
    %v5126 = vsel %vm195, %v5125, %v5124
    %v5128 = vsel %vm197, %v5126, 0.0
    %5129 = vadd.xlane.f32.xlu0 %v5128
    %v5130 = vpop.xlane.xlu0 %5129
    %v5131 = vmul.f32 %v5130, %v1147
    %v5132 = vadd.f32 %v5131, 1e-05
    %v5133 = vrsqrt.pop %v5132
    %v5135 = vrot.slane %v5133, 1
    %v5136 = vrot.slane %v5133, 2
    %v5137 = vrot.slane %v5133, 3
    %v5138 = vrot.slane %v5133, 4
    %v5139 = vrot.slane %v5133, 5
    %v5140 = vrot.slane %v5133, 6
    %v5141 = vrot.slane %v5133, 7
    %v5150 = vmul.f32 %v5089, %v5133
    %v5151 = vmul.f32 %v5090, %v5135
    %v5152 = vmul.f32 %v5091, %v5136
    %v5153 = vmul.f32 %v5092, %v5137
    %v5154 = vmul.f32 %v5093, %v5138
    %v5155 = vmul.f32 %v5094, %v5139
    %v5156 = vmul.f32 %v5095, %v5140
    %v5157 = vmul.f32 %v5096, %v5141
    %v5158 = vmul.f32 %v5150, %v1237
    %v5159 = vmul.f32 %v5151, %v1237
    %v5160 = vmul.f32 %v5152, %v1237
    %v5161 = vmul.f32 %v5153, %v1237
    %v5162 = vmul.f32 %v5154, %v1237
    %v5163 = vmul.f32 %v5155, %v1237
    %v5164 = vmul.f32 %v5156, %v1237
    %v5165 = vmul.f32 %v5157, %v1237
    %v5166 = vadd.f32 %v5158, %v1249
    %v5167 = vadd.f32 %v5159, %v1249
    %v5168 = vadd.f32 %v5160, %v1249
    %v5169 = vadd.f32 %v5161, %v1249
    %v5170 = vadd.f32 %v5162, %v1249
    %v5171 = vadd.f32 %v5163, %v1249
    %v5172 = vadd.f32 %v5164, %v1249
    %v5173 = vadd.f32 %v5165, %v1249
    %v5182 = vrot.slane %v5167, 7
    %v5183 = vsel %vm177, %v5182, %v5166
    %v5184 = vrot.slane %v5168, 6
    %v5185 = vsel %vm180, %v5184, %v5183
    %v5186 = vrot.slane %v5169, 5
    %v5187 = vsel %vm183, %v5186, %v5185
    %v5188 = vrot.slane %v5170, 4
    %v5189 = vsel %vm186, %v5188, %v5187
    %v5190 = vrot.slane %v5171, 3
    %v5191 = vsel %vm189, %v5190, %v5189
    %v5192 = vrot.slane %v5172, 2
    %v5193 = vsel %vm192, %v5192, %v5191
    %v5194 = vrot.slane %v5173, 1
    %v5195 = vsel %vm195, %v5194, %v5193
    %v5196 = vsel %vm197, %v5195, 0
    %5198 = vmatprep.subr.mxu0 0.0
    %5199 = vmatpush1.msra.mxu0 0.0
    %5200 = vmatprep.subr.mxu0 0.0
    %5201 = vmatpush1.msra.mxu0 0.0
    %5202 = vmatprep.subr.mxu0 0.0
    %5203 = vmatpush1.msra.mxu0 0.0
    %5204 = vmatprep.subr.mxu0 0.0
    %5205 = vmatpush1.msra.mxu0 0.0
    %5206 = vmatprep.subr.mxu0 0.0
    %5207 = vmatpush1.msra.mxu0 0.0
    %5208 = vmatprep.subr.mxu0 0.0
    %5209 = vmatpush1.msra.mxu0 0.0
    %5210 = vmatprep.subr.mxu0 0.0
    %5211 = vmatpush1.msra.mxu0 0.0
    %5212 = vmatprep.subr.mxu0 0.0
    %5213 = vmatpush1.msra.mxu0 0.0
    %5214 = vmatprep.subr.mxu0 0.0
    %5215 = vmatpush1.msra.mxu0 0.0
    %5216 = vmatprep.subr.mxu0 0.0
    %5217 = vmatpush1.msra.mxu0 0.0
    %5218 = vmatprep.subr.mxu0 0.0
    %5219 = vmatpush1.msra.mxu0 0.0
    %5220 = vmatprep.subr.mxu0 0.0
    %5221 = vmatpush1.msra.mxu0 0.0
    %5222 = vmatprep.subr.mxu0 0.0
    %5223 = vmatpush1.msra.mxu0 %v88
    %5224 = vmatprep.subr.mxu0 0.0
    %5225 = vmatpush1.msra.mxu0 %v87
    %5226 = vmatprep.subr.mxu0 0.0
    %5227 = vmatpush1.msra.mxu0 %v86
    %5228 = vmatprep.subr.mxu0 0.0
    %5229 = vmatpush1.msra.mxu0 %v85
    %5230 = vmatprep.subr.mxu0 0.0
    %5231 = vmatpush2.msra.mxu0 0.0
    %5232 = vmatprep.subr.mxu0 0.0
    %5233 = vmatpush2.msra.mxu0 0.0
    %5234 = vmatprep.subr.mxu0 0.0
    %5235 = vmatpush2.msra.mxu0 0.0
    %5236 = vmatprep.subr.mxu0 0.0
    %5237 = vmatpush2.msra.mxu0 0.0
    %5238 = vmatprep.subr.mxu0 0.0
    %5239 = vmatpush2.msra.mxu0 0.0
    %5240 = vmatprep.subr.mxu0 0.0
    %5241 = vmatpush2.msra.mxu0 0.0
    %5242 = vmatprep.subr.mxu0 0.0
    %5243 = vmatpush2.msra.mxu0 0.0
    %5244 = vmatprep.subr.mxu0 0.0
    %5245 = vmatpush2.msra.mxu0 0.0
    %5246 = vmatprep.subr.mxu0 0.0
    %5247 = vmatpush2.msra.mxu0 0.0
    %5248 = vmatprep.subr.mxu0 0.0
    %5249 = vmatpush2.msra.mxu0 0.0
    %5250 = vmatprep.subr.mxu0 0.0
    %5251 = vmatpush2.msra.mxu0 0.0
    %5252 = vmatprep.subr.mxu0 0.0
    %5253 = vmatpush2.msra.mxu0 0.0
    %5254 = vmatprep.subr.mxu0 0.0
    %5255 = vmatpush2.msra.mxu0 0.0
    %5256 = vmatprep.subr.mxu0 0.0
    %5257 = vmatpush2.msra.mxu0 0.0
    %5258 = vmatprep.subr.mxu0 0.0
    %5259 = vmatpush2.msra.mxu0 0.0
    %5260 = vmatprep.subr.mxu0 0.0
    %5261 = vmatpush2.msra.mxu0 0.0
    %5262 = vmatprep.mubr.f32.mxu0 0.0
    %5263 = vmatmul.mubr.f32.gmra.mxu0 %v5196
    %v5264 = vpop.f32.mrf.mxu0
    %v5265 = vadd.f32 %v1261, %v5264
    %v5266 = vpop.f32.mrf.mxu0
    %5267 = vdwg.mxu0
    %v5268 = vmax.f32 %v5265, 0.0
    %v5270 = vsel %vm1361, %v5268, 0
    %5272 = vmatprep.subr.mxu0 0.0
    %5273 = vmatpush1.msra.mxu0 0.0
    %5274 = vmatprep.subr.mxu0 0.0
    %5275 = vmatpush1.msra.mxu0 0.0
    %5276 = vmatprep.subr.mxu0 0.0
    %5277 = vmatpush1.msra.mxu0 0.0
    %5278 = vmatprep.subr.mxu0 0.0
    %5279 = vmatpush1.msra.mxu0 0.0
    %5280 = vmatprep.subr.mxu0 0.0
    %5281 = vmatpush1.msra.mxu0 0.0
    %5282 = vmatprep.subr.mxu0 0.0
    %5283 = vmatpush1.msra.mxu0 0.0
    %5284 = vmatprep.subr.mxu0 0.0
    %5285 = vmatpush1.msra.mxu0 0.0
    %5286 = vmatprep.subr.mxu0 0.0
    %5287 = vmatpush1.msra.mxu0 0.0
    %5288 = vmatprep.subr.mxu0 0.0
    %5289 = vmatpush1.msra.mxu0 %v124
    %5290 = vmatprep.subr.mxu0 0.0
    %5291 = vmatpush1.msra.mxu0 %v123
    %5292 = vmatprep.subr.mxu0 0.0
    %5293 = vmatpush1.msra.mxu0 %v122
    %5294 = vmatprep.subr.mxu0 0.0
    %5295 = vmatpush1.msra.mxu0 %v121
    %5296 = vmatprep.subr.mxu0 0.0
    %5297 = vmatpush1.msra.mxu0 %v120
    %5298 = vmatprep.subr.mxu0 0.0
    %5299 = vmatpush1.msra.mxu0 %v119
    %5300 = vmatprep.subr.mxu0 0.0
    %5301 = vmatpush1.msra.mxu0 %v118
    %5302 = vmatprep.subr.mxu0 0.0
    %5303 = vmatpush1.msra.mxu0 %v117
    %5304 = vmatprep.subr.mxu0 0.0
    %5305 = vmatpush2.msra.mxu0 0.0
    %5306 = vmatprep.subr.mxu0 0.0
    %5307 = vmatpush2.msra.mxu0 0.0
    %5308 = vmatprep.subr.mxu0 0.0
    %5309 = vmatpush2.msra.mxu0 0.0
    %5310 = vmatprep.subr.mxu0 0.0
    %5311 = vmatpush2.msra.mxu0 0.0
    %5312 = vmatprep.subr.mxu0 0.0
    %5313 = vmatpush2.msra.mxu0 0.0
    %5314 = vmatprep.subr.mxu0 0.0
    %5315 = vmatpush2.msra.mxu0 0.0
    %5316 = vmatprep.subr.mxu0 0.0
    %5317 = vmatpush2.msra.mxu0 0.0
    %5318 = vmatprep.subr.mxu0 0.0
    %5319 = vmatpush2.msra.mxu0 0.0
    %5320 = vmatprep.subr.mxu0 0.0
    %5321 = vmatpush2.msra.mxu0 0.0
    %5322 = vmatprep.subr.mxu0 0.0
    %5323 = vmatpush2.msra.mxu0 0.0
    %5324 = vmatprep.subr.mxu0 0.0
    %5325 = vmatpush2.msra.mxu0 0.0
    %5326 = vmatprep.subr.mxu0 0.0
    %5327 = vmatpush2.msra.mxu0 0.0
    %5328 = vmatprep.subr.mxu0 0.0
    %5329 = vmatpush2.msra.mxu0 0.0
    %5330 = vmatprep.subr.mxu0 0.0
    %5331 = vmatpush2.msra.mxu0 0.0
    %5332 = vmatprep.subr.mxu0 0.0
    %5333 = vmatpush2.msra.mxu0 0.0
    %5334 = vmatprep.subr.mxu0 0.0
    %5335 = vmatpush2.msra.mxu0 0.0
    %5336 = vmatprep.mubr.f32.mxu0 0.0
    %5337 = vmatmul.mubr.f32.gmra.mxu0 %v5270
    %v5338 = vpop.f32.mrf.mxu0
    %v5339 = vadd.f32 %v1360, %v5338
    %v5340 = vpop.f32.mrf.mxu0
    %5341 = vdwg.mxu0
    %v5343 = vrot.slane %v5339, 1
    %v5344 = vrot.slane %v5339, 2
    %v5345 = vrot.slane %v5339, 3
    %v5346 = vrot.slane %v5339, 4
    %v5347 = vrot.slane %v5339, 5
    %v5348 = vrot.slane %v5339, 6
    %v5349 = vrot.slane %v5339, 7
    %v5358 = vadd.f32 %v5166, %v5339
    %v5359 = vadd.f32 %v5167, %v5343
    %v5360 = vadd.f32 %v5168, %v5344
    %v5361 = vadd.f32 %v5169, %v5345
    %v5362 = vadd.f32 %v5170, %v5346
    %v5363 = vadd.f32 %v5171, %v5347
    %v5364 = vadd.f32 %v5172, %v5348
    %v5365 = vadd.f32 %v5173, %v5349
    %v5374 = vrot.slane %v5359, 7
    %v5375 = vsel %vm177, %v5374, %v5358
    %v5376 = vrot.slane %v5360, 6
    %v5377 = vsel %vm180, %v5376, %v5375
    %v5378 = vrot.slane %v5361, 5
    %v5379 = vsel %vm183, %v5378, %v5377
    %v5380 = vrot.slane %v5362, 4
    %v5381 = vsel %vm186, %v5380, %v5379
    %v5382 = vrot.slane %v5363, 3
    %v5383 = vsel %vm189, %v5382, %v5381
    %v5384 = vrot.slane %v5364, 2
    %v5385 = vsel %vm192, %v5384, %v5383
    %v5386 = vrot.slane %v5365, 1
    %v5387 = vsel %vm195, %v5386, %v5385
    %v5389 = vsel %vm197, %v5387, 0.0
    %5390 = vadd.xlane.f32.xlu0 %v5389
    %v5391 = vpop.xlane.xlu0 %5390
    %v5392 = vmul.f32 %v5391, %v1147
    %v5394 = vrot.slane %v5392, 1
    %v5395 = vrot.slane %v5392, 2
    %v5396 = vrot.slane %v5392, 3
    %v5397 = vrot.slane %v5392, 4
    %v5398 = vrot.slane %v5392, 5
    %v5399 = vrot.slane %v5392, 6
    %v5400 = vrot.slane %v5392, 7
    %v5409 = vsub.f32 %v5358, %v5392
    %v5410 = vsub.f32 %v5359, %v5394
    %v5411 = vsub.f32 %v5360, %v5395
    %v5412 = vsub.f32 %v5361, %v5396
    %v5413 = vsub.f32 %v5362, %v5397
    %v5414 = vsub.f32 %v5363, %v5398
    %v5415 = vsub.f32 %v5364, %v5399
    %v5416 = vsub.f32 %v5365, %v5400
    %v5417 = vmul.f32 %v5409, %v5409
    %v5418 = vmul.f32 %v5410, %v5410
    %v5419 = vmul.f32 %v5411, %v5411
    %v5420 = vmul.f32 %v5412, %v5412
    %v5421 = vmul.f32 %v5413, %v5413
    %v5422 = vmul.f32 %v5414, %v5414
    %v5423 = vmul.f32 %v5415, %v5415
    %v5424 = vmul.f32 %v5416, %v5416
    %v5433 = vrot.slane %v5418, 7
    %v5434 = vsel %vm177, %v5433, %v5417
    %v5435 = vrot.slane %v5419, 6
    %v5436 = vsel %vm180, %v5435, %v5434
    %v5437 = vrot.slane %v5420, 5
    %v5438 = vsel %vm183, %v5437, %v5436
    %v5439 = vrot.slane %v5421, 4
    %v5440 = vsel %vm186, %v5439, %v5438
    %v5441 = vrot.slane %v5422, 3
    %v5442 = vsel %vm189, %v5441, %v5440
    %v5443 = vrot.slane %v5423, 2
    %v5444 = vsel %vm192, %v5443, %v5442
    %v5445 = vrot.slane %v5424, 1
    %v5446 = vsel %vm195, %v5445, %v5444
    %v5448 = vsel %vm197, %v5446, 0.0
    %5449 = vadd.xlane.f32.xlu0 %v5448
    %v5450 = vpop.xlane.xlu0 %5449
    %v5451 = vmul.f32 %v5450, %v1147
    %v5452 = vadd.f32 %v5451, 1e-05
    %v5453 = vrsqrt.pop %v5452
    %v5455 = vrot.slane %v5453, 1
    %v5456 = vrot.slane %v5453, 2
    %v5457 = vrot.slane %v5453, 3
    %v5458 = vrot.slane %v5453, 4
    %v5459 = vrot.slane %v5453, 5
    %v5460 = vrot.slane %v5453, 6
    %v5461 = vrot.slane %v5453, 7
    %v5470 = vmul.f32 %v5409, %v5453
    %v5471 = vmul.f32 %v5410, %v5455
    %v5472 = vmul.f32 %v5411, %v5456
    %v5473 = vmul.f32 %v5412, %v5457
    %v5474 = vmul.f32 %v5413, %v5458
    %v5475 = vmul.f32 %v5414, %v5459
    %v5476 = vmul.f32 %v5415, %v5460
    %v5477 = vmul.f32 %v5416, %v5461
    %v5478 = vmul.f32 %v5470, %v1574
    %v5479 = vmul.f32 %v5471, %v1574
    %v5480 = vmul.f32 %v5472, %v1574
    %v5481 = vmul.f32 %v5473, %v1574
    %v5482 = vmul.f32 %v5474, %v1574
    %v5483 = vmul.f32 %v5475, %v1574
    %v5484 = vmul.f32 %v5476, %v1574
    %v5485 = vmul.f32 %v5477, %v1574
    %v5486 = vadd.f32 %v5478, %v1586
    %v5487 = vadd.f32 %v5479, %v1586
    %v5488 = vadd.f32 %v5480, %v1586
    %v5489 = vadd.f32 %v5481, %v1586
    %v5490 = vadd.f32 %v5482, %v1586
    %v5491 = vadd.f32 %v5483, %v1586
    %v5492 = vadd.f32 %v5484, %v1586
    %v5493 = vadd.f32 %v5485, %v1586
    %v5502 = vrot.slane %v5487, 7
    %v5503 = vsel %vm177, %v5502, %v5486
    %v5504 = vrot.slane %v5488, 6
    %v5505 = vsel %vm180, %v5504, %v5503
    %v5506 = vrot.slane %v5489, 5
    %v5507 = vsel %vm183, %v5506, %v5505
    %v5508 = vrot.slane %v5490, 4
    %v5509 = vsel %vm186, %v5508, %v5507
    %v5510 = vrot.slane %v5491, 3
    %v5511 = vsel %vm189, %v5510, %v5509
    %v5512 = vrot.slane %v5492, 2
    %v5513 = vsel %vm192, %v5512, %v5511
    %v5514 = vrot.slane %v5493, 1
    %v5515 = vsel %vm195, %v5514, %v5513
    %v5516 = vsel %vm197, %v5515, 0
    %5518 = vmatprep.subr.mxu0 0.0
    %5519 = vmatpush1.msra.mxu0 0.0
    %5520 = vmatprep.subr.mxu0 0.0
    %5521 = vmatpush1.msra.mxu0 0.0
    %5522 = vmatprep.subr.mxu0 0.0
    %5523 = vmatpush1.msra.mxu0 0.0
    %5524 = vmatprep.subr.mxu0 0.0
    %5525 = vmatpush1.msra.mxu0 0.0
    %5526 = vmatprep.subr.mxu0 0.0
    %5527 = vmatpush1.msra.mxu0 0.0
    %5528 = vmatprep.subr.mxu0 0.0
    %5529 = vmatpush1.msra.mxu0 0.0
    %5530 = vmatprep.subr.mxu0 0.0
    %5531 = vmatpush1.msra.mxu0 0.0
    %5532 = vmatprep.subr.mxu0 0.0
    %5533 = vmatpush1.msra.mxu0 0.0
    %5534 = vmatprep.subr.mxu0 0.0
    %5535 = vmatpush1.msra.mxu0 0.0
    %5536 = vmatprep.subr.mxu0 0.0
    %5537 = vmatpush1.msra.mxu0 0.0
    %5538 = vmatprep.subr.mxu0 0.0
    %5539 = vmatpush1.msra.mxu0 0.0
    %5540 = vmatprep.subr.mxu0 0.0
    %5541 = vmatpush1.msra.mxu0 0.0
    %5542 = vmatprep.subr.mxu0 0.0
    %5543 = vmatpush1.msra.mxu0 %v92
    %5544 = vmatprep.subr.mxu0 0.0
    %5545 = vmatpush1.msra.mxu0 %v91
    %5546 = vmatprep.subr.mxu0 0.0
    %5547 = vmatpush1.msra.mxu0 %v90
    %5548 = vmatprep.subr.mxu0 0.0
    %5549 = vmatpush1.msra.mxu0 %v89
    %5550 = vmatprep.subr.mxu0 0.0
    %5551 = vmatpush2.msra.mxu0 0.0
    %5552 = vmatprep.subr.mxu0 0.0
    %5553 = vmatpush2.msra.mxu0 0.0
    %5554 = vmatprep.subr.mxu0 0.0
    %5555 = vmatpush2.msra.mxu0 0.0
    %5556 = vmatprep.subr.mxu0 0.0
    %5557 = vmatpush2.msra.mxu0 0.0
    %5558 = vmatprep.subr.mxu0 0.0
    %5559 = vmatpush2.msra.mxu0 0.0
    %5560 = vmatprep.subr.mxu0 0.0
    %5561 = vmatpush2.msra.mxu0 0.0
    %5562 = vmatprep.subr.mxu0 0.0
    %5563 = vmatpush2.msra.mxu0 0.0
    %5564 = vmatprep.subr.mxu0 0.0
    %5565 = vmatpush2.msra.mxu0 0.0
    %5566 = vmatprep.subr.mxu0 0.0
    %5567 = vmatpush2.msra.mxu0 0.0
    %5568 = vmatprep.subr.mxu0 0.0
    %5569 = vmatpush2.msra.mxu0 0.0
    %5570 = vmatprep.subr.mxu0 0.0
    %5571 = vmatpush2.msra.mxu0 0.0
    %5572 = vmatprep.subr.mxu0 0.0
    %5573 = vmatpush2.msra.mxu0 0.0
    %5574 = vmatprep.subr.mxu0 0.0
    %5575 = vmatpush2.msra.mxu0 0.0
    %5576 = vmatprep.subr.mxu0 0.0
    %5577 = vmatpush2.msra.mxu0 0.0
    %5578 = vmatprep.subr.mxu0 0.0
    %5579 = vmatpush2.msra.mxu0 0.0
    %5580 = vmatprep.subr.mxu0 0.0
    %5581 = vmatpush2.msra.mxu0 0.0
    %5582 = vmatprep.mubr.f32.mxu0 0.0
    %5583 = vmatmul.mubr.f32.gmra.mxu0 %v5516
    %v5584 = vpop.f32.mrf.mxu0
    %v5585 = vadd.f32 %v1598, %v5584
    %v5586 = vpop.f32.mrf.mxu0
    %5587 = vdwg.mxu0
    %5588 = vmatprep.subr.mxu0 0.0
    %5589 = vmatpush1.msra.mxu0 0.0
    %5590 = vmatprep.subr.mxu0 0.0
    %5591 = vmatpush1.msra.mxu0 0.0
    %5592 = vmatprep.subr.mxu0 0.0
    %5593 = vmatpush1.msra.mxu0 0.0
    %5594 = vmatprep.subr.mxu0 0.0
    %5595 = vmatpush1.msra.mxu0 0.0
    %5596 = vmatprep.subr.mxu0 0.0
    %5597 = vmatpush1.msra.mxu0 0.0
    %5598 = vmatprep.subr.mxu0 0.0
    %5599 = vmatpush1.msra.mxu0 0.0
    %5600 = vmatprep.subr.mxu0 0.0
    %5601 = vmatpush1.msra.mxu0 0.0
    %5602 = vmatprep.subr.mxu0 0.0
    %5603 = vmatpush1.msra.mxu0 0.0
    %5604 = vmatprep.subr.mxu0 0.0
    %5605 = vmatpush1.msra.mxu0 0.0
    %5606 = vmatprep.subr.mxu0 0.0
    %5607 = vmatpush1.msra.mxu0 0.0
    %5608 = vmatprep.subr.mxu0 0.0
    %5609 = vmatpush1.msra.mxu0 0.0
    %5610 = vmatprep.subr.mxu0 0.0
    %5611 = vmatpush1.msra.mxu0 0.0
    %5612 = vmatprep.subr.mxu0 0.0
    %5613 = vmatpush1.msra.mxu0 %v96
    %5614 = vmatprep.subr.mxu0 0.0
    %5615 = vmatpush1.msra.mxu0 %v95
    %5616 = vmatprep.subr.mxu0 0.0
    %5617 = vmatpush1.msra.mxu0 %v94
    %5618 = vmatprep.subr.mxu0 0.0
    %5619 = vmatpush1.msra.mxu0 %v93
    %5620 = vmatprep.subr.mxu0 0.0
    %5621 = vmatpush2.msra.mxu0 0.0
    %5622 = vmatprep.subr.mxu0 0.0
    %5623 = vmatpush2.msra.mxu0 0.0
    %5624 = vmatprep.subr.mxu0 0.0
    %5625 = vmatpush2.msra.mxu0 0.0
    %5626 = vmatprep.subr.mxu0 0.0
    %5627 = vmatpush2.msra.mxu0 0.0
    %5628 = vmatprep.subr.mxu0 0.0
    %5629 = vmatpush2.msra.mxu0 0.0
    %5630 = vmatprep.subr.mxu0 0.0
    %5631 = vmatpush2.msra.mxu0 0.0
    %5632 = vmatprep.subr.mxu0 0.0
    %5633 = vmatpush2.msra.mxu0 0.0
    %5634 = vmatprep.subr.mxu0 0.0
    %5635 = vmatpush2.msra.mxu0 0.0
    %5636 = vmatprep.subr.mxu0 0.0
    %5637 = vmatpush2.msra.mxu0 0.0
    %5638 = vmatprep.subr.mxu0 0.0
    %5639 = vmatpush2.msra.mxu0 0.0
    %5640 = vmatprep.subr.mxu0 0.0
    %5641 = vmatpush2.msra.mxu0 0.0
    %5642 = vmatprep.subr.mxu0 0.0
    %5643 = vmatpush2.msra.mxu0 0.0
    %5644 = vmatprep.subr.mxu0 0.0
    %5645 = vmatpush2.msra.mxu0 0.0
    %5646 = vmatprep.subr.mxu0 0.0
    %5647 = vmatpush2.msra.mxu0 0.0
    %5648 = vmatprep.subr.mxu0 0.0
    %5649 = vmatpush2.msra.mxu0 0.0
    %5650 = vmatprep.subr.mxu0 0.0
    %5651 = vmatpush2.msra.mxu0 0.0
    %5652 = vmatprep.mubr.f32.mxu0 0.0
    %5653 = vmatmul.mubr.f32.gmra.mxu0 %v5516
    %v5654 = vpop.f32.mrf.mxu0
    %v5655 = vadd.f32 %v1696, %v5654
    %v5656 = vpop.f32.mrf.mxu0
    %5657 = vdwg.mxu0
    %v5659 = vsel %vm344, %v5585, 0
    %v5662 = vsel %vm344, %v5655, 0
    %5664 = vmatprep.subr.mxu0 0.0
    %5665 = vmatpush1.xpose.msra.mxu0 0.0
    %5666 = vmatprep.subr.mxu0 0.0
    %5667 = vmatpush1.xpose.msra.mxu0 0.0
    %5668 = vmatprep.subr.mxu0 0.0
    %5669 = vmatpush1.xpose.msra.mxu0 0.0
    %5670 = vmatprep.subr.mxu0 0.0
    %5671 = vmatpush1.xpose.msra.mxu0 0.0
    %5672 = vmatprep.subr.mxu0 0.0
    %5673 = vmatpush1.xpose.msra.mxu0 0.0
    %5674 = vmatprep.subr.mxu0 0.0
    %5675 = vmatpush1.xpose.msra.mxu0 0.0
    %5676 = vmatprep.subr.mxu0 0.0
    %5677 = vmatpush1.xpose.msra.mxu0 0.0
    %5678 = vmatprep.subr.mxu0 0.0
    %5679 = vmatpush1.xpose.msra.mxu0 0.0
    %5680 = vmatprep.subr.mxu0 0.0
    %5681 = vmatpush1.xpose.msra.mxu0 0.0
    %5682 = vmatprep.subr.mxu0 0.0
    %5683 = vmatpush1.xpose.msra.mxu0 0.0
    %5684 = vmatprep.subr.mxu0 0.0
    %5685 = vmatpush1.xpose.msra.mxu0 0.0
    %5686 = vmatprep.subr.mxu0 0.0
    %5687 = vmatpush1.xpose.msra.mxu0 0.0
    %5688 = vmatprep.subr.mxu0 0.0
    %5689 = vmatpush1.xpose.msra.mxu0 0.0
    %5690 = vmatprep.subr.mxu0 0.0
    %5691 = vmatpush1.xpose.msra.mxu0 0.0
    %5692 = vmatprep.subr.mxu0 0.0
    %5693 = vmatpush1.xpose.msra.mxu0 0.0
    %5694 = vmatprep.subr.mxu0 0.0
    %5695 = vmatpush1.xpose.msra.mxu0 %v5662
    %5696 = vmatprep.subr.mxu0 0.0
    %5697 = vmatpush2.xpose.msra.mxu0 0.0
    %5698 = vmatprep.subr.mxu0 0.0
    %5699 = vmatpush2.xpose.msra.mxu0 0.0
    %5700 = vmatprep.subr.mxu0 0.0
    %5701 = vmatpush2.xpose.msra.mxu0 0.0
    %5702 = vmatprep.subr.mxu0 0.0
    %5703 = vmatpush2.xpose.msra.mxu0 0.0
    %5704 = vmatprep.subr.mxu0 0.0
    %5705 = vmatpush2.xpose.msra.mxu0 0.0
    %5706 = vmatprep.subr.mxu0 0.0
    %5707 = vmatpush2.xpose.msra.mxu0 0.0
    %5708 = vmatprep.subr.mxu0 0.0
    %5709 = vmatpush2.xpose.msra.mxu0 0.0
    %5710 = vmatprep.subr.mxu0 0.0
    %5711 = vmatpush2.xpose.msra.mxu0 0.0
    %5712 = vmatprep.subr.mxu0 0.0
    %5713 = vmatpush2.xpose.msra.mxu0 0.0
    %5714 = vmatprep.subr.mxu0 0.0
    %5715 = vmatpush2.xpose.msra.mxu0 0.0
    %5716 = vmatprep.subr.mxu0 0.0
    %5717 = vmatpush2.xpose.msra.mxu0 0.0
    %5718 = vmatprep.subr.mxu0 0.0
    %5719 = vmatpush2.xpose.msra.mxu0 0.0
    %5720 = vmatprep.subr.mxu0 0.0
    %5721 = vmatpush2.xpose.msra.mxu0 0.0
    %5722 = vmatprep.subr.mxu0 0.0
    %5723 = vmatpush2.xpose.msra.mxu0 0.0
    %5724 = vmatprep.subr.mxu0 0.0
    %5725 = vmatpush2.xpose.msra.mxu0 0.0
    %5726 = vmatprep.subr.mxu0 0.0
    %5727 = vmatpush2.xpose.msra.mxu0 0.0
    %5728 = vmatprep.mubr.f32.mxu0 0.0
    %5729 = vmatmul.mubr.f32.gmra.mxu0 %v5659
    %v5730 = vpop.f32.mrf.mxu0
    %v5731 = vadd.f32 0.0, %v5730
    %v5732 = vpop.f32.mrf.mxu0
    %5733 = vdwg.mxu0
    %v5734 = vsel %vm344, %v5731, -inf
    %5735 = vmax.xlane.f32.xlu0 %v5734
    %v5736 = vpop.xlane.xlu0 %5735
    %v5737 = vsub.f32 %v5731, %v5736
    %v5738 = vmul.f32 %v5737, 1.442695
    %v5739 = vpow.pop %v5738
    %v5740 = vsel %vm344, %v5739, 0.0
    %5741 = vadd.xlane.f32.xlu0 %v5740
    %v5742 = vpop.xlane.xlu0 %5741
    %v5743 = vrcp.pop %v5742
    %v5744 = vmul.f32 %v5739, %v5743
    %5745 = vrot.lane.b32.xlu0 %v5655, 96
    %v5746 = vpop.permute.xlu0 %5745
    %v5749 = vsel %vm344, %v5744, 0
    %5751 = vmatprep.subr.mxu0 0.0
    %5752 = vmatpush1.msra.mxu0 0.0
    %5753 = vmatprep.subr.mxu0 0.0
    %5754 = vmatpush1.msra.mxu0 0.0
    %5755 = vmatprep.subr.mxu0 0.0
    %5756 = vmatpush1.msra.mxu0 0.0
    %5757 = vmatprep.subr.mxu0 0.0
    %5758 = vmatpush1.msra.mxu0 0.0
    %5759 = vmatprep.subr.mxu0 0.0
    %5760 = vmatpush1.msra.mxu0 0.0
    %5761 = vmatprep.subr.mxu0 0.0
    %5762 = vmatpush1.msra.mxu0 0.0
    %5763 = vmatprep.subr.mxu0 0.0
    %5764 = vmatpush1.msra.mxu0 0.0
    %5765 = vmatprep.subr.mxu0 0.0
    %5766 = vmatpush1.msra.mxu0 0.0
    %5767 = vmatprep.subr.mxu0 0.0
    %5768 = vmatpush1.msra.mxu0 0.0
    %5769 = vmatprep.subr.mxu0 0.0
    %5770 = vmatpush1.msra.mxu0 0.0
    %5771 = vmatprep.subr.mxu0 0.0
    %5772 = vmatpush1.msra.mxu0 0.0
    %5773 = vmatprep.subr.mxu0 0.0
    %5774 = vmatpush1.msra.mxu0 0.0
    %5775 = vmatprep.subr.mxu0 0.0
    %5776 = vmatpush1.msra.mxu0 0.0
    %5777 = vmatprep.subr.mxu0 0.0
    %5778 = vmatpush1.msra.mxu0 0.0
    %5779 = vmatprep.subr.mxu0 0.0
    %5780 = vmatpush1.msra.mxu0 0.0
    %5781 = vmatprep.subr.mxu0 0.0
    %5782 = vmatpush1.msra.mxu0 %v5746
    %5783 = vmatprep.subr.mxu0 0.0
    %5784 = vmatpush2.msra.mxu0 0.0
    %5785 = vmatprep.subr.mxu0 0.0
    %5786 = vmatpush2.msra.mxu0 0.0
    %5787 = vmatprep.subr.mxu0 0.0
    %5788 = vmatpush2.msra.mxu0 0.0
    %5789 = vmatprep.subr.mxu0 0.0
    %5790 = vmatpush2.msra.mxu0 0.0
    %5791 = vmatprep.subr.mxu0 0.0
    %5792 = vmatpush2.msra.mxu0 0.0
    %5793 = vmatprep.subr.mxu0 0.0
    %5794 = vmatpush2.msra.mxu0 0.0
    %5795 = vmatprep.subr.mxu0 0.0
    %5796 = vmatpush2.msra.mxu0 0.0
    %5797 = vmatprep.subr.mxu0 0.0
    %5798 = vmatpush2.msra.mxu0 0.0
    %5799 = vmatprep.subr.mxu0 0.0
    %5800 = vmatpush2.msra.mxu0 0.0
    %5801 = vmatprep.subr.mxu0 0.0
    %5802 = vmatpush2.msra.mxu0 0.0
    %5803 = vmatprep.subr.mxu0 0.0
    %5804 = vmatpush2.msra.mxu0 0.0
    %5805 = vmatprep.subr.mxu0 0.0
    %5806 = vmatpush2.msra.mxu0 0.0
    %5807 = vmatprep.subr.mxu0 0.0
    %5808 = vmatpush2.msra.mxu0 0.0
    %5809 = vmatprep.subr.mxu0 0.0
    %5810 = vmatpush2.msra.mxu0 0.0
    %5811 = vmatprep.subr.mxu0 0.0
    %5812 = vmatpush2.msra.mxu0 0.0
    %5813 = vmatprep.subr.mxu0 0.0
    %5814 = vmatpush2.msra.mxu0 0.0
    %5815 = vmatprep.mubr.f32.mxu0 0.0
    %5816 = vmatmul.mubr.f32.gmra.mxu0 %v5749
    %v5817 = vpop.f32.mrf.mxu0
    %v5818 = vadd.f32 0.0, %v5817
    %v5819 = vpop.f32.mrf.mxu0
    %5820 = vdwg.mxu0
    %5821 = vrot.lane.b32.xlu0 %v5585, 120
    %v5822 = vpop.permute.xlu0 %5821
    %5823 = vrot.lane.b32.xlu0 %v5655, 120
    %v5824 = vpop.permute.xlu0 %5823
    %v5825 = vsel %vm344, %v5822, 0
    %v5827 = vsel %vm344, %v5824, 0
    %5829 = vmatprep.subr.mxu0 0.0
    %5830 = vmatpush1.xpose.msra.mxu0 0.0
    %5831 = vmatprep.subr.mxu0 0.0
    %5832 = vmatpush1.xpose.msra.mxu0 0.0
    %5833 = vmatprep.subr.mxu0 0.0
    %5834 = vmatpush1.xpose.msra.mxu0 0.0
    %5835 = vmatprep.subr.mxu0 0.0
    %5836 = vmatpush1.xpose.msra.mxu0 0.0
    %5837 = vmatprep.subr.mxu0 0.0
    %5838 = vmatpush1.xpose.msra.mxu0 0.0
    %5839 = vmatprep.subr.mxu0 0.0
    %5840 = vmatpush1.xpose.msra.mxu0 0.0
    %5841 = vmatprep.subr.mxu0 0.0
    %5842 = vmatpush1.xpose.msra.mxu0 0.0
    %5843 = vmatprep.subr.mxu0 0.0
    %5844 = vmatpush1.xpose.msra.mxu0 0.0
    %5845 = vmatprep.subr.mxu0 0.0
    %5846 = vmatpush1.xpose.msra.mxu0 0.0
    %5847 = vmatprep.subr.mxu0 0.0
    %5848 = vmatpush1.xpose.msra.mxu0 0.0
    %5849 = vmatprep.subr.mxu0 0.0
    %5850 = vmatpush1.xpose.msra.mxu0 0.0
    %5851 = vmatprep.subr.mxu0 0.0
    %5852 = vmatpush1.xpose.msra.mxu0 0.0
    %5853 = vmatprep.subr.mxu0 0.0
    %5854 = vmatpush1.xpose.msra.mxu0 0.0
    %5855 = vmatprep.subr.mxu0 0.0
    %5856 = vmatpush1.xpose.msra.mxu0 0.0
    %5857 = vmatprep.subr.mxu0 0.0
    %5858 = vmatpush1.xpose.msra.mxu0 0.0
    %5859 = vmatprep.subr.mxu0 0.0
    %5860 = vmatpush1.xpose.msra.mxu0 %v5827
    %5861 = vmatprep.subr.mxu0 0.0
    %5862 = vmatpush2.xpose.msra.mxu0 0.0
    %5863 = vmatprep.subr.mxu0 0.0
    %5864 = vmatpush2.xpose.msra.mxu0 0.0
    %5865 = vmatprep.subr.mxu0 0.0
    %5866 = vmatpush2.xpose.msra.mxu0 0.0
    %5867 = vmatprep.subr.mxu0 0.0
    %5868 = vmatpush2.xpose.msra.mxu0 0.0
    %5869 = vmatprep.subr.mxu0 0.0
    %5870 = vmatpush2.xpose.msra.mxu0 0.0
    %5871 = vmatprep.subr.mxu0 0.0
    %5872 = vmatpush2.xpose.msra.mxu0 0.0
    %5873 = vmatprep.subr.mxu0 0.0
    %5874 = vmatpush2.xpose.msra.mxu0 0.0
    %5875 = vmatprep.subr.mxu0 0.0
    %5876 = vmatpush2.xpose.msra.mxu0 0.0
    %5877 = vmatprep.subr.mxu0 0.0
    %5878 = vmatpush2.xpose.msra.mxu0 0.0
    %5879 = vmatprep.subr.mxu0 0.0
    %5880 = vmatpush2.xpose.msra.mxu0 0.0
    %5881 = vmatprep.subr.mxu0 0.0
    %5882 = vmatpush2.xpose.msra.mxu0 0.0
    %5883 = vmatprep.subr.mxu0 0.0
    %5884 = vmatpush2.xpose.msra.mxu0 0.0
    %5885 = vmatprep.subr.mxu0 0.0
    %5886 = vmatpush2.xpose.msra.mxu0 0.0
    %5887 = vmatprep.subr.mxu0 0.0
    %5888 = vmatpush2.xpose.msra.mxu0 0.0
    %5889 = vmatprep.subr.mxu0 0.0
    %5890 = vmatpush2.xpose.msra.mxu0 0.0
    %5891 = vmatprep.subr.mxu0 0.0
    %5892 = vmatpush2.xpose.msra.mxu0 0.0
    %5893 = vmatprep.mubr.f32.mxu0 0.0
    %5894 = vmatmul.mubr.f32.gmra.mxu0 %v5825
    %v5895 = vpop.f32.mrf.mxu0
    %v5896 = vadd.f32 0.0, %v5895
    %v5897 = vpop.f32.mrf.mxu0
    %5898 = vdwg.mxu0
    %v5899 = vsel %vm344, %v5896, -inf
    %5900 = vmax.xlane.f32.xlu0 %v5899
    %v5901 = vpop.xlane.xlu0 %5900
    %v5902 = vsub.f32 %v5896, %v5901
    %v5903 = vmul.f32 %v5902, 1.442695
    %v5904 = vpow.pop %v5903
    %v5905 = vsel %vm344, %v5904, 0.0
    %5906 = vadd.xlane.f32.xlu0 %v5905
    %v5907 = vpop.xlane.xlu0 %5906
    %v5908 = vrcp.pop %v5907
    %v5909 = vmul.f32 %v5904, %v5908
    %5910 = vrot.lane.b32.xlu0 %v5655, 88
    %v5911 = vpop.permute.xlu0 %5910
    %v5914 = vsel %vm344, %v5909, 0
    %5916 = vmatprep.subr.mxu0 0.0
    %5917 = vmatpush1.msra.mxu0 0.0
    %5918 = vmatprep.subr.mxu0 0.0
    %5919 = vmatpush1.msra.mxu0 0.0
    %5920 = vmatprep.subr.mxu0 0.0
    %5921 = vmatpush1.msra.mxu0 0.0
    %5922 = vmatprep.subr.mxu0 0.0
    %5923 = vmatpush1.msra.mxu0 0.0
    %5924 = vmatprep.subr.mxu0 0.0
    %5925 = vmatpush1.msra.mxu0 0.0
    %5926 = vmatprep.subr.mxu0 0.0
    %5927 = vmatpush1.msra.mxu0 0.0
    %5928 = vmatprep.subr.mxu0 0.0
    %5929 = vmatpush1.msra.mxu0 0.0
    %5930 = vmatprep.subr.mxu0 0.0
    %5931 = vmatpush1.msra.mxu0 0.0
    %5932 = vmatprep.subr.mxu0 0.0
    %5933 = vmatpush1.msra.mxu0 0.0
    %5934 = vmatprep.subr.mxu0 0.0
    %5935 = vmatpush1.msra.mxu0 0.0
    %5936 = vmatprep.subr.mxu0 0.0
    %5937 = vmatpush1.msra.mxu0 0.0
    %5938 = vmatprep.subr.mxu0 0.0
    %5939 = vmatpush1.msra.mxu0 0.0
    %5940 = vmatprep.subr.mxu0 0.0
    %5941 = vmatpush1.msra.mxu0 0.0
    %5942 = vmatprep.subr.mxu0 0.0
    %5943 = vmatpush1.msra.mxu0 0.0
    %5944 = vmatprep.subr.mxu0 0.0
    %5945 = vmatpush1.msra.mxu0 0.0
    %5946 = vmatprep.subr.mxu0 0.0
    %5947 = vmatpush1.msra.mxu0 %v5911
    %5948 = vmatprep.subr.mxu0 0.0
    %5949 = vmatpush2.msra.mxu0 0.0
    %5950 = vmatprep.subr.mxu0 0.0
    %5951 = vmatpush2.msra.mxu0 0.0
    %5952 = vmatprep.subr.mxu0 0.0
    %5953 = vmatpush2.msra.mxu0 0.0
    %5954 = vmatprep.subr.mxu0 0.0
    %5955 = vmatpush2.msra.mxu0 0.0
    %5956 = vmatprep.subr.mxu0 0.0
    %5957 = vmatpush2.msra.mxu0 0.0
    %5958 = vmatprep.subr.mxu0 0.0
    %5959 = vmatpush2.msra.mxu0 0.0
    %5960 = vmatprep.subr.mxu0 0.0
    %5961 = vmatpush2.msra.mxu0 0.0
    %5962 = vmatprep.subr.mxu0 0.0
    %5963 = vmatpush2.msra.mxu0 0.0
    %5964 = vmatprep.subr.mxu0 0.0
    %5965 = vmatpush2.msra.mxu0 0.0
    %5966 = vmatprep.subr.mxu0 0.0
    %5967 = vmatpush2.msra.mxu0 0.0
    %5968 = vmatprep.subr.mxu0 0.0
    %5969 = vmatpush2.msra.mxu0 0.0
    %5970 = vmatprep.subr.mxu0 0.0
    %5971 = vmatpush2.msra.mxu0 0.0
    %5972 = vmatprep.subr.mxu0 0.0
    %5973 = vmatpush2.msra.mxu0 0.0
    %5974 = vmatprep.subr.mxu0 0.0
    %5975 = vmatpush2.msra.mxu0 0.0
    %5976 = vmatprep.subr.mxu0 0.0
    %5977 = vmatpush2.msra.mxu0 0.0
    %5978 = vmatprep.subr.mxu0 0.0
    %5979 = vmatpush2.msra.mxu0 0.0
    %5980 = vmatprep.mubr.f32.mxu0 0.0
    %5981 = vmatmul.mubr.f32.gmra.mxu0 %v5914
    %v5982 = vpop.f32.mrf.mxu0
    %v5983 = vadd.f32 0.0, %v5982
    %v5984 = vpop.f32.mrf.mxu0
    %5985 = vdwg.mxu0
    %5986 = vrot.lane.b32.xlu0 %v5585, 112
    %v5987 = vpop.permute.xlu0 %5986
    %5988 = vrot.lane.b32.xlu0 %v5655, 112
    %v5989 = vpop.permute.xlu0 %5988
    %v5990 = vsel %vm344, %v5987, 0
    %v5992 = vsel %vm344, %v5989, 0
    %5994 = vmatprep.subr.mxu0 0.0
    %5995 = vmatpush1.xpose.msra.mxu0 0.0
    %5996 = vmatprep.subr.mxu0 0.0
    %5997 = vmatpush1.xpose.msra.mxu0 0.0
    %5998 = vmatprep.subr.mxu0 0.0
    %5999 = vmatpush1.xpose.msra.mxu0 0.0
    %6000 = vmatprep.subr.mxu0 0.0
    %6001 = vmatpush1.xpose.msra.mxu0 0.0
    %6002 = vmatprep.subr.mxu0 0.0
    %6003 = vmatpush1.xpose.msra.mxu0 0.0
    %6004 = vmatprep.subr.mxu0 0.0
    %6005 = vmatpush1.xpose.msra.mxu0 0.0
    %6006 = vmatprep.subr.mxu0 0.0
    %6007 = vmatpush1.xpose.msra.mxu0 0.0
    %6008 = vmatprep.subr.mxu0 0.0
    %6009 = vmatpush1.xpose.msra.mxu0 0.0
    %6010 = vmatprep.subr.mxu0 0.0
    %6011 = vmatpush1.xpose.msra.mxu0 0.0
    %6012 = vmatprep.subr.mxu0 0.0
    %6013 = vmatpush1.xpose.msra.mxu0 0.0
    %6014 = vmatprep.subr.mxu0 0.0
    %6015 = vmatpush1.xpose.msra.mxu0 0.0
    %6016 = vmatprep.subr.mxu0 0.0
    %6017 = vmatpush1.xpose.msra.mxu0 0.0
    %6018 = vmatprep.subr.mxu0 0.0
    %6019 = vmatpush1.xpose.msra.mxu0 0.0
    %6020 = vmatprep.subr.mxu0 0.0
    %6021 = vmatpush1.xpose.msra.mxu0 0.0
    %6022 = vmatprep.subr.mxu0 0.0
    %6023 = vmatpush1.xpose.msra.mxu0 0.0
    %6024 = vmatprep.subr.mxu0 0.0
    %6025 = vmatpush1.xpose.msra.mxu0 %v5992
    %6026 = vmatprep.subr.mxu0 0.0
    %6027 = vmatpush2.xpose.msra.mxu0 0.0
    %6028 = vmatprep.subr.mxu0 0.0
    %6029 = vmatpush2.xpose.msra.mxu0 0.0
    %6030 = vmatprep.subr.mxu0 0.0
    %6031 = vmatpush2.xpose.msra.mxu0 0.0
    %6032 = vmatprep.subr.mxu0 0.0
    %6033 = vmatpush2.xpose.msra.mxu0 0.0
    %6034 = vmatprep.subr.mxu0 0.0
    %6035 = vmatpush2.xpose.msra.mxu0 0.0
    %6036 = vmatprep.subr.mxu0 0.0
    %6037 = vmatpush2.xpose.msra.mxu0 0.0
    %6038 = vmatprep.subr.mxu0 0.0
    %6039 = vmatpush2.xpose.msra.mxu0 0.0
    %6040 = vmatprep.subr.mxu0 0.0
    %6041 = vmatpush2.xpose.msra.mxu0 0.0
    %6042 = vmatprep.subr.mxu0 0.0
    %6043 = vmatpush2.xpose.msra.mxu0 0.0
    %6044 = vmatprep.subr.mxu0 0.0
    %6045 = vmatpush2.xpose.msra.mxu0 0.0
    %6046 = vmatprep.subr.mxu0 0.0
    %6047 = vmatpush2.xpose.msra.mxu0 0.0
    %6048 = vmatprep.subr.mxu0 0.0
    %6049 = vmatpush2.xpose.msra.mxu0 0.0
    %6050 = vmatprep.subr.mxu0 0.0
    %6051 = vmatpush2.xpose.msra.mxu0 0.0
    %6052 = vmatprep.subr.mxu0 0.0
    %6053 = vmatpush2.xpose.msra.mxu0 0.0
    %6054 = vmatprep.subr.mxu0 0.0
    %6055 = vmatpush2.xpose.msra.mxu0 0.0
    %6056 = vmatprep.subr.mxu0 0.0
    %6057 = vmatpush2.xpose.msra.mxu0 0.0
    %6058 = vmatprep.mubr.f32.mxu0 0.0
    %6059 = vmatmul.mubr.f32.gmra.mxu0 %v5990
    %v6060 = vpop.f32.mrf.mxu0
    %v6061 = vadd.f32 0.0, %v6060
    %v6062 = vpop.f32.mrf.mxu0
    %6063 = vdwg.mxu0
    %v6064 = vsel %vm344, %v6061, -inf
    %6065 = vmax.xlane.f32.xlu0 %v6064
    %v6066 = vpop.xlane.xlu0 %6065
    %v6067 = vsub.f32 %v6061, %v6066
    %v6068 = vmul.f32 %v6067, 1.442695
    %v6069 = vpow.pop %v6068
    %v6070 = vsel %vm344, %v6069, 0.0
    %6071 = vadd.xlane.f32.xlu0 %v6070
    %v6072 = vpop.xlane.xlu0 %6071
    %v6073 = vrcp.pop %v6072
    %v6074 = vmul.f32 %v6069, %v6073
    %6075 = vrot.lane.b32.xlu0 %v5655, 80
    %v6076 = vpop.permute.xlu0 %6075
    %v6079 = vsel %vm344, %v6074, 0
    %6081 = vmatprep.subr.mxu0 0.0
    %6082 = vmatpush1.msra.mxu0 0.0
    %6083 = vmatprep.subr.mxu0 0.0
    %6084 = vmatpush1.msra.mxu0 0.0
    %6085 = vmatprep.subr.mxu0 0.0
    %6086 = vmatpush1.msra.mxu0 0.0
    %6087 = vmatprep.subr.mxu0 0.0
    %6088 = vmatpush1.msra.mxu0 0.0
    %6089 = vmatprep.subr.mxu0 0.0
    %6090 = vmatpush1.msra.mxu0 0.0
    %6091 = vmatprep.subr.mxu0 0.0
    %6092 = vmatpush1.msra.mxu0 0.0
    %6093 = vmatprep.subr.mxu0 0.0
    %6094 = vmatpush1.msra.mxu0 0.0
    %6095 = vmatprep.subr.mxu0 0.0
    %6096 = vmatpush1.msra.mxu0 0.0
    %6097 = vmatprep.subr.mxu0 0.0
    %6098 = vmatpush1.msra.mxu0 0.0
    %6099 = vmatprep.subr.mxu0 0.0
    %6100 = vmatpush1.msra.mxu0 0.0
    %6101 = vmatprep.subr.mxu0 0.0
    %6102 = vmatpush1.msra.mxu0 0.0
    %6103 = vmatprep.subr.mxu0 0.0
    %6104 = vmatpush1.msra.mxu0 0.0
    %6105 = vmatprep.subr.mxu0 0.0
    %6106 = vmatpush1.msra.mxu0 0.0
    %6107 = vmatprep.subr.mxu0 0.0
    %6108 = vmatpush1.msra.mxu0 0.0
    %6109 = vmatprep.subr.mxu0 0.0
    %6110 = vmatpush1.msra.mxu0 0.0
    %6111 = vmatprep.subr.mxu0 0.0
    %6112 = vmatpush1.msra.mxu0 %v6076
    %6113 = vmatprep.subr.mxu0 0.0
    %6114 = vmatpush2.msra.mxu0 0.0
    %6115 = vmatprep.subr.mxu0 0.0
    %6116 = vmatpush2.msra.mxu0 0.0
    %6117 = vmatprep.subr.mxu0 0.0
    %6118 = vmatpush2.msra.mxu0 0.0
    %6119 = vmatprep.subr.mxu0 0.0
    %6120 = vmatpush2.msra.mxu0 0.0
    %6121 = vmatprep.subr.mxu0 0.0
    %6122 = vmatpush2.msra.mxu0 0.0
    %6123 = vmatprep.subr.mxu0 0.0
    %6124 = vmatpush2.msra.mxu0 0.0
    %6125 = vmatprep.subr.mxu0 0.0
    %6126 = vmatpush2.msra.mxu0 0.0
    %6127 = vmatprep.subr.mxu0 0.0
    %6128 = vmatpush2.msra.mxu0 0.0
    %6129 = vmatprep.subr.mxu0 0.0
    %6130 = vmatpush2.msra.mxu0 0.0
    %6131 = vmatprep.subr.mxu0 0.0
    %6132 = vmatpush2.msra.mxu0 0.0
    %6133 = vmatprep.subr.mxu0 0.0
    %6134 = vmatpush2.msra.mxu0 0.0
    %6135 = vmatprep.subr.mxu0 0.0
    %6136 = vmatpush2.msra.mxu0 0.0
    %6137 = vmatprep.subr.mxu0 0.0
    %6138 = vmatpush2.msra.mxu0 0.0
    %6139 = vmatprep.subr.mxu0 0.0
    %6140 = vmatpush2.msra.mxu0 0.0
    %6141 = vmatprep.subr.mxu0 0.0
    %6142 = vmatpush2.msra.mxu0 0.0
    %6143 = vmatprep.subr.mxu0 0.0
    %6144 = vmatpush2.msra.mxu0 0.0
    %6145 = vmatprep.mubr.f32.mxu0 0.0
    %6146 = vmatmul.mubr.f32.gmra.mxu0 %v6079
    %v6147 = vpop.f32.mrf.mxu0
    %v6148 = vadd.f32 0.0, %v6147
    %v6149 = vpop.f32.mrf.mxu0
    %6150 = vdwg.mxu0
    %6151 = vrot.lane.b32.xlu0 %v5585, 104
    %v6152 = vpop.permute.xlu0 %6151
    %6153 = vrot.lane.b32.xlu0 %v5655, 104
    %v6154 = vpop.permute.xlu0 %6153
    %v6155 = vsel %vm344, %v6152, 0
    %v6157 = vsel %vm344, %v6154, 0
    %6159 = vmatprep.subr.mxu0 0.0
    %6160 = vmatpush1.xpose.msra.mxu0 0.0
    %6161 = vmatprep.subr.mxu0 0.0
    %6162 = vmatpush1.xpose.msra.mxu0 0.0
    %6163 = vmatprep.subr.mxu0 0.0
    %6164 = vmatpush1.xpose.msra.mxu0 0.0
    %6165 = vmatprep.subr.mxu0 0.0
    %6166 = vmatpush1.xpose.msra.mxu0 0.0
    %6167 = vmatprep.subr.mxu0 0.0
    %6168 = vmatpush1.xpose.msra.mxu0 0.0
    %6169 = vmatprep.subr.mxu0 0.0
    %6170 = vmatpush1.xpose.msra.mxu0 0.0
    %6171 = vmatprep.subr.mxu0 0.0
    %6172 = vmatpush1.xpose.msra.mxu0 0.0
    %6173 = vmatprep.subr.mxu0 0.0
    %6174 = vmatpush1.xpose.msra.mxu0 0.0
    %6175 = vmatprep.subr.mxu0 0.0
    %6176 = vmatpush1.xpose.msra.mxu0 0.0
    %6177 = vmatprep.subr.mxu0 0.0
    %6178 = vmatpush1.xpose.msra.mxu0 0.0
    %6179 = vmatprep.subr.mxu0 0.0
    %6180 = vmatpush1.xpose.msra.mxu0 0.0
    %6181 = vmatprep.subr.mxu0 0.0
    %6182 = vmatpush1.xpose.msra.mxu0 0.0
    %6183 = vmatprep.subr.mxu0 0.0
    %6184 = vmatpush1.xpose.msra.mxu0 0.0
    %6185 = vmatprep.subr.mxu0 0.0
    %6186 = vmatpush1.xpose.msra.mxu0 0.0
    %6187 = vmatprep.subr.mxu0 0.0
    %6188 = vmatpush1.xpose.msra.mxu0 0.0
    %6189 = vmatprep.subr.mxu0 0.0
    %6190 = vmatpush1.xpose.msra.mxu0 %v6157
    %6191 = vmatprep.subr.mxu0 0.0
    %6192 = vmatpush2.xpose.msra.mxu0 0.0
    %6193 = vmatprep.subr.mxu0 0.0
    %6194 = vmatpush2.xpose.msra.mxu0 0.0
    %6195 = vmatprep.subr.mxu0 0.0
    %6196 = vmatpush2.xpose.msra.mxu0 0.0
    %6197 = vmatprep.subr.mxu0 0.0
    %6198 = vmatpush2.xpose.msra.mxu0 0.0
    %6199 = vmatprep.subr.mxu0 0.0
    %6200 = vmatpush2.xpose.msra.mxu0 0.0
    %6201 = vmatprep.subr.mxu0 0.0
    %6202 = vmatpush2.xpose.msra.mxu0 0.0
    %6203 = vmatprep.subr.mxu0 0.0
    %6204 = vmatpush2.xpose.msra.mxu0 0.0
    %6205 = vmatprep.subr.mxu0 0.0
    %6206 = vmatpush2.xpose.msra.mxu0 0.0
    %6207 = vmatprep.subr.mxu0 0.0
    %6208 = vmatpush2.xpose.msra.mxu0 0.0
    %6209 = vmatprep.subr.mxu0 0.0
    %6210 = vmatpush2.xpose.msra.mxu0 0.0
    %6211 = vmatprep.subr.mxu0 0.0
    %6212 = vmatpush2.xpose.msra.mxu0 0.0
    %6213 = vmatprep.subr.mxu0 0.0
    %6214 = vmatpush2.xpose.msra.mxu0 0.0
    %6215 = vmatprep.subr.mxu0 0.0
    %6216 = vmatpush2.xpose.msra.mxu0 0.0
    %6217 = vmatprep.subr.mxu0 0.0
    %6218 = vmatpush2.xpose.msra.mxu0 0.0
    %6219 = vmatprep.subr.mxu0 0.0
    %6220 = vmatpush2.xpose.msra.mxu0 0.0
    %6221 = vmatprep.subr.mxu0 0.0
    %6222 = vmatpush2.xpose.msra.mxu0 0.0
    %6223 = vmatprep.mubr.f32.mxu0 0.0
    %6224 = vmatmul.mubr.f32.gmra.mxu0 %v6155
    %v6225 = vpop.f32.mrf.mxu0
    %v6226 = vadd.f32 0.0, %v6225
    %v6227 = vpop.f32.mrf.mxu0
    %6228 = vdwg.mxu0
    %v6229 = vsel %vm344, %v6226, -inf
    %6230 = vmax.xlane.f32.xlu0 %v6229
    %v6231 = vpop.xlane.xlu0 %6230
    %v6232 = vsub.f32 %v6226, %v6231
    %v6233 = vmul.f32 %v6232, 1.442695
    %v6234 = vpow.pop %v6233
    %v6235 = vsel %vm344, %v6234, 0.0
    %6236 = vadd.xlane.f32.xlu0 %v6235
    %v6237 = vpop.xlane.xlu0 %6236
    %v6238 = vrcp.pop %v6237
    %v6239 = vmul.f32 %v6234, %v6238
    %6240 = vrot.lane.b32.xlu0 %v5655, 72
    %v6241 = vpop.permute.xlu0 %6240
    %v6244 = vsel %vm344, %v6239, 0
    %6246 = vmatprep.subr.mxu0 0.0
    %6247 = vmatpush1.msra.mxu0 0.0
    %6248 = vmatprep.subr.mxu0 0.0
    %6249 = vmatpush1.msra.mxu0 0.0
    %6250 = vmatprep.subr.mxu0 0.0
    %6251 = vmatpush1.msra.mxu0 0.0
    %6252 = vmatprep.subr.mxu0 0.0
    %6253 = vmatpush1.msra.mxu0 0.0
    %6254 = vmatprep.subr.mxu0 0.0
    %6255 = vmatpush1.msra.mxu0 0.0
    %6256 = vmatprep.subr.mxu0 0.0
    %6257 = vmatpush1.msra.mxu0 0.0
    %6258 = vmatprep.subr.mxu0 0.0
    %6259 = vmatpush1.msra.mxu0 0.0
    %6260 = vmatprep.subr.mxu0 0.0
    %6261 = vmatpush1.msra.mxu0 0.0
    %6262 = vmatprep.subr.mxu0 0.0
    %6263 = vmatpush1.msra.mxu0 0.0
    %6264 = vmatprep.subr.mxu0 0.0
    %6265 = vmatpush1.msra.mxu0 0.0
    %6266 = vmatprep.subr.mxu0 0.0
    %6267 = vmatpush1.msra.mxu0 0.0
    %6268 = vmatprep.subr.mxu0 0.0
    %6269 = vmatpush1.msra.mxu0 0.0
    %6270 = vmatprep.subr.mxu0 0.0
    %6271 = vmatpush1.msra.mxu0 0.0
    %6272 = vmatprep.subr.mxu0 0.0
    %6273 = vmatpush1.msra.mxu0 0.0
    %6274 = vmatprep.subr.mxu0 0.0
    %6275 = vmatpush1.msra.mxu0 0.0
    %6276 = vmatprep.subr.mxu0 0.0
    %6277 = vmatpush1.msra.mxu0 %v6241
    %6278 = vmatprep.subr.mxu0 0.0
    %6279 = vmatpush2.msra.mxu0 0.0
    %6280 = vmatprep.subr.mxu0 0.0
    %6281 = vmatpush2.msra.mxu0 0.0
    %6282 = vmatprep.subr.mxu0 0.0
    %6283 = vmatpush2.msra.mxu0 0.0
    %6284 = vmatprep.subr.mxu0 0.0
    %6285 = vmatpush2.msra.mxu0 0.0
    %6286 = vmatprep.subr.mxu0 0.0
    %6287 = vmatpush2.msra.mxu0 0.0
    %6288 = vmatprep.subr.mxu0 0.0
    %6289 = vmatpush2.msra.mxu0 0.0
    %6290 = vmatprep.subr.mxu0 0.0
    %6291 = vmatpush2.msra.mxu0 0.0
    %6292 = vmatprep.subr.mxu0 0.0
    %6293 = vmatpush2.msra.mxu0 0.0
    %6294 = vmatprep.subr.mxu0 0.0
    %6295 = vmatpush2.msra.mxu0 0.0
    %6296 = vmatprep.subr.mxu0 0.0
    %6297 = vmatpush2.msra.mxu0 0.0
    %6298 = vmatprep.subr.mxu0 0.0
    %6299 = vmatpush2.msra.mxu0 0.0
    %6300 = vmatprep.subr.mxu0 0.0
    %6301 = vmatpush2.msra.mxu0 0.0
    %6302 = vmatprep.subr.mxu0 0.0
    %6303 = vmatpush2.msra.mxu0 0.0
    %6304 = vmatprep.subr.mxu0 0.0
    %6305 = vmatpush2.msra.mxu0 0.0
    %6306 = vmatprep.subr.mxu0 0.0
    %6307 = vmatpush2.msra.mxu0 0.0
    %6308 = vmatprep.subr.mxu0 0.0
    %6309 = vmatpush2.msra.mxu0 0.0
    %6310 = vmatprep.mubr.f32.mxu0 0.0
    %6311 = vmatmul.mubr.f32.gmra.mxu0 %v6244
    %v6312 = vpop.f32.mrf.mxu0
    %v6313 = vadd.f32 0.0, %v6312
    %v6314 = vpop.f32.mrf.mxu0
    %6315 = vdwg.mxu0
    %6317 = vrot.lane.b32.xlu0 %v5983, 8
    %v6318 = vpop.permute.xlu0 %6317
    %6321 = vrot.lane.b32.xlu0 %v6148, 16
    %v6322 = vpop.permute.xlu0 %6321
    %6325 = vrot.lane.b32.xlu0 %v6313, 24
    %v6326 = vpop.permute.xlu0 %6325
    %v6328 = vsel %vm344, %v5818, %v6318
    %v6329 = vsel %vm1016, %v6328, %v6322
    %v6330 = vsel %vm1018, %v6329, %v6326
    %v6332 = vsel %vm197, %v6330, 0
    %6334 = vmatprep.subr.mxu0 0.0
    %6335 = vmatpush1.msra.mxu0 0.0
    %6336 = vmatprep.subr.mxu0 0.0
    %6337 = vmatpush1.msra.mxu0 0.0
    %6338 = vmatprep.subr.mxu0 0.0
    %6339 = vmatpush1.msra.mxu0 0.0
    %6340 = vmatprep.subr.mxu0 0.0
    %6341 = vmatpush1.msra.mxu0 0.0
    %6342 = vmatprep.subr.mxu0 0.0
    %6343 = vmatpush1.msra.mxu0 0.0
    %6344 = vmatprep.subr.mxu0 0.0
    %6345 = vmatpush1.msra.mxu0 0.0
    %6346 = vmatprep.subr.mxu0 0.0
    %6347 = vmatpush1.msra.mxu0 0.0
    %6348 = vmatprep.subr.mxu0 0.0
    %6349 = vmatpush1.msra.mxu0 0.0
    %6350 = vmatprep.subr.mxu0 0.0
    %6351 = vmatpush1.msra.mxu0 0.0
    %6352 = vmatprep.subr.mxu0 0.0
    %6353 = vmatpush1.msra.mxu0 0.0
    %6354 = vmatprep.subr.mxu0 0.0
    %6355 = vmatpush1.msra.mxu0 0.0
    %6356 = vmatprep.subr.mxu0 0.0
    %6357 = vmatpush1.msra.mxu0 0.0
    %6358 = vmatprep.subr.mxu0 0.0
    %6359 = vmatpush1.msra.mxu0 %v100
    %6360 = vmatprep.subr.mxu0 0.0
    %6361 = vmatpush1.msra.mxu0 %v99
    %6362 = vmatprep.subr.mxu0 0.0
    %6363 = vmatpush1.msra.mxu0 %v98
    %6364 = vmatprep.subr.mxu0 0.0
    %6365 = vmatpush1.msra.mxu0 %v97
    %6366 = vmatprep.subr.mxu0 0.0
    %6367 = vmatpush2.msra.mxu0 0.0
    %6368 = vmatprep.subr.mxu0 0.0
    %6369 = vmatpush2.msra.mxu0 0.0
    %6370 = vmatprep.subr.mxu0 0.0
    %6371 = vmatpush2.msra.mxu0 0.0
    %6372 = vmatprep.subr.mxu0 0.0
    %6373 = vmatpush2.msra.mxu0 0.0
    %6374 = vmatprep.subr.mxu0 0.0
    %6375 = vmatpush2.msra.mxu0 0.0
    %6376 = vmatprep.subr.mxu0 0.0
    %6377 = vmatpush2.msra.mxu0 0.0
    %6378 = vmatprep.subr.mxu0 0.0
    %6379 = vmatpush2.msra.mxu0 0.0
    %6380 = vmatprep.subr.mxu0 0.0
    %6381 = vmatpush2.msra.mxu0 0.0
    %6382 = vmatprep.subr.mxu0 0.0
    %6383 = vmatpush2.msra.mxu0 0.0
    %6384 = vmatprep.subr.mxu0 0.0
    %6385 = vmatpush2.msra.mxu0 0.0
    %6386 = vmatprep.subr.mxu0 0.0
    %6387 = vmatpush2.msra.mxu0 0.0
    %6388 = vmatprep.subr.mxu0 0.0
    %6389 = vmatpush2.msra.mxu0 0.0
    %6390 = vmatprep.subr.mxu0 0.0
    %6391 = vmatpush2.msra.mxu0 0.0
    %6392 = vmatprep.subr.mxu0 0.0
    %6393 = vmatpush2.msra.mxu0 0.0
    %6394 = vmatprep.subr.mxu0 0.0
    %6395 = vmatpush2.msra.mxu0 0.0
    %6396 = vmatprep.subr.mxu0 0.0
    %6397 = vmatpush2.msra.mxu0 0.0
    %6398 = vmatprep.mubr.f32.mxu0 0.0
    %6399 = vmatmul.mubr.f32.gmra.mxu0 %v6332
    %v6400 = vpop.f32.mrf.mxu0
    %v6401 = vadd.f32 %v2443, %v6400
    %v6402 = vpop.f32.mrf.mxu0
    %6403 = vdwg.mxu0
    %v6405 = vrot.slane %v6401, 1
    %v6406 = vrot.slane %v6401, 2
    %v6407 = vrot.slane %v6401, 3
    %v6408 = vrot.slane %v6401, 4
    %v6409 = vrot.slane %v6401, 5
    %v6410 = vrot.slane %v6401, 6
    %v6411 = vrot.slane %v6401, 7
    %v6420 = vadd.f32 %v5486, %v6401
    %v6421 = vadd.f32 %v5487, %v6405
    %v6422 = vadd.f32 %v5488, %v6406
    %v6423 = vadd.f32 %v5489, %v6407
    %v6424 = vadd.f32 %v5490, %v6408
    %v6425 = vadd.f32 %v5491, %v6409
    %v6426 = vadd.f32 %v5492, %v6410
    %v6427 = vadd.f32 %v5493, %v6411
    %v6436 = vrot.slane %v6421, 7
    %v6437 = vsel %vm177, %v6436, %v6420
    %v6438 = vrot.slane %v6422, 6
    %v6439 = vsel %vm180, %v6438, %v6437
    %v6440 = vrot.slane %v6423, 5
    %v6441 = vsel %vm183, %v6440, %v6439
    %v6442 = vrot.slane %v6424, 4
    %v6443 = vsel %vm186, %v6442, %v6441
    %v6444 = vrot.slane %v6425, 3
    %v6445 = vsel %vm189, %v6444, %v6443
    %v6446 = vrot.slane %v6426, 2
    %v6447 = vsel %vm192, %v6446, %v6445
    %v6448 = vrot.slane %v6427, 1
    %v6449 = vsel %vm195, %v6448, %v6447
    %v6451 = vsel %vm197, %v6449, 0.0
    %6452 = vadd.xlane.f32.xlu0 %v6451
    %v6453 = vpop.xlane.xlu0 %6452
    %v6454 = vmul.f32 %v6453, %v1147
    %v6456 = vrot.slane %v6454, 1
    %v6457 = vrot.slane %v6454, 2
    %v6458 = vrot.slane %v6454, 3
    %v6459 = vrot.slane %v6454, 4
    %v6460 = vrot.slane %v6454, 5
    %v6461 = vrot.slane %v6454, 6
    %v6462 = vrot.slane %v6454, 7
    %v6471 = vsub.f32 %v6420, %v6454
    %v6472 = vsub.f32 %v6421, %v6456
    %v6473 = vsub.f32 %v6422, %v6457
    %v6474 = vsub.f32 %v6423, %v6458
    %v6475 = vsub.f32 %v6424, %v6459
    %v6476 = vsub.f32 %v6425, %v6460
    %v6477 = vsub.f32 %v6426, %v6461
    %v6478 = vsub.f32 %v6427, %v6462
    %v6479 = vmul.f32 %v6471, %v6471
    %v6480 = vmul.f32 %v6472, %v6472
    %v6481 = vmul.f32 %v6473, %v6473
    %v6482 = vmul.f32 %v6474, %v6474
    %v6483 = vmul.f32 %v6475, %v6475
    %v6484 = vmul.f32 %v6476, %v6476
    %v6485 = vmul.f32 %v6477, %v6477
    %v6486 = vmul.f32 %v6478, %v6478
    %v6495 = vrot.slane %v6480, 7
    %v6496 = vsel %vm177, %v6495, %v6479
    %v6497 = vrot.slane %v6481, 6
    %v6498 = vsel %vm180, %v6497, %v6496
    %v6499 = vrot.slane %v6482, 5
    %v6500 = vsel %vm183, %v6499, %v6498
    %v6501 = vrot.slane %v6483, 4
    %v6502 = vsel %vm186, %v6501, %v6500
    %v6503 = vrot.slane %v6484, 3
    %v6504 = vsel %vm189, %v6503, %v6502
    %v6505 = vrot.slane %v6485, 2
    %v6506 = vsel %vm192, %v6505, %v6504
    %v6507 = vrot.slane %v6486, 1
    %v6508 = vsel %vm195, %v6507, %v6506
    %v6510 = vsel %vm197, %v6508, 0.0
    %6511 = vadd.xlane.f32.xlu0 %v6510
    %v6512 = vpop.xlane.xlu0 %6511
    %v6513 = vmul.f32 %v6512, %v1147
    %v6514 = vadd.f32 %v6513, 1e-05
    %v6515 = vrsqrt.pop %v6514
    %v6517 = vrot.slane %v6515, 1
    %v6518 = vrot.slane %v6515, 2
    %v6519 = vrot.slane %v6515, 3
    %v6520 = vrot.slane %v6515, 4
    %v6521 = vrot.slane %v6515, 5
    %v6522 = vrot.slane %v6515, 6
    %v6523 = vrot.slane %v6515, 7
    %v6532 = vmul.f32 %v6471, %v6515
    %v6533 = vmul.f32 %v6472, %v6517
    %v6534 = vmul.f32 %v6473, %v6518
    %v6535 = vmul.f32 %v6474, %v6519
    %v6536 = vmul.f32 %v6475, %v6520
    %v6537 = vmul.f32 %v6476, %v6521
    %v6538 = vmul.f32 %v6477, %v6522
    %v6539 = vmul.f32 %v6478, %v6523
    %v6540 = vmul.f32 %v6532, %v2656
    %v6541 = vmul.f32 %v6533, %v2656
    %v6542 = vmul.f32 %v6534, %v2656
    %v6543 = vmul.f32 %v6535, %v2656
    %v6544 = vmul.f32 %v6536, %v2656
    %v6545 = vmul.f32 %v6537, %v2656
    %v6546 = vmul.f32 %v6538, %v2656
    %v6547 = vmul.f32 %v6539, %v2656
    %v6548 = vadd.f32 %v6540, %v2668
    %v6549 = vadd.f32 %v6541, %v2668
    %v6550 = vadd.f32 %v6542, %v2668
    %v6551 = vadd.f32 %v6543, %v2668
    %v6552 = vadd.f32 %v6544, %v2668
    %v6553 = vadd.f32 %v6545, %v2668
    %v6554 = vadd.f32 %v6546, %v2668
    %v6555 = vadd.f32 %v6547, %v2668
    %v6564 = vrot.slane %v6549, 7
    %v6565 = vsel %vm177, %v6564, %v6548
    %v6566 = vrot.slane %v6550, 6
    %v6567 = vsel %vm180, %v6566, %v6565
    %v6568 = vrot.slane %v6551, 5
    %v6569 = vsel %vm183, %v6568, %v6567
    %v6570 = vrot.slane %v6552, 4
    %v6571 = vsel %vm186, %v6570, %v6569
    %v6572 = vrot.slane %v6553, 3
    %v6573 = vsel %vm189, %v6572, %v6571
    %v6574 = vrot.slane %v6554, 2
    %v6575 = vsel %vm192, %v6574, %v6573
    %v6576 = vrot.slane %v6555, 1
    %v6577 = vsel %vm195, %v6576, %v6575
    %v6578 = vsel %vm197, %v6577, 0
    %6580 = vmatprep.subr.mxu0 0.0
    %6581 = vmatpush1.msra.mxu0 0.0
    %6582 = vmatprep.subr.mxu0 0.0
    %6583 = vmatpush1.msra.mxu0 0.0
    %6584 = vmatprep.subr.mxu0 0.0
    %6585 = vmatpush1.msra.mxu0 0.0
    %6586 = vmatprep.subr.mxu0 0.0
    %6587 = vmatpush1.msra.mxu0 0.0
    %6588 = vmatprep.subr.mxu0 0.0
    %6589 = vmatpush1.msra.mxu0 0.0
    %6590 = vmatprep.subr.mxu0 0.0
    %6591 = vmatpush1.msra.mxu0 0.0
    %6592 = vmatprep.subr.mxu0 0.0
    %6593 = vmatpush1.msra.mxu0 0.0
    %6594 = vmatprep.subr.mxu0 0.0
    %6595 = vmatpush1.msra.mxu0 0.0
    %6596 = vmatprep.subr.mxu0 0.0
    %6597 = vmatpush1.msra.mxu0 0.0
    %6598 = vmatprep.subr.mxu0 0.0
    %6599 = vmatpush1.msra.mxu0 0.0
    %6600 = vmatprep.subr.mxu0 0.0
    %6601 = vmatpush1.msra.mxu0 0.0
    %6602 = vmatprep.subr.mxu0 0.0
    %6603 = vmatpush1.msra.mxu0 0.0
    %6604 = vmatprep.subr.mxu0 0.0
    %6605 = vmatpush1.msra.mxu0 %v104
    %6606 = vmatprep.subr.mxu0 0.0
    %6607 = vmatpush1.msra.mxu0 %v103
    %6608 = vmatprep.subr.mxu0 0.0
    %6609 = vmatpush1.msra.mxu0 %v102
    %6610 = vmatprep.subr.mxu0 0.0
    %6611 = vmatpush1.msra.mxu0 %v101
    %6612 = vmatprep.subr.mxu0 0.0
    %6613 = vmatpush2.msra.mxu0 0.0
    %6614 = vmatprep.subr.mxu0 0.0
    %6615 = vmatpush2.msra.mxu0 0.0
    %6616 = vmatprep.subr.mxu0 0.0
    %6617 = vmatpush2.msra.mxu0 0.0
    %6618 = vmatprep.subr.mxu0 0.0
    %6619 = vmatpush2.msra.mxu0 0.0
    %6620 = vmatprep.subr.mxu0 0.0
    %6621 = vmatpush2.msra.mxu0 0.0
    %6622 = vmatprep.subr.mxu0 0.0
    %6623 = vmatpush2.msra.mxu0 0.0
    %6624 = vmatprep.subr.mxu0 0.0
    %6625 = vmatpush2.msra.mxu0 0.0
    %6626 = vmatprep.subr.mxu0 0.0
    %6627 = vmatpush2.msra.mxu0 0.0
    %6628 = vmatprep.subr.mxu0 0.0
    %6629 = vmatpush2.msra.mxu0 0.0
    %6630 = vmatprep.subr.mxu0 0.0
    %6631 = vmatpush2.msra.mxu0 0.0
    %6632 = vmatprep.subr.mxu0 0.0
    %6633 = vmatpush2.msra.mxu0 0.0
    %6634 = vmatprep.subr.mxu0 0.0
    %6635 = vmatpush2.msra.mxu0 0.0
    %6636 = vmatprep.subr.mxu0 0.0
    %6637 = vmatpush2.msra.mxu0 0.0
    %6638 = vmatprep.subr.mxu0 0.0
    %6639 = vmatpush2.msra.mxu0 0.0
    %6640 = vmatprep.subr.mxu0 0.0
    %6641 = vmatpush2.msra.mxu0 0.0
    %6642 = vmatprep.subr.mxu0 0.0
    %6643 = vmatpush2.msra.mxu0 0.0
    %6644 = vmatprep.mubr.f32.mxu0 0.0
    %6645 = vmatmul.mubr.f32.gmra.mxu0 %v6578
    %v6646 = vpop.f32.mrf.mxu0
    %v6647 = vadd.f32 %v2680, %v6646
    %v6648 = vpop.f32.mrf.mxu0
    %6649 = vdwg.mxu0
    %6650 = vmatprep.subr.mxu0 0.0
    %6651 = vmatpush1.msra.mxu0 0.0
    %6652 = vmatprep.subr.mxu0 0.0
    %6653 = vmatpush1.msra.mxu0 0.0
    %6654 = vmatprep.subr.mxu0 0.0
    %6655 = vmatpush1.msra.mxu0 0.0
    %6656 = vmatprep.subr.mxu0 0.0
    %6657 = vmatpush1.msra.mxu0 0.0
    %6658 = vmatprep.subr.mxu0 0.0
    %6659 = vmatpush1.msra.mxu0 0.0
    %6660 = vmatprep.subr.mxu0 0.0
    %6661 = vmatpush1.msra.mxu0 0.0
    %6662 = vmatprep.subr.mxu0 0.0
    %6663 = vmatpush1.msra.mxu0 0.0
    %6664 = vmatprep.subr.mxu0 0.0
    %6665 = vmatpush1.msra.mxu0 0.0
    %6666 = vmatprep.subr.mxu0 0.0
    %6667 = vmatpush1.msra.mxu0 0.0
    %6668 = vmatprep.subr.mxu0 0.0
    %6669 = vmatpush1.msra.mxu0 0.0
    %6670 = vmatprep.subr.mxu0 0.0
    %6671 = vmatpush1.msra.mxu0 0.0
    %6672 = vmatprep.subr.mxu0 0.0
    %6673 = vmatpush1.msra.mxu0 0.0
    %6674 = vmatprep.subr.mxu0 0.0
    %6675 = vmatpush1.msra.mxu0 %v108
    %6676 = vmatprep.subr.mxu0 0.0
    %6677 = vmatpush1.msra.mxu0 %v107
    %6678 = vmatprep.subr.mxu0 0.0
    %6679 = vmatpush1.msra.mxu0 %v106
    %6680 = vmatprep.subr.mxu0 0.0
    %6681 = vmatpush1.msra.mxu0 %v105
    %6682 = vmatprep.subr.mxu0 0.0
    %6683 = vmatpush2.msra.mxu0 0.0
    %6684 = vmatprep.subr.mxu0 0.0
    %6685 = vmatpush2.msra.mxu0 0.0
    %6686 = vmatprep.subr.mxu0 0.0
    %6687 = vmatpush2.msra.mxu0 0.0
    %6688 = vmatprep.subr.mxu0 0.0
    %6689 = vmatpush2.msra.mxu0 0.0
    %6690 = vmatprep.subr.mxu0 0.0
    %6691 = vmatpush2.msra.mxu0 0.0
    %6692 = vmatprep.subr.mxu0 0.0
    %6693 = vmatpush2.msra.mxu0 0.0
    %6694 = vmatprep.subr.mxu0 0.0
    %6695 = vmatpush2.msra.mxu0 0.0
    %6696 = vmatprep.subr.mxu0 0.0
    %6697 = vmatpush2.msra.mxu0 0.0
    %6698 = vmatprep.subr.mxu0 0.0
    %6699 = vmatpush2.msra.mxu0 0.0
    %6700 = vmatprep.subr.mxu0 0.0
    %6701 = vmatpush2.msra.mxu0 0.0
    %6702 = vmatprep.subr.mxu0 0.0
    %6703 = vmatpush2.msra.mxu0 0.0
    %6704 = vmatprep.subr.mxu0 0.0
    %6705 = vmatpush2.msra.mxu0 0.0
    %6706 = vmatprep.subr.mxu0 0.0
    %6707 = vmatpush2.msra.mxu0 0.0
    %6708 = vmatprep.subr.mxu0 0.0
    %6709 = vmatpush2.msra.mxu0 0.0
    %6710 = vmatprep.subr.mxu0 0.0
    %6711 = vmatpush2.msra.mxu0 0.0
    %6712 = vmatprep.subr.mxu0 0.0
    %6713 = vmatpush2.msra.mxu0 0.0
    %6714 = vmatprep.mubr.f32.mxu0 0.0
    %6715 = vmatmul.mubr.f32.gmra.mxu0 %v5516
    %v6716 = vpop.f32.mrf.mxu0
    %v6717 = vadd.f32 %v2778, %v6716
    %v6718 = vpop.f32.mrf.mxu0
    %6719 = vdwg.mxu0
    %v6721 = vsel %vm344, %v6647, 0
    %v6724 = vsel %vm344, %v6717, 0
    %6726 = vmatprep.subr.mxu0 0.0
    %6727 = vmatpush1.xpose.msra.mxu0 0.0
    %6728 = vmatprep.subr.mxu0 0.0
    %6729 = vmatpush1.xpose.msra.mxu0 0.0
    %6730 = vmatprep.subr.mxu0 0.0
    %6731 = vmatpush1.xpose.msra.mxu0 0.0
    %6732 = vmatprep.subr.mxu0 0.0
    %6733 = vmatpush1.xpose.msra.mxu0 0.0
    %6734 = vmatprep.subr.mxu0 0.0
    %6735 = vmatpush1.xpose.msra.mxu0 0.0
    %6736 = vmatprep.subr.mxu0 0.0
    %6737 = vmatpush1.xpose.msra.mxu0 0.0
    %6738 = vmatprep.subr.mxu0 0.0
    %6739 = vmatpush1.xpose.msra.mxu0 0.0
    %6740 = vmatprep.subr.mxu0 0.0
    %6741 = vmatpush1.xpose.msra.mxu0 0.0
    %6742 = vmatprep.subr.mxu0 0.0
    %6743 = vmatpush1.xpose.msra.mxu0 0.0
    %6744 = vmatprep.subr.mxu0 0.0
    %6745 = vmatpush1.xpose.msra.mxu0 0.0
    %6746 = vmatprep.subr.mxu0 0.0
    %6747 = vmatpush1.xpose.msra.mxu0 0.0
    %6748 = vmatprep.subr.mxu0 0.0
    %6749 = vmatpush1.xpose.msra.mxu0 0.0
    %6750 = vmatprep.subr.mxu0 0.0
    %6751 = vmatpush1.xpose.msra.mxu0 0.0
    %6752 = vmatprep.subr.mxu0 0.0
    %6753 = vmatpush1.xpose.msra.mxu0 0.0
    %6754 = vmatprep.subr.mxu0 0.0
    %6755 = vmatpush1.xpose.msra.mxu0 0.0
    %6756 = vmatprep.subr.mxu0 0.0
    %6757 = vmatpush1.xpose.msra.mxu0 %v6724
    %6758 = vmatprep.subr.mxu0 0.0
    %6759 = vmatpush2.xpose.msra.mxu0 0.0
    %6760 = vmatprep.subr.mxu0 0.0
    %6761 = vmatpush2.xpose.msra.mxu0 0.0
    %6762 = vmatprep.subr.mxu0 0.0
    %6763 = vmatpush2.xpose.msra.mxu0 0.0
    %6764 = vmatprep.subr.mxu0 0.0
    %6765 = vmatpush2.xpose.msra.mxu0 0.0
    %6766 = vmatprep.subr.mxu0 0.0
    %6767 = vmatpush2.xpose.msra.mxu0 0.0
    %6768 = vmatprep.subr.mxu0 0.0
    %6769 = vmatpush2.xpose.msra.mxu0 0.0
    %6770 = vmatprep.subr.mxu0 0.0
    %6771 = vmatpush2.xpose.msra.mxu0 0.0
    %6772 = vmatprep.subr.mxu0 0.0
    %6773 = vmatpush2.xpose.msra.mxu0 0.0
    %6774 = vmatprep.subr.mxu0 0.0
    %6775 = vmatpush2.xpose.msra.mxu0 0.0
    %6776 = vmatprep.subr.mxu0 0.0
    %6777 = vmatpush2.xpose.msra.mxu0 0.0
    %6778 = vmatprep.subr.mxu0 0.0
    %6779 = vmatpush2.xpose.msra.mxu0 0.0
    %6780 = vmatprep.subr.mxu0 0.0
    %6781 = vmatpush2.xpose.msra.mxu0 0.0
    %6782 = vmatprep.subr.mxu0 0.0
    %6783 = vmatpush2.xpose.msra.mxu0 0.0
    %6784 = vmatprep.subr.mxu0 0.0
    %6785 = vmatpush2.xpose.msra.mxu0 0.0
    %6786 = vmatprep.subr.mxu0 0.0
    %6787 = vmatpush2.xpose.msra.mxu0 0.0
    %6788 = vmatprep.subr.mxu0 0.0
    %6789 = vmatpush2.xpose.msra.mxu0 0.0
    %6790 = vmatprep.mubr.f32.mxu0 0.0
    %6791 = vmatmul.mubr.f32.gmra.mxu0 %v6721
    %v6792 = vpop.f32.mrf.mxu0
    %v6793 = vadd.f32 0.0, %v6792
    %v6794 = vpop.f32.mrf.mxu0
    %6795 = vdwg.mxu0
    %v6796 = vsel %vm344, %v6793, -inf
    %6797 = vmax.xlane.f32.xlu0 %v6796
    %v6798 = vpop.xlane.xlu0 %6797
    %v6799 = vsub.f32 %v6793, %v6798
    %v6800 = vmul.f32 %v6799, 1.442695
    %v6801 = vpow.pop %v6800
    %v6802 = vsel %vm344, %v6801, 0.0
    %6803 = vadd.xlane.f32.xlu0 %v6802
    %v6804 = vpop.xlane.xlu0 %6803
    %v6805 = vrcp.pop %v6804
    %v6806 = vmul.f32 %v6801, %v6805
    %6807 = vrot.lane.b32.xlu0 %v6717, 96
    %v6808 = vpop.permute.xlu0 %6807
    %v6811 = vsel %vm344, %v6806, 0
    %6813 = vmatprep.subr.mxu0 0.0
    %6814 = vmatpush1.msra.mxu0 0.0
    %6815 = vmatprep.subr.mxu0 0.0
    %6816 = vmatpush1.msra.mxu0 0.0
    %6817 = vmatprep.subr.mxu0 0.0
    %6818 = vmatpush1.msra.mxu0 0.0
    %6819 = vmatprep.subr.mxu0 0.0
    %6820 = vmatpush1.msra.mxu0 0.0
    %6821 = vmatprep.subr.mxu0 0.0
    %6822 = vmatpush1.msra.mxu0 0.0
    %6823 = vmatprep.subr.mxu0 0.0
    %6824 = vmatpush1.msra.mxu0 0.0
    %6825 = vmatprep.subr.mxu0 0.0
    %6826 = vmatpush1.msra.mxu0 0.0
    %6827 = vmatprep.subr.mxu0 0.0
    %6828 = vmatpush1.msra.mxu0 0.0
    %6829 = vmatprep.subr.mxu0 0.0
    %6830 = vmatpush1.msra.mxu0 0.0
    %6831 = vmatprep.subr.mxu0 0.0
    %6832 = vmatpush1.msra.mxu0 0.0
    %6833 = vmatprep.subr.mxu0 0.0
    %6834 = vmatpush1.msra.mxu0 0.0
    %6835 = vmatprep.subr.mxu0 0.0
    %6836 = vmatpush1.msra.mxu0 0.0
    %6837 = vmatprep.subr.mxu0 0.0
    %6838 = vmatpush1.msra.mxu0 0.0
    %6839 = vmatprep.subr.mxu0 0.0
    %6840 = vmatpush1.msra.mxu0 0.0
    %6841 = vmatprep.subr.mxu0 0.0
    %6842 = vmatpush1.msra.mxu0 0.0
    %6843 = vmatprep.subr.mxu0 0.0
    %6844 = vmatpush1.msra.mxu0 %v6808
    %6845 = vmatprep.subr.mxu0 0.0
    %6846 = vmatpush2.msra.mxu0 0.0
    %6847 = vmatprep.subr.mxu0 0.0
    %6848 = vmatpush2.msra.mxu0 0.0
    %6849 = vmatprep.subr.mxu0 0.0
    %6850 = vmatpush2.msra.mxu0 0.0
    %6851 = vmatprep.subr.mxu0 0.0
    %6852 = vmatpush2.msra.mxu0 0.0
    %6853 = vmatprep.subr.mxu0 0.0
    %6854 = vmatpush2.msra.mxu0 0.0
    %6855 = vmatprep.subr.mxu0 0.0
    %6856 = vmatpush2.msra.mxu0 0.0
    %6857 = vmatprep.subr.mxu0 0.0
    %6858 = vmatpush2.msra.mxu0 0.0
    %6859 = vmatprep.subr.mxu0 0.0
    %6860 = vmatpush2.msra.mxu0 0.0
    %6861 = vmatprep.subr.mxu0 0.0
    %6862 = vmatpush2.msra.mxu0 0.0
    %6863 = vmatprep.subr.mxu0 0.0
    %6864 = vmatpush2.msra.mxu0 0.0
    %6865 = vmatprep.subr.mxu0 0.0
    %6866 = vmatpush2.msra.mxu0 0.0
    %6867 = vmatprep.subr.mxu0 0.0
    %6868 = vmatpush2.msra.mxu0 0.0
    %6869 = vmatprep.subr.mxu0 0.0
    %6870 = vmatpush2.msra.mxu0 0.0
    %6871 = vmatprep.subr.mxu0 0.0
    %6872 = vmatpush2.msra.mxu0 0.0
    %6873 = vmatprep.subr.mxu0 0.0
    %6874 = vmatpush2.msra.mxu0 0.0
    %6875 = vmatprep.subr.mxu0 0.0
    %6876 = vmatpush2.msra.mxu0 0.0
    %6877 = vmatprep.mubr.f32.mxu0 0.0
    %6878 = vmatmul.mubr.f32.gmra.mxu0 %v6811
    %v6879 = vpop.f32.mrf.mxu0
    %v6880 = vadd.f32 0.0, %v6879
    %v6881 = vpop.f32.mrf.mxu0
    %6882 = vdwg.mxu0
    %6883 = vrot.lane.b32.xlu0 %v6647, 120
    %v6884 = vpop.permute.xlu0 %6883
    %6885 = vrot.lane.b32.xlu0 %v6717, 120
    %v6886 = vpop.permute.xlu0 %6885
    %v6887 = vsel %vm344, %v6884, 0
    %v6889 = vsel %vm344, %v6886, 0
    %6891 = vmatprep.subr.mxu0 0.0
    %6892 = vmatpush1.xpose.msra.mxu0 0.0
    %6893 = vmatprep.subr.mxu0 0.0
    %6894 = vmatpush1.xpose.msra.mxu0 0.0
    %6895 = vmatprep.subr.mxu0 0.0
    %6896 = vmatpush1.xpose.msra.mxu0 0.0
    %6897 = vmatprep.subr.mxu0 0.0
    %6898 = vmatpush1.xpose.msra.mxu0 0.0
    %6899 = vmatprep.subr.mxu0 0.0
    %6900 = vmatpush1.xpose.msra.mxu0 0.0
    %6901 = vmatprep.subr.mxu0 0.0
    %6902 = vmatpush1.xpose.msra.mxu0 0.0
    %6903 = vmatprep.subr.mxu0 0.0
    %6904 = vmatpush1.xpose.msra.mxu0 0.0
    %6905 = vmatprep.subr.mxu0 0.0
    %6906 = vmatpush1.xpose.msra.mxu0 0.0
    %6907 = vmatprep.subr.mxu0 0.0
    %6908 = vmatpush1.xpose.msra.mxu0 0.0
    %6909 = vmatprep.subr.mxu0 0.0
    %6910 = vmatpush1.xpose.msra.mxu0 0.0
    %6911 = vmatprep.subr.mxu0 0.0
    %6912 = vmatpush1.xpose.msra.mxu0 0.0
    %6913 = vmatprep.subr.mxu0 0.0
    %6914 = vmatpush1.xpose.msra.mxu0 0.0
    %6915 = vmatprep.subr.mxu0 0.0
    %6916 = vmatpush1.xpose.msra.mxu0 0.0
    %6917 = vmatprep.subr.mxu0 0.0
    %6918 = vmatpush1.xpose.msra.mxu0 0.0
    %6919 = vmatprep.subr.mxu0 0.0
    %6920 = vmatpush1.xpose.msra.mxu0 0.0
    %6921 = vmatprep.subr.mxu0 0.0
    %6922 = vmatpush1.xpose.msra.mxu0 %v6889
    %6923 = vmatprep.subr.mxu0 0.0
    %6924 = vmatpush2.xpose.msra.mxu0 0.0
    %6925 = vmatprep.subr.mxu0 0.0
    %6926 = vmatpush2.xpose.msra.mxu0 0.0
    %6927 = vmatprep.subr.mxu0 0.0
    %6928 = vmatpush2.xpose.msra.mxu0 0.0
    %6929 = vmatprep.subr.mxu0 0.0
    %6930 = vmatpush2.xpose.msra.mxu0 0.0
    %6931 = vmatprep.subr.mxu0 0.0
    %6932 = vmatpush2.xpose.msra.mxu0 0.0
    %6933 = vmatprep.subr.mxu0 0.0
    %6934 = vmatpush2.xpose.msra.mxu0 0.0
    %6935 = vmatprep.subr.mxu0 0.0
    %6936 = vmatpush2.xpose.msra.mxu0 0.0
    %6937 = vmatprep.subr.mxu0 0.0
    %6938 = vmatpush2.xpose.msra.mxu0 0.0
    %6939 = vmatprep.subr.mxu0 0.0
    %6940 = vmatpush2.xpose.msra.mxu0 0.0
    %6941 = vmatprep.subr.mxu0 0.0
    %6942 = vmatpush2.xpose.msra.mxu0 0.0
    %6943 = vmatprep.subr.mxu0 0.0
    %6944 = vmatpush2.xpose.msra.mxu0 0.0
    %6945 = vmatprep.subr.mxu0 0.0
    %6946 = vmatpush2.xpose.msra.mxu0 0.0
    %6947 = vmatprep.subr.mxu0 0.0
    %6948 = vmatpush2.xpose.msra.mxu0 0.0
    %6949 = vmatprep.subr.mxu0 0.0
    %6950 = vmatpush2.xpose.msra.mxu0 0.0
    %6951 = vmatprep.subr.mxu0 0.0
    %6952 = vmatpush2.xpose.msra.mxu0 0.0
    %6953 = vmatprep.subr.mxu0 0.0
    %6954 = vmatpush2.xpose.msra.mxu0 0.0
    %6955 = vmatprep.mubr.f32.mxu0 0.0
    %6956 = vmatmul.mubr.f32.gmra.mxu0 %v6887
    %v6957 = vpop.f32.mrf.mxu0
    %v6958 = vadd.f32 0.0, %v6957
    %v6959 = vpop.f32.mrf.mxu0
    %6960 = vdwg.mxu0
    %v6961 = vsel %vm344, %v6958, -inf
    %6962 = vmax.xlane.f32.xlu0 %v6961
    %v6963 = vpop.xlane.xlu0 %6962
    %v6964 = vsub.f32 %v6958, %v6963
    %v6965 = vmul.f32 %v6964, 1.442695
    %v6966 = vpow.pop %v6965
    %v6967 = vsel %vm344, %v6966, 0.0
    %6968 = vadd.xlane.f32.xlu0 %v6967
    %v6969 = vpop.xlane.xlu0 %6968
    %v6970 = vrcp.pop %v6969
    %v6971 = vmul.f32 %v6966, %v6970
    %6972 = vrot.lane.b32.xlu0 %v6717, 88
    %v6973 = vpop.permute.xlu0 %6972
    %v6976 = vsel %vm344, %v6971, 0
    %6978 = vmatprep.subr.mxu0 0.0
    %6979 = vmatpush1.msra.mxu0 0.0
    %6980 = vmatprep.subr.mxu0 0.0
    %6981 = vmatpush1.msra.mxu0 0.0
    %6982 = vmatprep.subr.mxu0 0.0
    %6983 = vmatpush1.msra.mxu0 0.0
    %6984 = vmatprep.subr.mxu0 0.0
    %6985 = vmatpush1.msra.mxu0 0.0
    %6986 = vmatprep.subr.mxu0 0.0
    %6987 = vmatpush1.msra.mxu0 0.0
    %6988 = vmatprep.subr.mxu0 0.0
    %6989 = vmatpush1.msra.mxu0 0.0
    %6990 = vmatprep.subr.mxu0 0.0
    %6991 = vmatpush1.msra.mxu0 0.0
    %6992 = vmatprep.subr.mxu0 0.0
    %6993 = vmatpush1.msra.mxu0 0.0
    %6994 = vmatprep.subr.mxu0 0.0
    %6995 = vmatpush1.msra.mxu0 0.0
    %6996 = vmatprep.subr.mxu0 0.0
    %6997 = vmatpush1.msra.mxu0 0.0
    %6998 = vmatprep.subr.mxu0 0.0
    %6999 = vmatpush1.msra.mxu0 0.0
    %7000 = vmatprep.subr.mxu0 0.0
    %7001 = vmatpush1.msra.mxu0 0.0
    %7002 = vmatprep.subr.mxu0 0.0
    %7003 = vmatpush1.msra.mxu0 0.0
    %7004 = vmatprep.subr.mxu0 0.0
    %7005 = vmatpush1.msra.mxu0 0.0
    %7006 = vmatprep.subr.mxu0 0.0
    %7007 = vmatpush1.msra.mxu0 0.0
    %7008 = vmatprep.subr.mxu0 0.0
    %7009 = vmatpush1.msra.mxu0 %v6973
    %7010 = vmatprep.subr.mxu0 0.0
    %7011 = vmatpush2.msra.mxu0 0.0
    %7012 = vmatprep.subr.mxu0 0.0
    %7013 = vmatpush2.msra.mxu0 0.0
    %7014 = vmatprep.subr.mxu0 0.0
    %7015 = vmatpush2.msra.mxu0 0.0
    %7016 = vmatprep.subr.mxu0 0.0
    %7017 = vmatpush2.msra.mxu0 0.0
    %7018 = vmatprep.subr.mxu0 0.0
    %7019 = vmatpush2.msra.mxu0 0.0
    %7020 = vmatprep.subr.mxu0 0.0
    %7021 = vmatpush2.msra.mxu0 0.0
    %7022 = vmatprep.subr.mxu0 0.0
    %7023 = vmatpush2.msra.mxu0 0.0
    %7024 = vmatprep.subr.mxu0 0.0
    %7025 = vmatpush2.msra.mxu0 0.0
    %7026 = vmatprep.subr.mxu0 0.0
    %7027 = vmatpush2.msra.mxu0 0.0
    %7028 = vmatprep.subr.mxu0 0.0
    %7029 = vmatpush2.msra.mxu0 0.0
    %7030 = vmatprep.subr.mxu0 0.0
    %7031 = vmatpush2.msra.mxu0 0.0
    %7032 = vmatprep.subr.mxu0 0.0
    %7033 = vmatpush2.msra.mxu0 0.0
    %7034 = vmatprep.subr.mxu0 0.0
    %7035 = vmatpush2.msra.mxu0 0.0
    %7036 = vmatprep.subr.mxu0 0.0
    %7037 = vmatpush2.msra.mxu0 0.0
    %7038 = vmatprep.subr.mxu0 0.0
    %7039 = vmatpush2.msra.mxu0 0.0
    %7040 = vmatprep.subr.mxu0 0.0
    %7041 = vmatpush2.msra.mxu0 0.0
    %7042 = vmatprep.mubr.f32.mxu0 0.0
    %7043 = vmatmul.mubr.f32.gmra.mxu0 %v6976
    %v7044 = vpop.f32.mrf.mxu0
    %v7045 = vadd.f32 0.0, %v7044
    %v7046 = vpop.f32.mrf.mxu0
    %7047 = vdwg.mxu0
    %7048 = vrot.lane.b32.xlu0 %v6647, 112
    %v7049 = vpop.permute.xlu0 %7048
    %7050 = vrot.lane.b32.xlu0 %v6717, 112
    %v7051 = vpop.permute.xlu0 %7050
    %v7052 = vsel %vm344, %v7049, 0
    %v7054 = vsel %vm344, %v7051, 0
    %7056 = vmatprep.subr.mxu0 0.0
    %7057 = vmatpush1.xpose.msra.mxu0 0.0
    %7058 = vmatprep.subr.mxu0 0.0
    %7059 = vmatpush1.xpose.msra.mxu0 0.0
    %7060 = vmatprep.subr.mxu0 0.0
    %7061 = vmatpush1.xpose.msra.mxu0 0.0
    %7062 = vmatprep.subr.mxu0 0.0
    %7063 = vmatpush1.xpose.msra.mxu0 0.0
    %7064 = vmatprep.subr.mxu0 0.0
    %7065 = vmatpush1.xpose.msra.mxu0 0.0
    %7066 = vmatprep.subr.mxu0 0.0
    %7067 = vmatpush1.xpose.msra.mxu0 0.0
    %7068 = vmatprep.subr.mxu0 0.0
    %7069 = vmatpush1.xpose.msra.mxu0 0.0
    %7070 = vmatprep.subr.mxu0 0.0
    %7071 = vmatpush1.xpose.msra.mxu0 0.0
    %7072 = vmatprep.subr.mxu0 0.0
    %7073 = vmatpush1.xpose.msra.mxu0 0.0
    %7074 = vmatprep.subr.mxu0 0.0
    %7075 = vmatpush1.xpose.msra.mxu0 0.0
    %7076 = vmatprep.subr.mxu0 0.0
    %7077 = vmatpush1.xpose.msra.mxu0 0.0
    %7078 = vmatprep.subr.mxu0 0.0
    %7079 = vmatpush1.xpose.msra.mxu0 0.0
    %7080 = vmatprep.subr.mxu0 0.0
    %7081 = vmatpush1.xpose.msra.mxu0 0.0
    %7082 = vmatprep.subr.mxu0 0.0
    %7083 = vmatpush1.xpose.msra.mxu0 0.0
    %7084 = vmatprep.subr.mxu0 0.0
    %7085 = vmatpush1.xpose.msra.mxu0 0.0
    %7086 = vmatprep.subr.mxu0 0.0
    %7087 = vmatpush1.xpose.msra.mxu0 %v7054
    %7088 = vmatprep.subr.mxu0 0.0
    %7089 = vmatpush2.xpose.msra.mxu0 0.0
    %7090 = vmatprep.subr.mxu0 0.0
    %7091 = vmatpush2.xpose.msra.mxu0 0.0
    %7092 = vmatprep.subr.mxu0 0.0
    %7093 = vmatpush2.xpose.msra.mxu0 0.0
    %7094 = vmatprep.subr.mxu0 0.0
    %7095 = vmatpush2.xpose.msra.mxu0 0.0
    %7096 = vmatprep.subr.mxu0 0.0
    %7097 = vmatpush2.xpose.msra.mxu0 0.0
    %7098 = vmatprep.subr.mxu0 0.0
    %7099 = vmatpush2.xpose.msra.mxu0 0.0
    %7100 = vmatprep.subr.mxu0 0.0
    %7101 = vmatpush2.xpose.msra.mxu0 0.0
    %7102 = vmatprep.subr.mxu0 0.0
    %7103 = vmatpush2.xpose.msra.mxu0 0.0
    %7104 = vmatprep.subr.mxu0 0.0
    %7105 = vmatpush2.xpose.msra.mxu0 0.0
    %7106 = vmatprep.subr.mxu0 0.0
    %7107 = vmatpush2.xpose.msra.mxu0 0.0
    %7108 = vmatprep.subr.mxu0 0.0
    %7109 = vmatpush2.xpose.msra.mxu0 0.0
    %7110 = vmatprep.subr.mxu0 0.0
    %7111 = vmatpush2.xpose.msra.mxu0 0.0
    %7112 = vmatprep.subr.mxu0 0.0
    %7113 = vmatpush2.xpose.msra.mxu0 0.0
    %7114 = vmatprep.subr.mxu0 0.0
    %7115 = vmatpush2.xpose.msra.mxu0 0.0
    %7116 = vmatprep.subr.mxu0 0.0
    %7117 = vmatpush2.xpose.msra.mxu0 0.0
    %7118 = vmatprep.subr.mxu0 0.0
    %7119 = vmatpush2.xpose.msra.mxu0 0.0
    %7120 = vmatprep.mubr.f32.mxu0 0.0
    %7121 = vmatmul.mubr.f32.gmra.mxu0 %v7052
    %v7122 = vpop.f32.mrf.mxu0
    %v7123 = vadd.f32 0.0, %v7122
    %v7124 = vpop.f32.mrf.mxu0
    %7125 = vdwg.mxu0
    %v7126 = vsel %vm344, %v7123, -inf
    %7127 = vmax.xlane.f32.xlu0 %v7126
    %v7128 = vpop.xlane.xlu0 %7127
    %v7129 = vsub.f32 %v7123, %v7128
    %v7130 = vmul.f32 %v7129, 1.442695
    %v7131 = vpow.pop %v7130
    %v7132 = vsel %vm344, %v7131, 0.0
    %7133 = vadd.xlane.f32.xlu0 %v7132
    %v7134 = vpop.xlane.xlu0 %7133
    %v7135 = vrcp.pop %v7134
    %v7136 = vmul.f32 %v7131, %v7135
    %7137 = vrot.lane.b32.xlu0 %v6717, 80
    %v7138 = vpop.permute.xlu0 %7137
    %v7141 = vsel %vm344, %v7136, 0
    %7143 = vmatprep.subr.mxu0 0.0
    %7144 = vmatpush1.msra.mxu0 0.0
    %7145 = vmatprep.subr.mxu0 0.0
    %7146 = vmatpush1.msra.mxu0 0.0
    %7147 = vmatprep.subr.mxu0 0.0
    %7148 = vmatpush1.msra.mxu0 0.0
    %7149 = vmatprep.subr.mxu0 0.0
    %7150 = vmatpush1.msra.mxu0 0.0
    %7151 = vmatprep.subr.mxu0 0.0
    %7152 = vmatpush1.msra.mxu0 0.0
    %7153 = vmatprep.subr.mxu0 0.0
    %7154 = vmatpush1.msra.mxu0 0.0
    %7155 = vmatprep.subr.mxu0 0.0
    %7156 = vmatpush1.msra.mxu0 0.0
    %7157 = vmatprep.subr.mxu0 0.0
    %7158 = vmatpush1.msra.mxu0 0.0
    %7159 = vmatprep.subr.mxu0 0.0
    %7160 = vmatpush1.msra.mxu0 0.0
    %7161 = vmatprep.subr.mxu0 0.0
    %7162 = vmatpush1.msra.mxu0 0.0
    %7163 = vmatprep.subr.mxu0 0.0
    %7164 = vmatpush1.msra.mxu0 0.0
    %7165 = vmatprep.subr.mxu0 0.0
    %7166 = vmatpush1.msra.mxu0 0.0
    %7167 = vmatprep.subr.mxu0 0.0
    %7168 = vmatpush1.msra.mxu0 0.0
    %7169 = vmatprep.subr.mxu0 0.0
    %7170 = vmatpush1.msra.mxu0 0.0
    %7171 = vmatprep.subr.mxu0 0.0
    %7172 = vmatpush1.msra.mxu0 0.0
    %7173 = vmatprep.subr.mxu0 0.0
    %7174 = vmatpush1.msra.mxu0 %v7138
    %7175 = vmatprep.subr.mxu0 0.0
    %7176 = vmatpush2.msra.mxu0 0.0
    %7177 = vmatprep.subr.mxu0 0.0
    %7178 = vmatpush2.msra.mxu0 0.0
    %7179 = vmatprep.subr.mxu0 0.0
    %7180 = vmatpush2.msra.mxu0 0.0
    %7181 = vmatprep.subr.mxu0 0.0
    %7182 = vmatpush2.msra.mxu0 0.0
    %7183 = vmatprep.subr.mxu0 0.0
    %7184 = vmatpush2.msra.mxu0 0.0
    %7185 = vmatprep.subr.mxu0 0.0
    %7186 = vmatpush2.msra.mxu0 0.0
    %7187 = vmatprep.subr.mxu0 0.0
    %7188 = vmatpush2.msra.mxu0 0.0
    %7189 = vmatprep.subr.mxu0 0.0
    %7190 = vmatpush2.msra.mxu0 0.0
    %7191 = vmatprep.subr.mxu0 0.0
    %7192 = vmatpush2.msra.mxu0 0.0
    %7193 = vmatprep.subr.mxu0 0.0
    %7194 = vmatpush2.msra.mxu0 0.0
    %7195 = vmatprep.subr.mxu0 0.0
    %7196 = vmatpush2.msra.mxu0 0.0
    %7197 = vmatprep.subr.mxu0 0.0
    %7198 = vmatpush2.msra.mxu0 0.0
    %7199 = vmatprep.subr.mxu0 0.0
    %7200 = vmatpush2.msra.mxu0 0.0
    %7201 = vmatprep.subr.mxu0 0.0
    %7202 = vmatpush2.msra.mxu0 0.0
    %7203 = vmatprep.subr.mxu0 0.0
    %7204 = vmatpush2.msra.mxu0 0.0
    %7205 = vmatprep.subr.mxu0 0.0
    %7206 = vmatpush2.msra.mxu0 0.0
    %7207 = vmatprep.mubr.f32.mxu0 0.0
    %7208 = vmatmul.mubr.f32.gmra.mxu0 %v7141
    %v7209 = vpop.f32.mrf.mxu0
    %v7210 = vadd.f32 0.0, %v7209
    %v7211 = vpop.f32.mrf.mxu0
    %7212 = vdwg.mxu0
    %7213 = vrot.lane.b32.xlu0 %v6647, 104
    %v7214 = vpop.permute.xlu0 %7213
    %7215 = vrot.lane.b32.xlu0 %v6717, 104
    %v7216 = vpop.permute.xlu0 %7215
    %v7217 = vsel %vm344, %v7214, 0
    %v7219 = vsel %vm344, %v7216, 0
    %7221 = vmatprep.subr.mxu0 0.0
    %7222 = vmatpush1.xpose.msra.mxu0 0.0
    %7223 = vmatprep.subr.mxu0 0.0
    %7224 = vmatpush1.xpose.msra.mxu0 0.0
    %7225 = vmatprep.subr.mxu0 0.0
    %7226 = vmatpush1.xpose.msra.mxu0 0.0
    %7227 = vmatprep.subr.mxu0 0.0
    %7228 = vmatpush1.xpose.msra.mxu0 0.0
    %7229 = vmatprep.subr.mxu0 0.0
    %7230 = vmatpush1.xpose.msra.mxu0 0.0
    %7231 = vmatprep.subr.mxu0 0.0
    %7232 = vmatpush1.xpose.msra.mxu0 0.0
    %7233 = vmatprep.subr.mxu0 0.0
    %7234 = vmatpush1.xpose.msra.mxu0 0.0
    %7235 = vmatprep.subr.mxu0 0.0
    %7236 = vmatpush1.xpose.msra.mxu0 0.0
    %7237 = vmatprep.subr.mxu0 0.0
    %7238 = vmatpush1.xpose.msra.mxu0 0.0
    %7239 = vmatprep.subr.mxu0 0.0
    %7240 = vmatpush1.xpose.msra.mxu0 0.0
    %7241 = vmatprep.subr.mxu0 0.0
    %7242 = vmatpush1.xpose.msra.mxu0 0.0
    %7243 = vmatprep.subr.mxu0 0.0
    %7244 = vmatpush1.xpose.msra.mxu0 0.0
    %7245 = vmatprep.subr.mxu0 0.0
    %7246 = vmatpush1.xpose.msra.mxu0 0.0
    %7247 = vmatprep.subr.mxu0 0.0
    %7248 = vmatpush1.xpose.msra.mxu0 0.0
    %7249 = vmatprep.subr.mxu0 0.0
    %7250 = vmatpush1.xpose.msra.mxu0 0.0
    %7251 = vmatprep.subr.mxu0 0.0
    %7252 = vmatpush1.xpose.msra.mxu0 %v7219
    %7253 = vmatprep.subr.mxu0 0.0
    %7254 = vmatpush2.xpose.msra.mxu0 0.0
    %7255 = vmatprep.subr.mxu0 0.0
    %7256 = vmatpush2.xpose.msra.mxu0 0.0
    %7257 = vmatprep.subr.mxu0 0.0
    %7258 = vmatpush2.xpose.msra.mxu0 0.0
    %7259 = vmatprep.subr.mxu0 0.0
    %7260 = vmatpush2.xpose.msra.mxu0 0.0
    %7261 = vmatprep.subr.mxu0 0.0
    %7262 = vmatpush2.xpose.msra.mxu0 0.0
    %7263 = vmatprep.subr.mxu0 0.0
    %7264 = vmatpush2.xpose.msra.mxu0 0.0
    %7265 = vmatprep.subr.mxu0 0.0
    %7266 = vmatpush2.xpose.msra.mxu0 0.0
    %7267 = vmatprep.subr.mxu0 0.0
    %7268 = vmatpush2.xpose.msra.mxu0 0.0
    %7269 = vmatprep.subr.mxu0 0.0
    %7270 = vmatpush2.xpose.msra.mxu0 0.0
    %7271 = vmatprep.subr.mxu0 0.0
    %7272 = vmatpush2.xpose.msra.mxu0 0.0
    %7273 = vmatprep.subr.mxu0 0.0
    %7274 = vmatpush2.xpose.msra.mxu0 0.0
    %7275 = vmatprep.subr.mxu0 0.0
    %7276 = vmatpush2.xpose.msra.mxu0 0.0
    %7277 = vmatprep.subr.mxu0 0.0
    %7278 = vmatpush2.xpose.msra.mxu0 0.0
    %7279 = vmatprep.subr.mxu0 0.0
    %7280 = vmatpush2.xpose.msra.mxu0 0.0
    %7281 = vmatprep.subr.mxu0 0.0
    %7282 = vmatpush2.xpose.msra.mxu0 0.0
    %7283 = vmatprep.subr.mxu0 0.0
    %7284 = vmatpush2.xpose.msra.mxu0 0.0
    %7285 = vmatprep.mubr.f32.mxu0 0.0
    %7286 = vmatmul.mubr.f32.gmra.mxu0 %v7217
    %v7287 = vpop.f32.mrf.mxu0
    %v7288 = vadd.f32 0.0, %v7287
    %v7289 = vpop.f32.mrf.mxu0
    %7290 = vdwg.mxu0
    %v7291 = vsel %vm344, %v7288, -inf
    %7292 = vmax.xlane.f32.xlu0 %v7291
    %v7293 = vpop.xlane.xlu0 %7292
    %v7294 = vsub.f32 %v7288, %v7293
    %v7295 = vmul.f32 %v7294, 1.442695
    %v7296 = vpow.pop %v7295
    %v7297 = vsel %vm344, %v7296, 0.0
    %7298 = vadd.xlane.f32.xlu0 %v7297
    %v7299 = vpop.xlane.xlu0 %7298
    %v7300 = vrcp.pop %v7299
    %v7301 = vmul.f32 %v7296, %v7300
    %7302 = vrot.lane.b32.xlu0 %v6717, 72
    %v7303 = vpop.permute.xlu0 %7302
    %v7306 = vsel %vm344, %v7301, 0
    %7308 = vmatprep.subr.mxu0 0.0
    %7309 = vmatpush1.msra.mxu0 0.0
    %7310 = vmatprep.subr.mxu0 0.0
    %7311 = vmatpush1.msra.mxu0 0.0
    %7312 = vmatprep.subr.mxu0 0.0
    %7313 = vmatpush1.msra.mxu0 0.0
    %7314 = vmatprep.subr.mxu0 0.0
    %7315 = vmatpush1.msra.mxu0 0.0
    %7316 = vmatprep.subr.mxu0 0.0
    %7317 = vmatpush1.msra.mxu0 0.0
    %7318 = vmatprep.subr.mxu0 0.0
    %7319 = vmatpush1.msra.mxu0 0.0
    %7320 = vmatprep.subr.mxu0 0.0
    %7321 = vmatpush1.msra.mxu0 0.0
    %7322 = vmatprep.subr.mxu0 0.0
    %7323 = vmatpush1.msra.mxu0 0.0
    %7324 = vmatprep.subr.mxu0 0.0
    %7325 = vmatpush1.msra.mxu0 0.0
    %7326 = vmatprep.subr.mxu0 0.0
    %7327 = vmatpush1.msra.mxu0 0.0
    %7328 = vmatprep.subr.mxu0 0.0
    %7329 = vmatpush1.msra.mxu0 0.0
    %7330 = vmatprep.subr.mxu0 0.0
    %7331 = vmatpush1.msra.mxu0 0.0
    %7332 = vmatprep.subr.mxu0 0.0
    %7333 = vmatpush1.msra.mxu0 0.0
    %7334 = vmatprep.subr.mxu0 0.0
    %7335 = vmatpush1.msra.mxu0 0.0
    %7336 = vmatprep.subr.mxu0 0.0
    %7337 = vmatpush1.msra.mxu0 0.0
    %7338 = vmatprep.subr.mxu0 0.0
    %7339 = vmatpush1.msra.mxu0 %v7303
    %7340 = vmatprep.subr.mxu0 0.0
    %7341 = vmatpush2.msra.mxu0 0.0
    %7342 = vmatprep.subr.mxu0 0.0
    %7343 = vmatpush2.msra.mxu0 0.0
    %7344 = vmatprep.subr.mxu0 0.0
    %7345 = vmatpush2.msra.mxu0 0.0
    %7346 = vmatprep.subr.mxu0 0.0
    %7347 = vmatpush2.msra.mxu0 0.0
    %7348 = vmatprep.subr.mxu0 0.0
    %7349 = vmatpush2.msra.mxu0 0.0
    %7350 = vmatprep.subr.mxu0 0.0
    %7351 = vmatpush2.msra.mxu0 0.0
    %7352 = vmatprep.subr.mxu0 0.0
    %7353 = vmatpush2.msra.mxu0 0.0
    %7354 = vmatprep.subr.mxu0 0.0
    %7355 = vmatpush2.msra.mxu0 0.0
    %7356 = vmatprep.subr.mxu0 0.0
    %7357 = vmatpush2.msra.mxu0 0.0
    %7358 = vmatprep.subr.mxu0 0.0
    %7359 = vmatpush2.msra.mxu0 0.0
    %7360 = vmatprep.subr.mxu0 0.0
    %7361 = vmatpush2.msra.mxu0 0.0
    %7362 = vmatprep.subr.mxu0 0.0
    %7363 = vmatpush2.msra.mxu0 0.0
    %7364 = vmatprep.subr.mxu0 0.0
    %7365 = vmatpush2.msra.mxu0 0.0
    %7366 = vmatprep.subr.mxu0 0.0
    %7367 = vmatpush2.msra.mxu0 0.0
    %7368 = vmatprep.subr.mxu0 0.0
    %7369 = vmatpush2.msra.mxu0 0.0
    %7370 = vmatprep.subr.mxu0 0.0
    %7371 = vmatpush2.msra.mxu0 0.0
    %7372 = vmatprep.mubr.f32.mxu0 0.0
    %7373 = vmatmul.mubr.f32.gmra.mxu0 %v7306
    %v7374 = vpop.f32.mrf.mxu0
    %v7375 = vadd.f32 0.0, %v7374
    %v7376 = vpop.f32.mrf.mxu0
    %7377 = vdwg.mxu0
    %7379 = vrot.lane.b32.xlu0 %v7045, 8
    %v7380 = vpop.permute.xlu0 %7379
    %7383 = vrot.lane.b32.xlu0 %v7210, 16
    %v7384 = vpop.permute.xlu0 %7383
    %7387 = vrot.lane.b32.xlu0 %v7375, 24
    %v7388 = vpop.permute.xlu0 %7387
    %v7390 = vsel %vm344, %v6880, %v7380
    %v7391 = vsel %vm1016, %v7390, %v7384
    %v7392 = vsel %vm1018, %v7391, %v7388
    %v7394 = vsel %vm197, %v7392, 0
    %7396 = vmatprep.subr.mxu0 0.0
    %7397 = vmatpush1.msra.mxu0 0.0
    %7398 = vmatprep.subr.mxu0 0.0
    %7399 = vmatpush1.msra.mxu0 0.0
    %7400 = vmatprep.subr.mxu0 0.0
    %7401 = vmatpush1.msra.mxu0 0.0
    %7402 = vmatprep.subr.mxu0 0.0
    %7403 = vmatpush1.msra.mxu0 0.0
    %7404 = vmatprep.subr.mxu0 0.0
    %7405 = vmatpush1.msra.mxu0 0.0
    %7406 = vmatprep.subr.mxu0 0.0
    %7407 = vmatpush1.msra.mxu0 0.0
    %7408 = vmatprep.subr.mxu0 0.0
    %7409 = vmatpush1.msra.mxu0 0.0
    %7410 = vmatprep.subr.mxu0 0.0
    %7411 = vmatpush1.msra.mxu0 0.0
    %7412 = vmatprep.subr.mxu0 0.0
    %7413 = vmatpush1.msra.mxu0 0.0
    %7414 = vmatprep.subr.mxu0 0.0
    %7415 = vmatpush1.msra.mxu0 0.0
    %7416 = vmatprep.subr.mxu0 0.0
    %7417 = vmatpush1.msra.mxu0 0.0
    %7418 = vmatprep.subr.mxu0 0.0
    %7419 = vmatpush1.msra.mxu0 0.0
    %7420 = vmatprep.subr.mxu0 0.0
    %7421 = vmatpush1.msra.mxu0 %v112
    %7422 = vmatprep.subr.mxu0 0.0
    %7423 = vmatpush1.msra.mxu0 %v111
    %7424 = vmatprep.subr.mxu0 0.0
    %7425 = vmatpush1.msra.mxu0 %v110
    %7426 = vmatprep.subr.mxu0 0.0
    %7427 = vmatpush1.msra.mxu0 %v109
    %7428 = vmatprep.subr.mxu0 0.0
    %7429 = vmatpush2.msra.mxu0 0.0
    %7430 = vmatprep.subr.mxu0 0.0
    %7431 = vmatpush2.msra.mxu0 0.0
    %7432 = vmatprep.subr.mxu0 0.0
    %7433 = vmatpush2.msra.mxu0 0.0
    %7434 = vmatprep.subr.mxu0 0.0
    %7435 = vmatpush2.msra.mxu0 0.0
    %7436 = vmatprep.subr.mxu0 0.0
    %7437 = vmatpush2.msra.mxu0 0.0
    %7438 = vmatprep.subr.mxu0 0.0
    %7439 = vmatpush2.msra.mxu0 0.0
    %7440 = vmatprep.subr.mxu0 0.0
    %7441 = vmatpush2.msra.mxu0 0.0
    %7442 = vmatprep.subr.mxu0 0.0
    %7443 = vmatpush2.msra.mxu0 0.0
    %7444 = vmatprep.subr.mxu0 0.0
    %7445 = vmatpush2.msra.mxu0 0.0
    %7446 = vmatprep.subr.mxu0 0.0
    %7447 = vmatpush2.msra.mxu0 0.0
    %7448 = vmatprep.subr.mxu0 0.0
    %7449 = vmatpush2.msra.mxu0 0.0
    %7450 = vmatprep.subr.mxu0 0.0
    %7451 = vmatpush2.msra.mxu0 0.0
    %7452 = vmatprep.subr.mxu0 0.0
    %7453 = vmatpush2.msra.mxu0 0.0
    %7454 = vmatprep.subr.mxu0 0.0
    %7455 = vmatpush2.msra.mxu0 0.0
    %7456 = vmatprep.subr.mxu0 0.0
    %7457 = vmatpush2.msra.mxu0 0.0
    %7458 = vmatprep.subr.mxu0 0.0
    %7459 = vmatpush2.msra.mxu0 0.0
    %7460 = vmatprep.mubr.f32.mxu0 0.0
    %7461 = vmatmul.mubr.f32.gmra.mxu0 %v7394
    %v7462 = vpop.f32.mrf.mxu0
    %v7463 = vadd.f32 %v3525, %v7462
    %v7464 = vpop.f32.mrf.mxu0
    %7465 = vdwg.mxu0
    %v7467 = vrot.slane %v7463, 1
    %v7468 = vrot.slane %v7463, 2
    %v7469 = vrot.slane %v7463, 3
    %v7470 = vrot.slane %v7463, 4
    %v7471 = vrot.slane %v7463, 5
    %v7472 = vrot.slane %v7463, 6
    %v7473 = vrot.slane %v7463, 7
    %v7482 = vadd.f32 %v6548, %v7463
    %v7483 = vadd.f32 %v6549, %v7467
    %v7484 = vadd.f32 %v6550, %v7468
    %v7485 = vadd.f32 %v6551, %v7469
    %v7486 = vadd.f32 %v6552, %v7470
    %v7487 = vadd.f32 %v6553, %v7471
    %v7488 = vadd.f32 %v6554, %v7472
    %v7489 = vadd.f32 %v6555, %v7473
    %v7498 = vrot.slane %v7483, 7
    %v7499 = vsel %vm177, %v7498, %v7482
    %v7500 = vrot.slane %v7484, 6
    %v7501 = vsel %vm180, %v7500, %v7499
    %v7502 = vrot.slane %v7485, 5
    %v7503 = vsel %vm183, %v7502, %v7501
    %v7504 = vrot.slane %v7486, 4
    %v7505 = vsel %vm186, %v7504, %v7503
    %v7506 = vrot.slane %v7487, 3
    %v7507 = vsel %vm189, %v7506, %v7505
    %v7508 = vrot.slane %v7488, 2
    %v7509 = vsel %vm192, %v7508, %v7507
    %v7510 = vrot.slane %v7489, 1
    %v7511 = vsel %vm195, %v7510, %v7509
    %v7513 = vsel %vm197, %v7511, 0.0
    %7514 = vadd.xlane.f32.xlu0 %v7513
    %v7515 = vpop.xlane.xlu0 %7514
    %v7516 = vmul.f32 %v7515, %v1147
    %v7518 = vrot.slane %v7516, 1
    %v7519 = vrot.slane %v7516, 2
    %v7520 = vrot.slane %v7516, 3
    %v7521 = vrot.slane %v7516, 4
    %v7522 = vrot.slane %v7516, 5
    %v7523 = vrot.slane %v7516, 6
    %v7524 = vrot.slane %v7516, 7
    %v7533 = vsub.f32 %v7482, %v7516
    %v7534 = vsub.f32 %v7483, %v7518
    %v7535 = vsub.f32 %v7484, %v7519
    %v7536 = vsub.f32 %v7485, %v7520
    %v7537 = vsub.f32 %v7486, %v7521
    %v7538 = vsub.f32 %v7487, %v7522
    %v7539 = vsub.f32 %v7488, %v7523
    %v7540 = vsub.f32 %v7489, %v7524
    %v7541 = vmul.f32 %v7533, %v7533
    %v7542 = vmul.f32 %v7534, %v7534
    %v7543 = vmul.f32 %v7535, %v7535
    %v7544 = vmul.f32 %v7536, %v7536
    %v7545 = vmul.f32 %v7537, %v7537
    %v7546 = vmul.f32 %v7538, %v7538
    %v7547 = vmul.f32 %v7539, %v7539
    %v7548 = vmul.f32 %v7540, %v7540
    %v7557 = vrot.slane %v7542, 7
    %v7558 = vsel %vm177, %v7557, %v7541
    %v7559 = vrot.slane %v7543, 6
    %v7560 = vsel %vm180, %v7559, %v7558
    %v7561 = vrot.slane %v7544, 5
    %v7562 = vsel %vm183, %v7561, %v7560
    %v7563 = vrot.slane %v7545, 4
    %v7564 = vsel %vm186, %v7563, %v7562
    %v7565 = vrot.slane %v7546, 3
    %v7566 = vsel %vm189, %v7565, %v7564
    %v7567 = vrot.slane %v7547, 2
    %v7568 = vsel %vm192, %v7567, %v7566
    %v7569 = vrot.slane %v7548, 1
    %v7570 = vsel %vm195, %v7569, %v7568
    %v7572 = vsel %vm197, %v7570, 0.0
    %7573 = vadd.xlane.f32.xlu0 %v7572
    %v7574 = vpop.xlane.xlu0 %7573
    %v7575 = vmul.f32 %v7574, %v1147
    %v7576 = vadd.f32 %v7575, 1e-05
    %v7577 = vrsqrt.pop %v7576
    %v7579 = vrot.slane %v7577, 1
    %v7580 = vrot.slane %v7577, 2
    %v7581 = vrot.slane %v7577, 3
    %v7582 = vrot.slane %v7577, 4
    %v7583 = vrot.slane %v7577, 5
    %v7584 = vrot.slane %v7577, 6
    %v7585 = vrot.slane %v7577, 7
    %v7594 = vmul.f32 %v7533, %v7577
    %v7595 = vmul.f32 %v7534, %v7579
    %v7596 = vmul.f32 %v7535, %v7580
    %v7597 = vmul.f32 %v7536, %v7581
    %v7598 = vmul.f32 %v7537, %v7582
    %v7599 = vmul.f32 %v7538, %v7583
    %v7600 = vmul.f32 %v7539, %v7584
    %v7601 = vmul.f32 %v7540, %v7585
    %v7602 = vmul.f32 %v7594, %v3738
    %v7603 = vmul.f32 %v7595, %v3738
    %v7604 = vmul.f32 %v7596, %v3738
    %v7605 = vmul.f32 %v7597, %v3738
    %v7606 = vmul.f32 %v7598, %v3738
    %v7607 = vmul.f32 %v7599, %v3738
    %v7608 = vmul.f32 %v7600, %v3738
    %v7609 = vmul.f32 %v7601, %v3738
    %v7610 = vadd.f32 %v7602, %v3750
    %v7611 = vadd.f32 %v7603, %v3750
    %v7612 = vadd.f32 %v7604, %v3750
    %v7613 = vadd.f32 %v7605, %v3750
    %v7614 = vadd.f32 %v7606, %v3750
    %v7615 = vadd.f32 %v7607, %v3750
    %v7616 = vadd.f32 %v7608, %v3750
    %v7617 = vadd.f32 %v7609, %v3750
    %v7626 = vrot.slane %v7611, 7
    %v7627 = vsel %vm177, %v7626, %v7610
    %v7628 = vrot.slane %v7612, 6
    %v7629 = vsel %vm180, %v7628, %v7627
    %v7630 = vrot.slane %v7613, 5
    %v7631 = vsel %vm183, %v7630, %v7629
    %v7632 = vrot.slane %v7614, 4
    %v7633 = vsel %vm186, %v7632, %v7631
    %v7634 = vrot.slane %v7615, 3
    %v7635 = vsel %vm189, %v7634, %v7633
    %v7636 = vrot.slane %v7616, 2
    %v7637 = vsel %vm192, %v7636, %v7635
    %v7638 = vrot.slane %v7617, 1
    %v7639 = vsel %vm195, %v7638, %v7637
    %v7640 = vsel %vm197, %v7639, 0
    %7642 = vmatprep.subr.mxu0 0.0
    %7643 = vmatpush1.msra.mxu0 0.0
    %7644 = vmatprep.subr.mxu0 0.0
    %7645 = vmatpush1.msra.mxu0 0.0
    %7646 = vmatprep.subr.mxu0 0.0
    %7647 = vmatpush1.msra.mxu0 0.0
    %7648 = vmatprep.subr.mxu0 0.0
    %7649 = vmatpush1.msra.mxu0 0.0
    %7650 = vmatprep.subr.mxu0 0.0
    %7651 = vmatpush1.msra.mxu0 0.0
    %7652 = vmatprep.subr.mxu0 0.0
    %7653 = vmatpush1.msra.mxu0 0.0
    %7654 = vmatprep.subr.mxu0 0.0
    %7655 = vmatpush1.msra.mxu0 0.0
    %7656 = vmatprep.subr.mxu0 0.0
    %7657 = vmatpush1.msra.mxu0 0.0
    %7658 = vmatprep.subr.mxu0 0.0
    %7659 = vmatpush1.msra.mxu0 0.0
    %7660 = vmatprep.subr.mxu0 0.0
    %7661 = vmatpush1.msra.mxu0 0.0
    %7662 = vmatprep.subr.mxu0 0.0
    %7663 = vmatpush1.msra.mxu0 0.0
    %7664 = vmatprep.subr.mxu0 0.0
    %7665 = vmatpush1.msra.mxu0 0.0
    %7666 = vmatprep.subr.mxu0 0.0
    %7667 = vmatpush1.msra.mxu0 %v116
    %7668 = vmatprep.subr.mxu0 0.0
    %7669 = vmatpush1.msra.mxu0 %v115
    %7670 = vmatprep.subr.mxu0 0.0
    %7671 = vmatpush1.msra.mxu0 %v114
    %7672 = vmatprep.subr.mxu0 0.0
    %7673 = vmatpush1.msra.mxu0 %v113
    %7674 = vmatprep.subr.mxu0 0.0
    %7675 = vmatpush2.msra.mxu0 0.0
    %7676 = vmatprep.subr.mxu0 0.0
    %7677 = vmatpush2.msra.mxu0 0.0
    %7678 = vmatprep.subr.mxu0 0.0
    %7679 = vmatpush2.msra.mxu0 0.0
    %7680 = vmatprep.subr.mxu0 0.0
    %7681 = vmatpush2.msra.mxu0 0.0
    %7682 = vmatprep.subr.mxu0 0.0
    %7683 = vmatpush2.msra.mxu0 0.0
    %7684 = vmatprep.subr.mxu0 0.0
    %7685 = vmatpush2.msra.mxu0 0.0
    %7686 = vmatprep.subr.mxu0 0.0
    %7687 = vmatpush2.msra.mxu0 0.0
    %7688 = vmatprep.subr.mxu0 0.0
    %7689 = vmatpush2.msra.mxu0 0.0
    %7690 = vmatprep.subr.mxu0 0.0
    %7691 = vmatpush2.msra.mxu0 0.0
    %7692 = vmatprep.subr.mxu0 0.0
    %7693 = vmatpush2.msra.mxu0 0.0
    %7694 = vmatprep.subr.mxu0 0.0
    %7695 = vmatpush2.msra.mxu0 0.0
    %7696 = vmatprep.subr.mxu0 0.0
    %7697 = vmatpush2.msra.mxu0 0.0
    %7698 = vmatprep.subr.mxu0 0.0
    %7699 = vmatpush2.msra.mxu0 0.0
    %7700 = vmatprep.subr.mxu0 0.0
    %7701 = vmatpush2.msra.mxu0 0.0
    %7702 = vmatprep.subr.mxu0 0.0
    %7703 = vmatpush2.msra.mxu0 0.0
    %7704 = vmatprep.subr.mxu0 0.0
    %7705 = vmatpush2.msra.mxu0 0.0
    %7706 = vmatprep.mubr.f32.mxu0 0.0
    %7707 = vmatmul.mubr.f32.gmra.mxu0 %v7640
    %v7708 = vpop.f32.mrf.mxu0
    %v7709 = vadd.f32 %v3762, %v7708
    %v7710 = vpop.f32.mrf.mxu0
    %7711 = vdwg.mxu0
    %v7712 = vmax.f32 %v7709, 0.0
    %v7714 = vsel %vm1361, %v7712, 0
    %7716 = vmatprep.subr.mxu0 0.0
    %7717 = vmatpush1.msra.mxu0 0.0
    %7718 = vmatprep.subr.mxu0 0.0
    %7719 = vmatpush1.msra.mxu0 0.0
    %7720 = vmatprep.subr.mxu0 0.0
    %7721 = vmatpush1.msra.mxu0 0.0
    %7722 = vmatprep.subr.mxu0 0.0
    %7723 = vmatpush1.msra.mxu0 0.0
    %7724 = vmatprep.subr.mxu0 0.0
    %7725 = vmatpush1.msra.mxu0 0.0
    %7726 = vmatprep.subr.mxu0 0.0
    %7727 = vmatpush1.msra.mxu0 0.0
    %7728 = vmatprep.subr.mxu0 0.0
    %7729 = vmatpush1.msra.mxu0 0.0
    %7730 = vmatprep.subr.mxu0 0.0
    %7731 = vmatpush1.msra.mxu0 0.0
    %7732 = vmatprep.subr.mxu0 0.0
    %7733 = vmatpush1.msra.mxu0 %v132
    %7734 = vmatprep.subr.mxu0 0.0
    %7735 = vmatpush1.msra.mxu0 %v131
    %7736 = vmatprep.subr.mxu0 0.0
    %7737 = vmatpush1.msra.mxu0 %v130
    %7738 = vmatprep.subr.mxu0 0.0
    %7739 = vmatpush1.msra.mxu0 %v129
    %7740 = vmatprep.subr.mxu0 0.0
    %7741 = vmatpush1.msra.mxu0 %v128
    %7742 = vmatprep.subr.mxu0 0.0
    %7743 = vmatpush1.msra.mxu0 %v127
    %7744 = vmatprep.subr.mxu0 0.0
    %7745 = vmatpush1.msra.mxu0 %v126
    %7746 = vmatprep.subr.mxu0 0.0
    %7747 = vmatpush1.msra.mxu0 %v125
    %7748 = vmatprep.subr.mxu0 0.0
    %7749 = vmatpush2.msra.mxu0 0.0
    %7750 = vmatprep.subr.mxu0 0.0
    %7751 = vmatpush2.msra.mxu0 0.0
    %7752 = vmatprep.subr.mxu0 0.0
    %7753 = vmatpush2.msra.mxu0 0.0
    %7754 = vmatprep.subr.mxu0 0.0
    %7755 = vmatpush2.msra.mxu0 0.0
    %7756 = vmatprep.subr.mxu0 0.0
    %7757 = vmatpush2.msra.mxu0 0.0
    %7758 = vmatprep.subr.mxu0 0.0
    %7759 = vmatpush2.msra.mxu0 0.0
    %7760 = vmatprep.subr.mxu0 0.0
    %7761 = vmatpush2.msra.mxu0 0.0
    %7762 = vmatprep.subr.mxu0 0.0
    %7763 = vmatpush2.msra.mxu0 0.0
    %7764 = vmatprep.subr.mxu0 0.0
    %7765 = vmatpush2.msra.mxu0 0.0
    %7766 = vmatprep.subr.mxu0 0.0
    %7767 = vmatpush2.msra.mxu0 0.0
    %7768 = vmatprep.subr.mxu0 0.0
    %7769 = vmatpush2.msra.mxu0 0.0
    %7770 = vmatprep.subr.mxu0 0.0
    %7771 = vmatpush2.msra.mxu0 0.0
    %7772 = vmatprep.subr.mxu0 0.0
    %7773 = vmatpush2.msra.mxu0 0.0
    %7774 = vmatprep.subr.mxu0 0.0
    %7775 = vmatpush2.msra.mxu0 0.0
    %7776 = vmatprep.subr.mxu0 0.0
    %7777 = vmatpush2.msra.mxu0 0.0
    %7778 = vmatprep.subr.mxu0 0.0
    %7779 = vmatpush2.msra.mxu0 0.0
    %7780 = vmatprep.mubr.f32.mxu0 0.0
    %7781 = vmatmul.mubr.f32.gmra.mxu0 %v7714
    %v7782 = vpop.f32.mrf.mxu0
    %v7783 = vadd.f32 %v3861, %v7782
    %v7784 = vpop.f32.mrf.mxu0
    %7785 = vdwg.mxu0
    %v7787 = vrot.slane %v7783, 1
    %v7788 = vrot.slane %v7783, 2
    %v7789 = vrot.slane %v7783, 3
    %v7790 = vrot.slane %v7783, 4
    %v7791 = vrot.slane %v7783, 5
    %v7792 = vrot.slane %v7783, 6
    %v7793 = vrot.slane %v7783, 7
    %v7802 = vadd.f32 %v7610, %v7783
    %v7803 = vadd.f32 %v7611, %v7787
    %v7804 = vadd.f32 %v7612, %v7788
    %v7805 = vadd.f32 %v7613, %v7789
    %v7806 = vadd.f32 %v7614, %v7790
    %v7807 = vadd.f32 %v7615, %v7791
    %v7808 = vadd.f32 %v7616, %v7792
    %v7809 = vadd.f32 %v7617, %v7793
    %v7818 = vrot.slane %v7803, 7
    %v7819 = vsel %vm177, %v7818, %v7802
    %v7820 = vrot.slane %v7804, 6
    %v7821 = vsel %vm180, %v7820, %v7819
    %v7822 = vrot.slane %v7805, 5
    %v7823 = vsel %vm183, %v7822, %v7821
    %v7824 = vrot.slane %v7806, 4
    %v7825 = vsel %vm186, %v7824, %v7823
    %v7826 = vrot.slane %v7807, 3
    %v7827 = vsel %vm189, %v7826, %v7825
    %v7828 = vrot.slane %v7808, 2
    %v7829 = vsel %vm192, %v7828, %v7827
    %v7830 = vrot.slane %v7809, 1
    %v7831 = vsel %vm195, %v7830, %v7829
    %v7833 = vsel %vm197, %v7831, 0.0
    %7834 = vadd.xlane.f32.xlu0 %v7833
    %v7835 = vpop.xlane.xlu0 %7834
    %v7836 = vmul.f32 %v7835, %v1147
    %v7838 = vrot.slane %v7836, 1
    %v7839 = vrot.slane %v7836, 2
    %v7840 = vrot.slane %v7836, 3
    %v7841 = vrot.slane %v7836, 4
    %v7842 = vrot.slane %v7836, 5
    %v7843 = vrot.slane %v7836, 6
    %v7844 = vrot.slane %v7836, 7
    %v7853 = vsub.f32 %v7802, %v7836
    %v7854 = vsub.f32 %v7803, %v7838
    %v7855 = vsub.f32 %v7804, %v7839
    %v7856 = vsub.f32 %v7805, %v7840
    %v7857 = vsub.f32 %v7806, %v7841
    %v7858 = vsub.f32 %v7807, %v7842
    %v7859 = vsub.f32 %v7808, %v7843
    %v7860 = vsub.f32 %v7809, %v7844
    %v7861 = vmul.f32 %v7853, %v7853
    %v7862 = vmul.f32 %v7854, %v7854
    %v7863 = vmul.f32 %v7855, %v7855
    %v7864 = vmul.f32 %v7856, %v7856
    %v7865 = vmul.f32 %v7857, %v7857
    %v7866 = vmul.f32 %v7858, %v7858
    %v7867 = vmul.f32 %v7859, %v7859
    %v7868 = vmul.f32 %v7860, %v7860
    %v7877 = vrot.slane %v7862, 7
    %v7878 = vsel %vm177, %v7877, %v7861
    %v7879 = vrot.slane %v7863, 6
    %v7880 = vsel %vm180, %v7879, %v7878
    %v7881 = vrot.slane %v7864, 5
    %v7882 = vsel %vm183, %v7881, %v7880
    %v7883 = vrot.slane %v7865, 4
    %v7884 = vsel %vm186, %v7883, %v7882
    %v7885 = vrot.slane %v7866, 3
    %v7886 = vsel %vm189, %v7885, %v7884
    %v7887 = vrot.slane %v7867, 2
    %v7888 = vsel %vm192, %v7887, %v7886
    %v7889 = vrot.slane %v7868, 1
    %v7890 = vsel %vm195, %v7889, %v7888
    %v7892 = vsel %vm197, %v7890, 0.0
    %7893 = vadd.xlane.f32.xlu0 %v7892
    %v7894 = vpop.xlane.xlu0 %7893
    %v7895 = vmul.f32 %v7894, %v1147
    %v7896 = vadd.f32 %v7895, 1e-05
    %v7897 = vrsqrt.pop %v7896
    %v7899 = vrot.slane %v7897, 1
    %v7900 = vrot.slane %v7897, 2
    %v7901 = vrot.slane %v7897, 3
    %v7902 = vrot.slane %v7897, 4
    %v7903 = vrot.slane %v7897, 5
    %v7904 = vrot.slane %v7897, 6
    %v7905 = vrot.slane %v7897, 7
    %v7914 = vmul.f32 %v7853, %v7897
    %v7915 = vmul.f32 %v7854, %v7899
    %v7916 = vmul.f32 %v7855, %v7900
    %v7917 = vmul.f32 %v7856, %v7901
    %v7918 = vmul.f32 %v7857, %v7902
    %v7919 = vmul.f32 %v7858, %v7903
    %v7920 = vmul.f32 %v7859, %v7904
    %v7921 = vmul.f32 %v7860, %v7905
    %v7922 = vmul.f32 %v7914, %v4074
    %v7923 = vmul.f32 %v7915, %v4074
    %v7924 = vmul.f32 %v7916, %v4074
    %v7925 = vmul.f32 %v7917, %v4074
    %v7926 = vmul.f32 %v7918, %v4074
    %v7927 = vmul.f32 %v7919, %v4074
    %v7928 = vmul.f32 %v7920, %v4074
    %v7929 = vmul.f32 %v7921, %v4074
    %v7930 = vadd.f32 %v7922, %v4086
    %v7931 = vadd.f32 %v7923, %v4086
    %v7932 = vadd.f32 %v7924, %v4086
    %v7933 = vadd.f32 %v7925, %v4086
    %v7934 = vadd.f32 %v7926, %v4086
    %v7935 = vadd.f32 %v7927, %v4086
    %v7936 = vadd.f32 %v7928, %v4086
    %v7937 = vadd.f32 %v7929, %v4086
    %7938 = vst.msk [vmem:[#allocation10 + $0x1] sm:$0x1] %vm4095, %v7930
    %7939 = vst.msk [vmem:[#allocation10 + $0x3] sm:$0x1] %vm4095, %v7931
    %7940 = vst.msk [vmem:[#allocation10 + $0x5] sm:$0x1] %vm4095, %v7932
    %7941 = vst.msk [vmem:[#allocation10 + $0x7] sm:$0x1] %vm4095, %v7933
    %7942 = vst.msk [vmem:[#allocation10 + $0x9] sm:$0x1] %vm4095, %v7934
    %7943 = vst.msk [vmem:[#allocation10 + $0xb] sm:$0x1] %vm4095, %v7935
    %7944 = vst.msk [vmem:[#allocation10 + $0xd] sm:$0x1] %vm4095, %v7936
    %7945 = vst.msk [vmem:[#allocation10 + $0xf] sm:$0x1] %vm4095, %v7937
    // Predicated region
    $region34: #{vit_forward.1} parent=1 // pred_check
      _
    $region35: #{vit_forward.1} parent=1 // pred_check_branch
      %7947 = sbr.rel (0) target = $region37
    $region36: #{vit_forward.1} parent=1 // pred_region
      %s7949 = ssub.s32 256, 256
      %7950 = vsyncadd [#allocation4], %s7949
      %s7951 = sshll.u32 [#allocation10], 4
      %s7952 = int_to_ptr.vmem [resolvable:$true] %s7951
      %7957 = dma.vmem_to_hbm [thread:$0]  %s7952, 256, %s4, [#allocation4], 32, 32, 2
    $region37: #{vit_forward.1} parent=1 // pred_fallthru
      _
    // Predicated region
    $region38: #{vit_forward.1} parent=1 // pred_check
      _
    $region39: #{vit_forward.1} parent=1 // pred_check_branch
      %7959 = sbr.rel (0) target = $region41
    $region40: #{vit_forward.1} parent=1 // pred_region
      %7960 = dma.done [#allocation4], 256
    $region41: #{vit_forward.1} parent=1 // pred_fallthru
      _
    %7961 = vsyncpa [#allocation3], 1
    %7962 = vsyncpa [#allocation6], 1
    %7963 = vsyncpa [#allocation9], 1
    %7964 = vsyncpa [#allocation4], 1

</llo_original>
